<compile_context>
chip_gen: v6e
topology: v6e:2x2x1
jax: 0.10.0
libtpu: 0.0.40
codegen_flags: <defaults>
</compile_context>

<pallas_src>
from functools import partial
from math import sqrt

import jax
import jax.numpy as jnp
from jax import lax
from jax.experimental import pallas as pl
from jax.experimental.pallas import tpu as pltpu

_SQRT_HALF = 0.7071067811865476
_BN_EPS = 1e-12
_LANE = 128      # channel (lane) dims padded to a multiple of this
_SUBLANE = 8
_TAPS = tuple((dy, dx) for dy in range(3) for dx in range(3))
_POOL = ((0, 0), (0, 1), (1, 0), (1, 1))      # 2x2 max-pool candidates

# TODO(synk): sweep tile_n and vmem_limit_bytes per chip generation (v7x has
# only 64 MiB physical VMEM -> keep headroom; v5e/v6e can go higher).
_COMPILER_PARAMS = pltpu.CompilerParams(
    dimension_semantics=("parallel",),
    vmem_limit_bytes=48 * 1024 * 1024,
)


def _round_up(x, m):
    return (x + m - 1) // m * m


def _erf_f32(z):
    # Abramowitz & Stegun 7.1.26 rational approximation (~1.5e-7 abs error),
    # i.e. float32-level parity with torch.nn.GELU()'s exact erf.
    a1, a2, a3, a4, a5 = (0.254829592, -0.284496736, 1.421413741,
                          -1.453152027, 1.061405429)
    p = 0.3275911
    s = jnp.where(z >= 0.0, 1.0, -1.0)
    za = jnp.abs(z)
    t = 1.0 / (1.0 + p * za)
    poly = ((((a5 * t + a4) * t + a3) * t + a2) * t + a1) * t
    return s * (1.0 - poly * jnp.exp(-za * za))


def _gelu(x):
    # exact (erf-form) GELU, matching torch.nn.GELU(approximate='none')
    return 0.5 * x * (1.0 + _erf_f32(x * _SQRT_HALF))


# --------------------------------------------------------------------------
# Kernel 1: conv1 (3x3 SAME, taps packed into K) + fused 2x2 max-pool
#           + per-tile BN1 stats
# --------------------------------------------------------------------------
def _conv1_pool_kernel(xp_ref, w_ref, y_ref, sum_ref, sq_ref, lhs_ref,
                       *, hh, wh, tb, cip, ktail):
    """xp_ref : (4, tb, hh+1, wh+1, cip) parity-split zero-padded input
                (plane 2*pr+pc holds x_pad[:, 2r+pr, 2c+pc, :]), matmul dtype.
       w_ref  : (kp1, cp) conv1 weights, taps packed along K (row t*cip + c).
       y_ref  : (tb, hh, wh, cp) raw conv1+pool output (pre-BN), matmul dtype.
       sum_ref/sq_ref : (1, 1, cp) per-tile channel sum / sum of squares, fp32.
       lhs_ref: (tb*hh*wh, kp1) packed-tap LHS scratch, matmul dtype.
    """
    tm = tb * hh * wh
    cp = w_ref.shape[-1]
    if ktail:
        # Keep the pad lanes of the packed LHS zero (the matching weight rows
        # are zero, but uninitialised VMEM could hold NaNs -> 0*NaN).  Cheap
        # (<= 120 lanes) and done every step so it never depends on which
        # core / order the grid runs in.
        lhs_ref[:, 9 * cip:] = jnp.zeros((tm, ktail), lhs_ref.dtype)
    y = None
    for di, dj in _POOL:                       # 2x2 pool candidates
        for t, (dy, dx) in enumerate(_TAPS):   # pack 9 taps into the K dim
            sy, sx = di + dy, dj + dx          # offsets in padded coords
            par = 2 * (sy % 2) + (sx % 2)      # parity plane
            ro, co = sy // 2, sx // 2          # offset within the plane
            sl = xp_ref[par, :, ro:ro + hh, co:co + wh, :]
            lhs_ref[:, t * cip:(t + 1) * cip] = sl.reshape(tm, cip)
        d = jnp.dot(lhs_ref[...], w_ref[...],
                    preferred_element_type=jnp.float32)   # one K=9*cip matmul
        y = d if y is None else jnp.maximum(y, d)         # running max (pool)
    y_ref[...] = y.astype(y_ref.dtype).reshape(y_ref.shape)
    # BN1 batch statistics in fp32.
    # TODO(synk): E[x^2]-E[x]^2 can cancel when |mean| >> std; switch to
    # shifted / Welford-style per-tile stats if that ever bites at eps=1e-12.
    sum_ref[...] = jnp.sum(y, axis=0, keepdims=True).reshape(1, 1, cp)
    sq_ref[...] = jnp.sum(y * y, axis=0, keepdims=True).reshape(1, 1, cp)


# --------------------------------------------------------------------------
# Kernel 2: BN1 (folded scale/shift) + GELU + conv2 (taps packed into K)
#           + per-tile BN2 stats
# --------------------------------------------------------------------------
def _bn1_gelu_conv2_kernel(y1_ref, scale_ref, shift_ref, w_ref,
                           y2_ref, sum_ref, sq_ref, apad_ref, lhs_ref,
                           *, hh, wh, tb):
    """y1_ref  : (tb, hh, wh, cp) raw conv1+pool tile, matmul dtype.
       scale_ref/shift_ref : (1, cp) folded BN1 scale / shift, fp32.
       w_ref   : (9*cp, cp) conv2 weights, taps packed along K.
       y2_ref  : (tb*hh*wh, cp) raw conv2 output (pre-BN2), matmul dtype.
       apad_ref: (tb, hh+2, wh+2, cp) zero-halo activation scratch (the halo
                 IS conv2's SAME padding), matmul dtype.
       lhs_ref : (tb*hh*wh, 9*cp) packed-tap LHS scratch, matmul dtype.
    """
    cp = w_ref.shape[-1]
    tm = tb * hh * wh
    zdt = apad_ref.dtype
    # Zero only the halo ring; the interior is fully rewritten every step.
    # Doing it every step keeps correctness independent of grid order and of
    # which TensorCore owns which grid slice (megacore on v7x).
    apad_ref[:, 0:1, :, :] = jnp.zeros((tb, 1, wh + 2, cp), zdt)
    apad_ref[:, hh + 1:hh + 2, :, :] = jnp.zeros((tb, 1, wh + 2, cp), zdt)
    apad_ref[:, :, 0:1, :] = jnp.zeros((tb, hh + 2, 1, cp), zdt)
    apad_ref[:, :, wh + 1:wh + 2, :] = jnp.zeros((tb, hh + 2, 1, cp), zdt)

    s = scale_ref[...].reshape(1, 1, 1, cp)
    b = shift_ref[...].reshape(1, 1, 1, cp)
    act = _gelu(y1_ref[...].astype(jnp.float32) * s + b)   # BN1 + GELU, fp32
    apad_ref[:, 1:hh + 1, 1:wh + 1, :] = act.astype(zdt)

    # Pack the 9 shifted slices into 128-aligned lane blocks of the K dim,
    # then a single matmul -- no per-tap accumulator read-modify-write.
    # TODO(synk): on v6e/v7x with cp=128 a K=256 tap-pair variant is
    # equivalent; the full 9-tap pack already keeps the MXU contraction full.
    for t, (dy, dx) in enumerate(_TAPS):
        sl = apad_ref[:, dy:dy + hh, dx:dx + wh, :]
        lhs_ref[:, t * cp:(t + 1) * cp] = sl.reshape(tm, cp)
    y2 = jnp.dot(lhs_ref[...], w_ref[...],
                 preferred_element_type=jnp.float32)
    y2_ref[...] = y2.astype(y2_ref.dtype)
    sum_ref[...] = jnp.sum(y2, axis=0, keepdims=True).reshape(1, 1, cp)
    sq_ref[...] = jnp.sum(y2 * y2, axis=0, keepdims=True).reshape(1, 1, cp)


# --------------------------------------------------------------------------
# Kernel 3: BN2 (folded) + GELU, pointwise and lane-dense
# --------------------------------------------------------------------------
def _bn2_gelu_kernel(y_ref, scale_ref, shift_ref, o_ref):
    o_ref[...] = _gelu(y_ref[...].astype(jnp.float32) * scale_ref[...]
                       + shift_ref[...])


# --------------------------------------------------------------------------
# Wrapper
# --------------------------------------------------------------------------
def convgroup_forward(x_nchw, params, *, tile_n=None,
                      matmul_dtype=jnp.bfloat16):
    """ConvGroup forward.  x_nchw: (N, Cin, H, W) fp32; returns NCHW fp32."""
    w1, w2 = params["w1"], params["w2"]
    N, Cin, H, W = x_nchw.shape
    Cout = w1.shape[0]
    assert H % 2 == 0 and W % 2 == 0, "even spatial dims required (2x2 pool)"
    hh, wh = H // 2, W // 2
    # TODO(synk): support wh % 8 != 0 (airbench's 8x8 stages, wh=4) by padding
    # W to a sublane multiple and masking the pad columns out of the BN stats.
    assert wh % _SUBLANE == 0, "W//2 must be a multiple of 8 for this kernel"
    if tile_n is None:
        tile_n = max(d for d in range(1, min(N, 8) + 1) if N % d == 0)
    assert N % tile_n == 0, "tile_n must divide the batch"
    ntiles = N // tile_n
    tm = tile_n * hh * wh                 # output rows per grid step
    m_total = N * hh * wh
    cip = _round_up(Cin, _SUBLANE)        # conv1 per-tap channel depth
    cp = _round_up(Cout, _LANE)           # lane-dense channel width
    kp1 = _round_up(9 * cip, _LANE)       # conv1 packed contraction depth
    kp2 = 9 * cp                          # conv2 packed contraction depth
    mm_bytes = jnp.dtype(matmul_dtype).itemsize

    # ----------------- plain-JAX glue: layout prep (O(input) traffic) -------
    x = jnp.transpose(x_nchw, (0, 2, 3, 1))                      # NCHW->NHWC
    x = jnp.pad(x, ((0, 0), (1, 1), (1, 1), (0, cip - Cin)))     # SAME pad
    # parity split, parity-major / batch-contiguous:
    #   xp[2*pr + pc, n, r, c, :] = x_pad[n, 2r + pr, 2c + pc, :]
    xp = x.reshape(N, hh + 1, 2, wh + 1, 2, cip)
    xp = jnp.transpose(xp, (2, 4, 0, 1, 3, 5))
    xp = xp.reshape(4, N, hh + 1, wh + 1, cip).astype(matmul_dtype)

    def repack(w, ci_pad, co_pad):        # OIHW -> (9*ci_pad, co_pad)
        co, ci = w.shape[0], w.shape[1]
        wt = jnp.transpose(w, (2, 3, 1, 0)).reshape(9, ci, co)   # tap-major
        wt = jnp.pad(wt, ((0, 0), (0, ci_pad - ci), (0, co_pad - co)))
        return wt.reshape(9 * ci_pad, co_pad).astype(matmul_dtype)

    w1p = jnp.pad(repack(w1, cip, cp), ((0, kp1 - 9 * cip), (0, 0)))
    w2p = repack(w2, cp, cp)              # (9*cp, cp), already lane aligned

    def pad_c(v):
        return jnp.pad(v.astype(jnp.float32), (0, cp - Cout)).reshape(1, cp)

    g1p, b1p = pad_c(params["g1"]), pad_c(params["b1"])
    g2p, b2p = pad_c(params["g2"]), pad_c(params["b2"])

    # ----------------- pass 1: conv1 + 2x2 max-pool + BN1 partial stats -----
    y1_raw, s1, q1 = pl.pallas_call(
        partial(_conv1_pool_kernel, hh=hh, wh=wh, tb=tile_n, cip=cip,
                ktail=kp1 - 9 * cip),
        out_shape=(
            jax.ShapeDtypeStruct((N, hh, wh, cp), matmul_dtype),
            jax.ShapeDtypeStruct((ntiles, 1, cp), jnp.float32),
            jax.ShapeDtypeStruct((ntiles, 1, cp), jnp.float32),
        ),
        grid=(ntiles,),
        in_specs=[
            pl.BlockSpec((4, tile_n, hh + 1, wh + 1, cip),
                         lambda n: (0, n, 0, 0, 0)),
            pl.BlockSpec((kp1, cp), lambda n: (0, 0)),
        ],
        out_specs=(
            pl.BlockSpec((tile_n, hh, wh, cp), lambda n: (n, 0, 0, 0)),
            pl.BlockSpec((1, 1, cp), lambda n: (n, 0, 0)),
            pl.BlockSpec((1, 1, cp), lambda n: (n, 0, 0)),
        ),
        scratch_shapes=[pltpu.VMEM((tm, kp1), matmul_dtype)],
        compiler_params=_COMPILER_PARAMS,
        cost_estimate=pl.CostEstimate(
            flops=2 * 4 * m_total * kp1 * cp,
            transcendentals=0,
            bytes_accessed=(xp.size + w1p.size + m_total * cp) * mm_bytes
                           + 2 * ntiles * cp * 4,
        ),
    )(xp, w1p)

    # tiny cross-tile reduction -> folded BN1 scale/shift (training stats)
    mean1 = jnp.sum(s1, axis=0) / m_total                       # (1, cp)
    var1 = jnp.maximum(jnp.sum(q1, axis=0) / m_total - mean1 * mean1, 0.0)
    scale1 = g1p * lax.rsqrt(var1 + _BN_EPS)
    shift1 = b1p - mean1 * scale1

    # ----------------- pass 2: BN1 + GELU + conv2 + BN2 partial stats -------
    y2_raw, s2, q2 = pl.pallas_call(
        partial(_bn1_gelu_conv2_kernel, hh=hh, wh=wh, tb=tile_n),
        out_shape=(
            jax.ShapeDtypeStruct((m_total, cp), matmul_dtype),
            jax.ShapeDtypeStruct((ntiles, 1, cp), jnp.float32),
            jax.ShapeDtypeStruct((ntiles, 1, cp), jnp.float32),
        ),
        grid=(ntiles,),
        in_specs=[
            pl.BlockSpec((tile_n, hh, wh, cp), lambda n: (n, 0, 0, 0)),
            pl.BlockSpec((1, cp), lambda n: (0, 0)),
            pl.BlockSpec((1, cp), lambda n: (0, 0)),
            pl.BlockSpec((kp2, cp), lambda n: (0, 0)),
        ],
        out_specs=(
            pl.BlockSpec((tm, cp), lambda n: (n, 0)),
            pl.BlockSpec((1, 1, cp), lambda n: (n, 0, 0)),
            pl.BlockSpec((1, 1, cp), lambda n: (n, 0, 0)),
        ),
        scratch_shapes=[
            pltpu.VMEM((tile_n, hh + 2, wh + 2, cp), matmul_dtype),
            pltpu.VMEM((tm, kp2), matmul_dtype),
        ],
        compiler_params=_COMPILER_PARAMS,
        cost_estimate=pl.CostEstimate(
            flops=2 * m_total * kp2 * cp,
            transcendentals=m_total * cp,
            bytes_accessed=(2 * m_total * cp + w2p.size) * mm_bytes
                           + 2 * ntiles * cp * 4,
        ),
    )(y1_raw, scale1, shift1, w2p)

    mean2 = jnp.sum(s2, axis=0) / m_total
    var2 = jnp.maximum(jnp.sum(q2, axis=0) / m_total - mean2 * mean2, 0.0)
    scale2 = g2p * lax.rsqrt(var2 + _BN_EPS)
    shift2 = b2p - mean2 * scale2

    # ----------------- pass 3: BN2 + GELU (pointwise, lane-dense) -----------
    tm3 = m_total
    for cand in (8192, 4096, 2048, 1024, 512, 256, 128, 64, 32, 16, 8):
        if cand <= m_total and m_total % cand == 0:
            tm3 = cand
            break
    # TODO(synk): when chaining ConvGroups, fold BN2+GELU into the next
    # group's conv1 kernel (same trick as BN1 -> conv2 here) and keep NHWC to
    # skip this pass and the final transpose entirely.
    out_flat = pl.pallas_call(
        _bn2_gelu_kernel,
        out_shape=jax.ShapeDtypeStruct((m_total, cp), jnp.float32),
        grid=(m_total // tm3,),
        in_specs=[
            pl.BlockSpec((tm3, cp), lambda n: (n, 0)),
            pl.BlockSpec((1, cp), lambda n: (0, 0)),
            pl.BlockSpec((1, cp), lambda n: (0, 0)),
        ],
        out_specs=pl.BlockSpec((tm3, cp), lambda n: (n, 0)),
        compiler_params=_COMPILER_PARAMS,
        cost_estimate=pl.CostEstimate(
            flops=6 * m_total * cp,
            transcendentals=m_total * cp,
            bytes_accessed=m_total * cp * (mm_bytes + 4),
        ),
    )(y2_raw, scale2, shift2)

    out = out_flat.reshape(N, hh, wh, cp)[:, :, :, :Cout]
    return jnp.transpose(out, (0, 3, 1, 2))                    # NHWC -> NCHW


# ----------------------- deterministic parameter init ----------------------
def init_params(key, cin, cout):
    k1, k2 = jax.random.split(key)

    def conv_w(k, ci, co):
        # PyTorch Conv2d default init bound, then dirac_ on the first ci filters
        bound = 1.0 / float(sqrt(ci * 9))
        w = jax.random.uniform(k, (co, ci, 3, 3), jnp.float32, -bound, bound)
        n = min(ci, co)
        dirac = jnp.zeros((n, ci, 3, 3), jnp.float32).at[
            jnp.arange(n), jnp.arange(n), 1, 1].set(1.0)
        return w.at[:n].set(dirac)

    return dict(
        w1=conv_w(k1, cin, cout),
        w2=conv_w(k2, cout, cout),
        g1=jnp.ones((cout,), jnp.float32),    # BatchNorm weight (frozen at 1)
        b1=jnp.zeros((cout,), jnp.float32),   # BatchNorm bias
        g2=jnp.ones((cout,), jnp.float32),
        b2=jnp.zeros((cout,), jnp.float32),
    )


# --------------------------- pure-JAX reference ----------------------------
def _reference_forward(x_nchw, params, matmul_dtype=jnp.float32):
    """Reference that mirrors the kernel's matmul-operand and intermediate
    rounding (identity when matmul_dtype=float32)."""
    def conv(x, w):
        return lax.conv_general_dilated(
            x.astype(matmul_dtype), w.astype(matmul_dtype), (1, 1), "SAME",
            dimension_numbers=("NCHW", "OIHW", "NCHW"),
            preferred_element_type=jnp.float32)

    def bn(x, gamma, beta):
        mean = jnp.mean(x, axis=(0, 2, 3), keepdims=True)
        var = jnp.mean((x - mean) ** 2, axis=(0, 2, 3), keepdims=True)
        xh = (x - mean) / jnp.sqrt(var + _BN_EPS)
        return xh * gamma.reshape(1, -1, 1, 1) + beta.reshape(1, -1, 1, 1)

    def gelu(x):
        return 0.5 * x * (1.0 + jax.scipy.special.erf(x * _SQRT_HALF))

    def round_i(x):   # emulate the kernel's matmul-dtype intermediates
        return x.astype(matmul_dtype).astype(jnp.float32)

    x = conv(x_nchw, params["w1"])
    x = lax.reduce_window(x, -jnp.inf, lax.max, (1, 1, 2, 2), (1, 1, 2, 2),
                          "VALID")
    x = round_i(x)
    x = gelu(bn(x, params["g1"], params["b1"]))
    x = conv(x, params["w2"])
    x = round_i(x)
    x = gelu(bn(x, params["g2"], params["b2"]))
    return x


if __name__ == "__main__":
    key = jax.random.PRNGKey(0)
    kx, kp = jax.random.split(key)

    N, Cin, Cout, H, W = 2, 4, 8, 16, 16
    x = jax.random.normal(kx, (N, Cin, H, W), jnp.float32)
    params = init_params(kp, Cin, Cout)

    # Fast path: bf16 MXU operands + bf16 intermediates, fp32 accumulation /
    # BN / GELU math.
    out = jax.jit(convgroup_forward)(x, params)
    out = jax.block_until_ready(out)
    assert out.shape == (N, Cout, H // 2, W // 2), out.shape

    ref_bf16 = _reference_forward(x, params, matmul_dtype=jnp.bfloat16)
    err_bf16 = float(jnp.max(jnp.abs(out - ref_bf16)))
    assert err_bf16 < 5e-2, f"bf16 path mismatch, max abs err = {err_bf16}"

    # Exact-parity path: fp32 matmul operands & intermediates, tight tolerance
    # vs the fp32 PyTorch module semantics.
    out_f32 = jax.jit(
        lambda xx, pp: convgroup_forward(xx, pp, matmul_dtype=jnp.float32)
    )(x, params)
    out_f32 = jax.block_until_ready(out_f32)
    ref_f32 = _reference_forward(x, params, matmul_dtype=jnp.float32)
    err_f32 = float(jnp.max(jnp.abs(out_f32 - ref_f32)))
    assert err_f32 < 1e-3, f"fp32 path mismatch, max abs err = {err_f32}"

    print("KERNEL_OK")
</pallas_src>

<mosaic_0001>
module attributes {stable_mosaic.version = 11 : i64} {
  func.func @_conv1_pool_kernel(%arg0: i32, %arg1: memref<4x2x9x9x8xbf16, #tpu.memory_space<vmem>>, %arg2: memref<128x128xbf16, #tpu.memory_space<vmem>>, %arg3: memref<2x8x8x128xbf16, #tpu.memory_space<vmem>>, %arg4: memref<1x1x128xf32, #tpu.memory_space<vmem>>, %arg5: memref<1x1x128xf32, #tpu.memory_space<vmem>>, %arg6: memref<128x128xbf16, #tpu.memory_space<vmem>>) attributes {dimension_semantics = [#tpu.dimension_semantics<parallel>], iteration_bounds = array<i64: 1>, scalar_prefetch = 0 : i64, scratch_operands = 1 : i64, tpu.core_type = #tpu.core_type<tc>, window_params = [{transform_indices = @transform_0, window_bounds = array<i64: 4, 2, 9, 9, 8>}, {pipeline_mode = #tpu.pipeline_mode<synchronous>, transform_indices = @transform_1, window_bounds = array<i64: 128, 128>}, {transform_indices = @transform_2, window_bounds = array<i64: 2, 8, 8, 128>}, {transform_indices = @transform_3, window_bounds = array<i64: 1, 1, 128>}, {transform_indices = @transform_4, window_bounds = array<i64: 1, 1, 128>}]} {
    %cst = arith.constant 0.000000e+00 : bf16
    %0 = vector.broadcast %cst : bf16 to vector<128x56xbf16>
    %c0 = arith.constant 0 : index
    %c72 = arith.constant 72 : index
    %1 = vector.load %arg6[%c0, %c72] : memref<128x128xbf16, #tpu.memory_space<vmem>>, vector<128x56xbf16>
    tpu.vector_store %arg6[%c0, %c72], %0 {strides = array<i32>} : memref<128x128xbf16, #tpu.memory_space<vmem>>, vector<128x56xbf16>,
    %c0_0 = arith.constant 0 : index
    %c0_1 = arith.constant 0 : index
    %c0_2 = arith.constant 0 : index
    %c0_3 = arith.constant 0 : index
    %c0_4 = arith.constant 0 : index
    %2 = vector.load %arg1[%c0_0, %c0_1, %c0_2, %c0_3, %c0_4] : memref<4x2x9x9x8xbf16, #tpu.memory_space<vmem>>, vector<1x2x8x8x8xbf16>
    %3 = vector.shape_cast %2 : vector<1x2x8x8x8xbf16> to vector<2x8x8x8xbf16>
    %4 = vector.shape_cast %3 : vector<2x8x8x8xbf16> to vector<128x8xbf16>
    %c0_5 = arith.constant 0 : index
    %c0_6 = arith.constant 0 : index
    %5 = vector.load %arg6[%c0_5, %c0_6] : memref<128x128xbf16, #tpu.memory_space<vmem>>, vector<128x8xbf16>
    tpu.vector_store %arg6[%c0_5, %c0_6], %4 {strides = array<i32>} : memref<128x128xbf16, #tpu.memory_space<vmem>>, vector<128x8xbf16>,
    %c1 = arith.constant 1 : index
    %c0_7 = arith.constant 0 : index
    %c0_8 = arith.constant 0 : index
    %c0_9 = arith.constant 0 : index
    %c0_10 = arith.constant 0 : index
    %6 = vector.load %arg1[%c1, %c0_7, %c0_8, %c0_9, %c0_10] : memref<4x2x9x9x8xbf16, #tpu.memory_space<vmem>>, vector<1x2x8x8x8xbf16>
    %7 = vector.shape_cast %6 : vector<1x2x8x8x8xbf16> to vector<2x8x8x8xbf16>
    %8 = vector.shape_cast %7 : vector<2x8x8x8xbf16> to vector<128x8xbf16>
    %c0_11 = arith.constant 0 : index
    %c8 = arith.constant 8 : index
    %9 = vector.load %arg6[%c0_11, %c8] : memref<128x128xbf16, #tpu.memory_space<vmem>>, vector<128x8xbf16>
    tpu.vector_store %arg6[%c0_11, %c8], %8 {strides = array<i32>} : memref<128x128xbf16, #tpu.memory_space<vmem>>, vector<128x8xbf16>,
    %c0_12 = arith.constant 0 : index
    %c0_13 = arith.constant 0 : index
    %c0_14 = arith.constant 0 : index
    %c1_15 = arith.constant 1 : index
    %c0_16 = arith.constant 0 : index
    %10 = vector.load %arg1[%c0_12, %c0_13, %c0_14, %c1_15, %c0_16] : memref<4x2x9x9x8xbf16, #tpu.memory_space<vmem>>, vector<1x2x8x8x8xbf16>
    %11 = vector.shape_cast %10 : vector<1x2x8x8x8xbf16> to vector<2x8x8x8xbf16>
    %12 = vector.shape_cast %11 : vector<2x8x8x8xbf16> to vector<128x8xbf16>
    %c0_17 = arith.constant 0 : index
    %c16 = arith.constant 16 : index
    %13 = vector.load %arg6[%c0_17, %c16] : memref<128x128xbf16, #tpu.memory_space<vmem>>, vector<128x8xbf16>
    tpu.vector_store %arg6[%c0_17, %c16], %12 {strides = array<i32>} : memref<128x128xbf16, #tpu.memory_space<vmem>>, vector<128x8xbf16>,
    %c2 = arith.constant 2 : index
    %c0_18 = arith.constant 0 : index
    %c0_19 = arith.constant 0 : index
    %c0_20 = arith.constant 0 : index
    %c0_21 = arith.constant 0 : index
    %14 = vector.load %arg1[%c2, %c0_18, %c0_19, %c0_20, %c0_21] : memref<4x2x9x9x8xbf16, #tpu.memory_space<vmem>>, vector<1x2x8x8x8xbf16>
    %15 = vector.shape_cast %14 : vector<1x2x8x8x8xbf16> to vector<2x8x8x8xbf16>
    %16 = vector.shape_cast %15 : vector<2x8x8x8xbf16> to vector<128x8xbf16>
    %c0_22 = arith.constant 0 : index
    %c24 = arith.constant 24 : index
    %17 = vector.load %arg6[%c0_22, %c24] : memref<128x128xbf16, #tpu.memory_space<vmem>>, vector<128x8xbf16>
    tpu.vector_store %arg6[%c0_22, %c24], %16 {strides = array<i32>} : memref<128x128xbf16, #tpu.memory_space<vmem>>, vector<128x8xbf16>,
    %c3 = arith.constant 3 : index
    %c0_23 = arith.constant 0 : index
    %c0_24 = arith.constant 0 : index
    %c0_25 = arith.constant 0 : index
    %c0_26 = arith.constant 0 : index
    %18 = vector.load %arg1[%c3, %c0_23, %c0_24, %c0_25, %c0_26] : memref<4x2x9x9x8xbf16, #tpu.memory_space<vmem>>, vector<1x2x8x8x8xbf16>
    %19 = vector.shape_cast %18 : vector<1x2x8x8x8xbf16> to vector<2x8x8x8xbf16>
    %20 = vector.shape_cast %19 : vector<2x8x8x8xbf16> to vector<128x8xbf16>
    %c0_27 = arith.constant 0 : index
    %c32 = arith.constant 32 : index
    %21 = vector.load %arg6[%c0_27, %c32] : memref<128x128xbf16, #tpu.memory_space<vmem>>, vector<128x8xbf16>
    tpu.vector_store %arg6[%c0_27, %c32], %20 {strides = array<i32>} : memref<128x128xbf16, #tpu.memory_space<vmem>>, vector<128x8xbf16>,
    %c2_28 = arith.constant 2 : index
    %c0_29 = arith.constant 0 : index
    %c0_30 = arith.constant 0 : index
    %c1_31 = arith.constant 1 : index
    %c0_32 = arith.constant 0 : index
    %22 = vector.load %arg1[%c2_28, %c0_29, %c0_30, %c1_31, %c0_32] : memref<4x2x9x9x8xbf16, #tpu.memory_space<vmem>>, vector<1x2x8x8x8xbf16>
    %23 = vector.shape_cast %22 : vector<1x2x8x8x8xbf16> to vector<2x8x8x8xbf16>
    %24 = vector.shape_cast %23 : vector<2x8x8x8xbf16> to vector<128x8xbf16>
    %c0_33 = arith.constant 0 : index
    %c40 = arith.constant 40 : index
    %25 = vector.load %arg6[%c0_33, %c40] : memref<128x128xbf16, #tpu.memory_space<vmem>>, vector<128x8xbf16>
    tpu.vector_store %arg6[%c0_33, %c40], %24 {strides = array<i32>} : memref<128x128xbf16, #tpu.memory_space<vmem>>, vector<128x8xbf16>,
    %c0_34 = arith.constant 0 : index
    %c0_35 = arith.constant 0 : index
    %c1_36 = arith.constant 1 : index
    %c0_37 = arith.constant 0 : index
    %c0_38 = arith.constant 0 : index
    %26 = vector.load %arg1[%c0_34, %c0_35, %c1_36, %c0_37, %c0_38] : memref<4x2x9x9x8xbf16, #tpu.memory_space<vmem>>, vector<1x2x8x8x8xbf16>
    %27 = vector.shape_cast %26 : vector<1x2x8x8x8xbf16> to vector<2x8x8x8xbf16>
    %28 = vector.shape_cast %27 : vector<2x8x8x8xbf16> to vector<128x8xbf16>
    %c0_39 = arith.constant 0 : index
    %c48 = arith.constant 48 : index
    %29 = vector.load %arg6[%c0_39, %c48] : memref<128x128xbf16, #tpu.memory_space<vmem>>, vector<128x8xbf16>
    tpu.vector_store %arg6[%c0_39, %c48], %28 {strides = array<i32>} : memref<128x128xbf16, #tpu.memory_space<vmem>>, vector<128x8xbf16>,
    %c1_40 = arith.constant 1 : index
    %c0_41 = arith.constant 0 : index
    %c1_42 = arith.constant 1 : index
    %c0_43 = arith.constant 0 : index
    %c0_44 = arith.constant 0 : index
    %30 = vector.load %arg1[%c1_40, %c0_41, %c1_42, %c0_43, %c0_44] : memref<4x2x9x9x8xbf16, #tpu.memory_space<vmem>>, vector<1x2x8x8x8xbf16>
    %31 = vector.shape_cast %30 : vector<1x2x8x8x8xbf16> to vector<2x8x8x8xbf16>
    %32 = vector.shape_cast %31 : vector<2x8x8x8xbf16> to vector<128x8xbf16>
    %c0_45 = arith.constant 0 : index
    %c56 = arith.constant 56 : index
    %33 = vector.load %arg6[%c0_45, %c56] : memref<128x128xbf16, #tpu.memory_space<vmem>>, vector<128x8xbf16>
    tpu.vector_store %arg6[%c0_45, %c56], %32 {strides = array<i32>} : memref<128x128xbf16, #tpu.memory_space<vmem>>, vector<128x8xbf16>,
    %c0_46 = arith.constant 0 : index
    %c0_47 = arith.constant 0 : index
    %c1_48 = arith.constant 1 : index
    %c1_49 = arith.constant 1 : index
    %c0_50 = arith.constant 0 : index
    %34 = vector.load %arg1[%c0_46, %c0_47, %c1_48, %c1_49, %c0_50] : memref<4x2x9x9x8xbf16, #tpu.memory_space<vmem>>, vector<1x2x8x8x8xbf16>
    %35 = vector.shape_cast %34 : vector<1x2x8x8x8xbf16> to vector<2x8x8x8xbf16>
    %36 = vector.shape_cast %35 : vector<2x8x8x8xbf16> to vector<128x8xbf16>
    %c0_51 = arith.constant 0 : index
    %c64 = arith.constant 64 : index
    %37 = vector.load %arg6[%c0_51, %c64] : memref<128x128xbf16, #tpu.memory_space<vmem>>, vector<128x8xbf16>
    tpu.vector_store %arg6[%c0_51, %c64], %36 {strides = array<i32>} : memref<128x128xbf16, #tpu.memory_space<vmem>>, vector<128x8xbf16>,
    %c0_52 = arith.constant 0 : index
    %c0_53 = arith.constant 0 : index
    %38 = vector.load %arg6[%c0_52, %c0_53] : memref<128x128xbf16, #tpu.memory_space<vmem>>, vector<128x128xbf16>
    %c0_54 = arith.constant 0 : index
    %c0_55 = arith.constant 0 : index
    %39 = vector.load %arg2[%c0_54, %c0_55] : memref<128x128xbf16, #tpu.memory_space<vmem>>, vector<128x128xbf16>
    %cst_56 = arith.constant dense<0.000000e+00> : vector<128x128xf32>
    %40 = tpu.matmul %38, %39, %cst_56 {dimension_numbers = #tpu.dot_dimension_numbers<[1], [0], [0], [1], [0, 0, 1, 1], [], []>} : vector<128x128xbf16>, vector<128x128xbf16>, vector<128x128xf32> -> vector<128x128xf32>
    %c1_57 = arith.constant 1 : index
    %c0_58 = arith.constant 0 : index
    %c0_59 = arith.constant 0 : index
    %c0_60 = arith.constant 0 : index
    %c0_61 = arith.constant 0 : index
    %41 = vector.load %arg1[%c1_57, %c0_58, %c0_59, %c0_60, %c0_61] : memref<4x2x9x9x8xbf16, #tpu.memory_space<vmem>>, vector<1x2x8x8x8xbf16>
    %42 = vector.shape_cast %41 : vector<1x2x8x8x8xbf16> to vector<2x8x8x8xbf16>
    %43 = vector.shape_cast %42 : vector<2x8x8x8xbf16> to vector<128x8xbf16>
    %c0_62 = arith.constant 0 : index
    %c0_63 = arith.constant 0 : index
    %44 = vector.load %arg6[%c0_62, %c0_63] : memref<128x128xbf16, #tpu.memory_space<vmem>>, vector<128x8xbf16>
    tpu.vector_store %arg6[%c0_62, %c0_63], %43 {strides = array<i32>} : memref<128x128xbf16, #tpu.memory_space<vmem>>, vector<128x8xbf16>,
    %c0_64 = arith.constant 0 : index
    %c0_65 = arith.constant 0 : index
    %c0_66 = arith.constant 0 : index
    %c1_67 = arith.constant 1 : index
    %c0_68 = arith.constant 0 : index
    %45 = vector.load %arg1[%c0_64, %c0_65, %c0_66, %c1_67, %c0_68] : memref<4x2x9x9x8xbf16, #tpu.memory_space<vmem>>, vector<1x2x8x8x8xbf16>
    %46 = vector.shape_cast %45 : vector<1x2x8x8x8xbf16> to vector<2x8x8x8xbf16>
    %47 = vector.shape_cast %46 : vector<2x8x8x8xbf16> to vector<128x8xbf16>
    %c0_69 = arith.constant 0 : index
    %c8_70 = arith.constant 8 : index
    %48 = vector.load %arg6[%c0_69, %c8_70] : memref<128x128xbf16, #tpu.memory_space<vmem>>, vector<128x8xbf16>
    tpu.vector_store %arg6[%c0_69, %c8_70], %47 {strides = array<i32>} : memref<128x128xbf16, #tpu.memory_space<vmem>>, vector<128x8xbf16>,
    %c1_71 = arith.constant 1 : index
    %c0_72 = arith.constant 0 : index
    %c0_73 = arith.constant 0 : index
    %c1_74 = arith.constant 1 : index
    %c0_75 = arith.constant 0 : index
    %49 = vector.load %arg1[%c1_71, %c0_72, %c0_73, %c1_74, %c0_75] : memref<4x2x9x9x8xbf16, #tpu.memory_space<vmem>>, vector<1x2x8x8x8xbf16>
    %50 = vector.shape_cast %49 : vector<1x2x8x8x8xbf16> to vector<2x8x8x8xbf16>
    %51 = vector.shape_cast %50 : vector<2x8x8x8xbf16> to vector<128x8xbf16>
    %c0_76 = arith.constant 0 : index
    %c16_77 = arith.constant 16 : index
    %52 = vector.load %arg6[%c0_76, %c16_77] : memref<128x128xbf16, #tpu.memory_space<vmem>>, vector<128x8xbf16>
    tpu.vector_store %arg6[%c0_76, %c16_77], %51 {strides = array<i32>} : memref<128x128xbf16, #tpu.memory_space<vmem>>, vector<128x8xbf16>,
    %c3_78 = arith.constant 3 : index
    %c0_79 = arith.constant 0 : index
    %c0_80 = arith.constant 0 : index
    %c0_81 = arith.constant 0 : index
    %c0_82 = arith.constant 0 : index
    %53 = vector.load %arg1[%c3_78, %c0_79, %c0_80, %c0_81, %c0_82] : memref<4x2x9x9x8xbf16, #tpu.memory_space<vmem>>, vector<1x2x8x8x8xbf16>
    %54 = vector.shape_cast %53 : vector<1x2x8x8x8xbf16> to vector<2x8x8x8xbf16>
    %55 = vector.shape_cast %54 : vector<2x8x8x8xbf16> to vector<128x8xbf16>
    %c0_83 = arith.constant 0 : index
    %c24_84 = arith.constant 24 : index
    %56 = vector.load %arg6[%c0_83, %c24_84] : memref<128x128xbf16, #tpu.memory_space<vmem>>, vector<128x8xbf16>
    tpu.vector_store %arg6[%c0_83, %c24_84], %55 {strides = array<i32>} : memref<128x128xbf16, #tpu.memory_space<vmem>>, vector<128x8xbf16>,
    %c2_85 = arith.constant 2 : index
    %c0_86 = arith.constant 0 : index
    %c0_87 = arith.constant 0 : index
    %c1_88 = arith.constant 1 : index
    %c0_89 = arith.constant 0 : index
    %57 = vector.load %arg1[%c2_85, %c0_86, %c0_87, %c1_88, %c0_89] : memref<4x2x9x9x8xbf16, #tpu.memory_space<vmem>>, vector<1x2x8x8x8xbf16>
    %58 = vector.shape_cast %57 : vector<1x2x8x8x8xbf16> to vector<2x8x8x8xbf16>
    %59 = vector.shape_cast %58 : vector<2x8x8x8xbf16> to vector<128x8xbf16>
    %c0_90 = arith.constant 0 : index
    %c32_91 = arith.constant 32 : index
    %60 = vector.load %arg6[%c0_90, %c32_91] : memref<128x128xbf16, #tpu.memory_space<vmem>>, vector<128x8xbf16>
    tpu.vector_store %arg6[%c0_90, %c32_91], %59 {strides = array<i32>} : memref<128x128xbf16, #tpu.memory_space<vmem>>, vector<128x8xbf16>,
    %c3_92 = arith.constant 3 : index
    %c0_93 = arith.constant 0 : index
    %c0_94 = arith.constant 0 : index
    %c1_95 = arith.constant 1 : index
    %c0_96 = arith.constant 0 : index
    %61 = vector.load %arg1[%c3_92, %c0_93, %c0_94, %c1_95, %c0_96] : memref<4x2x9x9x8xbf16, #tpu.memory_space<vmem>>, vector<1x2x8x8x8xbf16>
    %62 = vector.shape_cast %61 : vector<1x2x8x8x8xbf16> to vector<2x8x8x8xbf16>
    %63 = vector.shape_cast %62 : vector<2x8x8x8xbf16> to vector<128x8xbf16>
    %c0_97 = arith.constant 0 : index
    %c40_98 = arith.constant 40 : index
    %64 = vector.load %arg6[%c0_97, %c40_98] : memref<128x128xbf16, #tpu.memory_space<vmem>>, vector<128x8xbf16>
    tpu.vector_store %arg6[%c0_97, %c40_98], %63 {strides = array<i32>} : memref<128x128xbf16, #tpu.memory_space<vmem>>, vector<128x8xbf16>,
    %c1_99 = arith.constant 1 : index
    %c0_100 = arith.constant 0 : index
    %c1_101 = arith.constant 1 : index
    %c0_102 = arith.constant 0 : index
    %c0_103 = arith.constant 0 : index
    %65 = vector.load %arg1[%c1_99, %c0_100, %c1_101, %c0_102, %c0_103] : memref<4x2x9x9x8xbf16, #tpu.memory_space<vmem>>, vector<1x2x8x8x8xbf16>
    %66 = vector.shape_cast %65 : vector<1x2x8x8x8xbf16> to vector<2x8x8x8xbf16>
    %67 = vector.shape_cast %66 : vector<2x8x8x8xbf16> to vector<128x8xbf16>
    %c0_104 = arith.constant 0 : index
    %c48_105 = arith.constant 48 : index
    %68 = vector.load %arg6[%c0_104, %c48_105] : memref<128x128xbf16, #tpu.memory_space<vmem>>, vector<128x8xbf16>
    tpu.vector_store %arg6[%c0_104, %c48_105], %67 {strides = array<i32>} : memref<128x128xbf16, #tpu.memory_space<vmem>>, vector<128x8xbf16>,
    %c0_106 = arith.constant 0 : index
    %c0_107 = arith.constant 0 : index
    %c1_108 = arith.constant 1 : index
    %c1_109 = arith.constant 1 : index
    %c0_110 = arith.constant 0 : index
    %69 = vector.load %arg1[%c0_106, %c0_107, %c1_108, %c1_109, %c0_110] : memref<4x2x9x9x8xbf16, #tpu.memory_space<vmem>>, vector<1x2x8x8x8xbf16>
    %70 = vector.shape_cast %69 : vector<1x2x8x8x8xbf16> to vector<2x8x8x8xbf16>
    %71 = vector.shape_cast %70 : vector<2x8x8x8xbf16> to vector<128x8xbf16>
    %c0_111 = arith.constant 0 : index
    %c56_112 = arith.constant 56 : index
    %72 = vector.load %arg6[%c0_111, %c56_112] : memref<128x128xbf16, #tpu.memory_space<vmem>>, vector<128x8xbf16>
    tpu.vector_store %arg6[%c0_111, %c56_112], %71 {strides = array<i32>} : memref<128x128xbf16, #tpu.memory_space<vmem>>, vector<128x8xbf16>,
    %c1_113 = arith.constant 1 : index
    %c0_114 = arith.constant 0 : index
    %c1_115 = arith.constant 1 : index
    %c1_116 = arith.constant 1 : index
    %c0_117 = arith.constant 0 : index
    %73 = vector.load %arg1[%c1_113, %c0_114, %c1_115, %c1_116, %c0_117] : memref<4x2x9x9x8xbf16, #tpu.memory_space<vmem>>, vector<1x2x8x8x8xbf16>
    %74 = vector.shape_cast %73 : vector<1x2x8x8x8xbf16> to vector<2x8x8x8xbf16>
    %75 = vector.shape_cast %74 : vector<2x8x8x8xbf16> to vector<128x8xbf16>
    %c0_118 = arith.constant 0 : index
    %c64_119 = arith.constant 64 : index
    %76 = vector.load %arg6[%c0_118, %c64_119] : memref<128x128xbf16, #tpu.memory_space<vmem>>, vector<128x8xbf16>
    tpu.vector_store %arg6[%c0_118, %c64_119], %75 {strides = array<i32>} : memref<128x128xbf16, #tpu.memory_space<vmem>>, vector<128x8xbf16>,
    %c0_120 = arith.constant 0 : index
    %c0_121 = arith.constant 0 : index
    %77 = vector.load %arg6[%c0_120, %c0_121] : memref<128x128xbf16, #tpu.memory_space<vmem>>, vector<128x128xbf16>
    %c0_122 = arith.constant 0 : index
    %c0_123 = arith.constant 0 : index
    %78 = vector.load %arg2[%c0_122, %c0_123] : memref<128x128xbf16, #tpu.memory_space<vmem>>, vector<128x128xbf16>
    %cst_124 = arith.constant dense<0.000000e+00> : vector<128x128xf32>
    %79 = tpu.matmul %77, %78, %cst_124 {dimension_numbers = #tpu.dot_dimension_numbers<[1], [0], [0], [1], [0, 0, 1, 1], [], []>} : vector<128x128xbf16>, vector<128x128xbf16>, vector<128x128xf32> -> vector<128x128xf32>
    %80 = arith.maximumf %40, %79 : vector<128x128xf32>
    %c2_125 = arith.constant 2 : index
    %c0_126 = arith.constant 0 : index
    %c0_127 = arith.constant 0 : index
    %c0_128 = arith.constant 0 : index
    %c0_129 = arith.constant 0 : index
    %81 = vector.load %arg1[%c2_125, %c0_126, %c0_127, %c0_128, %c0_129] : memref<4x2x9x9x8xbf16, #tpu.memory_space<vmem>>, vector<1x2x8x8x8xbf16>
    %82 = vector.shape_cast %81 : vector<1x2x8x8x8xbf16> to vector<2x8x8x8xbf16>
    %83 = vector.shape_cast %82 : vector<2x8x8x8xbf16> to vector<128x8xbf16>
    %c0_130 = arith.constant 0 : index
    %c0_131 = arith.constant 0 : index
    %84 = vector.load %arg6[%c0_130, %c0_131] : memref<128x128xbf16, #tpu.memory_space<vmem>>, vector<128x8xbf16>
    tpu.vector_store %arg6[%c0_130, %c0_131], %83 {strides = array<i32>} : memref<128x128xbf16, #tpu.memory_space<vmem>>, vector<128x8xbf16>,
    %c3_132 = arith.constant 3 : index
    %c0_133 = arith.constant 0 : index
    %c0_134 = arith.constant 0 : index
    %c0_135 = arith.constant 0 : index
    %c0_136 = arith.constant 0 : index
    %85 = vector.load %arg1[%c3_132, %c0_133, %c0_134, %c0_135, %c0_136] : memref<4x2x9x9x8xbf16, #tpu.memory_space<vmem>>, vector<1x2x8x8x8xbf16>
    %86 = vector.shape_cast %85 : vector<1x2x8x8x8xbf16> to vector<2x8x8x8xbf16>
    %87 = vector.shape_cast %86 : vector<2x8x8x8xbf16> to vector<128x8xbf16>
    %c0_137 = arith.constant 0 : index
    %c8_138 = arith.constant 8 : index
    %88 = vector.load %arg6[%c0_137, %c8_138] : memref<128x128xbf16, #tpu.memory_space<vmem>>, vector<128x8xbf16>
    tpu.vector_store %arg6[%c0_137, %c8_138], %87 {strides = array<i32>} : memref<128x128xbf16, #tpu.memory_space<vmem>>, vector<128x8xbf16>,
    %c2_139 = arith.constant 2 : index
    %c0_140 = arith.constant 0 : index
    %c0_141 = arith.constant 0 : index
    %c1_142 = arith.constant 1 : index
    %c0_143 = arith.constant 0 : index
    %89 = vector.load %arg1[%c2_139, %c0_140, %c0_141, %c1_142, %c0_143] : memref<4x2x9x9x8xbf16, #tpu.memory_space<vmem>>, vector<1x2x8x8x8xbf16>
    %90 = vector.shape_cast %89 : vector<1x2x8x8x8xbf16> to vector<2x8x8x8xbf16>
    %91 = vector.shape_cast %90 : vector<2x8x8x8xbf16> to vector<128x8xbf16>
    %c0_144 = arith.constant 0 : index
    %c16_145 = arith.constant 16 : index
    %92 = vector.load %arg6[%c0_144, %c16_145] : memref<128x128xbf16, #tpu.memory_space<vmem>>, vector<128x8xbf16>
    tpu.vector_store %arg6[%c0_144, %c16_145], %91 {strides = array<i32>} : memref<128x128xbf16, #tpu.memory_space<vmem>>, vector<128x8xbf16>,
    %c0_146 = arith.constant 0 : index
    %c0_147 = arith.constant 0 : index
    %c1_148 = arith.constant 1 : index
    %c0_149 = arith.constant 0 : index
    %c0_150 = arith.constant 0 : index
    %93 = vector.load %arg1[%c0_146, %c0_147, %c1_148, %c0_149, %c0_150] : memref<4x2x9x9x8xbf16, #tpu.memory_space<vmem>>, vector<1x2x8x8x8xbf16>
    %94 = vector.shape_cast %93 : vector<1x2x8x8x8xbf16> to vector<2x8x8x8xbf16>
    %95 = vector.shape_cast %94 : vector<2x8x8x8xbf16> to vector<128x8xbf16>
    %c0_151 = arith.constant 0 : index
    %c24_152 = arith.constant 24 : index
    %96 = vector.load %arg6[%c0_151, %c24_152] : memref<128x128xbf16, #tpu.memory_space<vmem>>, vector<128x8xbf16>
    tpu.vector_store %arg6[%c0_151, %c24_152], %95 {strides = array<i32>} : memref<128x128xbf16, #tpu.memory_space<vmem>>, vector<128x8xbf16>,
    %c1_153 = arith.constant 1 : index
    %c0_154 = arith.constant 0 : index
    %c1_155 = arith.constant 1 : index
    %c0_156 = arith.constant 0 : index
    %c0_157 = arith.constant 0 : index
    %97 = vector.load %arg1[%c1_153, %c0_154, %c1_155, %c0_156, %c0_157] : memref<4x2x9x9x8xbf16, #tpu.memory_space<vmem>>, vector<1x2x8x8x8xbf16>
    %98 = vector.shape_cast %97 : vector<1x2x8x8x8xbf16> to vector<2x8x8x8xbf16>
    %99 = vector.shape_cast %98 : vector<2x8x8x8xbf16> to vector<128x8xbf16>
    %c0_158 = arith.constant 0 : index
    %c32_159 = arith.constant 32 : index
    %100 = vector.load %arg6[%c0_158, %c32_159] : memref<128x128xbf16, #tpu.memory_space<vmem>>, vector<128x8xbf16>
    tpu.vector_store %arg6[%c0_158, %c32_159], %99 {strides = array<i32>} : memref<128x128xbf16, #tpu.memory_space<vmem>>, vector<128x8xbf16>,
    %c0_160 = arith.constant 0 : index
    %c0_161 = arith.constant 0 : index
    %c1_162 = arith.constant 1 : index
    %c1_163 = arith.constant 1 : index
    %c0_164 = arith.constant 0 : index
    %101 = vector.load %arg1[%c0_160, %c0_161, %c1_162, %c1_163, %c0_164] : memref<4x2x9x9x8xbf16, #tpu.memory_space<vmem>>, vector<1x2x8x8x8xbf16>
    %102 = vector.shape_cast %101 : vector<1x2x8x8x8xbf16> to vector<2x8x8x8xbf16>
    %103 = vector.shape_cast %102 : vector<2x8x8x8xbf16> to vector<128x8xbf16>
    %c0_165 = arith.constant 0 : index
    %c40_166 = arith.constant 40 : index
    %104 = vector.load %arg6[%c0_165, %c40_166] : memref<128x128xbf16, #tpu.memory_space<vmem>>, vector<128x8xbf16>
    tpu.vector_store %arg6[%c0_165, %c40_166], %103 {strides = array<i32>} : memref<128x128xbf16, #tpu.memory_space<vmem>>, vector<128x8xbf16>,
    %c2_167 = arith.constant 2 : index
    %c0_168 = arith.constant 0 : index
    %c1_169 = arith.constant 1 : index
    %c0_170 = arith.constant 0 : index
    %c0_171 = arith.constant 0 : index
    %105 = vector.load %arg1[%c2_167, %c0_168, %c1_169, %c0_170, %c0_171] : memref<4x2x9x9x8xbf16, #tpu.memory_space<vmem>>, vector<1x2x8x8x8xbf16>
    %106 = vector.shape_cast %105 : vector<1x2x8x8x8xbf16> to vector<2x8x8x8xbf16>
    %107 = vector.shape_cast %106 : vector<2x8x8x8xbf16> to vector<128x8xbf16>
    %c0_172 = arith.constant 0 : index
    %c48_173 = arith.constant 48 : index
    %108 = vector.load %arg6[%c0_172, %c48_173] : memref<128x128xbf16, #tpu.memory_space<vmem>>, vector<128x8xbf16>
    tpu.vector_store %arg6[%c0_172, %c48_173], %107 {strides = array<i32>} : memref<128x128xbf16, #tpu.memory_space<vmem>>, vector<128x8xbf16>,
    %c3_174 = arith.constant 3 : index
    %c0_175 = arith.constant 0 : index
    %c1_176 = arith.constant 1 : index
    %c0_177 = arith.constant 0 : index
    %c0_178 = arith.constant 0 : index
    %109 = vector.load %arg1[%c3_174, %c0_175, %c1_176, %c0_177, %c0_178] : memref<4x2x9x9x8xbf16, #tpu.memory_space<vmem>>, vector<1x2x8x8x8xbf16>
    %110 = vector.shape_cast %109 : vector<1x2x8x8x8xbf16> to vector<2x8x8x8xbf16>
    %111 = vector.shape_cast %110 : vector<2x8x8x8xbf16> to vector<128x8xbf16>
    %c0_179 = arith.constant 0 : index
    %c56_180 = arith.constant 56 : index
    %112 = vector.load %arg6[%c0_179, %c56_180] : memref<128x128xbf16, #tpu.memory_space<vmem>>, vector<128x8xbf16>
    tpu.vector_store %arg6[%c0_179, %c56_180], %111 {strides = array<i32>} : memref<128x128xbf16, #tpu.memory_space<vmem>>, vector<128x8xbf16>,
    %c2_181 = arith.constant 2 : index
    %c0_182 = arith.constant 0 : index
    %c1_183 = arith.constant 1 : index
    %c1_184 = arith.constant 1 : index
    %c0_185 = arith.constant 0 : index
    %113 = vector.load %arg1[%c2_181, %c0_182, %c1_183, %c1_184, %c0_185] : memref<4x2x9x9x8xbf16, #tpu.memory_space<vmem>>, vector<1x2x8x8x8xbf16>
    %114 = vector.shape_cast %113 : vector<1x2x8x8x8xbf16> to vector<2x8x8x8xbf16>
    %115 = vector.shape_cast %114 : vector<2x8x8x8xbf16> to vector<128x8xbf16>
    %c0_186 = arith.constant 0 : index
    %c64_187 = arith.constant 64 : index
    %116 = vector.load %arg6[%c0_186, %c64_187] : memref<128x128xbf16, #tpu.memory_space<vmem>>, vector<128x8xbf16>
    tpu.vector_store %arg6[%c0_186, %c64_187], %115 {strides = array<i32>} : memref<128x128xbf16, #tpu.memory_space<vmem>>, vector<128x8xbf16>,
    %c0_188 = arith.constant 0 : index
    %c0_189 = arith.constant 0 : index
    %117 = vector.load %arg6[%c0_188, %c0_189] : memref<128x128xbf16, #tpu.memory_space<vmem>>, vector<128x128xbf16>
    %c0_190 = arith.constant 0 : index
    %c0_191 = arith.constant 0 : index
    %118 = vector.load %arg2[%c0_190, %c0_191] : memref<128x128xbf16, #tpu.memory_space<vmem>>, vector<128x128xbf16>
    %cst_192 = arith.constant dense<0.000000e+00> : vector<128x128xf32>
    %119 = tpu.matmul %117, %118, %cst_192 {dimension_numbers = #tpu.dot_dimension_numbers<[1], [0], [0], [1], [0, 0, 1, 1], [], []>} : vector<128x128xbf16>, vector<128x128xbf16>, vector<128x128xf32> -> vector<128x128xf32>
    %120 = arith.maximumf %80, %119 : vector<128x128xf32>
    %c3_193 = arith.constant 3 : index
    %c0_194 = arith.constant 0 : index
    %c0_195 = arith.constant 0 : index
    %c0_196 = arith.constant 0 : index
    %c0_197 = arith.constant 0 : index
    %121 = vector.load %arg1[%c3_193, %c0_194, %c0_195, %c0_196, %c0_197] : memref<4x2x9x9x8xbf16, #tpu.memory_space<vmem>>, vector<1x2x8x8x8xbf16>
    %122 = vector.shape_cast %121 : vector<1x2x8x8x8xbf16> to vector<2x8x8x8xbf16>
    %123 = vector.shape_cast %122 : vector<2x8x8x8xbf16> to vector<128x8xbf16>
    %c0_198 = arith.constant 0 : index
    %c0_199 = arith.constant 0 : index
    %124 = vector.load %arg6[%c0_198, %c0_199] : memref<128x128xbf16, #tpu.memory_space<vmem>>, vector<128x8xbf16>
    tpu.vector_store %arg6[%c0_198, %c0_199], %123 {strides = array<i32>} : memref<128x128xbf16, #tpu.memory_space<vmem>>, vector<128x8xbf16>,
    %c2_200 = arith.constant 2 : index
    %c0_201 = arith.constant 0 : index
    %c0_202 = arith.constant 0 : index
    %c1_203 = arith.constant 1 : index
    %c0_204 = arith.constant 0 : index
    %125 = vector.load %arg1[%c2_200, %c0_201, %c0_202, %c1_203, %c0_204] : memref<4x2x9x9x8xbf16, #tpu.memory_space<vmem>>, vector<1x2x8x8x8xbf16>
    %126 = vector.shape_cast %125 : vector<1x2x8x8x8xbf16> to vector<2x8x8x8xbf16>
    %127 = vector.shape_cast %126 : vector<2x8x8x8xbf16> to vector<128x8xbf16>
    %c0_205 = arith.constant 0 : index
    %c8_206 = arith.constant 8 : index
    %128 = vector.load %arg6[%c0_205, %c8_206] : memref<128x128xbf16, #tpu.memory_space<vmem>>, vector<128x8xbf16>
    tpu.vector_store %arg6[%c0_205, %c8_206], %127 {strides = array<i32>} : memref<128x128xbf16, #tpu.memory_space<vmem>>, vector<128x8xbf16>,
    %c3_207 = arith.constant 3 : index
    %c0_208 = arith.constant 0 : index
    %c0_209 = arith.constant 0 : index
    %c1_210 = arith.constant 1 : index
    %c0_211 = arith.constant 0 : index
    %129 = vector.load %arg1[%c3_207, %c0_208, %c0_209, %c1_210, %c0_211] : memref<4x2x9x9x8xbf16, #tpu.memory_space<vmem>>, vector<1x2x8x8x8xbf16>
    %130 = vector.shape_cast %129 : vector<1x2x8x8x8xbf16> to vector<2x8x8x8xbf16>
    %131 = vector.shape_cast %130 : vector<2x8x8x8xbf16> to vector<128x8xbf16>
    %c0_212 = arith.constant 0 : index
    %c16_213 = arith.constant 16 : index
    %132 = vector.load %arg6[%c0_212, %c16_213] : memref<128x128xbf16, #tpu.memory_space<vmem>>, vector<128x8xbf16>
    tpu.vector_store %arg6[%c0_212, %c16_213], %131 {strides = array<i32>} : memref<128x128xbf16, #tpu.memory_space<vmem>>, vector<128x8xbf16>,
    %c1_214 = arith.constant 1 : index
    %c0_215 = arith.constant 0 : index
    %c1_216 = arith.constant 1 : index
    %c0_217 = arith.constant 0 : index
    %c0_218 = arith.constant 0 : index
    %133 = vector.load %arg1[%c1_214, %c0_215, %c1_216, %c0_217, %c0_218] : memref<4x2x9x9x8xbf16, #tpu.memory_space<vmem>>, vector<1x2x8x8x8xbf16>
    %134 = vector.shape_cast %133 : vector<1x2x8x8x8xbf16> to vector<2x8x8x8xbf16>
    %135 = vector.shape_cast %134 : vector<2x8x8x8xbf16> to vector<128x8xbf16>
    %c0_219 = arith.constant 0 : index
    %c24_220 = arith.constant 24 : index
    %136 = vector.load %arg6[%c0_219, %c24_220] : memref<128x128xbf16, #tpu.memory_space<vmem>>, vector<128x8xbf16>
    tpu.vector_store %arg6[%c0_219, %c24_220], %135 {strides = array<i32>} : memref<128x128xbf16, #tpu.memory_space<vmem>>, vector<128x8xbf16>,
    %c0_221 = arith.constant 0 : index
    %c0_222 = arith.constant 0 : index
    %c1_223 = arith.constant 1 : index
    %c1_224 = arith.constant 1 : index
    %c0_225 = arith.constant 0 : index
    %137 = vector.load %arg1[%c0_221, %c0_222, %c1_223, %c1_224, %c0_225] : memref<4x2x9x9x8xbf16, #tpu.memory_space<vmem>>, vector<1x2x8x8x8xbf16>
    %138 = vector.shape_cast %137 : vector<1x2x8x8x8xbf16> to vector<2x8x8x8xbf16>
    %139 = vector.shape_cast %138 : vector<2x8x8x8xbf16> to vector<128x8xbf16>
    %c0_226 = arith.constant 0 : index
    %c32_227 = arith.constant 32 : index
    %140 = vector.load %arg6[%c0_226, %c32_227] : memref<128x128xbf16, #tpu.memory_space<vmem>>, vector<128x8xbf16>
    tpu.vector_store %arg6[%c0_226, %c32_227], %139 {strides = array<i32>} : memref<128x128xbf16, #tpu.memory_space<vmem>>, vector<128x8xbf16>,
    %c1_228 = arith.constant 1 : index
    %c0_229 = arith.constant 0 : index
    %c1_230 = arith.constant 1 : index
    %c1_231 = arith.constant 1 : index
    %c0_232 = arith.constant 0 : index
    %141 = vector.load %arg1[%c1_228, %c0_229, %c1_230, %c1_231, %c0_232] : memref<4x2x9x9x8xbf16, #tpu.memory_space<vmem>>, vector<1x2x8x8x8xbf16>
    %142 = vector.shape_cast %141 : vector<1x2x8x8x8xbf16> to vector<2x8x8x8xbf16>
    %143 = vector.shape_cast %142 : vector<2x8x8x8xbf16> to vector<128x8xbf16>
    %c0_233 = arith.constant 0 : index
    %c40_234 = arith.constant 40 : index
    %144 = vector.load %arg6[%c0_233, %c40_234] : memref<128x128xbf16, #tpu.memory_space<vmem>>, vector<128x8xbf16>
    tpu.vector_store %arg6[%c0_233, %c40_234], %143 {strides = array<i32>} : memref<128x128xbf16, #tpu.memory_space<vmem>>, vector<128x8xbf16>,
    %c3_235 = arith.constant 3 : index
    %c0_236 = arith.constant 0 : index
    %c1_237 = arith.constant 1 : index
    %c0_238 = arith.constant 0 : index
    %c0_239 = arith.constant 0 : index
    %145 = vector.load %arg1[%c3_235, %c0_236, %c1_237, %c0_238, %c0_239] : memref<4x2x9x9x8xbf16, #tpu.memory_space<vmem>>, vector<1x2x8x8x8xbf16>
    %146 = vector.shape_cast %145 : vector<1x2x8x8x8xbf16> to vector<2x8x8x8xbf16>
    %147 = vector.shape_cast %146 : vector<2x8x8x8xbf16> to vector<128x8xbf16>
    %c0_240 = arith.constant 0 : index
    %c48_241 = arith.constant 48 : index
    %148 = vector.load %arg6[%c0_240, %c48_241] : memref<128x128xbf16, #tpu.memory_space<vmem>>, vector<128x8xbf16>
    tpu.vector_store %arg6[%c0_240, %c48_241], %147 {strides = array<i32>} : memref<128x128xbf16, #tpu.memory_space<vmem>>, vector<128x8xbf16>,
    %c2_242 = arith.constant 2 : index
    %c0_243 = arith.constant 0 : index
    %c1_244 = arith.constant 1 : index
    %c1_245 = arith.constant 1 : index
    %c0_246 = arith.constant 0 : index
    %149 = vector.load %arg1[%c2_242, %c0_243, %c1_244, %c1_245, %c0_246] : memref<4x2x9x9x8xbf16, #tpu.memory_space<vmem>>, vector<1x2x8x8x8xbf16>
    %150 = vector.shape_cast %149 : vector<1x2x8x8x8xbf16> to vector<2x8x8x8xbf16>
    %151 = vector.shape_cast %150 : vector<2x8x8x8xbf16> to vector<128x8xbf16>
    %c0_247 = arith.constant 0 : index
    %c56_248 = arith.constant 56 : index
    %152 = vector.load %arg6[%c0_247, %c56_248] : memref<128x128xbf16, #tpu.memory_space<vmem>>, vector<128x8xbf16>
    tpu.vector_store %arg6[%c0_247, %c56_248], %151 {strides = array<i32>} : memref<128x128xbf16, #tpu.memory_space<vmem>>, vector<128x8xbf16>,
    %c3_249 = arith.constant 3 : index
    %c0_250 = arith.constant 0 : index
    %c1_251 = arith.constant 1 : index
    %c1_252 = arith.constant 1 : index
    %c0_253 = arith.constant 0 : index
    %153 = vector.load %arg1[%c3_249, %c0_250, %c1_251, %c1_252, %c0_253] : memref<4x2x9x9x8xbf16, #tpu.memory_space<vmem>>, vector<1x2x8x8x8xbf16>
    %154 = vector.shape_cast %153 : vector<1x2x8x8x8xbf16> to vector<2x8x8x8xbf16>
    %155 = vector.shape_cast %154 : vector<2x8x8x8xbf16> to vector<128x8xbf16>
    %c0_254 = arith.constant 0 : index
    %c64_255 = arith.constant 64 : index
    %156 = vector.load %arg6[%c0_254, %c64_255] : memref<128x128xbf16, #tpu.memory_space<vmem>>, vector<128x8xbf16>
    tpu.vector_store %arg6[%c0_254, %c64_255], %155 {strides = array<i32>} : memref<128x128xbf16, #tpu.memory_space<vmem>>, vector<128x8xbf16>,
    %c0_256 = arith.constant 0 : index
    %c0_257 = arith.constant 0 : index
    %157 = vector.load %arg6[%c0_256, %c0_257] : memref<128x128xbf16, #tpu.memory_space<vmem>>, vector<128x128xbf16>
    %c0_258 = arith.constant 0 : index
    %c0_259 = arith.constant 0 : index
    %158 = vector.load %arg2[%c0_258, %c0_259] : memref<128x128xbf16, #tpu.memory_space<vmem>>, vector<128x128xbf16>
    %cst_260 = arith.constant dense<0.000000e+00> : vector<128x128xf32>
    %159 = tpu.matmul %157, %158, %cst_260 {dimension_numbers = #tpu.dot_dimension_numbers<[1], [0], [0], [1], [0, 0, 1, 1], [], []>} : vector<128x128xbf16>, vector<128x128xbf16>, vector<128x128xf32> -> vector<128x128xf32>
    %160 = arith.maximumf %120, %159 : vector<128x128xf32>
    %161 = arith.truncf %160 : vector<128x128xf32> to vector<128x128xbf16>
    %162 = vector.shape_cast %161 : vector<128x128xbf16> to vector<2x8x8x128xbf16>
    %c0_261 = arith.constant 0 : index
    %c0_262 = arith.constant 0 : index
    %c0_263 = arith.constant 0 : index
    %c0_264 = arith.constant 0 : index
    %163 = vector.load %arg3[%c0_261, %c0_262, %c0_263, %c0_264] : memref<2x8x8x128xbf16, #tpu.memory_space<vmem>>, vector<2x8x8x128xbf16>
    tpu.vector_store %arg3[%c0_261, %c0_262, %c0_263, %c0_264], %162 {strides = array<i32>} : memref<2x8x8x128xbf16, #tpu.memory_space<vmem>>, vector<2x8x8x128xbf16>,
    %cst_265 = arith.constant dense<0.000000e+00> : vector<128xf32>
    %164 = vector.multi_reduction <add>, %160, %cst_265 [0] : vector<128x128xf32> to vector<128xf32>
    %165 = vector.shape_cast %164 : vector<128xf32> to vector<1x128xf32>
    %166 = vector.shape_cast %165 : vector<1x128xf32> to vector<1x1x128xf32>
    %c0_266 = arith.constant 0 : index
    %c0_267 = arith.constant 0 : index
    %c0_268 = arith.constant 0 : index
    %167 = vector.load %arg4[%c0_266, %c0_267, %c0_268] : memref<1x1x128xf32, #tpu.memory_space<vmem>>, vector<1x1x128xf32>
    tpu.vector_store %arg4[%c0_266, %c0_267, %c0_268], %166 {strides = array<i32>} : memref<1x1x128xf32, #tpu.memory_space<vmem>>, vector<1x1x128xf32>,
    %168 = arith.mulf %160, %160 : vector<128x128xf32>
    %cst_269 = arith.constant dense<0.000000e+00> : vector<128xf32>
    %169 = vector.multi_reduction <add>, %168, %cst_269 [0] : vector<128x128xf32> to vector<128xf32>
    %170 = vector.shape_cast %169 : vector<128xf32> to vector<1x128xf32>
    %171 = vector.shape_cast %170 : vector<1x128xf32> to vector<1x1x128xf32>
    %c0_270 = arith.constant 0 : index
    %c0_271 = arith.constant 0 : index
    %c0_272 = arith.constant 0 : index
    %172 = vector.load %arg5[%c0_270, %c0_271, %c0_272] : memref<1x1x128xf32, #tpu.memory_space<vmem>>, vector<1x1x128xf32>
    tpu.vector_store %arg5[%c0_270, %c0_271, %c0_272], %171 {strides = array<i32>} : memref<1x1x128xf32, #tpu.memory_space<vmem>>, vector<1x1x128xf32>,
    return
  }
  func.func @transform_0(%arg0: i32) -> (i32, i32, i32, i32, i32) {
    %c0_i32 = arith.constant 0 : i32
    %c0_i32_0 = arith.constant 0 : i32
    %c0_i32_1 = arith.constant 0 : i32
    %c0_i32_2 = arith.constant 0 : i32
    %c0_i32_3 = arith.constant 0 : i32
    return %c0_i32, %arg0, %c0_i32_0, %c0_i32_1, %c0_i32_2 : i32, i32, i32, i32, i32
  }
  func.func @transform_1(%arg0: i32) -> (i32, i32) {
    %c0_i32 = arith.constant 0 : i32
    %c0_i32_0 = arith.constant 0 : i32
    %c0_i32_1 = arith.constant 0 : i32
    return %c0_i32, %c0_i32_0 : i32, i32
  }
  func.func @transform_2(%arg0: i32) -> (i32, i32, i32, i32) {
    %c0_i32 = arith.constant 0 : i32
    %c0_i32_0 = arith.constant 0 : i32
    %c0_i32_1 = arith.constant 0 : i32
    %c0_i32_2 = arith.constant 0 : i32
    return %arg0, %c0_i32, %c0_i32_0, %c0_i32_1 : i32, i32, i32, i32
  }
  func.func @transform_3(%arg0: i32) -> (i32, i32, i32) {
    %c0_i32 = arith.constant 0 : i32
    %c0_i32_0 = arith.constant 0 : i32
    %c0_i32_1 = arith.constant 0 : i32
    return %arg0, %c0_i32, %c0_i32_0 : i32, i32, i32
  }
  func.func @transform_4(%arg0: i32) -> (i32, i32, i32) {
    %c0_i32 = arith.constant 0 : i32
    %c0_i32_0 = arith.constant 0 : i32
    %c0_i32_1 = arith.constant 0 : i32
    return %arg0, %c0_i32, %c0_i32_0 : i32, i32, i32
  }
}

module attributes {stable_mosaic.version = 11 : i64} {
  func.func @_bn2_gelu_kernel(%arg0: i32, %arg1: memref<128x128xbf16, #tpu.memory_space<vmem>>, %arg2: memref<1x128xf32, #tpu.memory_space<vmem>>, %arg3: memref<1x128xf32, #tpu.memory_space<vmem>>, %arg4: memref<128x128xf32, #tpu.memory_space<vmem>>) attributes {dimension_semantics = [#tpu.dimension_semantics<parallel>], iteration_bounds = array<i64: 1>, scalar_prefetch = 0 : i64, scratch_operands = 0 : i64, tpu.core_type = #tpu.core_type<tc>, window_params = [{transform_indices = @transform_0, window_bounds = array<i64: 128, 128>}, {pipeline_mode = #tpu.pipeline_mode<synchronous>, transform_indices = @transform_1, window_bounds = array<i64: 1, 128>}, {pipeline_mode = #tpu.pipeline_mode<synchronous>, transform_indices = @transform_2, window_bounds = array<i64: 1, 128>}, {transform_indices = @transform_3, window_bounds = array<i64: 128, 128>}]} {
    %c0 = arith.constant 0 : index
    %c0_0 = arith.constant 0 : index
    %0 = vector.load %arg1[%c0, %c0_0] : memref<128x128xbf16, #tpu.memory_space<vmem>>, vector<128x128xbf16>
    %1 = arith.extf %0 : vector<128x128xbf16> to vector<128x128xf32>
    %c0_1 = arith.constant 0 : index
    %c0_2 = arith.constant 0 : index
    %2 = vector.load %arg2[%c0_1, %c0_2] : memref<1x128xf32, #tpu.memory_space<vmem>>, vector<1x128xf32>
    %3 = vector.broadcast %2 : vector<1x128xf32> to vector<128x128xf32>
    %4 = arith.mulf %1, %3 : vector<128x128xf32>
    %c0_3 = arith.constant 0 : index
    %c0_4 = arith.constant 0 : index
    %5 = vector.load %arg3[%c0_3, %c0_4] : memref<1x128xf32, #tpu.memory_space<vmem>>, vector<1x128xf32>
    %6 = vector.broadcast %5 : vector<1x128xf32> to vector<128x128xf32>
    %7 = arith.addf %4, %6 : vector<128x128xf32>
    %cst = arith.constant 5.000000e-01 : f32
    %8 = vector.broadcast %cst : f32 to vector<128x128xf32>
    %9 = arith.mulf %8, %7 : vector<128x128xf32>
    %cst_5 = arith.constant 0.707106769 : f32
    %10 = vector.broadcast %cst_5 : f32 to vector<128x128xf32>
    %11 = arith.mulf %7, %10 : vector<128x128xf32>
    %cst_6 = arith.constant 0.000000e+00 : f32
    %12 = vector.broadcast %cst_6 : f32 to vector<128x128xf32>
    %13 = arith.cmpf oge, %11, %12 : vector<128x128xf32>
    %cst_7 = arith.constant 1.000000e+00 : f32
    %cst_8 = arith.constant -1.000000e+00 : f32
    %14 = vector.broadcast %cst_7 : f32 to vector<128x128xf32>
    %15 = vector.broadcast %cst_8 : f32 to vector<128x128xf32>
    %16 = arith.select %13, %14, %15 : vector<128x128xi1>, vector<128x128xf32>
    %17 = math.absf %11 : vector<128x128xf32>
    %cst_9 = arith.constant 0.327591091 : f32
    %18 = vector.broadcast %cst_9 : f32 to vector<128x128xf32>
    %19 = arith.mulf %18, %17 : vector<128x128xf32>
    %cst_10 = arith.constant 1.000000e+00 : f32
    %20 = vector.broadcast %cst_10 : f32 to vector<128x128xf32>
    %21 = arith.addf %20, %19 : vector<128x128xf32>
    %cst_11 = arith.constant 1.000000e+00 : f32
    %22 = vector.broadcast %cst_11 : f32 to vector<128x128xf32>
    %23 = arith.divf %22, %21 : vector<128x128xf32>
    %cst_12 = arith.constant 1.06140542 : f32
    %24 = vector.broadcast %cst_12 : f32 to vector<128x128xf32>
    %25 = arith.mulf %24, %23 : vector<128x128xf32>
    %cst_13 = arith.constant -1.45315206 : f32
    %26 = vector.broadcast %cst_13 : f32 to vector<128x128xf32>
    %27 = arith.addf %25, %26 : vector<128x128xf32>
    %28 = arith.mulf %27, %23 : vector<128x128xf32>
    %cst_14 = arith.constant 1.42141378 : f32
    %29 = vector.broadcast %cst_14 : f32 to vector<128x128xf32>
    %30 = arith.addf %28, %29 : vector<128x128xf32>
    %31 = arith.mulf %30, %23 : vector<128x128xf32>
    %cst_15 = arith.constant -0.284496725 : f32
    %32 = vector.broadcast %cst_15 : f32 to vector<128x128xf32>
    %33 = arith.addf %31, %32 : vector<128x128xf32>
    %34 = arith.mulf %33, %23 : vector<128x128xf32>
    %cst_16 = arith.constant 0.254829586 : f32
    %35 = vector.broadcast %cst_16 : f32 to vector<128x128xf32>
    %36 = arith.addf %34, %35 : vector<128x128xf32>
    %37 = arith.mulf %36, %23 : vector<128x128xf32>
    %cst_17 = arith.constant 0.000000e+00 : f32
    %38 = vector.broadcast %cst_17 : f32 to vector<128x128xf32>
    %39 = arith.subf %38, %17 : vector<128x128xf32>
    %40 = arith.mulf %39, %17 : vector<128x128xf32>
    %41 = math.exp %40 : vector<128x128xf32>
    %42 = arith.mulf %37, %41 : vector<128x128xf32>
    %cst_18 = arith.constant 1.000000e+00 : f32
    %43 = vector.broadcast %cst_18 : f32 to vector<128x128xf32>
    %44 = arith.subf %43, %42 : vector<128x128xf32>
    %45 = arith.mulf %16, %44 : vector<128x128xf32>
    %cst_19 = arith.constant 1.000000e+00 : f32
    %46 = vector.broadcast %cst_19 : f32 to vector<128x128xf32>
    %47 = arith.addf %46, %45 : vector<128x128xf32>
    %48 = arith.mulf %9, %47 : vector<128x128xf32>
    %c0_20 = arith.constant 0 : index
    %c0_21 = arith.constant 0 : index
    %49 = vector.load %arg4[%c0_20, %c0_21] : memref<128x128xf32, #tpu.memory_space<vmem>>, vector<128x128xf32>
    tpu.vector_store %arg4[%c0_20, %c0_21], %48 {strides = array<i32>} : memref<128x128xf32, #tpu.memory_space<vmem>>, vector<128x128xf32>,
    return
  }
  func.func @transform_0(%arg0: i32) -> (i32, i32) {
    %c0_i32 = arith.constant 0 : i32
    %c0_i32_0 = arith.constant 0 : i32
    return %arg0, %c0_i32 : i32, i32
  }
  func.func @transform_1(%arg0: i32) -> (i32, i32) {
    %c0_i32 = arith.constant 0 : i32
    %c0_i32_0 = arith.constant 0 : i32
    %c0_i32_1 = arith.constant 0 : i32
    return %c0_i32, %c0_i32_0 : i32, i32
  }
  func.func @transform_2(%arg0: i32) -> (i32, i32) {
    %c0_i32 = arith.constant 0 : i32
    %c0_i32_0 = arith.constant 0 : i32
    %c0_i32_1 = arith.constant 0 : i32
    return %c0_i32, %c0_i32_0 : i32, i32
  }
  func.func @transform_3(%arg0: i32) -> (i32, i32) {
    %c0_i32 = arith.constant 0 : i32
    %c0_i32_0 = arith.constant 0 : i32
    return %arg0, %c0_i32 : i32, i32
  }
}

module attributes {stable_mosaic.version = 11 : i64} {
  func.func @_bn1_gelu_conv2_kernel(%arg0: i32, %arg1: memref<2x8x8x128xbf16, #tpu.memory_space<vmem>>, %arg2: memref<1x128xf32, #tpu.memory_space<vmem>>, %arg3: memref<1x128xf32, #tpu.memory_space<vmem>>, %arg4: memref<1152x128xbf16, #tpu.memory_space<vmem>>, %arg5: memref<128x128xbf16, #tpu.memory_space<vmem>>, %arg6: memref<1x1x128xf32, #tpu.memory_space<vmem>>, %arg7: memref<1x1x128xf32, #tpu.memory_space<vmem>>, %arg8: memref<2x10x10x128xbf16, #tpu.memory_space<vmem>>, %arg9: memref<128x1152xbf16, #tpu.memory_space<vmem>>) attributes {dimension_semantics = [#tpu.dimension_semantics<parallel>], iteration_bounds = array<i64: 1>, scalar_prefetch = 0 : i64, scratch_operands = 2 : i64, tpu.core_type = #tpu.core_type<tc>, window_params = [{transform_indices = @transform_0, window_bounds = array<i64: 2, 8, 8, 128>}, {pipeline_mode = #tpu.pipeline_mode<synchronous>, transform_indices = @transform_1, window_bounds = array<i64: 1, 128>}, {pipeline_mode = #tpu.pipeline_mode<synchronous>, transform_indices = @transform_2, window_bounds = array<i64: 1, 128>}, {pipeline_mode = #tpu.pipeline_mode<synchronous>, transform_indices = @transform_3, window_bounds = array<i64: 1152, 128>}, {transform_indices = @transform_4, window_bounds = array<i64: 128, 128>}, {transform_indices = @transform_5, window_bounds = array<i64: 1, 1, 128>}, {transform_indices = @transform_6, window_bounds = array<i64: 1, 1, 128>}]} {
    %cst = arith.constant 0.000000e+00 : bf16
    %0 = vector.broadcast %cst : bf16 to vector<2x1x10x128xbf16>
    %c0 = arith.constant 0 : index
    %c0_0 = arith.constant 0 : index
    %c0_1 = arith.constant 0 : index
    %c0_2 = arith.constant 0 : index
    %1 = vector.load %arg8[%c0, %c0_0, %c0_1, %c0_2] : memref<2x10x10x128xbf16, #tpu.memory_space<vmem>>, vector<2x1x10x128xbf16>
    tpu.vector_store %arg8[%c0, %c0_0, %c0_1, %c0_2], %0 {strides = array<i32>} : memref<2x10x10x128xbf16, #tpu.memory_space<vmem>>, vector<2x1x10x128xbf16>,
    %cst_3 = arith.constant 0.000000e+00 : bf16
    %2 = vector.broadcast %cst_3 : bf16 to vector<2x1x10x128xbf16>
    %c0_4 = arith.constant 0 : index
    %c9 = arith.constant 9 : index
    %c0_5 = arith.constant 0 : index
    %c0_6 = arith.constant 0 : index
    %3 = vector.load %arg8[%c0_4, %c9, %c0_5, %c0_6] : memref<2x10x10x128xbf16, #tpu.memory_space<vmem>>, vector<2x1x10x128xbf16>
    tpu.vector_store %arg8[%c0_4, %c9, %c0_5, %c0_6], %2 {strides = array<i32>} : memref<2x10x10x128xbf16, #tpu.memory_space<vmem>>, vector<2x1x10x128xbf16>,
    %cst_7 = arith.constant 0.000000e+00 : bf16
    %4 = vector.broadcast %cst_7 : bf16 to vector<2x10x1x128xbf16>
    %c0_8 = arith.constant 0 : index
    %c0_9 = arith.constant 0 : index
    %c0_10 = arith.constant 0 : index
    %c0_11 = arith.constant 0 : index
    %5 = vector.load %arg8[%c0_8, %c0_9, %c0_10, %c0_11] : memref<2x10x10x128xbf16, #tpu.memory_space<vmem>>, vector<2x10x1x128xbf16>
    tpu.vector_store %arg8[%c0_8, %c0_9, %c0_10, %c0_11], %4 {strides = array<i32>} : memref<2x10x10x128xbf16, #tpu.memory_space<vmem>>, vector<2x10x1x128xbf16>,
    %cst_12 = arith.constant 0.000000e+00 : bf16
    %6 = vector.broadcast %cst_12 : bf16 to vector<2x10x1x128xbf16>
    %c0_13 = arith.constant 0 : index
    %c0_14 = arith.constant 0 : index
    %c9_15 = arith.constant 9 : index
    %c0_16 = arith.constant 0 : index
    %7 = vector.load %arg8[%c0_13, %c0_14, %c9_15, %c0_16] : memref<2x10x10x128xbf16, #tpu.memory_space<vmem>>, vector<2x10x1x128xbf16>
    tpu.vector_store %arg8[%c0_13, %c0_14, %c9_15, %c0_16], %6 {strides = array<i32>} : memref<2x10x10x128xbf16, #tpu.memory_space<vmem>>, vector<2x10x1x128xbf16>,
    %c0_17 = arith.constant 0 : index
    %c0_18 = arith.constant 0 : index
    %8 = vector.load %arg2[%c0_17, %c0_18] : memref<1x128xf32, #tpu.memory_space<vmem>>, vector<1x128xf32>
    %9 = vector.shape_cast %8 : vector<1x128xf32> to vector<1x1x1x128xf32>
    %c0_19 = arith.constant 0 : index
    %c0_20 = arith.constant 0 : index
    %10 = vector.load %arg3[%c0_19, %c0_20] : memref<1x128xf32, #tpu.memory_space<vmem>>, vector<1x128xf32>
    %11 = vector.shape_cast %10 : vector<1x128xf32> to vector<1x1x1x128xf32>
    %c0_21 = arith.constant 0 : index
    %c0_22 = arith.constant 0 : index
    %c0_23 = arith.constant 0 : index
    %c0_24 = arith.constant 0 : index
    %12 = vector.load %arg1[%c0_21, %c0_22, %c0_23, %c0_24] : memref<2x8x8x128xbf16, #tpu.memory_space<vmem>>, vector<2x8x8x128xbf16>
    %13 = arith.extf %12 : vector<2x8x8x128xbf16> to vector<2x8x8x128xf32>
    %14 = vector.broadcast %9 : vector<1x1x1x128xf32> to vector<2x8x8x128xf32>
    %15 = arith.mulf %13, %14 : vector<2x8x8x128xf32>
    %16 = vector.broadcast %11 : vector<1x1x1x128xf32> to vector<2x8x8x128xf32>
    %17 = arith.addf %15, %16 : vector<2x8x8x128xf32>
    %cst_25 = arith.constant 5.000000e-01 : f32
    %18 = vector.broadcast %cst_25 : f32 to vector<2x8x8x128xf32>
    %19 = arith.mulf %18, %17 : vector<2x8x8x128xf32>
    %cst_26 = arith.constant 0.707106769 : f32
    %20 = vector.broadcast %cst_26 : f32 to vector<2x8x8x128xf32>
    %21 = arith.mulf %17, %20 : vector<2x8x8x128xf32>
    %cst_27 = arith.constant 0.000000e+00 : f32
    %22 = vector.broadcast %cst_27 : f32 to vector<2x8x8x128xf32>
    %23 = arith.cmpf oge, %21, %22 : vector<2x8x8x128xf32>
    %cst_28 = arith.constant 1.000000e+00 : f32
    %cst_29 = arith.constant -1.000000e+00 : f32
    %24 = vector.broadcast %cst_28 : f32 to vector<2x8x8x128xf32>
    %25 = vector.broadcast %cst_29 : f32 to vector<2x8x8x128xf32>
    %26 = arith.select %23, %24, %25 : vector<2x8x8x128xi1>, vector<2x8x8x128xf32>
    %27 = math.absf %21 : vector<2x8x8x128xf32>
    %cst_30 = arith.constant 0.327591091 : f32
    %28 = vector.broadcast %cst_30 : f32 to vector<2x8x8x128xf32>
    %29 = arith.mulf %28, %27 : vector<2x8x8x128xf32>
    %cst_31 = arith.constant 1.000000e+00 : f32
    %30 = vector.broadcast %cst_31 : f32 to vector<2x8x8x128xf32>
    %31 = arith.addf %30, %29 : vector<2x8x8x128xf32>
    %cst_32 = arith.constant 1.000000e+00 : f32
    %32 = vector.broadcast %cst_32 : f32 to vector<2x8x8x128xf32>
    %33 = arith.divf %32, %31 : vector<2x8x8x128xf32>
    %cst_33 = arith.constant 1.06140542 : f32
    %34 = vector.broadcast %cst_33 : f32 to vector<2x8x8x128xf32>
    %35 = arith.mulf %34, %33 : vector<2x8x8x128xf32>
    %cst_34 = arith.constant -1.45315206 : f32
    %36 = vector.broadcast %cst_34 : f32 to vector<2x8x8x128xf32>
    %37 = arith.addf %35, %36 : vector<2x8x8x128xf32>
    %38 = arith.mulf %37, %33 : vector<2x8x8x128xf32>
    %cst_35 = arith.constant 1.42141378 : f32
    %39 = vector.broadcast %cst_35 : f32 to vector<2x8x8x128xf32>
    %40 = arith.addf %38, %39 : vector<2x8x8x128xf32>
    %41 = arith.mulf %40, %33 : vector<2x8x8x128xf32>
    %cst_36 = arith.constant -0.284496725 : f32
    %42 = vector.broadcast %cst_36 : f32 to vector<2x8x8x128xf32>
    %43 = arith.addf %41, %42 : vector<2x8x8x128xf32>
    %44 = arith.mulf %43, %33 : vector<2x8x8x128xf32>
    %cst_37 = arith.constant 0.254829586 : f32
    %45 = vector.broadcast %cst_37 : f32 to vector<2x8x8x128xf32>
    %46 = arith.addf %44, %45 : vector<2x8x8x128xf32>
    %47 = arith.mulf %46, %33 : vector<2x8x8x128xf32>
    %cst_38 = arith.constant 0.000000e+00 : f32
    %48 = vector.broadcast %cst_38 : f32 to vector<2x8x8x128xf32>
    %49 = arith.subf %48, %27 : vector<2x8x8x128xf32>
    %50 = arith.mulf %49, %27 : vector<2x8x8x128xf32>
    %51 = math.exp %50 : vector<2x8x8x128xf32>
    %52 = arith.mulf %47, %51 : vector<2x8x8x128xf32>
    %cst_39 = arith.constant 1.000000e+00 : f32
    %53 = vector.broadcast %cst_39 : f32 to vector<2x8x8x128xf32>
    %54 = arith.subf %53, %52 : vector<2x8x8x128xf32>
    %55 = arith.mulf %26, %54 : vector<2x8x8x128xf32>
    %cst_40 = arith.constant 1.000000e+00 : f32
    %56 = vector.broadcast %cst_40 : f32 to vector<2x8x8x128xf32>
    %57 = arith.addf %56, %55 : vector<2x8x8x128xf32>
    %58 = arith.mulf %19, %57 : vector<2x8x8x128xf32>
    %59 = arith.truncf %58 : vector<2x8x8x128xf32> to vector<2x8x8x128xbf16>
    %c0_41 = arith.constant 0 : index
    %c1 = arith.constant 1 : index
    %c1_42 = arith.constant 1 : index
    %c0_43 = arith.constant 0 : index
    %60 = vector.load %arg8[%c0_41, %c1, %c1_42, %c0_43] : memref<2x10x10x128xbf16, #tpu.memory_space<vmem>>, vector<2x8x8x128xbf16>
    tpu.vector_store %arg8[%c0_41, %c1, %c1_42, %c0_43], %59 {strides = array<i32>} : memref<2x10x10x128xbf16, #tpu.memory_space<vmem>>, vector<2x8x8x128xbf16>,
    %c0_44 = arith.constant 0 : index
    %c0_45 = arith.constant 0 : index
    %c0_46 = arith.constant 0 : index
    %c0_47 = arith.constant 0 : index
    %61 = vector.load %arg8[%c0_44, %c0_45, %c0_46, %c0_47] : memref<2x10x10x128xbf16, #tpu.memory_space<vmem>>, vector<2x8x8x128xbf16>
    %62 = vector.shape_cast %61 : vector<2x8x8x128xbf16> to vector<128x128xbf16>
    %c0_48 = arith.constant 0 : index
    %c0_49 = arith.constant 0 : index
    %63 = vector.load %arg9[%c0_48, %c0_49] : memref<128x1152xbf16, #tpu.memory_space<vmem>>, vector<128x128xbf16>
    tpu.vector_store %arg9[%c0_48, %c0_49], %62 {strides = array<i32>} : memref<128x1152xbf16, #tpu.memory_space<vmem>>, vector<128x128xbf16>,
    %c0_50 = arith.constant 0 : index
    %c0_51 = arith.constant 0 : index
    %c1_52 = arith.constant 1 : index
    %c0_53 = arith.constant 0 : index
    %64 = vector.load %arg8[%c0_50, %c0_51, %c1_52, %c0_53] : memref<2x10x10x128xbf16, #tpu.memory_space<vmem>>, vector<2x8x8x128xbf16>
    %65 = vector.shape_cast %64 : vector<2x8x8x128xbf16> to vector<128x128xbf16>
    %c0_54 = arith.constant 0 : index
    %c128 = arith.constant 128 : index
    %66 = vector.load %arg9[%c0_54, %c128] : memref<128x1152xbf16, #tpu.memory_space<vmem>>, vector<128x128xbf16>
    tpu.vector_store %arg9[%c0_54, %c128], %65 {strides = array<i32>} : memref<128x1152xbf16, #tpu.memory_space<vmem>>, vector<128x128xbf16>,
    %c0_55 = arith.constant 0 : index
    %c0_56 = arith.constant 0 : index
    %c2 = arith.constant 2 : index
    %c0_57 = arith.constant 0 : index
    %67 = vector.load %arg8[%c0_55, %c0_56, %c2, %c0_57] : memref<2x10x10x128xbf16, #tpu.memory_space<vmem>>, vector<2x8x8x128xbf16>
    %68 = vector.shape_cast %67 : vector<2x8x8x128xbf16> to vector<128x128xbf16>
    %c0_58 = arith.constant 0 : index
    %c256 = arith.constant 256 : index
    %69 = vector.load %arg9[%c0_58, %c256] : memref<128x1152xbf16, #tpu.memory_space<vmem>>, vector<128x128xbf16>
    tpu.vector_store %arg9[%c0_58, %c256], %68 {strides = array<i32>} : memref<128x1152xbf16, #tpu.memory_space<vmem>>, vector<128x128xbf16>,
    %c0_59 = arith.constant 0 : index
    %c1_60 = arith.constant 1 : index
    %c0_61 = arith.constant 0 : index
    %c0_62 = arith.constant 0 : index
    %70 = vector.load %arg8[%c0_59, %c1_60, %c0_61, %c0_62] : memref<2x10x10x128xbf16, #tpu.memory_space<vmem>>, vector<2x8x8x128xbf16>
    %71 = vector.shape_cast %70 : vector<2x8x8x128xbf16> to vector<128x128xbf16>
    %c0_63 = arith.constant 0 : index
    %c384 = arith.constant 384 : index
    %72 = vector.load %arg9[%c0_63, %c384] : memref<128x1152xbf16, #tpu.memory_space<vmem>>, vector<128x128xbf16>
    tpu.vector_store %arg9[%c0_63, %c384], %71 {strides = array<i32>} : memref<128x1152xbf16, #tpu.memory_space<vmem>>, vector<128x128xbf16>,
    %c0_64 = arith.constant 0 : index
    %c1_65 = arith.constant 1 : index
    %c1_66 = arith.constant 1 : index
    %c0_67 = arith.constant 0 : index
    %73 = vector.load %arg8[%c0_64, %c1_65, %c1_66, %c0_67] : memref<2x10x10x128xbf16, #tpu.memory_space<vmem>>, vector<2x8x8x128xbf16>
    %74 = vector.shape_cast %73 : vector<2x8x8x128xbf16> to vector<128x128xbf16>
    %c0_68 = arith.constant 0 : index
    %c512 = arith.constant 512 : index
    %75 = vector.load %arg9[%c0_68, %c512] : memref<128x1152xbf16, #tpu.memory_space<vmem>>, vector<128x128xbf16>
    tpu.vector_store %arg9[%c0_68, %c512], %74 {strides = array<i32>} : memref<128x1152xbf16, #tpu.memory_space<vmem>>, vector<128x128xbf16>,
    %c0_69 = arith.constant 0 : index
    %c1_70 = arith.constant 1 : index
    %c2_71 = arith.constant 2 : index
    %c0_72 = arith.constant 0 : index
    %76 = vector.load %arg8[%c0_69, %c1_70, %c2_71, %c0_72] : memref<2x10x10x128xbf16, #tpu.memory_space<vmem>>, vector<2x8x8x128xbf16>
    %77 = vector.shape_cast %76 : vector<2x8x8x128xbf16> to vector<128x128xbf16>
    %c0_73 = arith.constant 0 : index
    %c640 = arith.constant 640 : index
    %78 = vector.load %arg9[%c0_73, %c640] : memref<128x1152xbf16, #tpu.memory_space<vmem>>, vector<128x128xbf16>
    tpu.vector_store %arg9[%c0_73, %c640], %77 {strides = array<i32>} : memref<128x1152xbf16, #tpu.memory_space<vmem>>, vector<128x128xbf16>,
    %c0_74 = arith.constant 0 : index
    %c2_75 = arith.constant 2 : index
    %c0_76 = arith.constant 0 : index
    %c0_77 = arith.constant 0 : index
    %79 = vector.load %arg8[%c0_74, %c2_75, %c0_76, %c0_77] : memref<2x10x10x128xbf16, #tpu.memory_space<vmem>>, vector<2x8x8x128xbf16>
    %80 = vector.shape_cast %79 : vector<2x8x8x128xbf16> to vector<128x128xbf16>
    %c0_78 = arith.constant 0 : index
    %c768 = arith.constant 768 : index
    %81 = vector.load %arg9[%c0_78, %c768] : memref<128x1152xbf16, #tpu.memory_space<vmem>>, vector<128x128xbf16>
    tpu.vector_store %arg9[%c0_78, %c768], %80 {strides = array<i32>} : memref<128x1152xbf16, #tpu.memory_space<vmem>>, vector<128x128xbf16>,
    %c0_79 = arith.constant 0 : index
    %c2_80 = arith.constant 2 : index
    %c1_81 = arith.constant 1 : index
    %c0_82 = arith.constant 0 : index
    %82 = vector.load %arg8[%c0_79, %c2_80, %c1_81, %c0_82] : memref<2x10x10x128xbf16, #tpu.memory_space<vmem>>, vector<2x8x8x128xbf16>
    %83 = vector.shape_cast %82 : vector<2x8x8x128xbf16> to vector<128x128xbf16>
    %c0_83 = arith.constant 0 : index
    %c896 = arith.constant 896 : index
    %84 = vector.load %arg9[%c0_83, %c896] : memref<128x1152xbf16, #tpu.memory_space<vmem>>, vector<128x128xbf16>
    tpu.vector_store %arg9[%c0_83, %c896], %83 {strides = array<i32>} : memref<128x1152xbf16, #tpu.memory_space<vmem>>, vector<128x128xbf16>,
    %c0_84 = arith.constant 0 : index
    %c2_85 = arith.constant 2 : index
    %c2_86 = arith.constant 2 : index
    %c0_87 = arith.constant 0 : index
    %85 = vector.load %arg8[%c0_84, %c2_85, %c2_86, %c0_87] : memref<2x10x10x128xbf16, #tpu.memory_space<vmem>>, vector<2x8x8x128xbf16>
    %86 = vector.shape_cast %85 : vector<2x8x8x128xbf16> to vector<128x128xbf16>
    %c0_88 = arith.constant 0 : index
    %c1024 = arith.constant 1024 : index
    %87 = vector.load %arg9[%c0_88, %c1024] : memref<128x1152xbf16, #tpu.memory_space<vmem>>, vector<128x128xbf16>
    tpu.vector_store %arg9[%c0_88, %c1024], %86 {strides = array<i32>} : memref<128x1152xbf16, #tpu.memory_space<vmem>>, vector<128x128xbf16>,
    %c0_89 = arith.constant 0 : index
    %c0_90 = arith.constant 0 : index
    %88 = vector.load %arg9[%c0_89, %c0_90] : memref<128x1152xbf16, #tpu.memory_space<vmem>>, vector<128x1152xbf16>
    %c0_91 = arith.constant 0 : index
    %c0_92 = arith.constant 0 : index
    %89 = vector.load %arg4[%c0_91, %c0_92] : memref<1152x128xbf16, #tpu.memory_space<vmem>>, vector<1152x128xbf16>
    %cst_93 = arith.constant dense<0.000000e+00> : vector<128x128xf32>
    %90 = tpu.matmul %88, %89, %cst_93 {dimension_numbers = #tpu.dot_dimension_numbers<[1], [0], [0], [1], [0, 0, 1, 1], [], []>} : vector<128x1152xbf16>, vector<1152x128xbf16>, vector<128x128xf32> -> vector<128x128xf32>
    %91 = arith.truncf %90 : vector<128x128xf32> to vector<128x128xbf16>
    %c0_94 = arith.constant 0 : index
    %c0_95 = arith.constant 0 : index
    %92 = vector.load %arg5[%c0_94, %c0_95] : memref<128x128xbf16, #tpu.memory_space<vmem>>, vector<128x128xbf16>
    tpu.vector_store %arg5[%c0_94, %c0_95], %91 {strides = array<i32>} : memref<128x128xbf16, #tpu.memory_space<vmem>>, vector<128x128xbf16>,
    %cst_96 = arith.constant dense<0.000000e+00> : vector<128xf32>
    %93 = vector.multi_reduction <add>, %90, %cst_96 [0] : vector<128x128xf32> to vector<128xf32>
    %94 = vector.shape_cast %93 : vector<128xf32> to vector<1x128xf32>
    %95 = vector.shape_cast %94 : vector<1x128xf32> to vector<1x1x128xf32>
    %c0_97 = arith.constant 0 : index
    %c0_98 = arith.constant 0 : index
    %c0_99 = arith.constant 0 : index
    %96 = vector.load %arg6[%c0_97, %c0_98, %c0_99] : memref<1x1x128xf32, #tpu.memory_space<vmem>>, vector<1x1x128xf32>
    tpu.vector_store %arg6[%c0_97, %c0_98, %c0_99], %95 {strides = array<i32>} : memref<1x1x128xf32, #tpu.memory_space<vmem>>, vector<1x1x128xf32>,
    %97 = arith.mulf %90, %90 : vector<128x128xf32>
    %cst_100 = arith.constant dense<0.000000e+00> : vector<128xf32>
    %98 = vector.multi_reduction <add>, %97, %cst_100 [0] : vector<128x128xf32> to vector<128xf32>
    %99 = vector.shape_cast %98 : vector<128xf32> to vector<1x128xf32>
    %100 = vector.shape_cast %99 : vector<1x128xf32> to vector<1x1x128xf32>
    %c0_101 = arith.constant 0 : index
    %c0_102 = arith.constant 0 : index
    %c0_103 = arith.constant 0 : index
    %101 = vector.load %arg7[%c0_101, %c0_102, %c0_103] : memref<1x1x128xf32, #tpu.memory_space<vmem>>, vector<1x1x128xf32>
    tpu.vector_store %arg7[%c0_101, %c0_102, %c0_103], %100 {strides = array<i32>} : memref<1x1x128xf32, #tpu.memory_space<vmem>>, vector<1x1x128xf32>,
    return
  }
  func.func @transform_0(%arg0: i32) -> (i32, i32, i32, i32) {
    %c0_i32 = arith.constant 0 : i32
    %c0_i32_0 = arith.constant 0 : i32
    %c0_i32_1 = arith.constant 0 : i32
    %c0_i32_2 = arith.constant 0 : i32
    return %arg0, %c0_i32, %c0_i32_0, %c0_i32_1 : i32, i32, i32, i32
  }
  func.func @transform_1(%arg0: i32) -> (i32, i32) {
    %c0_i32 = arith.constant 0 : i32
    %c0_i32_0 = arith.constant 0 : i32
    %c0_i32_1 = arith.constant 0 : i32
    return %c0_i32, %c0_i32_0 : i32, i32
  }
  func.func @transform_2(%arg0: i32) -> (i32, i32) {
    %c0_i32 = arith.constant 0 : i32
    %c0_i32_0 = arith.constant 0 : i32
    %c0_i32_1 = arith.constant 0 : i32
    return %c0_i32, %c0_i32_0 : i32, i32
  }
  func.func @transform_3(%arg0: i32) -> (i32, i32) {
    %c0_i32 = arith.constant 0 : i32
    %c0_i32_0 = arith.constant 0 : i32
    %c0_i32_1 = arith.constant 0 : i32
    return %c0_i32, %c0_i32_0 : i32, i32
  }
  func.func @transform_4(%arg0: i32) -> (i32, i32) {
    %c0_i32 = arith.constant 0 : i32
    %c0_i32_0 = arith.constant 0 : i32
    return %arg0, %c0_i32 : i32, i32
  }
  func.func @transform_5(%arg0: i32) -> (i32, i32, i32) {
    %c0_i32 = arith.constant 0 : i32
    %c0_i32_0 = arith.constant 0 : i32
    %c0_i32_1 = arith.constant 0 : i32
    return %arg0, %c0_i32, %c0_i32_0 : i32, i32, i32
  }
  func.func @transform_6(%arg0: i32) -> (i32, i32, i32) {
    %c0_i32 = arith.constant 0 : i32
    %c0_i32_0 = arith.constant 0 : i32
    %c0_i32_1 = arith.constant 0 : i32
    return %arg0, %c0_i32, %c0_i32_0 : i32, i32, i32
  }
}

</mosaic_0001>

<llo_original>
// kernel: convgroup_forward.5
$region0: #{convgroup_forward.5}
  #allocation0 [shape = 'u32[]', space=smem, size = 0x4, offset = 0x4, fixed_abs, tag = 'smem constant byte address 0x4 - core index']
  #allocation1 [shape = 'u32[144,128]{1,0:T(1,128)}', space=vmem, size = 0x12000, scoped, tag = 'internal scratch']
  %s0 = inlined_call_operand.vmem [shape: bf16[128,128], index: 0, kind: input, shape index: {}]
  %s1 = inlined_call_operand.vmem [shape: f32[1,128], index: 1, kind: input, shape index: {}]
  %s2 = inlined_call_operand.vmem [shape: f32[1,128], index: 2, kind: input, shape index: {}]
  %s3 = inlined_call_operand.vmem [shape: f32[128,128], index: 3, kind: output, shape index: {}]
  %s4 = sld [smem:[#allocation0]]
  $region22: #{convgroup_forward.5} parent=0
    _
  %s6 = ssub.s32 1, %s4
  %s7 = scalar_select 0, %s6, %s4
  // Predicated region
  $region2: #{convgroup_forward.5} parent=0 // pred_check
    _
  $region3: #{convgroup_forward.5} parent=0 // pred_check_branch
    %9 = sbr.rel (0) target = $region5
  $region4: #{convgroup_forward.5} parent=0 // pred_region
    _
  $region5: #{convgroup_forward.5} parent=0 // pred_fallthru
    _
  // Predicated region
  $region6: #{convgroup_forward.5} parent=0 // pred_check
    _
  $region7: #{convgroup_forward.5} parent=0 // pred_check_branch
    %11 = sbr.rel (0) target = $region9
  $region8: #{convgroup_forward.5} parent=0 // pred_region
    _
  $region9: #{convgroup_forward.5} parent=0 // pred_fallthru
    _
  // Predicated region
  $region10: #{convgroup_forward.5} parent=0 // pred_check
    _
  $region11: #{convgroup_forward.5} parent=0 // pred_check_branch
    %13 = sbr.rel (0) target = $region13
  $region12: #{convgroup_forward.5} parent=0 // pred_region
    _
  $region13: #{convgroup_forward.5} parent=0 // pred_fallthru
    _
  %v14 = vld [vmem:[%s0] sm:$0xf]
  %v15 = vld [vmem:[%s0 + $0x4] sm:$0xf]
  %v16 = vld [vmem:[%s0 + $0x8] sm:$0xf]
  %v17 = vld [vmem:[%s0 + $0xc] sm:$0xf]
  %v18 = vld [vmem:[%s0 + $0x10] sm:$0xf]
  %v19 = vld [vmem:[%s0 + $0x14] sm:$0xf]
  %v20 = vld [vmem:[%s0 + $0x18] sm:$0xf]
  %v21 = vld [vmem:[%s0 + $0x1c] sm:$0xf]
  %v22 = vld [vmem:[%s0 + $0x20] sm:$0xf]
  %v23 = vld [vmem:[%s0 + $0x24] sm:$0xf]
  %v24 = vld [vmem:[%s0 + $0x28] sm:$0xf]
  %v25 = vld [vmem:[%s0 + $0x2c] sm:$0xf]
  %v26 = vld [vmem:[%s0 + $0x30] sm:$0xf]
  %v27 = vld [vmem:[%s0 + $0x34] sm:$0xf]
  %v28 = vld [vmem:[%s0 + $0x38] sm:$0xf]
  %v29 = vld [vmem:[%s0 + $0x3c] sm:$0xf]
  %v30 = vunpack.c.l.bf16 %v14
  %v31 = vunpack.c.l.bf16 %v15
  %v32 = vunpack.c.l.bf16 %v16
  %v33 = vunpack.c.l.bf16 %v17
  %v34 = vunpack.c.l.bf16 %v18
  %v35 = vunpack.c.l.bf16 %v19
  %v36 = vunpack.c.l.bf16 %v20
  %v37 = vunpack.c.l.bf16 %v21
  %v38 = vunpack.c.l.bf16 %v22
  %v39 = vunpack.c.l.bf16 %v23
  %v40 = vunpack.c.l.bf16 %v24
  %v41 = vunpack.c.l.bf16 %v25
  %v42 = vunpack.c.l.bf16 %v26
  %v43 = vunpack.c.l.bf16 %v27
  %v44 = vunpack.c.l.bf16 %v28
  %v45 = vunpack.c.l.bf16 %v29
  %v46 = vld [vmem:[%s1] sm:$0x1]
  %v48 = vlaneseq
  %v49 = vshrl.u32 %v48, 7
  %v50 = vsub.s32 0, %v49
  %v51 = vrot.slane %v46, %v50
  %v53 = vmul.f32 %v30, %v51
  %v54 = vmul.f32 %v31, %v51
  %v55 = vmul.f32 %v32, %v51
  %v56 = vmul.f32 %v33, %v51
  %v57 = vmul.f32 %v34, %v51
  %v58 = vmul.f32 %v35, %v51
  %v59 = vmul.f32 %v36, %v51
  %v60 = vmul.f32 %v37, %v51
  %v61 = vmul.f32 %v38, %v51
  %v62 = vmul.f32 %v39, %v51
  %v63 = vmul.f32 %v40, %v51
  %v64 = vmul.f32 %v41, %v51
  %v65 = vmul.f32 %v42, %v51
  %v66 = vmul.f32 %v43, %v51
  %v67 = vmul.f32 %v44, %v51
  %v68 = vmul.f32 %v45, %v51
  %v69 = vld [vmem:[%s2] sm:$0x1]
  %v71 = vlaneseq
  %v72 = vshrl.u32 %v71, 7
  %v73 = vsub.s32 0, %v72
  %v74 = vrot.slane %v69, %v73
  %v76 = vadd.f32 %v53, %v74
  %v77 = vadd.f32 %v54, %v74
  %v78 = vadd.f32 %v55, %v74
  %v79 = vadd.f32 %v56, %v74
  %v80 = vadd.f32 %v57, %v74
  %v81 = vadd.f32 %v58, %v74
  %v82 = vadd.f32 %v59, %v74
  %v83 = vadd.f32 %v60, %v74
  %v84 = vadd.f32 %v61, %v74
  %v85 = vadd.f32 %v62, %v74
  %v86 = vadd.f32 %v63, %v74
  %v87 = vadd.f32 %v64, %v74
  %v88 = vadd.f32 %v65, %v74
  %v89 = vadd.f32 %v66, %v74
  %v90 = vadd.f32 %v67, %v74
  %v91 = vadd.f32 %v68, %v74
  %v92 = vmul.f32 %v76, 0.5
  %v93 = vmul.f32 %v77, 0.5
  %v94 = vmul.f32 %v78, 0.5
  %v95 = vmul.f32 %v79, 0.5
  %v96 = vmul.f32 %v80, 0.5
  %v97 = vmul.f32 %v81, 0.5
  %v98 = vmul.f32 %v82, 0.5
  %v99 = vmul.f32 %v83, 0.5
  %v100 = vmul.f32 %v84, 0.5
  %v101 = vmul.f32 %v85, 0.5
  %v102 = vmul.f32 %v86, 0.5
  %v103 = vmul.f32 %v87, 0.5
  %v104 = vmul.f32 %v88, 0.5
  %v105 = vmul.f32 %v89, 0.5
  %v106 = vmul.f32 %v90, 0.5
  %v107 = vmul.f32 %v91, 0.5
  %v108 = vmul.f32 %v76, 0.70710677
  %v109 = vmul.f32 %v77, 0.70710677
  %v110 = vmul.f32 %v78, 0.70710677
  %v111 = vmul.f32 %v79, 0.70710677
  %v112 = vmul.f32 %v80, 0.70710677
  %v113 = vmul.f32 %v81, 0.70710677
  %v114 = vmul.f32 %v82, 0.70710677
  %v115 = vmul.f32 %v83, 0.70710677
  %v116 = vmul.f32 %v84, 0.70710677
  %v117 = vmul.f32 %v85, 0.70710677
  %v118 = vmul.f32 %v86, 0.70710677
  %v119 = vmul.f32 %v87, 0.70710677
  %v120 = vmul.f32 %v88, 0.70710677
  %v121 = vmul.f32 %v89, 0.70710677
  %v122 = vmul.f32 %v90, 0.70710677
  %v123 = vmul.f32 %v91, 0.70710677
  %vm124 = vcmp.ge.f32.partialorder %v108, 0.0
  %vm125 = vcmp.ge.f32.partialorder %v109, 0.0
  %vm126 = vcmp.ge.f32.partialorder %v110, 0.0
  %vm127 = vcmp.ge.f32.partialorder %v111, 0.0
  %vm128 = vcmp.ge.f32.partialorder %v112, 0.0
  %vm129 = vcmp.ge.f32.partialorder %v113, 0.0
  %vm130 = vcmp.ge.f32.partialorder %v114, 0.0
  %vm131 = vcmp.ge.f32.partialorder %v115, 0.0
  %vm132 = vcmp.ge.f32.partialorder %v116, 0.0
  %vm133 = vcmp.ge.f32.partialorder %v117, 0.0
  %vm134 = vcmp.ge.f32.partialorder %v118, 0.0
  %vm135 = vcmp.ge.f32.partialorder %v119, 0.0
  %vm136 = vcmp.ge.f32.partialorder %v120, 0.0
  %vm137 = vcmp.ge.f32.partialorder %v121, 0.0
  %vm138 = vcmp.ge.f32.partialorder %v122, 0.0
  %vm139 = vcmp.ge.f32.partialorder %v123, 0.0
  %v140 = vsel %vm124, 1.0, -1.0
  %v141 = vsel %vm125, 1.0, -1.0
  %v142 = vsel %vm126, 1.0, -1.0
  %v143 = vsel %vm127, 1.0, -1.0
  %v144 = vsel %vm128, 1.0, -1.0
  %v145 = vsel %vm129, 1.0, -1.0
  %v146 = vsel %vm130, 1.0, -1.0
  %v147 = vsel %vm131, 1.0, -1.0
  %v148 = vsel %vm132, 1.0, -1.0
  %v149 = vsel %vm133, 1.0, -1.0
  %v150 = vsel %vm134, 1.0, -1.0
  %v151 = vsel %vm135, 1.0, -1.0
  %v152 = vsel %vm136, 1.0, -1.0
  %v153 = vsel %vm137, 1.0, -1.0
  %v154 = vsel %vm138, 1.0, -1.0
  %v155 = vsel %vm139, 1.0, -1.0
  %v156 = vand.u32 2147483647, %v108
  %v157 = vand.u32 2147483647, %v109
  %v158 = vand.u32 2147483647, %v110
  %v159 = vand.u32 2147483647, %v111
  %v160 = vand.u32 2147483647, %v112
  %v161 = vand.u32 2147483647, %v113
  %v162 = vand.u32 2147483647, %v114
  %v163 = vand.u32 2147483647, %v115
  %v164 = vand.u32 2147483647, %v116
  %v165 = vand.u32 2147483647, %v117
  %v166 = vand.u32 2147483647, %v118
  %v167 = vand.u32 2147483647, %v119
  %v168 = vand.u32 2147483647, %v120
  %v169 = vand.u32 2147483647, %v121
  %v170 = vand.u32 2147483647, %v122
  %v171 = vand.u32 2147483647, %v123
  %v172 = vmul.f32 %v156, 0.3275911
  %v173 = vmul.f32 %v157, 0.3275911
  %v174 = vmul.f32 %v158, 0.3275911
  %v175 = vmul.f32 %v159, 0.3275911
  %v176 = vmul.f32 %v160, 0.3275911
  %v177 = vmul.f32 %v161, 0.3275911
  %v178 = vmul.f32 %v162, 0.3275911
  %v179 = vmul.f32 %v163, 0.3275911
  %v180 = vmul.f32 %v164, 0.3275911
  %v181 = vmul.f32 %v165, 0.3275911
  %v182 = vmul.f32 %v166, 0.3275911
  %v183 = vmul.f32 %v167, 0.3275911
  %v184 = vmul.f32 %v168, 0.3275911
  %v185 = vmul.f32 %v169, 0.3275911
  %v186 = vmul.f32 %v170, 0.3275911
  %v187 = vmul.f32 %v171, 0.3275911
  %v188 = vadd.f32 %v172, 1.0
  %v189 = vadd.f32 %v173, 1.0
  %v190 = vadd.f32 %v174, 1.0
  %v191 = vadd.f32 %v175, 1.0
  %v192 = vadd.f32 %v176, 1.0
  %v193 = vadd.f32 %v177, 1.0
  %v194 = vadd.f32 %v178, 1.0
  %v195 = vadd.f32 %v179, 1.0
  %v196 = vadd.f32 %v180, 1.0
  %v197 = vadd.f32 %v181, 1.0
  %v198 = vadd.f32 %v182, 1.0
  %v199 = vadd.f32 %v183, 1.0
  %v200 = vadd.f32 %v184, 1.0
  %v201 = vadd.f32 %v185, 1.0
  %v202 = vadd.f32 %v186, 1.0
  %v203 = vadd.f32 %v187, 1.0
  %v204 = vrcp.pop %v188
  %v205 = vmul.f32 1.0, %v204
  %v206 = vrcp.pop %v189
  %v207 = vmul.f32 1.0, %v206
  %v208 = vrcp.pop %v190
  %v209 = vmul.f32 1.0, %v208
  %v210 = vrcp.pop %v191
  %v211 = vmul.f32 1.0, %v210
  %v212 = vrcp.pop %v192
  %v213 = vmul.f32 1.0, %v212
  %v214 = vrcp.pop %v193
  %v215 = vmul.f32 1.0, %v214
  %v216 = vrcp.pop %v194
  %v217 = vmul.f32 1.0, %v216
  %v218 = vrcp.pop %v195
  %v219 = vmul.f32 1.0, %v218
  %v220 = vrcp.pop %v196
  %v221 = vmul.f32 1.0, %v220
  %v222 = vrcp.pop %v197
  %v223 = vmul.f32 1.0, %v222
  %v224 = vrcp.pop %v198
  %v225 = vmul.f32 1.0, %v224
  %v226 = vrcp.pop %v199
  %v227 = vmul.f32 1.0, %v226
  %v228 = vrcp.pop %v200
  %v229 = vmul.f32 1.0, %v228
  %v230 = vrcp.pop %v201
  %v231 = vmul.f32 1.0, %v230
  %v232 = vrcp.pop %v202
  %v233 = vmul.f32 1.0, %v232
  %v234 = vrcp.pop %v203
  %v235 = vmul.f32 1.0, %v234
  %v236 = vmul.f32 %v205, 1.0614054
  %v237 = vmul.f32 %v207, 1.0614054
  %v238 = vmul.f32 %v209, 1.0614054
  %v239 = vmul.f32 %v211, 1.0614054
  %v240 = vmul.f32 %v213, 1.0614054
  %v241 = vmul.f32 %v215, 1.0614054
  %v242 = vmul.f32 %v217, 1.0614054
  %v243 = vmul.f32 %v219, 1.0614054
  %v244 = vmul.f32 %v221, 1.0614054
  %v245 = vmul.f32 %v223, 1.0614054
  %v246 = vmul.f32 %v225, 1.0614054
  %v247 = vmul.f32 %v227, 1.0614054
  %v248 = vmul.f32 %v229, 1.0614054
  %v249 = vmul.f32 %v231, 1.0614054
  %v250 = vmul.f32 %v233, 1.0614054
  %v251 = vmul.f32 %v235, 1.0614054
  %v252 = vadd.f32 %v236, -1.4531521
  %v253 = vadd.f32 %v237, -1.4531521
  %v254 = vadd.f32 %v238, -1.4531521
  %v255 = vadd.f32 %v239, -1.4531521
  %v256 = vadd.f32 %v240, -1.4531521
  %v257 = vadd.f32 %v241, -1.4531521
  %v258 = vadd.f32 %v242, -1.4531521
  %v259 = vadd.f32 %v243, -1.4531521
  %v260 = vadd.f32 %v244, -1.4531521
  %v261 = vadd.f32 %v245, -1.4531521
  %v262 = vadd.f32 %v246, -1.4531521
  %v263 = vadd.f32 %v247, -1.4531521
  %v264 = vadd.f32 %v248, -1.4531521
  %v265 = vadd.f32 %v249, -1.4531521
  %v266 = vadd.f32 %v250, -1.4531521
  %v267 = vadd.f32 %v251, -1.4531521
  %v268 = vmul.f32 %v252, %v205
  %v269 = vmul.f32 %v253, %v207
  %v270 = vmul.f32 %v254, %v209
  %v271 = vmul.f32 %v255, %v211
  %v272 = vmul.f32 %v256, %v213
  %v273 = vmul.f32 %v257, %v215
  %v274 = vmul.f32 %v258, %v217
  %v275 = vmul.f32 %v259, %v219
  %v276 = vmul.f32 %v260, %v221
  %v277 = vmul.f32 %v261, %v223
  %v278 = vmul.f32 %v262, %v225
  %v279 = vmul.f32 %v263, %v227
  %v280 = vmul.f32 %v264, %v229
  %v281 = vmul.f32 %v265, %v231
  %v282 = vmul.f32 %v266, %v233
  %v283 = vmul.f32 %v267, %v235
  %v284 = vadd.f32 %v268, 1.4214138
  %v285 = vadd.f32 %v269, 1.4214138
  %v286 = vadd.f32 %v270, 1.4214138
  %v287 = vadd.f32 %v271, 1.4214138
  %v288 = vadd.f32 %v272, 1.4214138
  %v289 = vadd.f32 %v273, 1.4214138
  %v290 = vadd.f32 %v274, 1.4214138
  %v291 = vadd.f32 %v275, 1.4214138
  %v292 = vadd.f32 %v276, 1.4214138
  %v293 = vadd.f32 %v277, 1.4214138
  %v294 = vadd.f32 %v278, 1.4214138
  %v295 = vadd.f32 %v279, 1.4214138
  %v296 = vadd.f32 %v280, 1.4214138
  %v297 = vadd.f32 %v281, 1.4214138
  %v298 = vadd.f32 %v282, 1.4214138
  %v299 = vadd.f32 %v283, 1.4214138
  %v300 = vmul.f32 %v284, %v205
  %v301 = vmul.f32 %v285, %v207
  %v302 = vmul.f32 %v286, %v209
  %v303 = vmul.f32 %v287, %v211
  %v304 = vmul.f32 %v288, %v213
  %v305 = vmul.f32 %v289, %v215
  %v306 = vmul.f32 %v290, %v217
  %v307 = vmul.f32 %v291, %v219
  %v308 = vmul.f32 %v292, %v221
  %v309 = vmul.f32 %v293, %v223
  %v310 = vmul.f32 %v294, %v225
  %v311 = vmul.f32 %v295, %v227
  %v312 = vmul.f32 %v296, %v229
  %v313 = vmul.f32 %v297, %v231
  %v314 = vmul.f32 %v298, %v233
  %v315 = vmul.f32 %v299, %v235
  %v316 = vadd.f32 %v300, -0.28449672
  %v317 = vadd.f32 %v301, -0.28449672
  %v318 = vadd.f32 %v302, -0.28449672
  %v319 = vadd.f32 %v303, -0.28449672
  %v320 = vadd.f32 %v304, -0.28449672
  %v321 = vadd.f32 %v305, -0.28449672
  %v322 = vadd.f32 %v306, -0.28449672
  %v323 = vadd.f32 %v307, -0.28449672
  %v324 = vadd.f32 %v308, -0.28449672
  %v325 = vadd.f32 %v309, -0.28449672
  %v326 = vadd.f32 %v310, -0.28449672
  %v327 = vadd.f32 %v311, -0.28449672
  %v328 = vadd.f32 %v312, -0.28449672
  %v329 = vadd.f32 %v313, -0.28449672
  %v330 = vadd.f32 %v314, -0.28449672
  %v331 = vadd.f32 %v315, -0.28449672
  %v332 = vmul.f32 %v316, %v205
  %v333 = vmul.f32 %v317, %v207
  %v334 = vmul.f32 %v318, %v209
  %v335 = vmul.f32 %v319, %v211
  %v336 = vmul.f32 %v320, %v213
  %v337 = vmul.f32 %v321, %v215
  %v338 = vmul.f32 %v322, %v217
  %v339 = vmul.f32 %v323, %v219
  %v340 = vmul.f32 %v324, %v221
  %v341 = vmul.f32 %v325, %v223
  %v342 = vmul.f32 %v326, %v225
  %v343 = vmul.f32 %v327, %v227
  %v344 = vmul.f32 %v328, %v229
  %v345 = vmul.f32 %v329, %v231
  %v346 = vmul.f32 %v330, %v233
  %v347 = vmul.f32 %v331, %v235
  %v348 = vadd.f32 %v332, 0.2548296
  %v349 = vadd.f32 %v333, 0.2548296
  %v350 = vadd.f32 %v334, 0.2548296
  %v351 = vadd.f32 %v335, 0.2548296
  %v352 = vadd.f32 %v336, 0.2548296
  %v353 = vadd.f32 %v337, 0.2548296
  %v354 = vadd.f32 %v338, 0.2548296
  %v355 = vadd.f32 %v339, 0.2548296
  %v356 = vadd.f32 %v340, 0.2548296
  %v357 = vadd.f32 %v341, 0.2548296
  %v358 = vadd.f32 %v342, 0.2548296
  %v359 = vadd.f32 %v343, 0.2548296
  %v360 = vadd.f32 %v344, 0.2548296
  %v361 = vadd.f32 %v345, 0.2548296
  %v362 = vadd.f32 %v346, 0.2548296
  %v363 = vadd.f32 %v347, 0.2548296
  %v364 = vmul.f32 %v348, %v205
  %v365 = vmul.f32 %v349, %v207
  %v366 = vmul.f32 %v350, %v209
  %v367 = vmul.f32 %v351, %v211
  %v368 = vmul.f32 %v352, %v213
  %v369 = vmul.f32 %v353, %v215
  %v370 = vmul.f32 %v354, %v217
  %v371 = vmul.f32 %v355, %v219
  %v372 = vmul.f32 %v356, %v221
  %v373 = vmul.f32 %v357, %v223
  %v374 = vmul.f32 %v358, %v225
  %v375 = vmul.f32 %v359, %v227
  %v376 = vmul.f32 %v360, %v229
  %v377 = vmul.f32 %v361, %v231
  %v378 = vmul.f32 %v362, %v233
  %v379 = vmul.f32 %v363, %v235
  %v380 = vsub.f32 0.0, %v156
  %v381 = vsub.f32 0.0, %v157
  %v382 = vsub.f32 0.0, %v158
  %v383 = vsub.f32 0.0, %v159
  %v384 = vsub.f32 0.0, %v160
  %v385 = vsub.f32 0.0, %v161
  %v386 = vsub.f32 0.0, %v162
  %v387 = vsub.f32 0.0, %v163
  %v388 = vsub.f32 0.0, %v164
  %v389 = vsub.f32 0.0, %v165
  %v390 = vsub.f32 0.0, %v166
  %v391 = vsub.f32 0.0, %v167
  %v392 = vsub.f32 0.0, %v168
  %v393 = vsub.f32 0.0, %v169
  %v394 = vsub.f32 0.0, %v170
  %v395 = vsub.f32 0.0, %v171
  %v396 = vmul.f32 %v380, %v156
  %v397 = vmul.f32 %v381, %v157
  %v398 = vmul.f32 %v382, %v158
  %v399 = vmul.f32 %v383, %v159
  %v400 = vmul.f32 %v384, %v160
  %v401 = vmul.f32 %v385, %v161
  %v402 = vmul.f32 %v386, %v162
  %v403 = vmul.f32 %v387, %v163
  %v404 = vmul.f32 %v388, %v164
  %v405 = vmul.f32 %v389, %v165
  %v406 = vmul.f32 %v390, %v166
  %v407 = vmul.f32 %v391, %v167
  %v408 = vmul.f32 %v392, %v168
  %v409 = vmul.f32 %v393, %v169
  %v410 = vmul.f32 %v394, %v170
  %v411 = vmul.f32 %v395, %v171
  %v412 = vmul.f32 %v396, 1.442695
  %v413 = vpow.pop %v412
  %v414 = vmul.f32 %v397, 1.442695
  %v415 = vpow.pop %v414
  %v416 = vmul.f32 %v398, 1.442695
  %v417 = vpow.pop %v416
  %v418 = vmul.f32 %v399, 1.442695
  %v419 = vpow.pop %v418
  %v420 = vmul.f32 %v400, 1.442695
  %v421 = vpow.pop %v420
  %v422 = vmul.f32 %v401, 1.442695
  %v423 = vpow.pop %v422
  %v424 = vmul.f32 %v402, 1.442695
  %v425 = vpow.pop %v424
  %v426 = vmul.f32 %v403, 1.442695
  %v427 = vpow.pop %v426
  %v428 = vmul.f32 %v404, 1.442695
  %v429 = vpow.pop %v428
  %v430 = vmul.f32 %v405, 1.442695
  %v431 = vpow.pop %v430
  %v432 = vmul.f32 %v406, 1.442695
  %v433 = vpow.pop %v432
  %v434 = vmul.f32 %v407, 1.442695
  %v435 = vpow.pop %v434
  %v436 = vmul.f32 %v408, 1.442695
  %v437 = vpow.pop %v436
  %v438 = vmul.f32 %v409, 1.442695
  %v439 = vpow.pop %v438
  %v440 = vmul.f32 %v410, 1.442695
  %v441 = vpow.pop %v440
  %v442 = vmul.f32 %v411, 1.442695
  %v443 = vpow.pop %v442
  %v444 = vmul.f32 %v364, %v413
  %v445 = vmul.f32 %v365, %v415
  %v446 = vmul.f32 %v366, %v417
  %v447 = vmul.f32 %v367, %v419
  %v448 = vmul.f32 %v368, %v421
  %v449 = vmul.f32 %v369, %v423
  %v450 = vmul.f32 %v370, %v425
  %v451 = vmul.f32 %v371, %v427
  %v452 = vmul.f32 %v372, %v429
  %v453 = vmul.f32 %v373, %v431
  %v454 = vmul.f32 %v374, %v433
  %v455 = vmul.f32 %v375, %v435
  %v456 = vmul.f32 %v376, %v437
  %v457 = vmul.f32 %v377, %v439
  %v458 = vmul.f32 %v378, %v441
  %v459 = vmul.f32 %v379, %v443
  %v460 = vsub.f32 1.0, %v444
  %v461 = vsub.f32 1.0, %v445
  %v462 = vsub.f32 1.0, %v446
  %v463 = vsub.f32 1.0, %v447
  %v464 = vsub.f32 1.0, %v448
  %v465 = vsub.f32 1.0, %v449
  %v466 = vsub.f32 1.0, %v450
  %v467 = vsub.f32 1.0, %v451
  %v468 = vsub.f32 1.0, %v452
  %v469 = vsub.f32 1.0, %v453
  %v470 = vsub.f32 1.0, %v454
  %v471 = vsub.f32 1.0, %v455
  %v472 = vsub.f32 1.0, %v456
  %v473 = vsub.f32 1.0, %v457
  %v474 = vsub.f32 1.0, %v458
  %v475 = vsub.f32 1.0, %v459
  %v476 = vmul.f32 %v140, %v460
  %v477 = vmul.f32 %v141, %v461
  %v478 = vmul.f32 %v142, %v462
  %v479 = vmul.f32 %v143, %v463
  %v480 = vmul.f32 %v144, %v464
  %v481 = vmul.f32 %v145, %v465
  %v482 = vmul.f32 %v146, %v466
  %v483 = vmul.f32 %v147, %v467
  %v484 = vmul.f32 %v148, %v468
  %v485 = vmul.f32 %v149, %v469
  %v486 = vmul.f32 %v150, %v470
  %v487 = vmul.f32 %v151, %v471
  %v488 = vmul.f32 %v152, %v472
  %v489 = vmul.f32 %v153, %v473
  %v490 = vmul.f32 %v154, %v474
  %v491 = vmul.f32 %v155, %v475
  %v492 = vadd.f32 %v476, 1.0
  %v493 = vadd.f32 %v477, 1.0
  %v494 = vadd.f32 %v478, 1.0
  %v495 = vadd.f32 %v479, 1.0
  %v496 = vadd.f32 %v480, 1.0
  %v497 = vadd.f32 %v481, 1.0
  %v498 = vadd.f32 %v482, 1.0
  %v499 = vadd.f32 %v483, 1.0
  %v500 = vadd.f32 %v484, 1.0
  %v501 = vadd.f32 %v485, 1.0
  %v502 = vadd.f32 %v486, 1.0
  %v503 = vadd.f32 %v487, 1.0
  %v504 = vadd.f32 %v488, 1.0
  %v505 = vadd.f32 %v489, 1.0
  %v506 = vadd.f32 %v490, 1.0
  %v507 = vadd.f32 %v491, 1.0
  %v508 = vmul.f32 %v92, %v492
  %v509 = vmul.f32 %v93, %v493
  %v510 = vmul.f32 %v94, %v494
  %v511 = vmul.f32 %v95, %v495
  %v512 = vmul.f32 %v96, %v496
  %v513 = vmul.f32 %v97, %v497
  %v514 = vmul.f32 %v98, %v498
  %v515 = vmul.f32 %v99, %v499
  %v516 = vmul.f32 %v100, %v500
  %v517 = vmul.f32 %v101, %v501
  %v518 = vmul.f32 %v102, %v502
  %v519 = vmul.f32 %v103, %v503
  %v520 = vmul.f32 %v104, %v504
  %v521 = vmul.f32 %v105, %v505
  %v522 = vmul.f32 %v106, %v506
  %v523 = vmul.f32 %v107, %v507
  %524 = vst [vmem:[%s3] sm:$0xff] %v508
  %525 = vst [vmem:[%s3 + $0x8] sm:$0xff] %v509
  %526 = vst [vmem:[%s3 + $0x10] sm:$0xff] %v510
  %527 = vst [vmem:[%s3 + $0x18] sm:$0xff] %v511
  %528 = vst [vmem:[%s3 + $0x20] sm:$0xff] %v512
  %529 = vst [vmem:[%s3 + $0x28] sm:$0xff] %v513
  %530 = vst [vmem:[%s3 + $0x30] sm:$0xff] %v514
  %531 = vst [vmem:[%s3 + $0x38] sm:$0xff] %v515
  %532 = vst [vmem:[%s3 + $0x40] sm:$0xff] %v516
  %533 = vst [vmem:[%s3 + $0x48] sm:$0xff] %v517
  %534 = vst [vmem:[%s3 + $0x50] sm:$0xff] %v518
  %535 = vst [vmem:[%s3 + $0x58] sm:$0xff] %v519
  %536 = vst [vmem:[%s3 + $0x60] sm:$0xff] %v520
  %537 = vst [vmem:[%s3 + $0x68] sm:$0xff] %v521
  %538 = vst [vmem:[%s3 + $0x70] sm:$0xff] %v522
  %539 = vst [vmem:[%s3 + $0x78] sm:$0xff] %v523
  // Predicated region
  $region14: #{convgroup_forward.5} parent=0 // pred_check
    _
  $region15: #{convgroup_forward.5} parent=0 // pred_check_branch
    %541 = sbr.rel (0) target = $region17
  $region16: #{convgroup_forward.5} parent=0 // pred_region
    _
  $region17: #{convgroup_forward.5} parent=0 // pred_fallthru
    _
  // Predicated region
  $region18: #{convgroup_forward.5} parent=0 // pred_check
    _
  $region19: #{convgroup_forward.5} parent=0 // pred_check_branch
    %543 = sbr.rel (0) target = $region21
  $region20: #{convgroup_forward.5} parent=0 // pred_region
    _
  $region21: #{convgroup_forward.5} parent=0 // pred_fallthru
    _

// kernel: convgroup_forward.4
$region0: #{convgroup_forward.4}
  #allocation0 [shape = 'u32[]', space=smem, size = 0x4, offset = 0x4, fixed_abs, tag = 'smem constant byte address 0x4 - core index']
  #allocation1 [shape = 'u32[144,128]{1,0:T(1,128)}', space=vmem, size = 0x12000, scoped, tag = 'internal scratch']
  #allocation2 [shape = 'bf16[2,10,10,128]{3,2,1,0:T(8,128)(2,1)}', space=vmem, size = 0x14000, scoped, tag = 'scratch operand']
  #allocation3 [shape = 'bf16[128,1152]{1,0:T(8,128)(2,1)}', space=vmem, size = 0x48000, scoped, tag = 'scratch operand']
  %s0 = inlined_call_operand.vmem [shape: bf16[2,8,8,128], index: 0, kind: input, shape index: {}]
  %s1 = inlined_call_operand.vmem [shape: f32[1,128], index: 1, kind: input, shape index: {}]
  %s2 = inlined_call_operand.vmem [shape: f32[1,128], index: 2, kind: input, shape index: {}]
  %s3 = inlined_call_operand.vmem [shape: bf16[1152,128], index: 3, kind: input, shape index: {}]
  %s4 = inlined_call_operand.vmem [shape: bf16[128,128], index: 4, kind: output, shape index: {0}]
  %s5 = inlined_call_operand.vmem [shape: f32[1,1,128], index: 5, kind: output, shape index: {1}]
  %s6 = inlined_call_operand.vmem [shape: f32[1,1,128], index: 6, kind: output, shape index: {2}]
  %7 = xla_tuple %s4, %s5, %s6
  %s8 = sld [smem:[#allocation0]]
  $region42: #{convgroup_forward.4} parent=0
    _
  %s10 = ssub.s32 1, %s8
  %s11 = scalar_select 0, %s10, %s8
  // Predicated region
  $region2: #{convgroup_forward.4} parent=0 // pred_check
    _
  $region3: #{convgroup_forward.4} parent=0 // pred_check_branch
    %13 = sbr.rel (0) target = $region5
  $region4: #{convgroup_forward.4} parent=0 // pred_region
    _
  $region5: #{convgroup_forward.4} parent=0 // pred_fallthru
    _
  // Predicated region
  $region6: #{convgroup_forward.4} parent=0 // pred_check
    _
  $region7: #{convgroup_forward.4} parent=0 // pred_check_branch
    %15 = sbr.rel (0) target = $region9
  $region8: #{convgroup_forward.4} parent=0 // pred_region
    _
  $region9: #{convgroup_forward.4} parent=0 // pred_fallthru
    _
  // Predicated region
  $region10: #{convgroup_forward.4} parent=0 // pred_check
    _
  $region11: #{convgroup_forward.4} parent=0 // pred_check_branch
    %17 = sbr.rel (0) target = $region13
  $region12: #{convgroup_forward.4} parent=0 // pred_region
    _
  $region13: #{convgroup_forward.4} parent=0 // pred_fallthru
    _
  // Predicated region
  $region14: #{convgroup_forward.4} parent=0 // pred_check
    _
  $region15: #{convgroup_forward.4} parent=0 // pred_check_branch
    %19 = sbr.rel (0) target = $region17
  $region16: #{convgroup_forward.4} parent=0 // pred_region
    _
  $region17: #{convgroup_forward.4} parent=0 // pred_fallthru
    _
  %21 = vst [vmem:[#allocation2] sm:$0xf] 0
  %22 = vst [vmem:[#allocation2 + $0x4] sm:$0x1] 0
  %23 = vst [vmem:[#allocation2 + $0x50] sm:$0xf] 0
  %24 = vst [vmem:[#allocation2 + $0x54] sm:$0x1] 0
  %s25 = scalar_lea.vmem [#allocation2], 72
  %26 = vst [vmem:[%s25] sm:$0xf] 0
  %27 = vst [vmem:[%s25 + $0x4] sm:$0x1] 0
  %28 = vst [vmem:[%s25 + $0x50] sm:$0xf] 0
  %29 = vst [vmem:[%s25 + $0x54] sm:$0x1] 0
  %vm30 = vcmask 1040384
  %vm31 = vsmask.f32 256
  %vm32 = vmand %vm30, %vm31
  %v33 = vld [vmem:[#allocation2] sm:$0x1]
  %v34 = vsel %vm32, 0, %v33
  %35 = vst [vmem:[#allocation2] sm:$0x1] %v34
  %v36 = vld [vmem:[#allocation2 + $0x8] sm:$0x1]
  %v37 = vsel %vm32, 0, %v36
  %38 = vst [vmem:[#allocation2 + $0x8] sm:$0x1] %v37
  %v39 = vld [vmem:[#allocation2 + $0x10] sm:$0x1]
  %v40 = vsel %vm32, 0, %v39
  %41 = vst [vmem:[#allocation2 + $0x10] sm:$0x1] %v40
  %v42 = vld [vmem:[#allocation2 + $0x18] sm:$0x1]
  %v43 = vsel %vm32, 0, %v42
  %44 = vst [vmem:[#allocation2 + $0x18] sm:$0x1] %v43
  %v45 = vld [vmem:[#allocation2 + $0x20] sm:$0x1]
  %v46 = vsel %vm32, 0, %v45
  %47 = vst [vmem:[#allocation2 + $0x20] sm:$0x1] %v46
  %v48 = vld [vmem:[#allocation2 + $0x28] sm:$0x1]
  %v49 = vsel %vm32, 0, %v48
  %50 = vst [vmem:[#allocation2 + $0x28] sm:$0x1] %v49
  %v51 = vld [vmem:[#allocation2 + $0x30] sm:$0x1]
  %v52 = vsel %vm32, 0, %v51
  %53 = vst [vmem:[#allocation2 + $0x30] sm:$0x1] %v52
  %v54 = vld [vmem:[#allocation2 + $0x38] sm:$0x1]
  %v55 = vsel %vm32, 0, %v54
  %56 = vst [vmem:[#allocation2 + $0x38] sm:$0x1] %v55
  %v57 = vld [vmem:[#allocation2 + $0x40] sm:$0x1]
  %v58 = vsel %vm32, 0, %v57
  %59 = vst [vmem:[#allocation2 + $0x40] sm:$0x1] %v58
  %v60 = vld [vmem:[#allocation2 + $0x48] sm:$0x1]
  %v61 = vsel %vm32, 0, %v60
  %62 = vst [vmem:[#allocation2 + $0x48] sm:$0x1] %v61
  %v63 = vld [vmem:[#allocation2 + $0x50] sm:$0x1]
  %v64 = vsel %vm32, 0, %v63
  %65 = vst [vmem:[#allocation2 + $0x50] sm:$0x1] %v64
  %v66 = vld [vmem:[#allocation2 + $0x58] sm:$0x1]
  %v67 = vsel %vm32, 0, %v66
  %68 = vst [vmem:[#allocation2 + $0x58] sm:$0x1] %v67
  %v69 = vld [vmem:[#allocation2 + $0x60] sm:$0x1]
  %v70 = vsel %vm32, 0, %v69
  %71 = vst [vmem:[#allocation2 + $0x60] sm:$0x1] %v70
  %v72 = vld [vmem:[#allocation2 + $0x68] sm:$0x1]
  %v73 = vsel %vm32, 0, %v72
  %74 = vst [vmem:[#allocation2 + $0x68] sm:$0x1] %v73
  %v75 = vld [vmem:[#allocation2 + $0x70] sm:$0x1]
  %v76 = vsel %vm32, 0, %v75
  %77 = vst [vmem:[#allocation2 + $0x70] sm:$0x1] %v76
  %v78 = vld [vmem:[#allocation2 + $0x78] sm:$0x1]
  %v79 = vsel %vm32, 0, %v78
  %80 = vst [vmem:[#allocation2 + $0x78] sm:$0x1] %v79
  %v81 = vld [vmem:[#allocation2 + $0x80] sm:$0x1]
  %v82 = vsel %vm32, 0, %v81
  %83 = vst [vmem:[#allocation2 + $0x80] sm:$0x1] %v82
  %v84 = vld [vmem:[#allocation2 + $0x88] sm:$0x1]
  %v85 = vsel %vm32, 0, %v84
  %86 = vst [vmem:[#allocation2 + $0x88] sm:$0x1] %v85
  %v87 = vld [vmem:[#allocation2 + $0x90] sm:$0x1]
  %v88 = vsel %vm32, 0, %v87
  %89 = vst [vmem:[#allocation2 + $0x90] sm:$0x1] %v88
  %v90 = vld [vmem:[#allocation2 + $0x98] sm:$0x1]
  %v91 = vsel %vm32, 0, %v90
  %92 = vst [vmem:[#allocation2 + $0x98] sm:$0x1] %v91
  %vm93 = vsmask.f32 7938
  %vm94 = vmand %vm30, %vm93
  %v95 = vld [vmem:[#allocation2 + $0x4] sm:$0x1]
  %v96 = vsel %vm94, 0, %v95
  %97 = vst [vmem:[#allocation2 + $0x4] sm:$0x1] %v96
  %v98 = vld [vmem:[#allocation2 + $0xc] sm:$0x1]
  %v99 = vsel %vm94, 0, %v98
  %100 = vst [vmem:[#allocation2 + $0xc] sm:$0x1] %v99
  %v101 = vld [vmem:[#allocation2 + $0x14] sm:$0x1]
  %v102 = vsel %vm94, 0, %v101
  %103 = vst [vmem:[#allocation2 + $0x14] sm:$0x1] %v102
  %v104 = vld [vmem:[#allocation2 + $0x1c] sm:$0x1]
  %v105 = vsel %vm94, 0, %v104
  %106 = vst [vmem:[#allocation2 + $0x1c] sm:$0x1] %v105
  %v107 = vld [vmem:[#allocation2 + $0x24] sm:$0x1]
  %v108 = vsel %vm94, 0, %v107
  %109 = vst [vmem:[#allocation2 + $0x24] sm:$0x1] %v108
  %v110 = vld [vmem:[#allocation2 + $0x2c] sm:$0x1]
  %v111 = vsel %vm94, 0, %v110
  %112 = vst [vmem:[#allocation2 + $0x2c] sm:$0x1] %v111
  %v113 = vld [vmem:[#allocation2 + $0x34] sm:$0x1]
  %v114 = vsel %vm94, 0, %v113
  %115 = vst [vmem:[#allocation2 + $0x34] sm:$0x1] %v114
  %v116 = vld [vmem:[#allocation2 + $0x3c] sm:$0x1]
  %v117 = vsel %vm94, 0, %v116
  %118 = vst [vmem:[#allocation2 + $0x3c] sm:$0x1] %v117
  %v119 = vld [vmem:[#allocation2 + $0x44] sm:$0x1]
  %v120 = vsel %vm94, 0, %v119
  %121 = vst [vmem:[#allocation2 + $0x44] sm:$0x1] %v120
  %v122 = vld [vmem:[#allocation2 + $0x4c] sm:$0x1]
  %v123 = vsel %vm94, 0, %v122
  %124 = vst [vmem:[#allocation2 + $0x4c] sm:$0x1] %v123
  %v125 = vld [vmem:[#allocation2 + $0x54] sm:$0x1]
  %v126 = vsel %vm94, 0, %v125
  %127 = vst [vmem:[#allocation2 + $0x54] sm:$0x1] %v126
  %v128 = vld [vmem:[#allocation2 + $0x5c] sm:$0x1]
  %v129 = vsel %vm94, 0, %v128
  %130 = vst [vmem:[#allocation2 + $0x5c] sm:$0x1] %v129
  %v131 = vld [vmem:[#allocation2 + $0x64] sm:$0x1]
  %v132 = vsel %vm94, 0, %v131
  %133 = vst [vmem:[#allocation2 + $0x64] sm:$0x1] %v132
  %v134 = vld [vmem:[#allocation2 + $0x6c] sm:$0x1]
  %v135 = vsel %vm94, 0, %v134
  %136 = vst [vmem:[#allocation2 + $0x6c] sm:$0x1] %v135
  %v137 = vld [vmem:[#allocation2 + $0x74] sm:$0x1]
  %v138 = vsel %vm94, 0, %v137
  %139 = vst [vmem:[#allocation2 + $0x74] sm:$0x1] %v138
  %v140 = vld [vmem:[#allocation2 + $0x7c] sm:$0x1]
  %v141 = vsel %vm94, 0, %v140
  %142 = vst [vmem:[#allocation2 + $0x7c] sm:$0x1] %v141
  %v143 = vld [vmem:[#allocation2 + $0x84] sm:$0x1]
  %v144 = vsel %vm94, 0, %v143
  %145 = vst [vmem:[#allocation2 + $0x84] sm:$0x1] %v144
  %v146 = vld [vmem:[#allocation2 + $0x8c] sm:$0x1]
  %v147 = vsel %vm94, 0, %v146
  %148 = vst [vmem:[#allocation2 + $0x8c] sm:$0x1] %v147
  %v149 = vld [vmem:[#allocation2 + $0x94] sm:$0x1]
  %v150 = vsel %vm94, 0, %v149
  %151 = vst [vmem:[#allocation2 + $0x94] sm:$0x1] %v150
  %v152 = vld [vmem:[#allocation2 + $0x9c] sm:$0x1]
  %v153 = vsel %vm94, 0, %v152
  %154 = vst [vmem:[#allocation2 + $0x9c] sm:$0x1] %v153
  %v155 = vld [vmem:[%s1] sm:$0x1]
  %v156 = vld [vmem:[%s2] sm:$0x1]
  %v157 = vld [vmem:[%s0] sm:$0xf]
  %v158 = vld [vmem:[%s0 + $0x4] sm:$0xf]
  %v159 = vld [vmem:[%s0 + $0x8] sm:$0xf]
  %v160 = vld [vmem:[%s0 + $0xc] sm:$0xf]
  %v161 = vld [vmem:[%s0 + $0x10] sm:$0xf]
  %v162 = vld [vmem:[%s0 + $0x14] sm:$0xf]
  %v163 = vld [vmem:[%s0 + $0x18] sm:$0xf]
  %v164 = vld [vmem:[%s0 + $0x1c] sm:$0xf]
  %v165 = vld [vmem:[%s0 + $0x20] sm:$0xf]
  %v166 = vld [vmem:[%s0 + $0x24] sm:$0xf]
  %v167 = vld [vmem:[%s0 + $0x28] sm:$0xf]
  %v168 = vld [vmem:[%s0 + $0x2c] sm:$0xf]
  %v169 = vld [vmem:[%s0 + $0x30] sm:$0xf]
  %v170 = vld [vmem:[%s0 + $0x34] sm:$0xf]
  %v171 = vld [vmem:[%s0 + $0x38] sm:$0xf]
  %v172 = vld [vmem:[%s0 + $0x3c] sm:$0xf]
  %v173 = vunpack.c.l.bf16 %v157
  %v174 = vunpack.c.l.bf16 %v158
  %v175 = vunpack.c.l.bf16 %v159
  %v176 = vunpack.c.l.bf16 %v160
  %v177 = vunpack.c.l.bf16 %v161
  %v178 = vunpack.c.l.bf16 %v162
  %v179 = vunpack.c.l.bf16 %v163
  %v180 = vunpack.c.l.bf16 %v164
  %v181 = vunpack.c.l.bf16 %v165
  %v182 = vunpack.c.l.bf16 %v166
  %v183 = vunpack.c.l.bf16 %v167
  %v184 = vunpack.c.l.bf16 %v168
  %v185 = vunpack.c.l.bf16 %v169
  %v186 = vunpack.c.l.bf16 %v170
  %v187 = vunpack.c.l.bf16 %v171
  %v188 = vunpack.c.l.bf16 %v172
  %v190 = vlaneseq
  %v191 = vshrl.u32 %v190, 7
  %v192 = vsub.s32 0, %v191
  %v193 = vrot.slane %v155, %v192
  %v195 = vmul.f32 %v173, %v193
  %v196 = vmul.f32 %v174, %v193
  %v197 = vmul.f32 %v175, %v193
  %v198 = vmul.f32 %v176, %v193
  %v199 = vmul.f32 %v177, %v193
  %v200 = vmul.f32 %v178, %v193
  %v201 = vmul.f32 %v179, %v193
  %v202 = vmul.f32 %v180, %v193
  %v203 = vmul.f32 %v181, %v193
  %v204 = vmul.f32 %v182, %v193
  %v205 = vmul.f32 %v183, %v193
  %v206 = vmul.f32 %v184, %v193
  %v207 = vmul.f32 %v185, %v193
  %v208 = vmul.f32 %v186, %v193
  %v209 = vmul.f32 %v187, %v193
  %v210 = vmul.f32 %v188, %v193
  %v212 = vlaneseq
  %v213 = vshrl.u32 %v212, 7
  %v214 = vsub.s32 0, %v213
  %v215 = vrot.slane %v156, %v214
  %v217 = vadd.f32 %v195, %v215
  %v218 = vadd.f32 %v196, %v215
  %v219 = vadd.f32 %v197, %v215
  %v220 = vadd.f32 %v198, %v215
  %v221 = vadd.f32 %v199, %v215
  %v222 = vadd.f32 %v200, %v215
  %v223 = vadd.f32 %v201, %v215
  %v224 = vadd.f32 %v202, %v215
  %v225 = vadd.f32 %v203, %v215
  %v226 = vadd.f32 %v204, %v215
  %v227 = vadd.f32 %v205, %v215
  %v228 = vadd.f32 %v206, %v215
  %v229 = vadd.f32 %v207, %v215
  %v230 = vadd.f32 %v208, %v215
  %v231 = vadd.f32 %v209, %v215
  %v232 = vadd.f32 %v210, %v215
  %v233 = vmul.f32 %v217, 0.5
  %v234 = vmul.f32 %v218, 0.5
  %v235 = vmul.f32 %v219, 0.5
  %v236 = vmul.f32 %v220, 0.5
  %v237 = vmul.f32 %v221, 0.5
  %v238 = vmul.f32 %v222, 0.5
  %v239 = vmul.f32 %v223, 0.5
  %v240 = vmul.f32 %v224, 0.5
  %v241 = vmul.f32 %v225, 0.5
  %v242 = vmul.f32 %v226, 0.5
  %v243 = vmul.f32 %v227, 0.5
  %v244 = vmul.f32 %v228, 0.5
  %v245 = vmul.f32 %v229, 0.5
  %v246 = vmul.f32 %v230, 0.5
  %v247 = vmul.f32 %v231, 0.5
  %v248 = vmul.f32 %v232, 0.5
  %v249 = vmul.f32 %v217, 0.70710677
  %v250 = vmul.f32 %v218, 0.70710677
  %v251 = vmul.f32 %v219, 0.70710677
  %v252 = vmul.f32 %v220, 0.70710677
  %v253 = vmul.f32 %v221, 0.70710677
  %v254 = vmul.f32 %v222, 0.70710677
  %v255 = vmul.f32 %v223, 0.70710677
  %v256 = vmul.f32 %v224, 0.70710677
  %v257 = vmul.f32 %v225, 0.70710677
  %v258 = vmul.f32 %v226, 0.70710677
  %v259 = vmul.f32 %v227, 0.70710677
  %v260 = vmul.f32 %v228, 0.70710677
  %v261 = vmul.f32 %v229, 0.70710677
  %v262 = vmul.f32 %v230, 0.70710677
  %v263 = vmul.f32 %v231, 0.70710677
  %v264 = vmul.f32 %v232, 0.70710677
  %vm265 = vcmp.ge.f32.partialorder %v249, 0.0
  %vm266 = vcmp.ge.f32.partialorder %v250, 0.0
  %vm267 = vcmp.ge.f32.partialorder %v251, 0.0
  %vm268 = vcmp.ge.f32.partialorder %v252, 0.0
  %vm269 = vcmp.ge.f32.partialorder %v253, 0.0
  %vm270 = vcmp.ge.f32.partialorder %v254, 0.0
  %vm271 = vcmp.ge.f32.partialorder %v255, 0.0
  %vm272 = vcmp.ge.f32.partialorder %v256, 0.0
  %vm273 = vcmp.ge.f32.partialorder %v257, 0.0
  %vm274 = vcmp.ge.f32.partialorder %v258, 0.0
  %vm275 = vcmp.ge.f32.partialorder %v259, 0.0
  %vm276 = vcmp.ge.f32.partialorder %v260, 0.0
  %vm277 = vcmp.ge.f32.partialorder %v261, 0.0
  %vm278 = vcmp.ge.f32.partialorder %v262, 0.0
  %vm279 = vcmp.ge.f32.partialorder %v263, 0.0
  %vm280 = vcmp.ge.f32.partialorder %v264, 0.0
  %v281 = vsel %vm265, 1.0, -1.0
  %v282 = vsel %vm266, 1.0, -1.0
  %v283 = vsel %vm267, 1.0, -1.0
  %v284 = vsel %vm268, 1.0, -1.0
  %v285 = vsel %vm269, 1.0, -1.0
  %v286 = vsel %vm270, 1.0, -1.0
  %v287 = vsel %vm271, 1.0, -1.0
  %v288 = vsel %vm272, 1.0, -1.0
  %v289 = vsel %vm273, 1.0, -1.0
  %v290 = vsel %vm274, 1.0, -1.0
  %v291 = vsel %vm275, 1.0, -1.0
  %v292 = vsel %vm276, 1.0, -1.0
  %v293 = vsel %vm277, 1.0, -1.0
  %v294 = vsel %vm278, 1.0, -1.0
  %v295 = vsel %vm279, 1.0, -1.0
  %v296 = vsel %vm280, 1.0, -1.0
  %v297 = vand.u32 2147483647, %v249
  %v298 = vand.u32 2147483647, %v250
  %v299 = vand.u32 2147483647, %v251
  %v300 = vand.u32 2147483647, %v252
  %v301 = vand.u32 2147483647, %v253
  %v302 = vand.u32 2147483647, %v254
  %v303 = vand.u32 2147483647, %v255
  %v304 = vand.u32 2147483647, %v256
  %v305 = vand.u32 2147483647, %v257
  %v306 = vand.u32 2147483647, %v258
  %v307 = vand.u32 2147483647, %v259
  %v308 = vand.u32 2147483647, %v260
  %v309 = vand.u32 2147483647, %v261
  %v310 = vand.u32 2147483647, %v262
  %v311 = vand.u32 2147483647, %v263
  %v312 = vand.u32 2147483647, %v264
  %v313 = vmul.f32 %v297, 0.3275911
  %v314 = vmul.f32 %v298, 0.3275911
  %v315 = vmul.f32 %v299, 0.3275911
  %v316 = vmul.f32 %v300, 0.3275911
  %v317 = vmul.f32 %v301, 0.3275911
  %v318 = vmul.f32 %v302, 0.3275911
  %v319 = vmul.f32 %v303, 0.3275911
  %v320 = vmul.f32 %v304, 0.3275911
  %v321 = vmul.f32 %v305, 0.3275911
  %v322 = vmul.f32 %v306, 0.3275911
  %v323 = vmul.f32 %v307, 0.3275911
  %v324 = vmul.f32 %v308, 0.3275911
  %v325 = vmul.f32 %v309, 0.3275911
  %v326 = vmul.f32 %v310, 0.3275911
  %v327 = vmul.f32 %v311, 0.3275911
  %v328 = vmul.f32 %v312, 0.3275911
  %v329 = vadd.f32 %v313, 1.0
  %v330 = vadd.f32 %v314, 1.0
  %v331 = vadd.f32 %v315, 1.0
  %v332 = vadd.f32 %v316, 1.0
  %v333 = vadd.f32 %v317, 1.0
  %v334 = vadd.f32 %v318, 1.0
  %v335 = vadd.f32 %v319, 1.0
  %v336 = vadd.f32 %v320, 1.0
  %v337 = vadd.f32 %v321, 1.0
  %v338 = vadd.f32 %v322, 1.0
  %v339 = vadd.f32 %v323, 1.0
  %v340 = vadd.f32 %v324, 1.0
  %v341 = vadd.f32 %v325, 1.0
  %v342 = vadd.f32 %v326, 1.0
  %v343 = vadd.f32 %v327, 1.0
  %v344 = vadd.f32 %v328, 1.0
  %v345 = vrcp.pop %v329
  %v346 = vmul.f32 1.0, %v345
  %v347 = vrcp.pop %v330
  %v348 = vmul.f32 1.0, %v347
  %v349 = vrcp.pop %v331
  %v350 = vmul.f32 1.0, %v349
  %v351 = vrcp.pop %v332
  %v352 = vmul.f32 1.0, %v351
  %v353 = vrcp.pop %v333
  %v354 = vmul.f32 1.0, %v353
  %v355 = vrcp.pop %v334
  %v356 = vmul.f32 1.0, %v355
  %v357 = vrcp.pop %v335
  %v358 = vmul.f32 1.0, %v357
  %v359 = vrcp.pop %v336
  %v360 = vmul.f32 1.0, %v359
  %v361 = vrcp.pop %v337
  %v362 = vmul.f32 1.0, %v361
  %v363 = vrcp.pop %v338
  %v364 = vmul.f32 1.0, %v363
  %v365 = vrcp.pop %v339
  %v366 = vmul.f32 1.0, %v365
  %v367 = vrcp.pop %v340
  %v368 = vmul.f32 1.0, %v367
  %v369 = vrcp.pop %v341
  %v370 = vmul.f32 1.0, %v369
  %v371 = vrcp.pop %v342
  %v372 = vmul.f32 1.0, %v371
  %v373 = vrcp.pop %v343
  %v374 = vmul.f32 1.0, %v373
  %v375 = vrcp.pop %v344
  %v376 = vmul.f32 1.0, %v375
  %v377 = vmul.f32 %v346, 1.0614054
  %v378 = vmul.f32 %v348, 1.0614054
  %v379 = vmul.f32 %v350, 1.0614054
  %v380 = vmul.f32 %v352, 1.0614054
  %v381 = vmul.f32 %v354, 1.0614054
  %v382 = vmul.f32 %v356, 1.0614054
  %v383 = vmul.f32 %v358, 1.0614054
  %v384 = vmul.f32 %v360, 1.0614054
  %v385 = vmul.f32 %v362, 1.0614054
  %v386 = vmul.f32 %v364, 1.0614054
  %v387 = vmul.f32 %v366, 1.0614054
  %v388 = vmul.f32 %v368, 1.0614054
  %v389 = vmul.f32 %v370, 1.0614054
  %v390 = vmul.f32 %v372, 1.0614054
  %v391 = vmul.f32 %v374, 1.0614054
  %v392 = vmul.f32 %v376, 1.0614054
  %v393 = vadd.f32 %v377, -1.4531521
  %v394 = vadd.f32 %v378, -1.4531521
  %v395 = vadd.f32 %v379, -1.4531521
  %v396 = vadd.f32 %v380, -1.4531521
  %v397 = vadd.f32 %v381, -1.4531521
  %v398 = vadd.f32 %v382, -1.4531521
  %v399 = vadd.f32 %v383, -1.4531521
  %v400 = vadd.f32 %v384, -1.4531521
  %v401 = vadd.f32 %v385, -1.4531521
  %v402 = vadd.f32 %v386, -1.4531521
  %v403 = vadd.f32 %v387, -1.4531521
  %v404 = vadd.f32 %v388, -1.4531521
  %v405 = vadd.f32 %v389, -1.4531521
  %v406 = vadd.f32 %v390, -1.4531521
  %v407 = vadd.f32 %v391, -1.4531521
  %v408 = vadd.f32 %v392, -1.4531521
  %v409 = vmul.f32 %v393, %v346
  %v410 = vmul.f32 %v394, %v348
  %v411 = vmul.f32 %v395, %v350
  %v412 = vmul.f32 %v396, %v352
  %v413 = vmul.f32 %v397, %v354
  %v414 = vmul.f32 %v398, %v356
  %v415 = vmul.f32 %v399, %v358
  %v416 = vmul.f32 %v400, %v360
  %v417 = vmul.f32 %v401, %v362
  %v418 = vmul.f32 %v402, %v364
  %v419 = vmul.f32 %v403, %v366
  %v420 = vmul.f32 %v404, %v368
  %v421 = vmul.f32 %v405, %v370
  %v422 = vmul.f32 %v406, %v372
  %v423 = vmul.f32 %v407, %v374
  %v424 = vmul.f32 %v408, %v376
  %v425 = vadd.f32 %v409, 1.4214138
  %v426 = vadd.f32 %v410, 1.4214138
  %v427 = vadd.f32 %v411, 1.4214138
  %v428 = vadd.f32 %v412, 1.4214138
  %v429 = vadd.f32 %v413, 1.4214138
  %v430 = vadd.f32 %v414, 1.4214138
  %v431 = vadd.f32 %v415, 1.4214138
  %v432 = vadd.f32 %v416, 1.4214138
  %v433 = vadd.f32 %v417, 1.4214138
  %v434 = vadd.f32 %v418, 1.4214138
  %v435 = vadd.f32 %v419, 1.4214138
  %v436 = vadd.f32 %v420, 1.4214138
  %v437 = vadd.f32 %v421, 1.4214138
  %v438 = vadd.f32 %v422, 1.4214138
  %v439 = vadd.f32 %v423, 1.4214138
  %v440 = vadd.f32 %v424, 1.4214138
  %v441 = vmul.f32 %v425, %v346
  %v442 = vmul.f32 %v426, %v348
  %v443 = vmul.f32 %v427, %v350
  %v444 = vmul.f32 %v428, %v352
  %v445 = vmul.f32 %v429, %v354
  %v446 = vmul.f32 %v430, %v356
  %v447 = vmul.f32 %v431, %v358
  %v448 = vmul.f32 %v432, %v360
  %v449 = vmul.f32 %v433, %v362
  %v450 = vmul.f32 %v434, %v364
  %v451 = vmul.f32 %v435, %v366
  %v452 = vmul.f32 %v436, %v368
  %v453 = vmul.f32 %v437, %v370
  %v454 = vmul.f32 %v438, %v372
  %v455 = vmul.f32 %v439, %v374
  %v456 = vmul.f32 %v440, %v376
  %v457 = vadd.f32 %v441, -0.28449672
  %v458 = vadd.f32 %v442, -0.28449672
  %v459 = vadd.f32 %v443, -0.28449672
  %v460 = vadd.f32 %v444, -0.28449672
  %v461 = vadd.f32 %v445, -0.28449672
  %v462 = vadd.f32 %v446, -0.28449672
  %v463 = vadd.f32 %v447, -0.28449672
  %v464 = vadd.f32 %v448, -0.28449672
  %v465 = vadd.f32 %v449, -0.28449672
  %v466 = vadd.f32 %v450, -0.28449672
  %v467 = vadd.f32 %v451, -0.28449672
  %v468 = vadd.f32 %v452, -0.28449672
  %v469 = vadd.f32 %v453, -0.28449672
  %v470 = vadd.f32 %v454, -0.28449672
  %v471 = vadd.f32 %v455, -0.28449672
  %v472 = vadd.f32 %v456, -0.28449672
  %v473 = vmul.f32 %v457, %v346
  %v474 = vmul.f32 %v458, %v348
  %v475 = vmul.f32 %v459, %v350
  %v476 = vmul.f32 %v460, %v352
  %v477 = vmul.f32 %v461, %v354
  %v478 = vmul.f32 %v462, %v356
  %v479 = vmul.f32 %v463, %v358
  %v480 = vmul.f32 %v464, %v360
  %v481 = vmul.f32 %v465, %v362
  %v482 = vmul.f32 %v466, %v364
  %v483 = vmul.f32 %v467, %v366
  %v484 = vmul.f32 %v468, %v368
  %v485 = vmul.f32 %v469, %v370
  %v486 = vmul.f32 %v470, %v372
  %v487 = vmul.f32 %v471, %v374
  %v488 = vmul.f32 %v472, %v376
  %v489 = vadd.f32 %v473, 0.2548296
  %v490 = vadd.f32 %v474, 0.2548296
  %v491 = vadd.f32 %v475, 0.2548296
  %v492 = vadd.f32 %v476, 0.2548296
  %v493 = vadd.f32 %v477, 0.2548296
  %v494 = vadd.f32 %v478, 0.2548296
  %v495 = vadd.f32 %v479, 0.2548296
  %v496 = vadd.f32 %v480, 0.2548296
  %v497 = vadd.f32 %v481, 0.2548296
  %v498 = vadd.f32 %v482, 0.2548296
  %v499 = vadd.f32 %v483, 0.2548296
  %v500 = vadd.f32 %v484, 0.2548296
  %v501 = vadd.f32 %v485, 0.2548296
  %v502 = vadd.f32 %v486, 0.2548296
  %v503 = vadd.f32 %v487, 0.2548296
  %v504 = vadd.f32 %v488, 0.2548296
  %v505 = vmul.f32 %v489, %v346
  %v506 = vmul.f32 %v490, %v348
  %v507 = vmul.f32 %v491, %v350
  %v508 = vmul.f32 %v492, %v352
  %v509 = vmul.f32 %v493, %v354
  %v510 = vmul.f32 %v494, %v356
  %v511 = vmul.f32 %v495, %v358
  %v512 = vmul.f32 %v496, %v360
  %v513 = vmul.f32 %v497, %v362
  %v514 = vmul.f32 %v498, %v364
  %v515 = vmul.f32 %v499, %v366
  %v516 = vmul.f32 %v500, %v368
  %v517 = vmul.f32 %v501, %v370
  %v518 = vmul.f32 %v502, %v372
  %v519 = vmul.f32 %v503, %v374
  %v520 = vmul.f32 %v504, %v376
  %v521 = vsub.f32 0.0, %v297
  %v522 = vsub.f32 0.0, %v298
  %v523 = vsub.f32 0.0, %v299
  %v524 = vsub.f32 0.0, %v300
  %v525 = vsub.f32 0.0, %v301
  %v526 = vsub.f32 0.0, %v302
  %v527 = vsub.f32 0.0, %v303
  %v528 = vsub.f32 0.0, %v304
  %v529 = vsub.f32 0.0, %v305
  %v530 = vsub.f32 0.0, %v306
  %v531 = vsub.f32 0.0, %v307
  %v532 = vsub.f32 0.0, %v308
  %v533 = vsub.f32 0.0, %v309
  %v534 = vsub.f32 0.0, %v310
  %v535 = vsub.f32 0.0, %v311
  %v536 = vsub.f32 0.0, %v312
  %v537 = vmul.f32 %v521, %v297
  %v538 = vmul.f32 %v522, %v298
  %v539 = vmul.f32 %v523, %v299
  %v540 = vmul.f32 %v524, %v300
  %v541 = vmul.f32 %v525, %v301
  %v542 = vmul.f32 %v526, %v302
  %v543 = vmul.f32 %v527, %v303
  %v544 = vmul.f32 %v528, %v304
  %v545 = vmul.f32 %v529, %v305
  %v546 = vmul.f32 %v530, %v306
  %v547 = vmul.f32 %v531, %v307
  %v548 = vmul.f32 %v532, %v308
  %v549 = vmul.f32 %v533, %v309
  %v550 = vmul.f32 %v534, %v310
  %v551 = vmul.f32 %v535, %v311
  %v552 = vmul.f32 %v536, %v312
  %v553 = vmul.f32 %v537, 1.442695
  %v554 = vpow.pop %v553
  %v555 = vmul.f32 %v538, 1.442695
  %v556 = vpow.pop %v555
  %v557 = vmul.f32 %v539, 1.442695
  %v558 = vpow.pop %v557
  %v559 = vmul.f32 %v540, 1.442695
  %v560 = vpow.pop %v559
  %v561 = vmul.f32 %v541, 1.442695
  %v562 = vpow.pop %v561
  %v563 = vmul.f32 %v542, 1.442695
  %v564 = vpow.pop %v563
  %v565 = vmul.f32 %v543, 1.442695
  %v566 = vpow.pop %v565
  %v567 = vmul.f32 %v544, 1.442695
  %v568 = vpow.pop %v567
  %v569 = vmul.f32 %v545, 1.442695
  %v570 = vpow.pop %v569
  %v571 = vmul.f32 %v546, 1.442695
  %v572 = vpow.pop %v571
  %v573 = vmul.f32 %v547, 1.442695
  %v574 = vpow.pop %v573
  %v575 = vmul.f32 %v548, 1.442695
  %v576 = vpow.pop %v575
  %v577 = vmul.f32 %v549, 1.442695
  %v578 = vpow.pop %v577
  %v579 = vmul.f32 %v550, 1.442695
  %v580 = vpow.pop %v579
  %v581 = vmul.f32 %v551, 1.442695
  %v582 = vpow.pop %v581
  %v583 = vmul.f32 %v552, 1.442695
  %v584 = vpow.pop %v583
  %v585 = vmul.f32 %v505, %v554
  %v586 = vmul.f32 %v506, %v556
  %v587 = vmul.f32 %v507, %v558
  %v588 = vmul.f32 %v508, %v560
  %v589 = vmul.f32 %v509, %v562
  %v590 = vmul.f32 %v510, %v564
  %v591 = vmul.f32 %v511, %v566
  %v592 = vmul.f32 %v512, %v568
  %v593 = vmul.f32 %v513, %v570
  %v594 = vmul.f32 %v514, %v572
  %v595 = vmul.f32 %v515, %v574
  %v596 = vmul.f32 %v516, %v576
  %v597 = vmul.f32 %v517, %v578
  %v598 = vmul.f32 %v518, %v580
  %v599 = vmul.f32 %v519, %v582
  %v600 = vmul.f32 %v520, %v584
  %v601 = vsub.f32 1.0, %v585
  %v602 = vsub.f32 1.0, %v586
  %v603 = vsub.f32 1.0, %v587
  %v604 = vsub.f32 1.0, %v588
  %v605 = vsub.f32 1.0, %v589
  %v606 = vsub.f32 1.0, %v590
  %v607 = vsub.f32 1.0, %v591
  %v608 = vsub.f32 1.0, %v592
  %v609 = vsub.f32 1.0, %v593
  %v610 = vsub.f32 1.0, %v594
  %v611 = vsub.f32 1.0, %v595
  %v612 = vsub.f32 1.0, %v596
  %v613 = vsub.f32 1.0, %v597
  %v614 = vsub.f32 1.0, %v598
  %v615 = vsub.f32 1.0, %v599
  %v616 = vsub.f32 1.0, %v600
  %v617 = vmul.f32 %v281, %v601
  %v618 = vmul.f32 %v282, %v602
  %v619 = vmul.f32 %v283, %v603
  %v620 = vmul.f32 %v284, %v604
  %v621 = vmul.f32 %v285, %v605
  %v622 = vmul.f32 %v286, %v606
  %v623 = vmul.f32 %v287, %v607
  %v624 = vmul.f32 %v288, %v608
  %v625 = vmul.f32 %v289, %v609
  %v626 = vmul.f32 %v290, %v610
  %v627 = vmul.f32 %v291, %v611
  %v628 = vmul.f32 %v292, %v612
  %v629 = vmul.f32 %v293, %v613
  %v630 = vmul.f32 %v294, %v614
  %v631 = vmul.f32 %v295, %v615
  %v632 = vmul.f32 %v296, %v616
  %v633 = vadd.f32 %v617, 1.0
  %v634 = vadd.f32 %v618, 1.0
  %v635 = vadd.f32 %v619, 1.0
  %v636 = vadd.f32 %v620, 1.0
  %v637 = vadd.f32 %v621, 1.0
  %v638 = vadd.f32 %v622, 1.0
  %v639 = vadd.f32 %v623, 1.0
  %v640 = vadd.f32 %v624, 1.0
  %v641 = vadd.f32 %v625, 1.0
  %v642 = vadd.f32 %v626, 1.0
  %v643 = vadd.f32 %v627, 1.0
  %v644 = vadd.f32 %v628, 1.0
  %v645 = vadd.f32 %v629, 1.0
  %v646 = vadd.f32 %v630, 1.0
  %v647 = vadd.f32 %v631, 1.0
  %v648 = vadd.f32 %v632, 1.0
  %v649 = vmul.f32 %v233, %v633
  %v650 = vmul.f32 %v234, %v634
  %v651 = vmul.f32 %v235, %v635
  %v652 = vmul.f32 %v236, %v636
  %v653 = vmul.f32 %v237, %v637
  %v654 = vmul.f32 %v238, %v638
  %v655 = vmul.f32 %v239, %v639
  %v656 = vmul.f32 %v240, %v640
  %v657 = vmul.f32 %v241, %v641
  %v658 = vmul.f32 %v242, %v642
  %v659 = vmul.f32 %v243, %v643
  %v660 = vmul.f32 %v244, %v644
  %v661 = vmul.f32 %v245, %v645
  %v662 = vmul.f32 %v246, %v646
  %v663 = vmul.f32 %v247, %v647
  %v664 = vmul.f32 %v248, %v648
  %v665 = vpack.c.bf16 %v649, %v649
  %v666 = vpack.c.bf16 %v650, %v650
  %v667 = vpack.c.bf16 %v651, %v651
  %v668 = vpack.c.bf16 %v652, %v652
  %v669 = vpack.c.bf16 %v653, %v653
  %v670 = vpack.c.bf16 %v654, %v654
  %v671 = vpack.c.bf16 %v655, %v655
  %v672 = vpack.c.bf16 %v656, %v656
  %v673 = vpack.c.bf16 %v657, %v657
  %v674 = vpack.c.bf16 %v658, %v658
  %v675 = vpack.c.bf16 %v659, %v659
  %v676 = vpack.c.bf16 %v660, %v660
  %v677 = vpack.c.bf16 %v661, %v661
  %v678 = vpack.c.bf16 %v662, %v662
  %v679 = vpack.c.bf16 %v663, %v663
  %v680 = vpack.c.bf16 %v664, %v664
  %v697 = vunpack.c.l.b16 %v665
  %v698 = vunpack.c.l.b16 %v666
  %v699 = vunpack.c.l.b16 %v667
  %v700 = vunpack.c.l.b16 %v668
  %v701 = vunpack.c.l.b16 %v669
  %v702 = vunpack.c.l.b16 %v670
  %v703 = vunpack.c.l.b16 %v671
  %v704 = vunpack.c.l.b16 %v672
  %v705 = vunpack.c.l.b16 %v673
  %v706 = vunpack.c.l.b16 %v674
  %v707 = vunpack.c.l.b16 %v675
  %v708 = vunpack.c.l.b16 %v676
  %v709 = vunpack.c.l.b16 %v677
  %v710 = vunpack.c.l.b16 %v678
  %v711 = vunpack.c.l.b16 %v679
  %v712 = vunpack.c.l.b16 %v680
  %v713 = vpack.c.b16 %v697, %v697
  %v714 = vpack.c.b16 %v698, %v698
  %v715 = vpack.c.b16 %v699, %v699
  %v716 = vpack.c.b16 %v700, %v700
  %v717 = vpack.c.b16 %v701, %v701
  %v718 = vpack.c.b16 %v702, %v702
  %v719 = vpack.c.b16 %v703, %v703
  %v720 = vpack.c.b16 %v704, %v704
  %v721 = vpack.c.b16 %v705, %v705
  %v722 = vpack.c.b16 %v706, %v706
  %v723 = vpack.c.b16 %v707, %v707
  %v724 = vpack.c.b16 %v708, %v708
  %v725 = vpack.c.b16 %v709, %v709
  %v726 = vpack.c.b16 %v710, %v710
  %v727 = vpack.c.b16 %v711, %v711
  %v728 = vpack.c.b16 %v712, %v712
  %v730 = vshrl.u32 %v713, 16
  %v732 = vrot.slane %v730, 7
  %v733 = vshll.u32 %v713, 16
  %v735 = vor.u32 %v732, %v733
  %v736 = vrot.slane %v732, 4
  %v738 = vshrl.u32 %v714, 16
  %v740 = vrot.slane %v738, 7
  %v741 = vshll.u32 %v714, 16
  %v743 = vor.u32 %v740, %v741
  %v744 = vrot.slane %v740, 4
  %v746 = vshrl.u32 %v715, 16
  %v748 = vrot.slane %v746, 7
  %v749 = vshll.u32 %v715, 16
  %v751 = vor.u32 %v748, %v749
  %v752 = vrot.slane %v748, 4
  %v754 = vshrl.u32 %v716, 16
  %v756 = vrot.slane %v754, 7
  %v757 = vshll.u32 %v716, 16
  %v759 = vor.u32 %v756, %v757
  %v760 = vrot.slane %v756, 4
  %v762 = vshrl.u32 %v717, 16
  %v764 = vrot.slane %v762, 7
  %v765 = vshll.u32 %v717, 16
  %v767 = vor.u32 %v764, %v765
  %v768 = vrot.slane %v764, 4
  %v770 = vshrl.u32 %v718, 16
  %v772 = vrot.slane %v770, 7
  %v773 = vshll.u32 %v718, 16
  %v775 = vor.u32 %v772, %v773
  %v776 = vrot.slane %v772, 4
  %v778 = vshrl.u32 %v719, 16
  %v780 = vrot.slane %v778, 7
  %v781 = vshll.u32 %v719, 16
  %v783 = vor.u32 %v780, %v781
  %v784 = vrot.slane %v780, 4
  %v786 = vshrl.u32 %v720, 16
  %v788 = vrot.slane %v786, 7
  %v789 = vshll.u32 %v720, 16
  %v791 = vor.u32 %v788, %v789
  %v792 = vrot.slane %v788, 4
  %v794 = vshrl.u32 %v721, 16
  %v796 = vrot.slane %v794, 7
  %v797 = vshll.u32 %v721, 16
  %v799 = vor.u32 %v796, %v797
  %v800 = vrot.slane %v796, 4
  %v802 = vshrl.u32 %v722, 16
  %v804 = vrot.slane %v802, 7
  %v805 = vshll.u32 %v722, 16
  %v807 = vor.u32 %v804, %v805
  %v808 = vrot.slane %v804, 4
  %v810 = vshrl.u32 %v723, 16
  %v812 = vrot.slane %v810, 7
  %v813 = vshll.u32 %v723, 16
  %v815 = vor.u32 %v812, %v813
  %v816 = vrot.slane %v812, 4
  %v818 = vshrl.u32 %v724, 16
  %v820 = vrot.slane %v818, 7
  %v821 = vshll.u32 %v724, 16
  %v823 = vor.u32 %v820, %v821
  %v824 = vrot.slane %v820, 4
  %v826 = vshrl.u32 %v725, 16
  %v828 = vrot.slane %v826, 7
  %v829 = vshll.u32 %v725, 16
  %v831 = vor.u32 %v828, %v829
  %v832 = vrot.slane %v828, 4
  %v834 = vshrl.u32 %v726, 16
  %v836 = vrot.slane %v834, 7
  %v837 = vshll.u32 %v726, 16
  %v839 = vor.u32 %v836, %v837
  %v840 = vrot.slane %v836, 4
  %v842 = vshrl.u32 %v727, 16
  %v844 = vrot.slane %v842, 7
  %v845 = vshll.u32 %v727, 16
  %v847 = vor.u32 %v844, %v845
  %v848 = vrot.slane %v844, 4
  %v850 = vshrl.u32 %v728, 16
  %v852 = vrot.slane %v850, 7
  %v853 = vshll.u32 %v728, 16
  %v855 = vor.u32 %v852, %v853
  %v856 = vrot.slane %v852, 4
  %s889 = scalar_lea.vmem [#allocation2], 8
  %vm890 = vcmask 1043456
  %vm891 = vmand %vm890, %vm93
  %v892 = vld [vmem:[%s889] sm:$0xf]
  %v893 = vsel %vm891, %v735, %v892
  %894 = vst [vmem:[%s889] sm:$0xf] %v893
  %v895 = vld [vmem:[%s889 + $0x4] sm:$0x1]
  %v896 = vsel %vm32, %v736, %v895
  %897 = vst [vmem:[%s889 + $0x4] sm:$0x1] %v896
  %v898 = vld [vmem:[%s889 + $0x8] sm:$0xf]
  %v899 = vsel %vm891, %v743, %v898
  %900 = vst [vmem:[%s889 + $0x8] sm:$0xf] %v899
  %v901 = vld [vmem:[%s889 + $0xc] sm:$0x1]
  %v902 = vsel %vm32, %v744, %v901
  %903 = vst [vmem:[%s889 + $0xc] sm:$0x1] %v902
  %v904 = vld [vmem:[%s889 + $0x10] sm:$0xf]
  %v905 = vsel %vm891, %v751, %v904
  %906 = vst [vmem:[%s889 + $0x10] sm:$0xf] %v905
  %v907 = vld [vmem:[%s889 + $0x14] sm:$0x1]
  %v908 = vsel %vm32, %v752, %v907
  %909 = vst [vmem:[%s889 + $0x14] sm:$0x1] %v908
  %v910 = vld [vmem:[%s889 + $0x18] sm:$0xf]
  %v911 = vsel %vm891, %v759, %v910
  %912 = vst [vmem:[%s889 + $0x18] sm:$0xf] %v911
  %v913 = vld [vmem:[%s889 + $0x1c] sm:$0x1]
  %v914 = vsel %vm32, %v760, %v913
  %915 = vst [vmem:[%s889 + $0x1c] sm:$0x1] %v914
  %v916 = vld [vmem:[%s889 + $0x20] sm:$0xf]
  %v917 = vsel %vm891, %v767, %v916
  %918 = vst [vmem:[%s889 + $0x20] sm:$0xf] %v917
  %v919 = vld [vmem:[%s889 + $0x24] sm:$0x1]
  %v920 = vsel %vm32, %v768, %v919
  %921 = vst [vmem:[%s889 + $0x24] sm:$0x1] %v920
  %v922 = vld [vmem:[%s889 + $0x28] sm:$0xf]
  %v923 = vsel %vm891, %v775, %v922
  %924 = vst [vmem:[%s889 + $0x28] sm:$0xf] %v923
  %v925 = vld [vmem:[%s889 + $0x2c] sm:$0x1]
  %v926 = vsel %vm32, %v776, %v925
  %927 = vst [vmem:[%s889 + $0x2c] sm:$0x1] %v926
  %v928 = vld [vmem:[%s889 + $0x30] sm:$0xf]
  %v929 = vsel %vm891, %v783, %v928
  %930 = vst [vmem:[%s889 + $0x30] sm:$0xf] %v929
  %v931 = vld [vmem:[%s889 + $0x34] sm:$0x1]
  %v932 = vsel %vm32, %v784, %v931
  %933 = vst [vmem:[%s889 + $0x34] sm:$0x1] %v932
  %v934 = vld [vmem:[%s889 + $0x38] sm:$0xf]
  %v935 = vsel %vm891, %v791, %v934
  %936 = vst [vmem:[%s889 + $0x38] sm:$0xf] %v935
  %v937 = vld [vmem:[%s889 + $0x3c] sm:$0x1]
  %v938 = vsel %vm32, %v792, %v937
  %939 = vst [vmem:[%s889 + $0x3c] sm:$0x1] %v938
  %v940 = vld [vmem:[%s889 + $0x50] sm:$0xf]
  %v941 = vsel %vm891, %v799, %v940
  %942 = vst [vmem:[%s889 + $0x50] sm:$0xf] %v941
  %v943 = vld [vmem:[%s889 + $0x54] sm:$0x1]
  %v944 = vsel %vm32, %v800, %v943
  %945 = vst [vmem:[%s889 + $0x54] sm:$0x1] %v944
  %v946 = vld [vmem:[%s889 + $0x58] sm:$0xf]
  %v947 = vsel %vm891, %v807, %v946
  %948 = vst [vmem:[%s889 + $0x58] sm:$0xf] %v947
  %v949 = vld [vmem:[%s889 + $0x5c] sm:$0x1]
  %v950 = vsel %vm32, %v808, %v949
  %951 = vst [vmem:[%s889 + $0x5c] sm:$0x1] %v950
  %v952 = vld [vmem:[%s889 + $0x60] sm:$0xf]
  %v953 = vsel %vm891, %v815, %v952
  %954 = vst [vmem:[%s889 + $0x60] sm:$0xf] %v953
  %v955 = vld [vmem:[%s889 + $0x64] sm:$0x1]
  %v956 = vsel %vm32, %v816, %v955
  %957 = vst [vmem:[%s889 + $0x64] sm:$0x1] %v956
  %v958 = vld [vmem:[%s889 + $0x68] sm:$0xf]
  %v959 = vsel %vm891, %v823, %v958
  %960 = vst [vmem:[%s889 + $0x68] sm:$0xf] %v959
  %v961 = vld [vmem:[%s889 + $0x6c] sm:$0x1]
  %v962 = vsel %vm32, %v824, %v961
  %963 = vst [vmem:[%s889 + $0x6c] sm:$0x1] %v962
  %v964 = vld [vmem:[%s889 + $0x70] sm:$0xf]
  %v965 = vsel %vm891, %v831, %v964
  %966 = vst [vmem:[%s889 + $0x70] sm:$0xf] %v965
  %v967 = vld [vmem:[%s889 + $0x74] sm:$0x1]
  %v968 = vsel %vm32, %v832, %v967
  %969 = vst [vmem:[%s889 + $0x74] sm:$0x1] %v968
  %v970 = vld [vmem:[%s889 + $0x78] sm:$0xf]
  %v971 = vsel %vm891, %v839, %v970
  %972 = vst [vmem:[%s889 + $0x78] sm:$0xf] %v971
  %v973 = vld [vmem:[%s889 + $0x7c] sm:$0x1]
  %v974 = vsel %vm32, %v840, %v973
  %975 = vst [vmem:[%s889 + $0x7c] sm:$0x1] %v974
  %v976 = vld [vmem:[%s889 + $0x80] sm:$0xf]
  %v977 = vsel %vm891, %v847, %v976
  %978 = vst [vmem:[%s889 + $0x80] sm:$0xf] %v977
  %v979 = vld [vmem:[%s889 + $0x84] sm:$0x1]
  %v980 = vsel %vm32, %v848, %v979
  %981 = vst [vmem:[%s889 + $0x84] sm:$0x1] %v980
  %v982 = vld [vmem:[%s889 + $0x88] sm:$0xf]
  %v983 = vsel %vm891, %v855, %v982
  %984 = vst [vmem:[%s889 + $0x88] sm:$0xf] %v983
  %v985 = vld [vmem:[%s889 + $0x8c] sm:$0x1]
  %v986 = vsel %vm32, %v856, %v985
  %987 = vst [vmem:[%s889 + $0x8c] sm:$0x1] %v986
  %v988 = vld [vmem:[#allocation2] sm:$0xf]
  %v989 = vld [vmem:[#allocation2 + $0x8] sm:$0xf]
  %v990 = vld [vmem:[#allocation2 + $0x10] sm:$0xf]
  %v991 = vld [vmem:[#allocation2 + $0x18] sm:$0xf]
  %v992 = vld [vmem:[#allocation2 + $0x20] sm:$0xf]
  %v993 = vld [vmem:[#allocation2 + $0x28] sm:$0xf]
  %v994 = vld [vmem:[#allocation2 + $0x30] sm:$0xf]
  %v995 = vld [vmem:[#allocation2 + $0x38] sm:$0xf]
  %v996 = vld [vmem:[#allocation2 + $0x50] sm:$0xf]
  %v997 = vld [vmem:[#allocation2 + $0x58] sm:$0xf]
  %v998 = vld [vmem:[#allocation2 + $0x60] sm:$0xf]
  %v999 = vld [vmem:[#allocation2 + $0x68] sm:$0xf]
  %v1000 = vld [vmem:[#allocation2 + $0x70] sm:$0xf]
  %v1001 = vld [vmem:[#allocation2 + $0x78] sm:$0xf]
  %v1002 = vld [vmem:[#allocation2 + $0x80] sm:$0xf]
  %v1003 = vld [vmem:[#allocation2 + $0x88] sm:$0xf]
  %1004 = vst [vmem:[#allocation3] sm:$0xf] %v988
  %1005 = vst [vmem:[#allocation3 + $0x24] sm:$0xf] %v989
  %1006 = vst [vmem:[#allocation3 + $0x48] sm:$0xf] %v990
  %1007 = vst [vmem:[#allocation3 + $0x6c] sm:$0xf] %v991
  %1008 = vst [vmem:[#allocation3 + $0x90] sm:$0xf] %v992
  %1009 = vst [vmem:[#allocation3 + $0xb4] sm:$0xf] %v993
  %1010 = vst [vmem:[#allocation3 + $0xd8] sm:$0xf] %v994
  %1011 = vst [vmem:[#allocation3 + $0xfc] sm:$0xf] %v995
  %1012 = vst [vmem:[#allocation3 + $0x120] sm:$0xf] %v996
  %1013 = vst [vmem:[#allocation3 + $0x144] sm:$0xf] %v997
  %1014 = vst [vmem:[#allocation3 + $0x168] sm:$0xf] %v998
  %1015 = vst [vmem:[#allocation3 + $0x18c] sm:$0xf] %v999
  %1016 = vst [vmem:[#allocation3 + $0x1b0] sm:$0xf] %v1000
  %1017 = vst [vmem:[#allocation3 + $0x1d4] sm:$0xf] %v1001
  %1018 = vst [vmem:[#allocation3 + $0x1f8] sm:$0xf] %v1002
  %1019 = vst [vmem:[#allocation3 + $0x21c] sm:$0xf] %v1003
  %v1020 = vld [vmem:[#allocation2] sm:$0xf]
  %v1021 = vld [vmem:[#allocation2 + $0x4] sm:$0x1]
  %v1022 = vld [vmem:[#allocation2 + $0x8] sm:$0xf]
  %v1023 = vld [vmem:[#allocation2 + $0xc] sm:$0x1]
  %v1024 = vld [vmem:[#allocation2 + $0x10] sm:$0xf]
  %v1025 = vld [vmem:[#allocation2 + $0x14] sm:$0x1]
  %v1026 = vld [vmem:[#allocation2 + $0x18] sm:$0xf]
  %v1027 = vld [vmem:[#allocation2 + $0x1c] sm:$0x1]
  %v1028 = vld [vmem:[#allocation2 + $0x20] sm:$0xf]
  %v1029 = vld [vmem:[#allocation2 + $0x24] sm:$0x1]
  %v1030 = vld [vmem:[#allocation2 + $0x28] sm:$0xf]
  %v1031 = vld [vmem:[#allocation2 + $0x2c] sm:$0x1]
  %v1032 = vld [vmem:[#allocation2 + $0x30] sm:$0xf]
  %v1033 = vld [vmem:[#allocation2 + $0x34] sm:$0x1]
  %v1034 = vld [vmem:[#allocation2 + $0x38] sm:$0xf]
  %v1035 = vld [vmem:[#allocation2 + $0x3c] sm:$0x1]
  %v1036 = vld [vmem:[#allocation2 + $0x50] sm:$0xf]
  %v1037 = vld [vmem:[#allocation2 + $0x54] sm:$0x1]
  %v1038 = vld [vmem:[#allocation2 + $0x58] sm:$0xf]
  %v1039 = vld [vmem:[#allocation2 + $0x5c] sm:$0x1]
  %v1040 = vld [vmem:[#allocation2 + $0x60] sm:$0xf]
  %v1041 = vld [vmem:[#allocation2 + $0x64] sm:$0x1]
  %v1042 = vld [vmem:[#allocation2 + $0x68] sm:$0xf]
  %v1043 = vld [vmem:[#allocation2 + $0x6c] sm:$0x1]
  %v1044 = vld [vmem:[#allocation2 + $0x70] sm:$0xf]
  %v1045 = vld [vmem:[#allocation2 + $0x74] sm:$0x1]
  %v1046 = vld [vmem:[#allocation2 + $0x78] sm:$0xf]
  %v1047 = vld [vmem:[#allocation2 + $0x7c] sm:$0x1]
  %v1048 = vld [vmem:[#allocation2 + $0x80] sm:$0xf]
  %v1049 = vld [vmem:[#allocation2 + $0x84] sm:$0x1]
  %v1050 = vld [vmem:[#allocation2 + $0x88] sm:$0xf]
  %v1051 = vld [vmem:[#allocation2 + $0x8c] sm:$0x1]
  %vm1052 = vsmask.f32 3328
  %vm1053 = vsmask.f32 7440
  %vm1054 = vmor %vm1052, %vm1053
  %v1056 = vshrl.u32 %v1020, 16
  %v1058 = vrot.slane %v1056, 4
  %v1059 = vshll.u32 %v1020, 16
  %v1061 = vrot.slane %v1059, 5
  %v1062 = vor.u32 %v1058, %v1061
  %v1063 = vrot.slane %v1062, 4
  %v1065 = vshll.u32 %v1021, 16
  %v1067 = vrot.slane %v1065, 5
  %v1068 = vsel %vm1054, %v1063, %v1067
  %v1070 = vshrl.u32 %v1022, 16
  %v1072 = vrot.slane %v1070, 4
  %v1073 = vshll.u32 %v1022, 16
  %v1075 = vrot.slane %v1073, 5
  %v1076 = vor.u32 %v1072, %v1075
  %v1077 = vrot.slane %v1076, 4
  %v1079 = vshll.u32 %v1023, 16
  %v1081 = vrot.slane %v1079, 5
  %v1082 = vsel %vm1054, %v1077, %v1081
  %v1084 = vshrl.u32 %v1024, 16
  %v1086 = vrot.slane %v1084, 4
  %v1087 = vshll.u32 %v1024, 16
  %v1089 = vrot.slane %v1087, 5
  %v1090 = vor.u32 %v1086, %v1089
  %v1091 = vrot.slane %v1090, 4
  %v1093 = vshll.u32 %v1025, 16
  %v1095 = vrot.slane %v1093, 5
  %v1096 = vsel %vm1054, %v1091, %v1095
  %v1098 = vshrl.u32 %v1026, 16
  %v1100 = vrot.slane %v1098, 4
  %v1101 = vshll.u32 %v1026, 16
  %v1103 = vrot.slane %v1101, 5
  %v1104 = vor.u32 %v1100, %v1103
  %v1105 = vrot.slane %v1104, 4
  %v1107 = vshll.u32 %v1027, 16
  %v1109 = vrot.slane %v1107, 5
  %v1110 = vsel %vm1054, %v1105, %v1109
  %v1112 = vshrl.u32 %v1028, 16
  %v1114 = vrot.slane %v1112, 4
  %v1115 = vshll.u32 %v1028, 16
  %v1117 = vrot.slane %v1115, 5
  %v1118 = vor.u32 %v1114, %v1117
  %v1119 = vrot.slane %v1118, 4
  %v1121 = vshll.u32 %v1029, 16
  %v1123 = vrot.slane %v1121, 5
  %v1124 = vsel %vm1054, %v1119, %v1123
  %v1126 = vshrl.u32 %v1030, 16
  %v1128 = vrot.slane %v1126, 4
  %v1129 = vshll.u32 %v1030, 16
  %v1131 = vrot.slane %v1129, 5
  %v1132 = vor.u32 %v1128, %v1131
  %v1133 = vrot.slane %v1132, 4
  %v1135 = vshll.u32 %v1031, 16
  %v1137 = vrot.slane %v1135, 5
  %v1138 = vsel %vm1054, %v1133, %v1137
  %v1140 = vshrl.u32 %v1032, 16
  %v1142 = vrot.slane %v1140, 4
  %v1143 = vshll.u32 %v1032, 16
  %v1145 = vrot.slane %v1143, 5
  %v1146 = vor.u32 %v1142, %v1145
  %v1147 = vrot.slane %v1146, 4
  %v1149 = vshll.u32 %v1033, 16
  %v1151 = vrot.slane %v1149, 5
  %v1152 = vsel %vm1054, %v1147, %v1151
  %v1154 = vshrl.u32 %v1034, 16
  %v1156 = vrot.slane %v1154, 4
  %v1157 = vshll.u32 %v1034, 16
  %v1159 = vrot.slane %v1157, 5
  %v1160 = vor.u32 %v1156, %v1159
  %v1161 = vrot.slane %v1160, 4
  %v1163 = vshll.u32 %v1035, 16
  %v1165 = vrot.slane %v1163, 5
  %v1166 = vsel %vm1054, %v1161, %v1165
  %v1168 = vshrl.u32 %v1036, 16
  %v1170 = vrot.slane %v1168, 4
  %v1171 = vshll.u32 %v1036, 16
  %v1173 = vrot.slane %v1171, 5
  %v1174 = vor.u32 %v1170, %v1173
  %v1175 = vrot.slane %v1174, 4
  %v1177 = vshll.u32 %v1037, 16
  %v1179 = vrot.slane %v1177, 5
  %v1180 = vsel %vm1054, %v1175, %v1179
  %v1182 = vshrl.u32 %v1038, 16
  %v1184 = vrot.slane %v1182, 4
  %v1185 = vshll.u32 %v1038, 16
  %v1187 = vrot.slane %v1185, 5
  %v1188 = vor.u32 %v1184, %v1187
  %v1189 = vrot.slane %v1188, 4
  %v1191 = vshll.u32 %v1039, 16
  %v1193 = vrot.slane %v1191, 5
  %v1194 = vsel %vm1054, %v1189, %v1193
  %v1196 = vshrl.u32 %v1040, 16
  %v1198 = vrot.slane %v1196, 4
  %v1199 = vshll.u32 %v1040, 16
  %v1201 = vrot.slane %v1199, 5
  %v1202 = vor.u32 %v1198, %v1201
  %v1203 = vrot.slane %v1202, 4
  %v1205 = vshll.u32 %v1041, 16
  %v1207 = vrot.slane %v1205, 5
  %v1208 = vsel %vm1054, %v1203, %v1207
  %v1210 = vshrl.u32 %v1042, 16
  %v1212 = vrot.slane %v1210, 4
  %v1213 = vshll.u32 %v1042, 16
  %v1215 = vrot.slane %v1213, 5
  %v1216 = vor.u32 %v1212, %v1215
  %v1217 = vrot.slane %v1216, 4
  %v1219 = vshll.u32 %v1043, 16
  %v1221 = vrot.slane %v1219, 5
  %v1222 = vsel %vm1054, %v1217, %v1221
  %v1224 = vshrl.u32 %v1044, 16
  %v1226 = vrot.slane %v1224, 4
  %v1227 = vshll.u32 %v1044, 16
  %v1229 = vrot.slane %v1227, 5
  %v1230 = vor.u32 %v1226, %v1229
  %v1231 = vrot.slane %v1230, 4
  %v1233 = vshll.u32 %v1045, 16
  %v1235 = vrot.slane %v1233, 5
  %v1236 = vsel %vm1054, %v1231, %v1235
  %v1238 = vshrl.u32 %v1046, 16
  %v1240 = vrot.slane %v1238, 4
  %v1241 = vshll.u32 %v1046, 16
  %v1243 = vrot.slane %v1241, 5
  %v1244 = vor.u32 %v1240, %v1243
  %v1245 = vrot.slane %v1244, 4
  %v1247 = vshll.u32 %v1047, 16
  %v1249 = vrot.slane %v1247, 5
  %v1250 = vsel %vm1054, %v1245, %v1249
  %v1252 = vshrl.u32 %v1048, 16
  %v1254 = vrot.slane %v1252, 4
  %v1255 = vshll.u32 %v1048, 16
  %v1257 = vrot.slane %v1255, 5
  %v1258 = vor.u32 %v1254, %v1257
  %v1259 = vrot.slane %v1258, 4
  %v1261 = vshll.u32 %v1049, 16
  %v1263 = vrot.slane %v1261, 5
  %v1264 = vsel %vm1054, %v1259, %v1263
  %v1266 = vshrl.u32 %v1050, 16
  %v1268 = vrot.slane %v1266, 4
  %v1269 = vshll.u32 %v1050, 16
  %v1271 = vrot.slane %v1269, 5
  %v1272 = vor.u32 %v1268, %v1271
  %v1273 = vrot.slane %v1272, 4
  %v1275 = vshll.u32 %v1051, 16
  %v1277 = vrot.slane %v1275, 5
  %v1278 = vsel %vm1054, %v1273, %v1277
  %1295 = vst [vmem:[#allocation3 + $0x4] sm:$0xf] %v1068
  %1296 = vst [vmem:[#allocation3 + $0x28] sm:$0xf] %v1082
  %1297 = vst [vmem:[#allocation3 + $0x4c] sm:$0xf] %v1096
  %1298 = vst [vmem:[#allocation3 + $0x70] sm:$0xf] %v1110
  %1299 = vst [vmem:[#allocation3 + $0x94] sm:$0xf] %v1124
  %1300 = vst [vmem:[#allocation3 + $0xb8] sm:$0xf] %v1138
  %1301 = vst [vmem:[#allocation3 + $0xdc] sm:$0xf] %v1152
  %1302 = vst [vmem:[#allocation3 + $0x100] sm:$0xf] %v1166
  %1303 = vst [vmem:[#allocation3 + $0x124] sm:$0xf] %v1180
  %1304 = vst [vmem:[#allocation3 + $0x148] sm:$0xf] %v1194
  %1305 = vst [vmem:[#allocation3 + $0x16c] sm:$0xf] %v1208
  %1306 = vst [vmem:[#allocation3 + $0x190] sm:$0xf] %v1222
  %1307 = vst [vmem:[#allocation3 + $0x1b4] sm:$0xf] %v1236
  %1308 = vst [vmem:[#allocation3 + $0x1d8] sm:$0xf] %v1250
  %1309 = vst [vmem:[#allocation3 + $0x1fc] sm:$0xf] %v1264
  %1310 = vst [vmem:[#allocation3 + $0x220] sm:$0xf] %v1278
  %v1311 = vld [vmem:[#allocation2] sm:$0xe]
  %v1312 = vld [vmem:[#allocation2 + $0x4] sm:$0x1]
  %v1313 = vld [vmem:[#allocation2 + $0x8] sm:$0xe]
  %v1314 = vld [vmem:[#allocation2 + $0xc] sm:$0x1]
  %v1315 = vld [vmem:[#allocation2 + $0x10] sm:$0xe]
  %v1316 = vld [vmem:[#allocation2 + $0x14] sm:$0x1]
  %v1317 = vld [vmem:[#allocation2 + $0x18] sm:$0xe]
  %v1318 = vld [vmem:[#allocation2 + $0x1c] sm:$0x1]
  %v1319 = vld [vmem:[#allocation2 + $0x20] sm:$0xe]
  %v1320 = vld [vmem:[#allocation2 + $0x24] sm:$0x1]
  %v1321 = vld [vmem:[#allocation2 + $0x28] sm:$0xe]
  %v1322 = vld [vmem:[#allocation2 + $0x2c] sm:$0x1]
  %v1323 = vld [vmem:[#allocation2 + $0x30] sm:$0xe]
  %v1324 = vld [vmem:[#allocation2 + $0x34] sm:$0x1]
  %v1325 = vld [vmem:[#allocation2 + $0x38] sm:$0xe]
  %v1326 = vld [vmem:[#allocation2 + $0x3c] sm:$0x1]
  %v1327 = vld [vmem:[#allocation2 + $0x50] sm:$0xe]
  %v1328 = vld [vmem:[#allocation2 + $0x54] sm:$0x1]
  %v1329 = vld [vmem:[#allocation2 + $0x58] sm:$0xe]
  %v1330 = vld [vmem:[#allocation2 + $0x5c] sm:$0x1]
  %v1331 = vld [vmem:[#allocation2 + $0x60] sm:$0xe]
  %v1332 = vld [vmem:[#allocation2 + $0x64] sm:$0x1]
  %v1333 = vld [vmem:[#allocation2 + $0x68] sm:$0xe]
  %v1334 = vld [vmem:[#allocation2 + $0x6c] sm:$0x1]
  %v1335 = vld [vmem:[#allocation2 + $0x70] sm:$0xe]
  %v1336 = vld [vmem:[#allocation2 + $0x74] sm:$0x1]
  %v1337 = vld [vmem:[#allocation2 + $0x78] sm:$0xe]
  %v1338 = vld [vmem:[#allocation2 + $0x7c] sm:$0x1]
  %v1339 = vld [vmem:[#allocation2 + $0x80] sm:$0xe]
  %v1340 = vld [vmem:[#allocation2 + $0x84] sm:$0x1]
  %v1341 = vld [vmem:[#allocation2 + $0x88] sm:$0xe]
  %v1342 = vld [vmem:[#allocation2 + $0x8c] sm:$0x1]
  %vm1375 = vcmask 1042432
  %vm1376 = vcmask 1046532
  %vm1377 = vmor %vm1375, %vm1376
  %v1378 = vrot.slane %v1311, 5
  %v1379 = vrot.slane %v1378, 4
  %v1380 = vrot.slane %v1312, 5
  %v1381 = vsel %vm1377, %v1379, %v1380
  %v1382 = vrot.slane %v1313, 5
  %v1383 = vrot.slane %v1382, 4
  %v1384 = vrot.slane %v1314, 5
  %v1385 = vsel %vm1377, %v1383, %v1384
  %v1386 = vrot.slane %v1315, 5
  %v1387 = vrot.slane %v1386, 4
  %v1388 = vrot.slane %v1316, 5
  %v1389 = vsel %vm1377, %v1387, %v1388
  %v1390 = vrot.slane %v1317, 5
  %v1391 = vrot.slane %v1390, 4
  %v1392 = vrot.slane %v1318, 5
  %v1393 = vsel %vm1377, %v1391, %v1392
  %v1394 = vrot.slane %v1319, 5
  %v1395 = vrot.slane %v1394, 4
  %v1396 = vrot.slane %v1320, 5
  %v1397 = vsel %vm1377, %v1395, %v1396
  %v1398 = vrot.slane %v1321, 5
  %v1399 = vrot.slane %v1398, 4
  %v1400 = vrot.slane %v1322, 5
  %v1401 = vsel %vm1377, %v1399, %v1400
  %v1402 = vrot.slane %v1323, 5
  %v1403 = vrot.slane %v1402, 4
  %v1404 = vrot.slane %v1324, 5
  %v1405 = vsel %vm1377, %v1403, %v1404
  %v1406 = vrot.slane %v1325, 5
  %v1407 = vrot.slane %v1406, 4
  %v1408 = vrot.slane %v1326, 5
  %v1409 = vsel %vm1377, %v1407, %v1408
  %v1410 = vrot.slane %v1327, 5
  %v1411 = vrot.slane %v1410, 4
  %v1412 = vrot.slane %v1328, 5
  %v1413 = vsel %vm1377, %v1411, %v1412
  %v1414 = vrot.slane %v1329, 5
  %v1415 = vrot.slane %v1414, 4
  %v1416 = vrot.slane %v1330, 5
  %v1417 = vsel %vm1377, %v1415, %v1416
  %v1418 = vrot.slane %v1331, 5
  %v1419 = vrot.slane %v1418, 4
  %v1420 = vrot.slane %v1332, 5
  %v1421 = vsel %vm1377, %v1419, %v1420
  %v1422 = vrot.slane %v1333, 5
  %v1423 = vrot.slane %v1422, 4
  %v1424 = vrot.slane %v1334, 5
  %v1425 = vsel %vm1377, %v1423, %v1424
  %v1426 = vrot.slane %v1335, 5
  %v1427 = vrot.slane %v1426, 4
  %v1428 = vrot.slane %v1336, 5
  %v1429 = vsel %vm1377, %v1427, %v1428
  %v1430 = vrot.slane %v1337, 5
  %v1431 = vrot.slane %v1430, 4
  %v1432 = vrot.slane %v1338, 5
  %v1433 = vsel %vm1377, %v1431, %v1432
  %v1434 = vrot.slane %v1339, 5
  %v1435 = vrot.slane %v1434, 4
  %v1436 = vrot.slane %v1340, 5
  %v1437 = vsel %vm1377, %v1435, %v1436
  %v1438 = vrot.slane %v1341, 5
  %v1439 = vrot.slane %v1438, 4
  %v1440 = vrot.slane %v1342, 5
  %v1441 = vsel %vm1377, %v1439, %v1440
  %1458 = vst [vmem:[#allocation3 + $0x8] sm:$0xf] %v1381
  %1459 = vst [vmem:[#allocation3 + $0x2c] sm:$0xf] %v1385
  %1460 = vst [vmem:[#allocation3 + $0x50] sm:$0xf] %v1389
  %1461 = vst [vmem:[#allocation3 + $0x74] sm:$0xf] %v1393
  %1462 = vst [vmem:[#allocation3 + $0x98] sm:$0xf] %v1397
  %1463 = vst [vmem:[#allocation3 + $0xbc] sm:$0xf] %v1401
  %1464 = vst [vmem:[#allocation3 + $0xe0] sm:$0xf] %v1405
  %1465 = vst [vmem:[#allocation3 + $0x104] sm:$0xf] %v1409
  %1466 = vst [vmem:[#allocation3 + $0x128] sm:$0xf] %v1413
  %1467 = vst [vmem:[#allocation3 + $0x14c] sm:$0xf] %v1417
  %1468 = vst [vmem:[#allocation3 + $0x170] sm:$0xf] %v1421
  %1469 = vst [vmem:[#allocation3 + $0x194] sm:$0xf] %v1425
  %1470 = vst [vmem:[#allocation3 + $0x1b8] sm:$0xf] %v1429
  %1471 = vst [vmem:[#allocation3 + $0x1dc] sm:$0xf] %v1433
  %1472 = vst [vmem:[#allocation3 + $0x200] sm:$0xf] %v1437
  %1473 = vst [vmem:[#allocation3 + $0x224] sm:$0xf] %v1441
  %v1474 = vld [vmem:[%s889] sm:$0xf]
  %v1475 = vld [vmem:[%s889 + $0x8] sm:$0xf]
  %v1476 = vld [vmem:[%s889 + $0x10] sm:$0xf]
  %v1477 = vld [vmem:[%s889 + $0x18] sm:$0xf]
  %v1478 = vld [vmem:[%s889 + $0x20] sm:$0xf]
  %v1479 = vld [vmem:[%s889 + $0x28] sm:$0xf]
  %v1480 = vld [vmem:[%s889 + $0x30] sm:$0xf]
  %v1481 = vld [vmem:[%s889 + $0x38] sm:$0xf]
  %v1482 = vld [vmem:[%s889 + $0x50] sm:$0xf]
  %v1483 = vld [vmem:[%s889 + $0x58] sm:$0xf]
  %v1484 = vld [vmem:[%s889 + $0x60] sm:$0xf]
  %v1485 = vld [vmem:[%s889 + $0x68] sm:$0xf]
  %v1486 = vld [vmem:[%s889 + $0x70] sm:$0xf]
  %v1487 = vld [vmem:[%s889 + $0x78] sm:$0xf]
  %v1488 = vld [vmem:[%s889 + $0x80] sm:$0xf]
  %v1489 = vld [vmem:[%s889 + $0x88] sm:$0xf]
  %1490 = vst [vmem:[#allocation3 + $0xc] sm:$0xf] %v1474
  %1491 = vst [vmem:[#allocation3 + $0x30] sm:$0xf] %v1475
  %1492 = vst [vmem:[#allocation3 + $0x54] sm:$0xf] %v1476
  %1493 = vst [vmem:[#allocation3 + $0x78] sm:$0xf] %v1477
  %1494 = vst [vmem:[#allocation3 + $0x9c] sm:$0xf] %v1478
  %1495 = vst [vmem:[#allocation3 + $0xc0] sm:$0xf] %v1479
  %1496 = vst [vmem:[#allocation3 + $0xe4] sm:$0xf] %v1480
  %1497 = vst [vmem:[#allocation3 + $0x108] sm:$0xf] %v1481
  %1498 = vst [vmem:[#allocation3 + $0x12c] sm:$0xf] %v1482
  %1499 = vst [vmem:[#allocation3 + $0x150] sm:$0xf] %v1483
  %1500 = vst [vmem:[#allocation3 + $0x174] sm:$0xf] %v1484
  %1501 = vst [vmem:[#allocation3 + $0x198] sm:$0xf] %v1485
  %1502 = vst [vmem:[#allocation3 + $0x1bc] sm:$0xf] %v1486
  %1503 = vst [vmem:[#allocation3 + $0x1e0] sm:$0xf] %v1487
  %1504 = vst [vmem:[#allocation3 + $0x204] sm:$0xf] %v1488
  %1505 = vst [vmem:[#allocation3 + $0x228] sm:$0xf] %v1489
  %v1506 = vld [vmem:[%s889] sm:$0xf]
  %v1507 = vld [vmem:[%s889 + $0x4] sm:$0x1]
  %v1508 = vld [vmem:[%s889 + $0x8] sm:$0xf]
  %v1509 = vld [vmem:[%s889 + $0xc] sm:$0x1]
  %v1510 = vld [vmem:[%s889 + $0x10] sm:$0xf]
  %v1511 = vld [vmem:[%s889 + $0x14] sm:$0x1]
  %v1512 = vld [vmem:[%s889 + $0x18] sm:$0xf]
  %v1513 = vld [vmem:[%s889 + $0x1c] sm:$0x1]
  %v1514 = vld [vmem:[%s889 + $0x20] sm:$0xf]
  %v1515 = vld [vmem:[%s889 + $0x24] sm:$0x1]
  %v1516 = vld [vmem:[%s889 + $0x28] sm:$0xf]
  %v1517 = vld [vmem:[%s889 + $0x2c] sm:$0x1]
  %v1518 = vld [vmem:[%s889 + $0x30] sm:$0xf]
  %v1519 = vld [vmem:[%s889 + $0x34] sm:$0x1]
  %v1520 = vld [vmem:[%s889 + $0x38] sm:$0xf]
  %v1521 = vld [vmem:[%s889 + $0x3c] sm:$0x1]
  %v1522 = vld [vmem:[%s889 + $0x50] sm:$0xf]
  %v1523 = vld [vmem:[%s889 + $0x54] sm:$0x1]
  %v1524 = vld [vmem:[%s889 + $0x58] sm:$0xf]
  %v1525 = vld [vmem:[%s889 + $0x5c] sm:$0x1]
  %v1526 = vld [vmem:[%s889 + $0x60] sm:$0xf]
  %v1527 = vld [vmem:[%s889 + $0x64] sm:$0x1]
  %v1528 = vld [vmem:[%s889 + $0x68] sm:$0xf]
  %v1529 = vld [vmem:[%s889 + $0x6c] sm:$0x1]
  %v1530 = vld [vmem:[%s889 + $0x70] sm:$0xf]
  %v1531 = vld [vmem:[%s889 + $0x74] sm:$0x1]
  %v1532 = vld [vmem:[%s889 + $0x78] sm:$0xf]
  %v1533 = vld [vmem:[%s889 + $0x7c] sm:$0x1]
  %v1534 = vld [vmem:[%s889 + $0x80] sm:$0xf]
  %v1535 = vld [vmem:[%s889 + $0x84] sm:$0x1]
  %v1536 = vld [vmem:[%s889 + $0x88] sm:$0xf]
  %v1537 = vld [vmem:[%s889 + $0x8c] sm:$0x1]
  %v1539 = vshrl.u32 %v1506, 16
  %v1541 = vrot.slane %v1539, 4
  %v1542 = vshll.u32 %v1506, 16
  %v1544 = vrot.slane %v1542, 5
  %v1545 = vor.u32 %v1541, %v1544
  %v1546 = vrot.slane %v1545, 4
  %v1548 = vshll.u32 %v1507, 16
  %v1550 = vrot.slane %v1548, 5
  %v1551 = vsel %vm1054, %v1546, %v1550
  %v1553 = vshrl.u32 %v1508, 16
  %v1555 = vrot.slane %v1553, 4
  %v1556 = vshll.u32 %v1508, 16
  %v1558 = vrot.slane %v1556, 5
  %v1559 = vor.u32 %v1555, %v1558
  %v1560 = vrot.slane %v1559, 4
  %v1562 = vshll.u32 %v1509, 16
  %v1564 = vrot.slane %v1562, 5
  %v1565 = vsel %vm1054, %v1560, %v1564
  %v1567 = vshrl.u32 %v1510, 16
  %v1569 = vrot.slane %v1567, 4
  %v1570 = vshll.u32 %v1510, 16
  %v1572 = vrot.slane %v1570, 5
  %v1573 = vor.u32 %v1569, %v1572
  %v1574 = vrot.slane %v1573, 4
  %v1576 = vshll.u32 %v1511, 16
  %v1578 = vrot.slane %v1576, 5
  %v1579 = vsel %vm1054, %v1574, %v1578
  %v1581 = vshrl.u32 %v1512, 16
  %v1583 = vrot.slane %v1581, 4
  %v1584 = vshll.u32 %v1512, 16
  %v1586 = vrot.slane %v1584, 5
  %v1587 = vor.u32 %v1583, %v1586
  %v1588 = vrot.slane %v1587, 4
  %v1590 = vshll.u32 %v1513, 16
  %v1592 = vrot.slane %v1590, 5
  %v1593 = vsel %vm1054, %v1588, %v1592
  %v1595 = vshrl.u32 %v1514, 16
  %v1597 = vrot.slane %v1595, 4
  %v1598 = vshll.u32 %v1514, 16
  %v1600 = vrot.slane %v1598, 5
  %v1601 = vor.u32 %v1597, %v1600
  %v1602 = vrot.slane %v1601, 4
  %v1604 = vshll.u32 %v1515, 16
  %v1606 = vrot.slane %v1604, 5
  %v1607 = vsel %vm1054, %v1602, %v1606
  %v1609 = vshrl.u32 %v1516, 16
  %v1611 = vrot.slane %v1609, 4
  %v1612 = vshll.u32 %v1516, 16
  %v1614 = vrot.slane %v1612, 5
  %v1615 = vor.u32 %v1611, %v1614
  %v1616 = vrot.slane %v1615, 4
  %v1618 = vshll.u32 %v1517, 16
  %v1620 = vrot.slane %v1618, 5
  %v1621 = vsel %vm1054, %v1616, %v1620
  %v1623 = vshrl.u32 %v1518, 16
  %v1625 = vrot.slane %v1623, 4
  %v1626 = vshll.u32 %v1518, 16
  %v1628 = vrot.slane %v1626, 5
  %v1629 = vor.u32 %v1625, %v1628
  %v1630 = vrot.slane %v1629, 4
  %v1632 = vshll.u32 %v1519, 16
  %v1634 = vrot.slane %v1632, 5
  %v1635 = vsel %vm1054, %v1630, %v1634
  %v1637 = vshrl.u32 %v1520, 16
  %v1639 = vrot.slane %v1637, 4
  %v1640 = vshll.u32 %v1520, 16
  %v1642 = vrot.slane %v1640, 5
  %v1643 = vor.u32 %v1639, %v1642
  %v1644 = vrot.slane %v1643, 4
  %v1646 = vshll.u32 %v1521, 16
  %v1648 = vrot.slane %v1646, 5
  %v1649 = vsel %vm1054, %v1644, %v1648
  %v1651 = vshrl.u32 %v1522, 16
  %v1653 = vrot.slane %v1651, 4
  %v1654 = vshll.u32 %v1522, 16
  %v1656 = vrot.slane %v1654, 5
  %v1657 = vor.u32 %v1653, %v1656
  %v1658 = vrot.slane %v1657, 4
  %v1660 = vshll.u32 %v1523, 16
  %v1662 = vrot.slane %v1660, 5
  %v1663 = vsel %vm1054, %v1658, %v1662
  %v1665 = vshrl.u32 %v1524, 16
  %v1667 = vrot.slane %v1665, 4
  %v1668 = vshll.u32 %v1524, 16
  %v1670 = vrot.slane %v1668, 5
  %v1671 = vor.u32 %v1667, %v1670
  %v1672 = vrot.slane %v1671, 4
  %v1674 = vshll.u32 %v1525, 16
  %v1676 = vrot.slane %v1674, 5
  %v1677 = vsel %vm1054, %v1672, %v1676
  %v1679 = vshrl.u32 %v1526, 16
  %v1681 = vrot.slane %v1679, 4
  %v1682 = vshll.u32 %v1526, 16
  %v1684 = vrot.slane %v1682, 5
  %v1685 = vor.u32 %v1681, %v1684
  %v1686 = vrot.slane %v1685, 4
  %v1688 = vshll.u32 %v1527, 16
  %v1690 = vrot.slane %v1688, 5
  %v1691 = vsel %vm1054, %v1686, %v1690
  %v1693 = vshrl.u32 %v1528, 16
  %v1695 = vrot.slane %v1693, 4
  %v1696 = vshll.u32 %v1528, 16
  %v1698 = vrot.slane %v1696, 5
  %v1699 = vor.u32 %v1695, %v1698
  %v1700 = vrot.slane %v1699, 4
  %v1702 = vshll.u32 %v1529, 16
  %v1704 = vrot.slane %v1702, 5
  %v1705 = vsel %vm1054, %v1700, %v1704
  %v1707 = vshrl.u32 %v1530, 16
  %v1709 = vrot.slane %v1707, 4
  %v1710 = vshll.u32 %v1530, 16
  %v1712 = vrot.slane %v1710, 5
  %v1713 = vor.u32 %v1709, %v1712
  %v1714 = vrot.slane %v1713, 4
  %v1716 = vshll.u32 %v1531, 16
  %v1718 = vrot.slane %v1716, 5
  %v1719 = vsel %vm1054, %v1714, %v1718
  %v1721 = vshrl.u32 %v1532, 16
  %v1723 = vrot.slane %v1721, 4
  %v1724 = vshll.u32 %v1532, 16
  %v1726 = vrot.slane %v1724, 5
  %v1727 = vor.u32 %v1723, %v1726
  %v1728 = vrot.slane %v1727, 4
  %v1730 = vshll.u32 %v1533, 16
  %v1732 = vrot.slane %v1730, 5
  %v1733 = vsel %vm1054, %v1728, %v1732
  %v1735 = vshrl.u32 %v1534, 16
  %v1737 = vrot.slane %v1735, 4
  %v1738 = vshll.u32 %v1534, 16
  %v1740 = vrot.slane %v1738, 5
  %v1741 = vor.u32 %v1737, %v1740
  %v1742 = vrot.slane %v1741, 4
  %v1744 = vshll.u32 %v1535, 16
  %v1746 = vrot.slane %v1744, 5
  %v1747 = vsel %vm1054, %v1742, %v1746
  %v1749 = vshrl.u32 %v1536, 16
  %v1751 = vrot.slane %v1749, 4
  %v1752 = vshll.u32 %v1536, 16
  %v1754 = vrot.slane %v1752, 5
  %v1755 = vor.u32 %v1751, %v1754
  %v1756 = vrot.slane %v1755, 4
  %v1758 = vshll.u32 %v1537, 16
  %v1760 = vrot.slane %v1758, 5
  %v1761 = vsel %vm1054, %v1756, %v1760
  %1778 = vst [vmem:[#allocation3 + $0x10] sm:$0xf] %v1551
  %1779 = vst [vmem:[#allocation3 + $0x34] sm:$0xf] %v1565
  %1780 = vst [vmem:[#allocation3 + $0x58] sm:$0xf] %v1579
  %1781 = vst [vmem:[#allocation3 + $0x7c] sm:$0xf] %v1593
  %1782 = vst [vmem:[#allocation3 + $0xa0] sm:$0xf] %v1607
  %1783 = vst [vmem:[#allocation3 + $0xc4] sm:$0xf] %v1621
  %1784 = vst [vmem:[#allocation3 + $0xe8] sm:$0xf] %v1635
  %1785 = vst [vmem:[#allocation3 + $0x10c] sm:$0xf] %v1649
  %1786 = vst [vmem:[#allocation3 + $0x130] sm:$0xf] %v1663
  %1787 = vst [vmem:[#allocation3 + $0x154] sm:$0xf] %v1677
  %1788 = vst [vmem:[#allocation3 + $0x178] sm:$0xf] %v1691
  %1789 = vst [vmem:[#allocation3 + $0x19c] sm:$0xf] %v1705
  %1790 = vst [vmem:[#allocation3 + $0x1c0] sm:$0xf] %v1719
  %1791 = vst [vmem:[#allocation3 + $0x1e4] sm:$0xf] %v1733
  %1792 = vst [vmem:[#allocation3 + $0x208] sm:$0xf] %v1747
  %1793 = vst [vmem:[#allocation3 + $0x22c] sm:$0xf] %v1761
  %v1794 = vld [vmem:[%s889] sm:$0xe]
  %v1795 = vld [vmem:[%s889 + $0x4] sm:$0x1]
  %v1796 = vld [vmem:[%s889 + $0x8] sm:$0xe]
  %v1797 = vld [vmem:[%s889 + $0xc] sm:$0x1]
  %v1798 = vld [vmem:[%s889 + $0x10] sm:$0xe]
  %v1799 = vld [vmem:[%s889 + $0x14] sm:$0x1]
  %v1800 = vld [vmem:[%s889 + $0x18] sm:$0xe]
  %v1801 = vld [vmem:[%s889 + $0x1c] sm:$0x1]
  %v1802 = vld [vmem:[%s889 + $0x20] sm:$0xe]
  %v1803 = vld [vmem:[%s889 + $0x24] sm:$0x1]
  %v1804 = vld [vmem:[%s889 + $0x28] sm:$0xe]
  %v1805 = vld [vmem:[%s889 + $0x2c] sm:$0x1]
  %v1806 = vld [vmem:[%s889 + $0x30] sm:$0xe]
  %v1807 = vld [vmem:[%s889 + $0x34] sm:$0x1]
  %v1808 = vld [vmem:[%s889 + $0x38] sm:$0xe]
  %v1809 = vld [vmem:[%s889 + $0x3c] sm:$0x1]
  %v1810 = vld [vmem:[%s889 + $0x50] sm:$0xe]
  %v1811 = vld [vmem:[%s889 + $0x54] sm:$0x1]
  %v1812 = vld [vmem:[%s889 + $0x58] sm:$0xe]
  %v1813 = vld [vmem:[%s889 + $0x5c] sm:$0x1]
  %v1814 = vld [vmem:[%s889 + $0x60] sm:$0xe]
  %v1815 = vld [vmem:[%s889 + $0x64] sm:$0x1]
  %v1816 = vld [vmem:[%s889 + $0x68] sm:$0xe]
  %v1817 = vld [vmem:[%s889 + $0x6c] sm:$0x1]
  %v1818 = vld [vmem:[%s889 + $0x70] sm:$0xe]
  %v1819 = vld [vmem:[%s889 + $0x74] sm:$0x1]
  %v1820 = vld [vmem:[%s889 + $0x78] sm:$0xe]
  %v1821 = vld [vmem:[%s889 + $0x7c] sm:$0x1]
  %v1822 = vld [vmem:[%s889 + $0x80] sm:$0xe]
  %v1823 = vld [vmem:[%s889 + $0x84] sm:$0x1]
  %v1824 = vld [vmem:[%s889 + $0x88] sm:$0xe]
  %v1825 = vld [vmem:[%s889 + $0x8c] sm:$0x1]
  %v1858 = vrot.slane %v1794, 5
  %v1859 = vrot.slane %v1858, 4
  %v1860 = vrot.slane %v1795, 5
  %v1861 = vsel %vm1377, %v1859, %v1860
  %v1862 = vrot.slane %v1796, 5
  %v1863 = vrot.slane %v1862, 4
  %v1864 = vrot.slane %v1797, 5
  %v1865 = vsel %vm1377, %v1863, %v1864
  %v1866 = vrot.slane %v1798, 5
  %v1867 = vrot.slane %v1866, 4
  %v1868 = vrot.slane %v1799, 5
  %v1869 = vsel %vm1377, %v1867, %v1868
  %v1870 = vrot.slane %v1800, 5
  %v1871 = vrot.slane %v1870, 4
  %v1872 = vrot.slane %v1801, 5
  %v1873 = vsel %vm1377, %v1871, %v1872
  %v1874 = vrot.slane %v1802, 5
  %v1875 = vrot.slane %v1874, 4
  %v1876 = vrot.slane %v1803, 5
  %v1877 = vsel %vm1377, %v1875, %v1876
  %v1878 = vrot.slane %v1804, 5
  %v1879 = vrot.slane %v1878, 4
  %v1880 = vrot.slane %v1805, 5
  %v1881 = vsel %vm1377, %v1879, %v1880
  %v1882 = vrot.slane %v1806, 5
  %v1883 = vrot.slane %v1882, 4
  %v1884 = vrot.slane %v1807, 5
  %v1885 = vsel %vm1377, %v1883, %v1884
  %v1886 = vrot.slane %v1808, 5
  %v1887 = vrot.slane %v1886, 4
  %v1888 = vrot.slane %v1809, 5
  %v1889 = vsel %vm1377, %v1887, %v1888
  %v1890 = vrot.slane %v1810, 5
  %v1891 = vrot.slane %v1890, 4
  %v1892 = vrot.slane %v1811, 5
  %v1893 = vsel %vm1377, %v1891, %v1892
  %v1894 = vrot.slane %v1812, 5
  %v1895 = vrot.slane %v1894, 4
  %v1896 = vrot.slane %v1813, 5
  %v1897 = vsel %vm1377, %v1895, %v1896
  %v1898 = vrot.slane %v1814, 5
  %v1899 = vrot.slane %v1898, 4
  %v1900 = vrot.slane %v1815, 5
  %v1901 = vsel %vm1377, %v1899, %v1900
  %v1902 = vrot.slane %v1816, 5
  %v1903 = vrot.slane %v1902, 4
  %v1904 = vrot.slane %v1817, 5
  %v1905 = vsel %vm1377, %v1903, %v1904
  %v1906 = vrot.slane %v1818, 5
  %v1907 = vrot.slane %v1906, 4
  %v1908 = vrot.slane %v1819, 5
  %v1909 = vsel %vm1377, %v1907, %v1908
  %v1910 = vrot.slane %v1820, 5
  %v1911 = vrot.slane %v1910, 4
  %v1912 = vrot.slane %v1821, 5
  %v1913 = vsel %vm1377, %v1911, %v1912
  %v1914 = vrot.slane %v1822, 5
  %v1915 = vrot.slane %v1914, 4
  %v1916 = vrot.slane %v1823, 5
  %v1917 = vsel %vm1377, %v1915, %v1916
  %v1918 = vrot.slane %v1824, 5
  %v1919 = vrot.slane %v1918, 4
  %v1920 = vrot.slane %v1825, 5
  %v1921 = vsel %vm1377, %v1919, %v1920
  %1938 = vst [vmem:[#allocation3 + $0x14] sm:$0xf] %v1861
  %1939 = vst [vmem:[#allocation3 + $0x38] sm:$0xf] %v1865
  %1940 = vst [vmem:[#allocation3 + $0x5c] sm:$0xf] %v1869
  %1941 = vst [vmem:[#allocation3 + $0x80] sm:$0xf] %v1873
  %1942 = vst [vmem:[#allocation3 + $0xa4] sm:$0xf] %v1877
  %1943 = vst [vmem:[#allocation3 + $0xc8] sm:$0xf] %v1881
  %1944 = vst [vmem:[#allocation3 + $0xec] sm:$0xf] %v1885
  %1945 = vst [vmem:[#allocation3 + $0x110] sm:$0xf] %v1889
  %1946 = vst [vmem:[#allocation3 + $0x134] sm:$0xf] %v1893
  %1947 = vst [vmem:[#allocation3 + $0x158] sm:$0xf] %v1897
  %1948 = vst [vmem:[#allocation3 + $0x17c] sm:$0xf] %v1901
  %1949 = vst [vmem:[#allocation3 + $0x1a0] sm:$0xf] %v1905
  %1950 = vst [vmem:[#allocation3 + $0x1c4] sm:$0xf] %v1909
  %1951 = vst [vmem:[#allocation3 + $0x1e8] sm:$0xf] %v1913
  %1952 = vst [vmem:[#allocation3 + $0x20c] sm:$0xf] %v1917
  %1953 = vst [vmem:[#allocation3 + $0x230] sm:$0xf] %v1921
  %s1954 = scalar_lea.vmem [#allocation2], 16
  %v1955 = vld [vmem:[%s1954] sm:$0xf]
  %v1956 = vld [vmem:[%s1954 + $0x8] sm:$0xf]
  %v1957 = vld [vmem:[%s1954 + $0x10] sm:$0xf]
  %v1958 = vld [vmem:[%s1954 + $0x18] sm:$0xf]
  %v1959 = vld [vmem:[%s1954 + $0x20] sm:$0xf]
  %v1960 = vld [vmem:[%s1954 + $0x28] sm:$0xf]
  %v1961 = vld [vmem:[%s1954 + $0x30] sm:$0xf]
  %v1962 = vld [vmem:[%s1954 + $0x38] sm:$0xf]
  %v1963 = vld [vmem:[%s1954 + $0x50] sm:$0xf]
  %v1964 = vld [vmem:[%s1954 + $0x58] sm:$0xf]
  %v1965 = vld [vmem:[%s1954 + $0x60] sm:$0xf]
  %v1966 = vld [vmem:[%s1954 + $0x68] sm:$0xf]
  %v1967 = vld [vmem:[%s1954 + $0x70] sm:$0xf]
  %v1968 = vld [vmem:[%s1954 + $0x78] sm:$0xf]
  %v1969 = vld [vmem:[%s1954 + $0x80] sm:$0xf]
  %v1970 = vld [vmem:[%s1954 + $0x88] sm:$0xf]
  %1971 = vst [vmem:[#allocation3 + $0x18] sm:$0xf] %v1955
  %1972 = vst [vmem:[#allocation3 + $0x3c] sm:$0xf] %v1956
  %1973 = vst [vmem:[#allocation3 + $0x60] sm:$0xf] %v1957
  %1974 = vst [vmem:[#allocation3 + $0x84] sm:$0xf] %v1958
  %1975 = vst [vmem:[#allocation3 + $0xa8] sm:$0xf] %v1959
  %1976 = vst [vmem:[#allocation3 + $0xcc] sm:$0xf] %v1960
  %1977 = vst [vmem:[#allocation3 + $0xf0] sm:$0xf] %v1961
  %1978 = vst [vmem:[#allocation3 + $0x114] sm:$0xf] %v1962
  %1979 = vst [vmem:[#allocation3 + $0x138] sm:$0xf] %v1963
  %1980 = vst [vmem:[#allocation3 + $0x15c] sm:$0xf] %v1964
  %1981 = vst [vmem:[#allocation3 + $0x180] sm:$0xf] %v1965
  %1982 = vst [vmem:[#allocation3 + $0x1a4] sm:$0xf] %v1966
  %1983 = vst [vmem:[#allocation3 + $0x1c8] sm:$0xf] %v1967
  %1984 = vst [vmem:[#allocation3 + $0x1ec] sm:$0xf] %v1968
  %1985 = vst [vmem:[#allocation3 + $0x210] sm:$0xf] %v1969
  %1986 = vst [vmem:[#allocation3 + $0x234] sm:$0xf] %v1970
  %v1987 = vld [vmem:[%s1954] sm:$0xf]
  %v1988 = vld [vmem:[%s1954 + $0x4] sm:$0x1]
  %v1989 = vld [vmem:[%s1954 + $0x8] sm:$0xf]
  %v1990 = vld [vmem:[%s1954 + $0xc] sm:$0x1]
  %v1991 = vld [vmem:[%s1954 + $0x10] sm:$0xf]
  %v1992 = vld [vmem:[%s1954 + $0x14] sm:$0x1]
  %v1993 = vld [vmem:[%s1954 + $0x18] sm:$0xf]
  %v1994 = vld [vmem:[%s1954 + $0x1c] sm:$0x1]
  %v1995 = vld [vmem:[%s1954 + $0x20] sm:$0xf]
  %v1996 = vld [vmem:[%s1954 + $0x24] sm:$0x1]
  %v1997 = vld [vmem:[%s1954 + $0x28] sm:$0xf]
  %v1998 = vld [vmem:[%s1954 + $0x2c] sm:$0x1]
  %v1999 = vld [vmem:[%s1954 + $0x30] sm:$0xf]
  %v2000 = vld [vmem:[%s1954 + $0x34] sm:$0x1]
  %v2001 = vld [vmem:[%s1954 + $0x38] sm:$0xf]
  %v2002 = vld [vmem:[%s1954 + $0x3c] sm:$0x1]
  %v2003 = vld [vmem:[%s1954 + $0x50] sm:$0xf]
  %v2004 = vld [vmem:[%s1954 + $0x54] sm:$0x1]
  %v2005 = vld [vmem:[%s1954 + $0x58] sm:$0xf]
  %v2006 = vld [vmem:[%s1954 + $0x5c] sm:$0x1]
  %v2007 = vld [vmem:[%s1954 + $0x60] sm:$0xf]
  %v2008 = vld [vmem:[%s1954 + $0x64] sm:$0x1]
  %v2009 = vld [vmem:[%s1954 + $0x68] sm:$0xf]
  %v2010 = vld [vmem:[%s1954 + $0x6c] sm:$0x1]
  %v2011 = vld [vmem:[%s1954 + $0x70] sm:$0xf]
  %v2012 = vld [vmem:[%s1954 + $0x74] sm:$0x1]
  %v2013 = vld [vmem:[%s1954 + $0x78] sm:$0xf]
  %v2014 = vld [vmem:[%s1954 + $0x7c] sm:$0x1]
  %v2015 = vld [vmem:[%s1954 + $0x80] sm:$0xf]
  %v2016 = vld [vmem:[%s1954 + $0x84] sm:$0x1]
  %v2017 = vld [vmem:[%s1954 + $0x88] sm:$0xf]
  %v2018 = vld [vmem:[%s1954 + $0x8c] sm:$0x1]
  %v2020 = vshrl.u32 %v1987, 16
  %v2022 = vrot.slane %v2020, 4
  %v2023 = vshll.u32 %v1987, 16
  %v2025 = vrot.slane %v2023, 5
  %v2026 = vor.u32 %v2022, %v2025
  %v2027 = vrot.slane %v2026, 4
  %v2029 = vshll.u32 %v1988, 16
  %v2031 = vrot.slane %v2029, 5
  %v2032 = vsel %vm1054, %v2027, %v2031
  %v2034 = vshrl.u32 %v1989, 16
  %v2036 = vrot.slane %v2034, 4
  %v2037 = vshll.u32 %v1989, 16
  %v2039 = vrot.slane %v2037, 5
  %v2040 = vor.u32 %v2036, %v2039
  %v2041 = vrot.slane %v2040, 4
  %v2043 = vshll.u32 %v1990, 16
  %v2045 = vrot.slane %v2043, 5
  %v2046 = vsel %vm1054, %v2041, %v2045
  %v2048 = vshrl.u32 %v1991, 16
  %v2050 = vrot.slane %v2048, 4
  %v2051 = vshll.u32 %v1991, 16
  %v2053 = vrot.slane %v2051, 5
  %v2054 = vor.u32 %v2050, %v2053
  %v2055 = vrot.slane %v2054, 4
  %v2057 = vshll.u32 %v1992, 16
  %v2059 = vrot.slane %v2057, 5
  %v2060 = vsel %vm1054, %v2055, %v2059
  %v2062 = vshrl.u32 %v1993, 16
  %v2064 = vrot.slane %v2062, 4
  %v2065 = vshll.u32 %v1993, 16
  %v2067 = vrot.slane %v2065, 5
  %v2068 = vor.u32 %v2064, %v2067
  %v2069 = vrot.slane %v2068, 4
  %v2071 = vshll.u32 %v1994, 16
  %v2073 = vrot.slane %v2071, 5
  %v2074 = vsel %vm1054, %v2069, %v2073
  %v2076 = vshrl.u32 %v1995, 16
  %v2078 = vrot.slane %v2076, 4
  %v2079 = vshll.u32 %v1995, 16
  %v2081 = vrot.slane %v2079, 5
  %v2082 = vor.u32 %v2078, %v2081
  %v2083 = vrot.slane %v2082, 4
  %v2085 = vshll.u32 %v1996, 16
  %v2087 = vrot.slane %v2085, 5
  %v2088 = vsel %vm1054, %v2083, %v2087
  %v2090 = vshrl.u32 %v1997, 16
  %v2092 = vrot.slane %v2090, 4
  %v2093 = vshll.u32 %v1997, 16
  %v2095 = vrot.slane %v2093, 5
  %v2096 = vor.u32 %v2092, %v2095
  %v2097 = vrot.slane %v2096, 4
  %v2099 = vshll.u32 %v1998, 16
  %v2101 = vrot.slane %v2099, 5
  %v2102 = vsel %vm1054, %v2097, %v2101
  %v2104 = vshrl.u32 %v1999, 16
  %v2106 = vrot.slane %v2104, 4
  %v2107 = vshll.u32 %v1999, 16
  %v2109 = vrot.slane %v2107, 5
  %v2110 = vor.u32 %v2106, %v2109
  %v2111 = vrot.slane %v2110, 4
  %v2113 = vshll.u32 %v2000, 16
  %v2115 = vrot.slane %v2113, 5
  %v2116 = vsel %vm1054, %v2111, %v2115
  %v2118 = vshrl.u32 %v2001, 16
  %v2120 = vrot.slane %v2118, 4
  %v2121 = vshll.u32 %v2001, 16
  %v2123 = vrot.slane %v2121, 5
  %v2124 = vor.u32 %v2120, %v2123
  %v2125 = vrot.slane %v2124, 4
  %v2127 = vshll.u32 %v2002, 16
  %v2129 = vrot.slane %v2127, 5
  %v2130 = vsel %vm1054, %v2125, %v2129
  %v2132 = vshrl.u32 %v2003, 16
  %v2134 = vrot.slane %v2132, 4
  %v2135 = vshll.u32 %v2003, 16
  %v2137 = vrot.slane %v2135, 5
  %v2138 = vor.u32 %v2134, %v2137
  %v2139 = vrot.slane %v2138, 4
  %v2141 = vshll.u32 %v2004, 16
  %v2143 = vrot.slane %v2141, 5
  %v2144 = vsel %vm1054, %v2139, %v2143
  %v2146 = vshrl.u32 %v2005, 16
  %v2148 = vrot.slane %v2146, 4
  %v2149 = vshll.u32 %v2005, 16
  %v2151 = vrot.slane %v2149, 5
  %v2152 = vor.u32 %v2148, %v2151
  %v2153 = vrot.slane %v2152, 4
  %v2155 = vshll.u32 %v2006, 16
  %v2157 = vrot.slane %v2155, 5
  %v2158 = vsel %vm1054, %v2153, %v2157
  %v2160 = vshrl.u32 %v2007, 16
  %v2162 = vrot.slane %v2160, 4
  %v2163 = vshll.u32 %v2007, 16
  %v2165 = vrot.slane %v2163, 5
  %v2166 = vor.u32 %v2162, %v2165
  %v2167 = vrot.slane %v2166, 4
  %v2169 = vshll.u32 %v2008, 16
  %v2171 = vrot.slane %v2169, 5
  %v2172 = vsel %vm1054, %v2167, %v2171
  %v2174 = vshrl.u32 %v2009, 16
  %v2176 = vrot.slane %v2174, 4
  %v2177 = vshll.u32 %v2009, 16
  %v2179 = vrot.slane %v2177, 5
  %v2180 = vor.u32 %v2176, %v2179
  %v2181 = vrot.slane %v2180, 4
  %v2183 = vshll.u32 %v2010, 16
  %v2185 = vrot.slane %v2183, 5
  %v2186 = vsel %vm1054, %v2181, %v2185
  %v2188 = vshrl.u32 %v2011, 16
  %v2190 = vrot.slane %v2188, 4
  %v2191 = vshll.u32 %v2011, 16
  %v2193 = vrot.slane %v2191, 5
  %v2194 = vor.u32 %v2190, %v2193
  %v2195 = vrot.slane %v2194, 4
  %v2197 = vshll.u32 %v2012, 16
  %v2199 = vrot.slane %v2197, 5
  %v2200 = vsel %vm1054, %v2195, %v2199
  %v2202 = vshrl.u32 %v2013, 16
  %v2204 = vrot.slane %v2202, 4
  %v2205 = vshll.u32 %v2013, 16
  %v2207 = vrot.slane %v2205, 5
  %v2208 = vor.u32 %v2204, %v2207
  %v2209 = vrot.slane %v2208, 4
  %v2211 = vshll.u32 %v2014, 16
  %v2213 = vrot.slane %v2211, 5
  %v2214 = vsel %vm1054, %v2209, %v2213
  %v2216 = vshrl.u32 %v2015, 16
  %v2218 = vrot.slane %v2216, 4
  %v2219 = vshll.u32 %v2015, 16
  %v2221 = vrot.slane %v2219, 5
  %v2222 = vor.u32 %v2218, %v2221
  %v2223 = vrot.slane %v2222, 4
  %v2225 = vshll.u32 %v2016, 16
  %v2227 = vrot.slane %v2225, 5
  %v2228 = vsel %vm1054, %v2223, %v2227
  %v2230 = vshrl.u32 %v2017, 16
  %v2232 = vrot.slane %v2230, 4
  %v2233 = vshll.u32 %v2017, 16
  %v2235 = vrot.slane %v2233, 5
  %v2236 = vor.u32 %v2232, %v2235
  %v2237 = vrot.slane %v2236, 4
  %v2239 = vshll.u32 %v2018, 16
  %v2241 = vrot.slane %v2239, 5
  %v2242 = vsel %vm1054, %v2237, %v2241
  %2259 = vst [vmem:[#allocation3 + $0x1c] sm:$0xf] %v2032
  %2260 = vst [vmem:[#allocation3 + $0x40] sm:$0xf] %v2046
  %2261 = vst [vmem:[#allocation3 + $0x64] sm:$0xf] %v2060
  %2262 = vst [vmem:[#allocation3 + $0x88] sm:$0xf] %v2074
  %2263 = vst [vmem:[#allocation3 + $0xac] sm:$0xf] %v2088
  %2264 = vst [vmem:[#allocation3 + $0xd0] sm:$0xf] %v2102
  %2265 = vst [vmem:[#allocation3 + $0xf4] sm:$0xf] %v2116
  %2266 = vst [vmem:[#allocation3 + $0x118] sm:$0xf] %v2130
  %2267 = vst [vmem:[#allocation3 + $0x13c] sm:$0xf] %v2144
  %2268 = vst [vmem:[#allocation3 + $0x160] sm:$0xf] %v2158
  %2269 = vst [vmem:[#allocation3 + $0x184] sm:$0xf] %v2172
  %2270 = vst [vmem:[#allocation3 + $0x1a8] sm:$0xf] %v2186
  %2271 = vst [vmem:[#allocation3 + $0x1cc] sm:$0xf] %v2200
  %2272 = vst [vmem:[#allocation3 + $0x1f0] sm:$0xf] %v2214
  %2273 = vst [vmem:[#allocation3 + $0x214] sm:$0xf] %v2228
  %2274 = vst [vmem:[#allocation3 + $0x238] sm:$0xf] %v2242
  %v2275 = vld [vmem:[%s1954] sm:$0xe]
  %v2276 = vld [vmem:[%s1954 + $0x4] sm:$0x1]
  %v2277 = vld [vmem:[%s1954 + $0x8] sm:$0xe]
  %v2278 = vld [vmem:[%s1954 + $0xc] sm:$0x1]
  %v2279 = vld [vmem:[%s1954 + $0x10] sm:$0xe]
  %v2280 = vld [vmem:[%s1954 + $0x14] sm:$0x1]
  %v2281 = vld [vmem:[%s1954 + $0x18] sm:$0xe]
  %v2282 = vld [vmem:[%s1954 + $0x1c] sm:$0x1]
  %v2283 = vld [vmem:[%s1954 + $0x20] sm:$0xe]
  %v2284 = vld [vmem:[%s1954 + $0x24] sm:$0x1]
  %v2285 = vld [vmem:[%s1954 + $0x28] sm:$0xe]
  %v2286 = vld [vmem:[%s1954 + $0x2c] sm:$0x1]
  %v2287 = vld [vmem:[%s1954 + $0x30] sm:$0xe]
  %v2288 = vld [vmem:[%s1954 + $0x34] sm:$0x1]
  %v2289 = vld [vmem:[%s1954 + $0x38] sm:$0xe]
  %v2290 = vld [vmem:[%s1954 + $0x3c] sm:$0x1]
  %v2291 = vld [vmem:[%s1954 + $0x50] sm:$0xe]
  %v2292 = vld [vmem:[%s1954 + $0x54] sm:$0x1]
  %v2293 = vld [vmem:[%s1954 + $0x58] sm:$0xe]
  %v2294 = vld [vmem:[%s1954 + $0x5c] sm:$0x1]
  %v2295 = vld [vmem:[%s1954 + $0x60] sm:$0xe]
  %v2296 = vld [vmem:[%s1954 + $0x64] sm:$0x1]
  %v2297 = vld [vmem:[%s1954 + $0x68] sm:$0xe]
  %v2298 = vld [vmem:[%s1954 + $0x6c] sm:$0x1]
  %v2299 = vld [vmem:[%s1954 + $0x70] sm:$0xe]
  %v2300 = vld [vmem:[%s1954 + $0x74] sm:$0x1]
  %v2301 = vld [vmem:[%s1954 + $0x78] sm:$0xe]
  %v2302 = vld [vmem:[%s1954 + $0x7c] sm:$0x1]
  %v2303 = vld [vmem:[%s1954 + $0x80] sm:$0xe]
  %v2304 = vld [vmem:[%s1954 + $0x84] sm:$0x1]
  %v2305 = vld [vmem:[%s1954 + $0x88] sm:$0xe]
  %v2306 = vld [vmem:[%s1954 + $0x8c] sm:$0x1]
  %v2339 = vrot.slane %v2275, 5
  %v2340 = vrot.slane %v2339, 4
  %v2341 = vrot.slane %v2276, 5
  %v2342 = vsel %vm1377, %v2340, %v2341
  %v2343 = vrot.slane %v2277, 5
  %v2344 = vrot.slane %v2343, 4
  %v2345 = vrot.slane %v2278, 5
  %v2346 = vsel %vm1377, %v2344, %v2345
  %v2347 = vrot.slane %v2279, 5
  %v2348 = vrot.slane %v2347, 4
  %v2349 = vrot.slane %v2280, 5
  %v2350 = vsel %vm1377, %v2348, %v2349
  %v2351 = vrot.slane %v2281, 5
  %v2352 = vrot.slane %v2351, 4
  %v2353 = vrot.slane %v2282, 5
  %v2354 = vsel %vm1377, %v2352, %v2353
  %v2355 = vrot.slane %v2283, 5
  %v2356 = vrot.slane %v2355, 4
  %v2357 = vrot.slane %v2284, 5
  %v2358 = vsel %vm1377, %v2356, %v2357
  %v2359 = vrot.slane %v2285, 5
  %v2360 = vrot.slane %v2359, 4
  %v2361 = vrot.slane %v2286, 5
  %v2362 = vsel %vm1377, %v2360, %v2361
  %v2363 = vrot.slane %v2287, 5
  %v2364 = vrot.slane %v2363, 4
  %v2365 = vrot.slane %v2288, 5
  %v2366 = vsel %vm1377, %v2364, %v2365
  %v2367 = vrot.slane %v2289, 5
  %v2368 = vrot.slane %v2367, 4
  %v2369 = vrot.slane %v2290, 5
  %v2370 = vsel %vm1377, %v2368, %v2369
  %v2371 = vrot.slane %v2291, 5
  %v2372 = vrot.slane %v2371, 4
  %v2373 = vrot.slane %v2292, 5
  %v2374 = vsel %vm1377, %v2372, %v2373
  %v2375 = vrot.slane %v2293, 5
  %v2376 = vrot.slane %v2375, 4
  %v2377 = vrot.slane %v2294, 5
  %v2378 = vsel %vm1377, %v2376, %v2377
  %v2379 = vrot.slane %v2295, 5
  %v2380 = vrot.slane %v2379, 4
  %v2381 = vrot.slane %v2296, 5
  %v2382 = vsel %vm1377, %v2380, %v2381
  %v2383 = vrot.slane %v2297, 5
  %v2384 = vrot.slane %v2383, 4
  %v2385 = vrot.slane %v2298, 5
  %v2386 = vsel %vm1377, %v2384, %v2385
  %v2387 = vrot.slane %v2299, 5
  %v2388 = vrot.slane %v2387, 4
  %v2389 = vrot.slane %v2300, 5
  %v2390 = vsel %vm1377, %v2388, %v2389
  %v2391 = vrot.slane %v2301, 5
  %v2392 = vrot.slane %v2391, 4
  %v2393 = vrot.slane %v2302, 5
  %v2394 = vsel %vm1377, %v2392, %v2393
  %v2395 = vrot.slane %v2303, 5
  %v2396 = vrot.slane %v2395, 4
  %v2397 = vrot.slane %v2304, 5
  %v2398 = vsel %vm1377, %v2396, %v2397
  %v2399 = vrot.slane %v2305, 5
  %v2400 = vrot.slane %v2399, 4
  %v2401 = vrot.slane %v2306, 5
  %v2402 = vsel %vm1377, %v2400, %v2401
  %2419 = vst [vmem:[#allocation3 + $0x20] sm:$0xf] %v2342
  %2420 = vst [vmem:[#allocation3 + $0x44] sm:$0xf] %v2346
  %2421 = vst [vmem:[#allocation3 + $0x68] sm:$0xf] %v2350
  %2422 = vst [vmem:[#allocation3 + $0x8c] sm:$0xf] %v2354
  %2423 = vst [vmem:[#allocation3 + $0xb0] sm:$0xf] %v2358
  %2424 = vst [vmem:[#allocation3 + $0xd4] sm:$0xf] %v2362
  %2425 = vst [vmem:[#allocation3 + $0xf8] sm:$0xf] %v2366
  %2426 = vst [vmem:[#allocation3 + $0x11c] sm:$0xf] %v2370
  %2427 = vst [vmem:[#allocation3 + $0x140] sm:$0xf] %v2374
  %2428 = vst [vmem:[#allocation3 + $0x164] sm:$0xf] %v2378
  %2429 = vst [vmem:[#allocation3 + $0x188] sm:$0xf] %v2382
  %2430 = vst [vmem:[#allocation3 + $0x1ac] sm:$0xf] %v2386
  %2431 = vst [vmem:[#allocation3 + $0x1d0] sm:$0xf] %v2390
  %2432 = vst [vmem:[#allocation3 + $0x1f4] sm:$0xf] %v2394
  %2433 = vst [vmem:[#allocation3 + $0x218] sm:$0xf] %v2398
  %2434 = vst [vmem:[#allocation3 + $0x23c] sm:$0xf] %v2402
  %v2435 = vld [vmem:[#allocation3] sm:$0xff]
  %v2436 = vld [vmem:[#allocation3 + $0x8] sm:$0xff]
  %v2437 = vld [vmem:[#allocation3 + $0x10] sm:$0xff]
  %v2438 = vld [vmem:[#allocation3 + $0x18] sm:$0xff]
  %v2439 = vld [vmem:[#allocation3 + $0x20] sm:$0xf]
  %v2440 = vld [vmem:[#allocation3 + $0x24] sm:$0xff]
  %v2441 = vld [vmem:[#allocation3 + $0x2c] sm:$0xff]
  %v2442 = vld [vmem:[#allocation3 + $0x34] sm:$0xff]
  %v2443 = vld [vmem:[#allocation3 + $0x3c] sm:$0xff]
  %v2444 = vld [vmem:[#allocation3 + $0x44] sm:$0xf]
  %v2445 = vld [vmem:[#allocation3 + $0x48] sm:$0xff]
  %v2446 = vld [vmem:[#allocation3 + $0x50] sm:$0xff]
  %v2447 = vld [vmem:[#allocation3 + $0x58] sm:$0xff]
  %v2448 = vld [vmem:[#allocation3 + $0x60] sm:$0xff]
  %v2449 = vld [vmem:[#allocation3 + $0x68] sm:$0xf]
  %v2450 = vld [vmem:[#allocation3 + $0x6c] sm:$0xff]
  %v2451 = vld [vmem:[#allocation3 + $0x74] sm:$0xff]
  %v2452 = vld [vmem:[#allocation3 + $0x7c] sm:$0xff]
  %v2453 = vld [vmem:[#allocation3 + $0x84] sm:$0xff]
  %v2454 = vld [vmem:[#allocation3 + $0x8c] sm:$0xf]
  %v2455 = vld [vmem:[#allocation3 + $0x90] sm:$0xff]
  %v2456 = vld [vmem:[#allocation3 + $0x98] sm:$0xff]
  %v2457 = vld [vmem:[#allocation3 + $0xa0] sm:$0xff]
  %v2458 = vld [vmem:[#allocation3 + $0xa8] sm:$0xff]
  %v2459 = vld [vmem:[#allocation3 + $0xb0] sm:$0xf]
  %v2460 = vld [vmem:[#allocation3 + $0xb4] sm:$0xff]
  %v2461 = vld [vmem:[#allocation3 + $0xbc] sm:$0xff]
  %v2462 = vld [vmem:[#allocation3 + $0xc4] sm:$0xff]
  %v2463 = vld [vmem:[#allocation3 + $0xcc] sm:$0xff]
  %v2464 = vld [vmem:[#allocation3 + $0xd4] sm:$0xf]
  %v2465 = vld [vmem:[#allocation3 + $0xd8] sm:$0xff]
  %v2466 = vld [vmem:[#allocation3 + $0xe0] sm:$0xff]
  %v2467 = vld [vmem:[#allocation3 + $0xe8] sm:$0xff]
  %v2468 = vld [vmem:[#allocation3 + $0xf0] sm:$0xff]
  %v2469 = vld [vmem:[#allocation3 + $0xf8] sm:$0xf]
  %v2470 = vld [vmem:[#allocation3 + $0xfc] sm:$0xff]
  %v2471 = vld [vmem:[#allocation3 + $0x104] sm:$0xff]
  %v2472 = vld [vmem:[#allocation3 + $0x10c] sm:$0xff]
  %v2473 = vld [vmem:[#allocation3 + $0x114] sm:$0xff]
  %v2474 = vld [vmem:[#allocation3 + $0x11c] sm:$0xf]
  %v2475 = vld [vmem:[#allocation3 + $0x120] sm:$0xff]
  %v2476 = vld [vmem:[#allocation3 + $0x128] sm:$0xff]
  %v2477 = vld [vmem:[#allocation3 + $0x130] sm:$0xff]
  %v2478 = vld [vmem:[#allocation3 + $0x138] sm:$0xff]
  %v2479 = vld [vmem:[#allocation3 + $0x140] sm:$0xf]
  %v2480 = vld [vmem:[#allocation3 + $0x144] sm:$0xff]
  %v2481 = vld [vmem:[#allocation3 + $0x14c] sm:$0xff]
  %v2482 = vld [vmem:[#allocation3 + $0x154] sm:$0xff]
  %v2483 = vld [vmem:[#allocation3 + $0x15c] sm:$0xff]
  %v2484 = vld [vmem:[#allocation3 + $0x164] sm:$0xf]
  %v2485 = vld [vmem:[#allocation3 + $0x168] sm:$0xff]
  %v2486 = vld [vmem:[#allocation3 + $0x170] sm:$0xff]
  %v2487 = vld [vmem:[#allocation3 + $0x178] sm:$0xff]
  %v2488 = vld [vmem:[#allocation3 + $0x180] sm:$0xff]
  %v2489 = vld [vmem:[#allocation3 + $0x188] sm:$0xf]
  %v2490 = vld [vmem:[#allocation3 + $0x18c] sm:$0xff]
  %v2491 = vld [vmem:[#allocation3 + $0x194] sm:$0xff]
  %v2492 = vld [vmem:[#allocation3 + $0x19c] sm:$0xff]
  %v2493 = vld [vmem:[#allocation3 + $0x1a4] sm:$0xff]
  %v2494 = vld [vmem:[#allocation3 + $0x1ac] sm:$0xf]
  %v2495 = vld [vmem:[#allocation3 + $0x1b0] sm:$0xff]
  %v2496 = vld [vmem:[#allocation3 + $0x1b8] sm:$0xff]
  %v2497 = vld [vmem:[#allocation3 + $0x1c0] sm:$0xff]
  %v2498 = vld [vmem:[#allocation3 + $0x1c8] sm:$0xff]
  %v2499 = vld [vmem:[#allocation3 + $0x1d0] sm:$0xf]
  %v2500 = vld [vmem:[#allocation3 + $0x1d4] sm:$0xff]
  %v2501 = vld [vmem:[#allocation3 + $0x1dc] sm:$0xff]
  %v2502 = vld [vmem:[#allocation3 + $0x1e4] sm:$0xff]
  %v2503 = vld [vmem:[#allocation3 + $0x1ec] sm:$0xff]
  %v2504 = vld [vmem:[#allocation3 + $0x1f4] sm:$0xf]
  %v2505 = vld [vmem:[#allocation3 + $0x1f8] sm:$0xff]
  %v2506 = vld [vmem:[#allocation3 + $0x200] sm:$0xff]
  %v2507 = vld [vmem:[#allocation3 + $0x208] sm:$0xff]
  %v2508 = vld [vmem:[#allocation3 + $0x210] sm:$0xff]
  %v2509 = vld [vmem:[#allocation3 + $0x218] sm:$0xf]
  %v2510 = vld [vmem:[#allocation3 + $0x21c] sm:$0xff]
  %v2511 = vld [vmem:[#allocation3 + $0x224] sm:$0xff]
  %v2512 = vld [vmem:[#allocation3 + $0x22c] sm:$0xff]
  %v2513 = vld [vmem:[#allocation3 + $0x234] sm:$0xff]
  %v2514 = vld [vmem:[#allocation3 + $0x23c] sm:$0xf]
  %v2515 = vld [vmem:[%s3] sm:$0xf]
  %v2516 = vld [vmem:[%s3 + $0x4] sm:$0xf]
  %v2517 = vld [vmem:[%s3 + $0x8] sm:$0xf]
  %v2518 = vld [vmem:[%s3 + $0xc] sm:$0xf]
  %v2519 = vld [vmem:[%s3 + $0x10] sm:$0xf]
  %v2520 = vld [vmem:[%s3 + $0x14] sm:$0xf]
  %v2521 = vld [vmem:[%s3 + $0x18] sm:$0xf]
  %v2522 = vld [vmem:[%s3 + $0x1c] sm:$0xf]
  %v2523 = vld [vmem:[%s3 + $0x20] sm:$0xf]
  %v2524 = vld [vmem:[%s3 + $0x24] sm:$0xf]
  %v2525 = vld [vmem:[%s3 + $0x28] sm:$0xf]
  %v2526 = vld [vmem:[%s3 + $0x2c] sm:$0xf]
  %v2527 = vld [vmem:[%s3 + $0x30] sm:$0xf]
  %v2528 = vld [vmem:[%s3 + $0x34] sm:$0xf]
  %v2529 = vld [vmem:[%s3 + $0x38] sm:$0xf]
  %v2530 = vld [vmem:[%s3 + $0x3c] sm:$0xf]
  %v2531 = vld [vmem:[%s3 + $0x40] sm:$0xf]
  %v2532 = vld [vmem:[%s3 + $0x44] sm:$0xf]
  %v2533 = vld [vmem:[%s3 + $0x48] sm:$0xf]
  %v2534 = vld [vmem:[%s3 + $0x4c] sm:$0xf]
  %v2535 = vld [vmem:[%s3 + $0x50] sm:$0xf]
  %v2536 = vld [vmem:[%s3 + $0x54] sm:$0xf]
  %v2537 = vld [vmem:[%s3 + $0x58] sm:$0xf]
  %v2538 = vld [vmem:[%s3 + $0x5c] sm:$0xf]
  %v2539 = vld [vmem:[%s3 + $0x60] sm:$0xf]
  %v2540 = vld [vmem:[%s3 + $0x64] sm:$0xf]
  %v2541 = vld [vmem:[%s3 + $0x68] sm:$0xf]
  %v2542 = vld [vmem:[%s3 + $0x6c] sm:$0xf]
  %v2543 = vld [vmem:[%s3 + $0x70] sm:$0xf]
  %v2544 = vld [vmem:[%s3 + $0x74] sm:$0xf]
  %v2545 = vld [vmem:[%s3 + $0x78] sm:$0xf]
  %v2546 = vld [vmem:[%s3 + $0x7c] sm:$0xf]
  %v2547 = vld [vmem:[%s3 + $0x80] sm:$0xf]
  %v2548 = vld [vmem:[%s3 + $0x84] sm:$0xf]
  %v2549 = vld [vmem:[%s3 + $0x88] sm:$0xf]
  %v2550 = vld [vmem:[%s3 + $0x8c] sm:$0xf]
  %v2551 = vld [vmem:[%s3 + $0x90] sm:$0xf]
  %v2552 = vld [vmem:[%s3 + $0x94] sm:$0xf]
  %v2553 = vld [vmem:[%s3 + $0x98] sm:$0xf]
  %v2554 = vld [vmem:[%s3 + $0x9c] sm:$0xf]
  %v2555 = vld [vmem:[%s3 + $0xa0] sm:$0xf]
  %v2556 = vld [vmem:[%s3 + $0xa4] sm:$0xf]
  %v2557 = vld [vmem:[%s3 + $0xa8] sm:$0xf]
  %v2558 = vld [vmem:[%s3 + $0xac] sm:$0xf]
  %v2559 = vld [vmem:[%s3 + $0xb0] sm:$0xf]
  %v2560 = vld [vmem:[%s3 + $0xb4] sm:$0xf]
  %v2561 = vld [vmem:[%s3 + $0xb8] sm:$0xf]
  %v2562 = vld [vmem:[%s3 + $0xbc] sm:$0xf]
  %v2563 = vld [vmem:[%s3 + $0xc0] sm:$0xf]
  %v2564 = vld [vmem:[%s3 + $0xc4] sm:$0xf]
  %v2565 = vld [vmem:[%s3 + $0xc8] sm:$0xf]
  %v2566 = vld [vmem:[%s3 + $0xcc] sm:$0xf]
  %v2567 = vld [vmem:[%s3 + $0xd0] sm:$0xf]
  %v2568 = vld [vmem:[%s3 + $0xd4] sm:$0xf]
  %v2569 = vld [vmem:[%s3 + $0xd8] sm:$0xf]
  %v2570 = vld [vmem:[%s3 + $0xdc] sm:$0xf]
  %v2571 = vld [vmem:[%s3 + $0xe0] sm:$0xf]
  %v2572 = vld [vmem:[%s3 + $0xe4] sm:$0xf]
  %v2573 = vld [vmem:[%s3 + $0xe8] sm:$0xf]
  %v2574 = vld [vmem:[%s3 + $0xec] sm:$0xf]
  %v2575 = vld [vmem:[%s3 + $0xf0] sm:$0xf]
  %v2576 = vld [vmem:[%s3 + $0xf4] sm:$0xf]
  %v2577 = vld [vmem:[%s3 + $0xf8] sm:$0xf]
  %v2578 = vld [vmem:[%s3 + $0xfc] sm:$0xf]
  %v2579 = vld [vmem:[%s3 + $0x100] sm:$0xf]
  %v2580 = vld [vmem:[%s3 + $0x104] sm:$0xf]
  %v2581 = vld [vmem:[%s3 + $0x108] sm:$0xf]
  %v2582 = vld [vmem:[%s3 + $0x10c] sm:$0xf]
  %v2583 = vld [vmem:[%s3 + $0x110] sm:$0xf]
  %v2584 = vld [vmem:[%s3 + $0x114] sm:$0xf]
  %v2585 = vld [vmem:[%s3 + $0x118] sm:$0xf]
  %v2586 = vld [vmem:[%s3 + $0x11c] sm:$0xf]
  %v2587 = vld [vmem:[%s3 + $0x120] sm:$0xf]
  %v2588 = vld [vmem:[%s3 + $0x124] sm:$0xf]
  %v2589 = vld [vmem:[%s3 + $0x128] sm:$0xf]
  %v2590 = vld [vmem:[%s3 + $0x12c] sm:$0xf]
  %v2591 = vld [vmem:[%s3 + $0x130] sm:$0xf]
  %v2592 = vld [vmem:[%s3 + $0x134] sm:$0xf]
  %v2593 = vld [vmem:[%s3 + $0x138] sm:$0xf]
  %v2594 = vld [vmem:[%s3 + $0x13c] sm:$0xf]
  %v2595 = vld [vmem:[%s3 + $0x140] sm:$0xf]
  %v2596 = vld [vmem:[%s3 + $0x144] sm:$0xf]
  %v2597 = vld [vmem:[%s3 + $0x148] sm:$0xf]
  %v2598 = vld [vmem:[%s3 + $0x14c] sm:$0xf]
  %v2599 = vld [vmem:[%s3 + $0x150] sm:$0xf]
  %v2600 = vld [vmem:[%s3 + $0x154] sm:$0xf]
  %v2601 = vld [vmem:[%s3 + $0x158] sm:$0xf]
  %v2602 = vld [vmem:[%s3 + $0x15c] sm:$0xf]
  %v2603 = vld [vmem:[%s3 + $0x160] sm:$0xf]
  %v2604 = vld [vmem:[%s3 + $0x164] sm:$0xf]
  %v2605 = vld [vmem:[%s3 + $0x168] sm:$0xf]
  %v2606 = vld [vmem:[%s3 + $0x16c] sm:$0xf]
  %v2607 = vld [vmem:[%s3 + $0x170] sm:$0xf]
  %v2608 = vld [vmem:[%s3 + $0x174] sm:$0xf]
  %v2609 = vld [vmem:[%s3 + $0x178] sm:$0xf]
  %v2610 = vld [vmem:[%s3 + $0x17c] sm:$0xf]
  %v2611 = vld [vmem:[%s3 + $0x180] sm:$0xf]
  %v2612 = vld [vmem:[%s3 + $0x184] sm:$0xf]
  %v2613 = vld [vmem:[%s3 + $0x188] sm:$0xf]
  %v2614 = vld [vmem:[%s3 + $0x18c] sm:$0xf]
  %v2615 = vld [vmem:[%s3 + $0x190] sm:$0xf]
  %v2616 = vld [vmem:[%s3 + $0x194] sm:$0xf]
  %v2617 = vld [vmem:[%s3 + $0x198] sm:$0xf]
  %v2618 = vld [vmem:[%s3 + $0x19c] sm:$0xf]
  %v2619 = vld [vmem:[%s3 + $0x1a0] sm:$0xf]
  %v2620 = vld [vmem:[%s3 + $0x1a4] sm:$0xf]
  %v2621 = vld [vmem:[%s3 + $0x1a8] sm:$0xf]
  %v2622 = vld [vmem:[%s3 + $0x1ac] sm:$0xf]
  %v2623 = vld [vmem:[%s3 + $0x1b0] sm:$0xf]
  %v2624 = vld [vmem:[%s3 + $0x1b4] sm:$0xf]
  %v2625 = vld [vmem:[%s3 + $0x1b8] sm:$0xf]
  %v2626 = vld [vmem:[%s3 + $0x1bc] sm:$0xf]
  %v2627 = vld [vmem:[%s3 + $0x1c0] sm:$0xf]
  %v2628 = vld [vmem:[%s3 + $0x1c4] sm:$0xf]
  %v2629 = vld [vmem:[%s3 + $0x1c8] sm:$0xf]
  %v2630 = vld [vmem:[%s3 + $0x1cc] sm:$0xf]
  %v2631 = vld [vmem:[%s3 + $0x1d0] sm:$0xf]
  %v2632 = vld [vmem:[%s3 + $0x1d4] sm:$0xf]
  %v2633 = vld [vmem:[%s3 + $0x1d8] sm:$0xf]
  %v2634 = vld [vmem:[%s3 + $0x1dc] sm:$0xf]
  %v2635 = vld [vmem:[%s3 + $0x1e0] sm:$0xf]
  %v2636 = vld [vmem:[%s3 + $0x1e4] sm:$0xf]
  %v2637 = vld [vmem:[%s3 + $0x1e8] sm:$0xf]
  %v2638 = vld [vmem:[%s3 + $0x1ec] sm:$0xf]
  %v2639 = vld [vmem:[%s3 + $0x1f0] sm:$0xf]
  %v2640 = vld [vmem:[%s3 + $0x1f4] sm:$0xf]
  %v2641 = vld [vmem:[%s3 + $0x1f8] sm:$0xf]
  %v2642 = vld [vmem:[%s3 + $0x1fc] sm:$0xf]
  %v2643 = vld [vmem:[%s3 + $0x200] sm:$0xf]
  %v2644 = vld [vmem:[%s3 + $0x204] sm:$0xf]
  %v2645 = vld [vmem:[%s3 + $0x208] sm:$0xf]
  %v2646 = vld [vmem:[%s3 + $0x20c] sm:$0xf]
  %v2647 = vld [vmem:[%s3 + $0x210] sm:$0xf]
  %v2648 = vld [vmem:[%s3 + $0x214] sm:$0xf]
  %v2649 = vld [vmem:[%s3 + $0x218] sm:$0xf]
  %v2650 = vld [vmem:[%s3 + $0x21c] sm:$0xf]
  %v2651 = vld [vmem:[%s3 + $0x220] sm:$0xf]
  %v2652 = vld [vmem:[%s3 + $0x224] sm:$0xf]
  %v2653 = vld [vmem:[%s3 + $0x228] sm:$0xf]
  %v2654 = vld [vmem:[%s3 + $0x22c] sm:$0xf]
  %v2655 = vld [vmem:[%s3 + $0x230] sm:$0xf]
  %v2656 = vld [vmem:[%s3 + $0x234] sm:$0xf]
  %v2657 = vld [vmem:[%s3 + $0x238] sm:$0xf]
  %v2658 = vld [vmem:[%s3 + $0x23c] sm:$0xf]
  %v2739 = vunpack.c.l.b16 %v2435
  %v2740 = vunpack.c.h.b16 %v2435
  %v2741 = vunpack.c.l.b16 %v2436
  %v2742 = vunpack.c.h.b16 %v2436
  %v2743 = vunpack.c.l.b16 %v2437
  %v2744 = vunpack.c.h.b16 %v2437
  %v2745 = vunpack.c.l.b16 %v2438
  %v2746 = vunpack.c.h.b16 %v2438
  %v2747 = vunpack.c.l.b16 %v2439
  %v2748 = vunpack.c.l.b16 %v2440
  %v2749 = vunpack.c.h.b16 %v2440
  %v2750 = vunpack.c.l.b16 %v2441
  %v2751 = vunpack.c.h.b16 %v2441
  %v2752 = vunpack.c.l.b16 %v2442
  %v2753 = vunpack.c.h.b16 %v2442
  %v2754 = vunpack.c.l.b16 %v2443
  %v2755 = vunpack.c.h.b16 %v2443
  %v2756 = vunpack.c.l.b16 %v2444
  %v2757 = vunpack.c.l.b16 %v2445
  %v2758 = vunpack.c.h.b16 %v2445
  %v2759 = vunpack.c.l.b16 %v2446
  %v2760 = vunpack.c.h.b16 %v2446
  %v2761 = vunpack.c.l.b16 %v2447
  %v2762 = vunpack.c.h.b16 %v2447
  %v2763 = vunpack.c.l.b16 %v2448
  %v2764 = vunpack.c.h.b16 %v2448
  %v2765 = vunpack.c.l.b16 %v2449
  %v2766 = vunpack.c.l.b16 %v2450
  %v2767 = vunpack.c.h.b16 %v2450
  %v2768 = vunpack.c.l.b16 %v2451
  %v2769 = vunpack.c.h.b16 %v2451
  %v2770 = vunpack.c.l.b16 %v2452
  %v2771 = vunpack.c.h.b16 %v2452
  %v2772 = vunpack.c.l.b16 %v2453
  %v2773 = vunpack.c.h.b16 %v2453
  %v2774 = vunpack.c.l.b16 %v2454
  %v2775 = vunpack.c.l.b16 %v2455
  %v2776 = vunpack.c.h.b16 %v2455
  %v2777 = vunpack.c.l.b16 %v2456
  %v2778 = vunpack.c.h.b16 %v2456
  %v2779 = vunpack.c.l.b16 %v2457
  %v2780 = vunpack.c.h.b16 %v2457
  %v2781 = vunpack.c.l.b16 %v2458
  %v2782 = vunpack.c.h.b16 %v2458
  %v2783 = vunpack.c.l.b16 %v2459
  %v2784 = vunpack.c.l.b16 %v2460
  %v2785 = vunpack.c.h.b16 %v2460
  %v2786 = vunpack.c.l.b16 %v2461
  %v2787 = vunpack.c.h.b16 %v2461
  %v2788 = vunpack.c.l.b16 %v2462
  %v2789 = vunpack.c.h.b16 %v2462
  %v2790 = vunpack.c.l.b16 %v2463
  %v2791 = vunpack.c.h.b16 %v2463
  %v2792 = vunpack.c.l.b16 %v2464
  %v2793 = vunpack.c.l.b16 %v2465
  %v2794 = vunpack.c.h.b16 %v2465
  %v2795 = vunpack.c.l.b16 %v2466
  %v2796 = vunpack.c.h.b16 %v2466
  %v2797 = vunpack.c.l.b16 %v2467
  %v2798 = vunpack.c.h.b16 %v2467
  %v2799 = vunpack.c.l.b16 %v2468
  %v2800 = vunpack.c.h.b16 %v2468
  %v2801 = vunpack.c.l.b16 %v2469
  %v2802 = vunpack.c.l.b16 %v2470
  %v2803 = vunpack.c.h.b16 %v2470
  %v2804 = vunpack.c.l.b16 %v2471
  %v2805 = vunpack.c.h.b16 %v2471
  %v2806 = vunpack.c.l.b16 %v2472
  %v2807 = vunpack.c.h.b16 %v2472
  %v2808 = vunpack.c.l.b16 %v2473
  %v2809 = vunpack.c.h.b16 %v2473
  %v2810 = vunpack.c.l.b16 %v2474
  %v2811 = vunpack.c.l.b16 %v2475
  %v2812 = vunpack.c.h.b16 %v2475
  %v2813 = vunpack.c.l.b16 %v2476
  %v2814 = vunpack.c.h.b16 %v2476
  %v2815 = vunpack.c.l.b16 %v2477
  %v2816 = vunpack.c.h.b16 %v2477
  %v2817 = vunpack.c.l.b16 %v2478
  %v2818 = vunpack.c.h.b16 %v2478
  %v2819 = vunpack.c.l.b16 %v2479
  %v2820 = vunpack.c.l.b16 %v2480
  %v2821 = vunpack.c.h.b16 %v2480
  %v2822 = vunpack.c.l.b16 %v2481
  %v2823 = vunpack.c.h.b16 %v2481
  %v2824 = vunpack.c.l.b16 %v2482
  %v2825 = vunpack.c.h.b16 %v2482
  %v2826 = vunpack.c.l.b16 %v2483
  %v2827 = vunpack.c.h.b16 %v2483
  %v2828 = vunpack.c.l.b16 %v2484
  %v2829 = vunpack.c.l.b16 %v2485
  %v2830 = vunpack.c.h.b16 %v2485
  %v2831 = vunpack.c.l.b16 %v2486
  %v2832 = vunpack.c.h.b16 %v2486
  %v2833 = vunpack.c.l.b16 %v2487
  %v2834 = vunpack.c.h.b16 %v2487
  %v2835 = vunpack.c.l.b16 %v2488
  %v2836 = vunpack.c.h.b16 %v2488
  %v2837 = vunpack.c.l.b16 %v2489
  %v2838 = vunpack.c.l.b16 %v2490
  %v2839 = vunpack.c.h.b16 %v2490
  %v2840 = vunpack.c.l.b16 %v2491
  %v2841 = vunpack.c.h.b16 %v2491
  %v2842 = vunpack.c.l.b16 %v2492
  %v2843 = vunpack.c.h.b16 %v2492
  %v2844 = vunpack.c.l.b16 %v2493
  %v2845 = vunpack.c.h.b16 %v2493
  %v2846 = vunpack.c.l.b16 %v2494
  %v2847 = vunpack.c.l.b16 %v2495
  %v2848 = vunpack.c.h.b16 %v2495
  %v2849 = vunpack.c.l.b16 %v2496
  %v2850 = vunpack.c.h.b16 %v2496
  %v2851 = vunpack.c.l.b16 %v2497
  %v2852 = vunpack.c.h.b16 %v2497
  %v2853 = vunpack.c.l.b16 %v2498
  %v2854 = vunpack.c.h.b16 %v2498
  %v2855 = vunpack.c.l.b16 %v2499
  %v2856 = vunpack.c.l.b16 %v2500
  %v2857 = vunpack.c.h.b16 %v2500
  %v2858 = vunpack.c.l.b16 %v2501
  %v2859 = vunpack.c.h.b16 %v2501
  %v2860 = vunpack.c.l.b16 %v2502
  %v2861 = vunpack.c.h.b16 %v2502
  %v2862 = vunpack.c.l.b16 %v2503
  %v2863 = vunpack.c.h.b16 %v2503
  %v2864 = vunpack.c.l.b16 %v2504
  %v2865 = vunpack.c.l.b16 %v2505
  %v2866 = vunpack.c.h.b16 %v2505
  %v2867 = vunpack.c.l.b16 %v2506
  %v2868 = vunpack.c.h.b16 %v2506
  %v2869 = vunpack.c.l.b16 %v2507
  %v2870 = vunpack.c.h.b16 %v2507
  %v2871 = vunpack.c.l.b16 %v2508
  %v2872 = vunpack.c.h.b16 %v2508
  %v2873 = vunpack.c.l.b16 %v2509
  %v2874 = vunpack.c.l.b16 %v2510
  %v2875 = vunpack.c.h.b16 %v2510
  %v2876 = vunpack.c.l.b16 %v2511
  %v2877 = vunpack.c.h.b16 %v2511
  %v2878 = vunpack.c.l.b16 %v2512
  %v2879 = vunpack.c.h.b16 %v2512
  %v2880 = vunpack.c.l.b16 %v2513
  %v2881 = vunpack.c.h.b16 %v2513
  %v2882 = vunpack.c.l.b16 %v2514
  %v2883 = vpack.c.b16 %v2748, %v2739
  %v2884 = vpack.c.b16 %v2749, %v2740
  %v2885 = vpack.c.b16 %v2750, %v2741
  %v2886 = vpack.c.b16 %v2751, %v2742
  %v2887 = vpack.c.b16 %v2752, %v2743
  %v2888 = vpack.c.b16 %v2753, %v2744
  %v2889 = vpack.c.b16 %v2754, %v2745
  %v2890 = vpack.c.b16 %v2755, %v2746
  %v2891 = vpack.c.b16 %v2756, %v2747
  %v2892 = vpack.c.b16 %v2766, %v2757
  %v2893 = vpack.c.b16 %v2767, %v2758
  %v2894 = vpack.c.b16 %v2768, %v2759
  %v2895 = vpack.c.b16 %v2769, %v2760
  %v2896 = vpack.c.b16 %v2770, %v2761
  %v2897 = vpack.c.b16 %v2771, %v2762
  %v2898 = vpack.c.b16 %v2772, %v2763
  %v2899 = vpack.c.b16 %v2773, %v2764
  %v2900 = vpack.c.b16 %v2774, %v2765
  %v2901 = vpack.c.b16 %v2784, %v2775
  %v2902 = vpack.c.b16 %v2785, %v2776
  %v2903 = vpack.c.b16 %v2786, %v2777
  %v2904 = vpack.c.b16 %v2787, %v2778
  %v2905 = vpack.c.b16 %v2788, %v2779
  %v2906 = vpack.c.b16 %v2789, %v2780
  %v2907 = vpack.c.b16 %v2790, %v2781
  %v2908 = vpack.c.b16 %v2791, %v2782
  %v2909 = vpack.c.b16 %v2792, %v2783
  %v2910 = vpack.c.b16 %v2802, %v2793
  %v2911 = vpack.c.b16 %v2803, %v2794
  %v2912 = vpack.c.b16 %v2804, %v2795
  %v2913 = vpack.c.b16 %v2805, %v2796
  %v2914 = vpack.c.b16 %v2806, %v2797
  %v2915 = vpack.c.b16 %v2807, %v2798
  %v2916 = vpack.c.b16 %v2808, %v2799
  %v2917 = vpack.c.b16 %v2809, %v2800
  %v2918 = vpack.c.b16 %v2810, %v2801
  %v2919 = vpack.c.b16 %v2820, %v2811
  %v2920 = vpack.c.b16 %v2821, %v2812
  %v2921 = vpack.c.b16 %v2822, %v2813
  %v2922 = vpack.c.b16 %v2823, %v2814
  %v2923 = vpack.c.b16 %v2824, %v2815
  %v2924 = vpack.c.b16 %v2825, %v2816
  %v2925 = vpack.c.b16 %v2826, %v2817
  %v2926 = vpack.c.b16 %v2827, %v2818
  %v2927 = vpack.c.b16 %v2828, %v2819
  %v2928 = vpack.c.b16 %v2838, %v2829
  %v2929 = vpack.c.b16 %v2839, %v2830
  %v2930 = vpack.c.b16 %v2840, %v2831
  %v2931 = vpack.c.b16 %v2841, %v2832
  %v2932 = vpack.c.b16 %v2842, %v2833
  %v2933 = vpack.c.b16 %v2843, %v2834
  %v2934 = vpack.c.b16 %v2844, %v2835
  %v2935 = vpack.c.b16 %v2845, %v2836
  %v2936 = vpack.c.b16 %v2846, %v2837
  %v2937 = vpack.c.b16 %v2856, %v2847
  %v2938 = vpack.c.b16 %v2857, %v2848
  %v2939 = vpack.c.b16 %v2858, %v2849
  %v2940 = vpack.c.b16 %v2859, %v2850
  %v2941 = vpack.c.b16 %v2860, %v2851
  %v2942 = vpack.c.b16 %v2861, %v2852
  %v2943 = vpack.c.b16 %v2862, %v2853
  %v2944 = vpack.c.b16 %v2863, %v2854
  %v2945 = vpack.c.b16 %v2864, %v2855
  %v2946 = vpack.c.b16 %v2874, %v2865
  %v2947 = vpack.c.b16 %v2875, %v2866
  %v2948 = vpack.c.b16 %v2876, %v2867
  %v2949 = vpack.c.b16 %v2877, %v2868
  %v2950 = vpack.c.b16 %v2878, %v2869
  %v2951 = vpack.c.b16 %v2879, %v2870
  %v2952 = vpack.c.b16 %v2880, %v2871
  %v2953 = vpack.c.b16 %v2881, %v2872
  %v2954 = vpack.c.b16 %v2882, %v2873
  %v3171 = vunpack.c.l.b16 %v2515
  %v3172 = vunpack.c.l.b16 %v2516
  %v3173 = vunpack.c.l.b16 %v2517
  %v3174 = vunpack.c.l.b16 %v2518
  %v3175 = vunpack.c.l.b16 %v2519
  %v3176 = vunpack.c.l.b16 %v2520
  %v3177 = vunpack.c.l.b16 %v2521
  %v3178 = vunpack.c.l.b16 %v2522
  %v3179 = vunpack.c.l.b16 %v2523
  %v3180 = vunpack.c.l.b16 %v2524
  %v3181 = vunpack.c.l.b16 %v2525
  %v3182 = vunpack.c.l.b16 %v2526
  %v3183 = vunpack.c.l.b16 %v2527
  %v3184 = vunpack.c.l.b16 %v2528
  %v3185 = vunpack.c.l.b16 %v2529
  %v3186 = vunpack.c.l.b16 %v2530
  %v3187 = vunpack.c.l.b16 %v2531
  %v3188 = vunpack.c.l.b16 %v2532
  %v3189 = vunpack.c.l.b16 %v2533
  %v3190 = vunpack.c.l.b16 %v2534
  %v3191 = vunpack.c.l.b16 %v2535
  %v3192 = vunpack.c.l.b16 %v2536
  %v3193 = vunpack.c.l.b16 %v2537
  %v3194 = vunpack.c.l.b16 %v2538
  %v3195 = vunpack.c.l.b16 %v2539
  %v3196 = vunpack.c.l.b16 %v2540
  %v3197 = vunpack.c.l.b16 %v2541
  %v3198 = vunpack.c.l.b16 %v2542
  %v3199 = vunpack.c.l.b16 %v2543
  %v3200 = vunpack.c.l.b16 %v2544
  %v3201 = vunpack.c.l.b16 %v2545
  %v3202 = vunpack.c.l.b16 %v2546
  %v3203 = vunpack.c.l.b16 %v2547
  %v3204 = vunpack.c.l.b16 %v2548
  %v3205 = vunpack.c.l.b16 %v2549
  %v3206 = vunpack.c.l.b16 %v2550
  %v3207 = vunpack.c.l.b16 %v2551
  %v3208 = vunpack.c.l.b16 %v2552
  %v3209 = vunpack.c.l.b16 %v2553
  %v3210 = vunpack.c.l.b16 %v2554
  %v3211 = vunpack.c.l.b16 %v2555
  %v3212 = vunpack.c.l.b16 %v2556
  %v3213 = vunpack.c.l.b16 %v2557
  %v3214 = vunpack.c.l.b16 %v2558
  %v3215 = vunpack.c.l.b16 %v2559
  %v3216 = vunpack.c.l.b16 %v2560
  %v3217 = vunpack.c.l.b16 %v2561
  %v3218 = vunpack.c.l.b16 %v2562
  %v3219 = vunpack.c.l.b16 %v2563
  %v3220 = vunpack.c.l.b16 %v2564
  %v3221 = vunpack.c.l.b16 %v2565
  %v3222 = vunpack.c.l.b16 %v2566
  %v3223 = vunpack.c.l.b16 %v2567
  %v3224 = vunpack.c.l.b16 %v2568
  %v3225 = vunpack.c.l.b16 %v2569
  %v3226 = vunpack.c.l.b16 %v2570
  %v3227 = vunpack.c.l.b16 %v2571
  %v3228 = vunpack.c.l.b16 %v2572
  %v3229 = vunpack.c.l.b16 %v2573
  %v3230 = vunpack.c.l.b16 %v2574
  %v3231 = vunpack.c.l.b16 %v2575
  %v3232 = vunpack.c.l.b16 %v2576
  %v3233 = vunpack.c.l.b16 %v2577
  %v3234 = vunpack.c.l.b16 %v2578
  %v3235 = vunpack.c.l.b16 %v2579
  %v3236 = vunpack.c.l.b16 %v2580
  %v3237 = vunpack.c.l.b16 %v2581
  %v3238 = vunpack.c.l.b16 %v2582
  %v3239 = vunpack.c.l.b16 %v2583
  %v3240 = vunpack.c.l.b16 %v2584
  %v3241 = vunpack.c.l.b16 %v2585
  %v3242 = vunpack.c.l.b16 %v2586
  %v3243 = vunpack.c.l.b16 %v2587
  %v3244 = vunpack.c.l.b16 %v2588
  %v3245 = vunpack.c.l.b16 %v2589
  %v3246 = vunpack.c.l.b16 %v2590
  %v3247 = vunpack.c.l.b16 %v2591
  %v3248 = vunpack.c.l.b16 %v2592
  %v3249 = vunpack.c.l.b16 %v2593
  %v3250 = vunpack.c.l.b16 %v2594
  %v3251 = vunpack.c.l.b16 %v2595
  %v3252 = vunpack.c.l.b16 %v2596
  %v3253 = vunpack.c.l.b16 %v2597
  %v3254 = vunpack.c.l.b16 %v2598
  %v3255 = vunpack.c.l.b16 %v2599
  %v3256 = vunpack.c.l.b16 %v2600
  %v3257 = vunpack.c.l.b16 %v2601
  %v3258 = vunpack.c.l.b16 %v2602
  %v3259 = vunpack.c.l.b16 %v2603
  %v3260 = vunpack.c.l.b16 %v2604
  %v3261 = vunpack.c.l.b16 %v2605
  %v3262 = vunpack.c.l.b16 %v2606
  %v3263 = vunpack.c.l.b16 %v2607
  %v3264 = vunpack.c.l.b16 %v2608
  %v3265 = vunpack.c.l.b16 %v2609
  %v3266 = vunpack.c.l.b16 %v2610
  %v3267 = vunpack.c.l.b16 %v2611
  %v3268 = vunpack.c.l.b16 %v2612
  %v3269 = vunpack.c.l.b16 %v2613
  %v3270 = vunpack.c.l.b16 %v2614
  %v3271 = vunpack.c.l.b16 %v2615
  %v3272 = vunpack.c.l.b16 %v2616
  %v3273 = vunpack.c.l.b16 %v2617
  %v3274 = vunpack.c.l.b16 %v2618
  %v3275 = vunpack.c.l.b16 %v2619
  %v3276 = vunpack.c.l.b16 %v2620
  %v3277 = vunpack.c.l.b16 %v2621
  %v3278 = vunpack.c.l.b16 %v2622
  %v3279 = vunpack.c.l.b16 %v2623
  %v3280 = vunpack.c.l.b16 %v2624
  %v3281 = vunpack.c.l.b16 %v2625
  %v3282 = vunpack.c.l.b16 %v2626
  %v3283 = vunpack.c.l.b16 %v2627
  %v3284 = vunpack.c.l.b16 %v2628
  %v3285 = vunpack.c.l.b16 %v2629
  %v3286 = vunpack.c.l.b16 %v2630
  %v3287 = vunpack.c.l.b16 %v2631
  %v3288 = vunpack.c.l.b16 %v2632
  %v3289 = vunpack.c.l.b16 %v2633
  %v3290 = vunpack.c.l.b16 %v2634
  %v3291 = vunpack.c.l.b16 %v2635
  %v3292 = vunpack.c.l.b16 %v2636
  %v3293 = vunpack.c.l.b16 %v2637
  %v3294 = vunpack.c.l.b16 %v2638
  %v3295 = vunpack.c.l.b16 %v2639
  %v3296 = vunpack.c.l.b16 %v2640
  %v3297 = vunpack.c.l.b16 %v2641
  %v3298 = vunpack.c.l.b16 %v2642
  %v3299 = vunpack.c.l.b16 %v2643
  %v3300 = vunpack.c.l.b16 %v2644
  %v3301 = vunpack.c.l.b16 %v2645
  %v3302 = vunpack.c.l.b16 %v2646
  %v3303 = vunpack.c.l.b16 %v2647
  %v3304 = vunpack.c.l.b16 %v2648
  %v3305 = vunpack.c.l.b16 %v2649
  %v3306 = vunpack.c.l.b16 %v2650
  %v3307 = vunpack.c.l.b16 %v2651
  %v3308 = vunpack.c.l.b16 %v2652
  %v3309 = vunpack.c.l.b16 %v2653
  %v3310 = vunpack.c.l.b16 %v2654
  %v3311 = vunpack.c.l.b16 %v2655
  %v3312 = vunpack.c.l.b16 %v2656
  %v3313 = vunpack.c.l.b16 %v2657
  %v3314 = vunpack.c.l.b16 %v2658
  %v3315 = vpack.c.b16 %v3172, %v3171
  %v3316 = vpack.c.b16 %v3174, %v3173
  %v3317 = vpack.c.b16 %v3176, %v3175
  %v3318 = vpack.c.b16 %v3178, %v3177
  %v3319 = vpack.c.b16 %v3180, %v3179
  %v3320 = vpack.c.b16 %v3182, %v3181
  %v3321 = vpack.c.b16 %v3184, %v3183
  %v3322 = vpack.c.b16 %v3186, %v3185
  %v3323 = vpack.c.b16 %v3188, %v3187
  %v3324 = vpack.c.b16 %v3190, %v3189
  %v3325 = vpack.c.b16 %v3192, %v3191
  %v3326 = vpack.c.b16 %v3194, %v3193
  %v3327 = vpack.c.b16 %v3196, %v3195
  %v3328 = vpack.c.b16 %v3198, %v3197
  %v3329 = vpack.c.b16 %v3200, %v3199
  %v3330 = vpack.c.b16 %v3202, %v3201
  %v3331 = vpack.c.b16 %v3204, %v3203
  %v3332 = vpack.c.b16 %v3206, %v3205
  %v3333 = vpack.c.b16 %v3208, %v3207
  %v3334 = vpack.c.b16 %v3210, %v3209
  %v3335 = vpack.c.b16 %v3212, %v3211
  %v3336 = vpack.c.b16 %v3214, %v3213
  %v3337 = vpack.c.b16 %v3216, %v3215
  %v3338 = vpack.c.b16 %v3218, %v3217
  %v3339 = vpack.c.b16 %v3220, %v3219
  %v3340 = vpack.c.b16 %v3222, %v3221
  %v3341 = vpack.c.b16 %v3224, %v3223
  %v3342 = vpack.c.b16 %v3226, %v3225
  %v3343 = vpack.c.b16 %v3228, %v3227
  %v3344 = vpack.c.b16 %v3230, %v3229
  %v3345 = vpack.c.b16 %v3232, %v3231
  %v3346 = vpack.c.b16 %v3234, %v3233
  %v3347 = vpack.c.b16 %v3236, %v3235
  %v3348 = vpack.c.b16 %v3238, %v3237
  %v3349 = vpack.c.b16 %v3240, %v3239
  %v3350 = vpack.c.b16 %v3242, %v3241
  %v3351 = vpack.c.b16 %v3244, %v3243
  %v3352 = vpack.c.b16 %v3246, %v3245
  %v3353 = vpack.c.b16 %v3248, %v3247
  %v3354 = vpack.c.b16 %v3250, %v3249
  %v3355 = vpack.c.b16 %v3252, %v3251
  %v3356 = vpack.c.b16 %v3254, %v3253
  %v3357 = vpack.c.b16 %v3256, %v3255
  %v3358 = vpack.c.b16 %v3258, %v3257
  %v3359 = vpack.c.b16 %v3260, %v3259
  %v3360 = vpack.c.b16 %v3262, %v3261
  %v3361 = vpack.c.b16 %v3264, %v3263
  %v3362 = vpack.c.b16 %v3266, %v3265
  %v3363 = vpack.c.b16 %v3268, %v3267
  %v3364 = vpack.c.b16 %v3270, %v3269
  %v3365 = vpack.c.b16 %v3272, %v3271
  %v3366 = vpack.c.b16 %v3274, %v3273
  %v3367 = vpack.c.b16 %v3276, %v3275
  %v3368 = vpack.c.b16 %v3278, %v3277
  %v3369 = vpack.c.b16 %v3280, %v3279
  %v3370 = vpack.c.b16 %v3282, %v3281
  %v3371 = vpack.c.b16 %v3284, %v3283
  %v3372 = vpack.c.b16 %v3286, %v3285
  %v3373 = vpack.c.b16 %v3288, %v3287
  %v3374 = vpack.c.b16 %v3290, %v3289
  %v3375 = vpack.c.b16 %v3292, %v3291
  %v3376 = vpack.c.b16 %v3294, %v3293
  %v3377 = vpack.c.b16 %v3296, %v3295
  %v3378 = vpack.c.b16 %v3298, %v3297
  %v3379 = vpack.c.b16 %v3300, %v3299
  %v3380 = vpack.c.b16 %v3302, %v3301
  %v3381 = vpack.c.b16 %v3304, %v3303
  %v3382 = vpack.c.b16 %v3306, %v3305
  %v3383 = vpack.c.b16 %v3308, %v3307
  %v3384 = vpack.c.b16 %v3310, %v3309
  %v3385 = vpack.c.b16 %v3312, %v3311
  %v3386 = vpack.c.b16 %v3314, %v3313
  %3459 = vmatprep.subr.bf16.mxu0 0
  %3460 = vmatpush1.bf16.msra.mxu0 %v3322
  %3461 = vmatprep.subr.bf16.mxu0 0
  %3462 = vmatpush1.bf16.msra.mxu0 %v3321
  %3463 = vmatprep.subr.bf16.mxu0 0
  %3464 = vmatpush1.bf16.msra.mxu0 %v3320
  %3465 = vmatprep.subr.bf16.mxu0 0
  %3466 = vmatpush1.bf16.msra.mxu0 %v3319
  %3467 = vmatprep.subr.bf16.mxu0 0
  %3468 = vmatpush1.bf16.msra.mxu0 %v3318
  %3469 = vmatprep.subr.bf16.mxu0 0
  %3470 = vmatpush1.bf16.msra.mxu0 %v3317
  %3471 = vmatprep.subr.bf16.mxu0 0
  %3472 = vmatpush1.bf16.msra.mxu0 %v3316
  %3473 = vmatprep.subr.bf16.mxu0 0
  %3474 = vmatpush1.bf16.msra.mxu0 %v3315
  %3475 = vmatprep.subr.bf16.mxu0 0
  %3476 = vmatpush2.bf16.msra.mxu0 %v3330
  %3477 = vmatprep.subr.bf16.mxu0 0
  %3478 = vmatpush2.bf16.msra.mxu0 %v3329
  %3479 = vmatprep.subr.bf16.mxu0 0
  %3480 = vmatpush2.bf16.msra.mxu0 %v3328
  %3481 = vmatprep.subr.bf16.mxu0 0
  %3482 = vmatpush2.bf16.msra.mxu0 %v3327
  %3483 = vmatprep.subr.bf16.mxu0 0
  %3484 = vmatpush2.bf16.msra.mxu0 %v3326
  %3485 = vmatprep.subr.bf16.mxu0 0
  %3486 = vmatpush2.bf16.msra.mxu0 %v3325
  %3487 = vmatprep.subr.bf16.mxu0 0
  %3488 = vmatpush2.bf16.msra.mxu0 %v3324
  %3489 = vmatprep.subr.bf16.mxu0 0
  %3490 = vmatpush2.bf16.msra.mxu0 %v3323
  %3491 = vmatprep.mubr.bf16.mxu0 %v2884
  %3492 = vmatmul.mubr.bf16.gmra.mxu0 %v2883
  %v3493 = vpop.f32.mrf.mxu0
  %v3494 = vadd.f32 0.0, %v3493
  %v3495 = vpop.f32.mrf.mxu0
  %v3496 = vpop.f32.mrf.mxu0
  %v3497 = vadd.f32 0.0, %v3496
  %v3498 = vpop.f32.mrf.mxu0
  %3499 = vmatprep.mubr.bf16.mxu0 %v2893
  %3500 = vmatmul.mubr.bf16.gmra.mxu0 %v2892
  %v3501 = vpop.f32.mrf.mxu0
  %v3502 = vadd.f32 0.0, %v3501
  %v3503 = vpop.f32.mrf.mxu0
  %v3504 = vpop.f32.mrf.mxu0
  %v3505 = vadd.f32 0.0, %v3504
  %v3506 = vpop.f32.mrf.mxu0
  %3507 = vmatprep.mubr.bf16.mxu0 %v2902
  %3508 = vmatmul.mubr.bf16.gmra.mxu0 %v2901
  %v3509 = vpop.f32.mrf.mxu0
  %v3510 = vadd.f32 0.0, %v3509
  %v3511 = vpop.f32.mrf.mxu0
  %v3512 = vpop.f32.mrf.mxu0
  %v3513 = vadd.f32 0.0, %v3512
  %v3514 = vpop.f32.mrf.mxu0
  %3515 = vmatprep.mubr.bf16.mxu0 %v2911
  %3516 = vmatmul.mubr.bf16.gmra.mxu0 %v2910
  %v3517 = vpop.f32.mrf.mxu0
  %v3518 = vadd.f32 0.0, %v3517
  %v3519 = vpop.f32.mrf.mxu0
  %v3520 = vpop.f32.mrf.mxu0
  %v3521 = vadd.f32 0.0, %v3520
  %v3522 = vpop.f32.mrf.mxu0
  %3523 = vmatprep.mubr.bf16.mxu0 %v2920
  %3524 = vmatmul.mubr.bf16.gmra.mxu0 %v2919
  %v3525 = vpop.f32.mrf.mxu0
  %v3526 = vadd.f32 0.0, %v3525
  %v3527 = vpop.f32.mrf.mxu0
  %v3528 = vpop.f32.mrf.mxu0
  %v3529 = vadd.f32 0.0, %v3528
  %v3530 = vpop.f32.mrf.mxu0
  %3531 = vmatprep.mubr.bf16.mxu0 %v2929
  %3532 = vmatmul.mubr.bf16.gmra.mxu0 %v2928
  %v3533 = vpop.f32.mrf.mxu0
  %v3534 = vadd.f32 0.0, %v3533
  %v3535 = vpop.f32.mrf.mxu0
  %v3536 = vpop.f32.mrf.mxu0
  %v3537 = vadd.f32 0.0, %v3536
  %v3538 = vpop.f32.mrf.mxu0
  %3539 = vmatprep.mubr.bf16.mxu0 %v2938
  %3540 = vmatmul.mubr.bf16.gmra.mxu0 %v2937
  %v3541 = vpop.f32.mrf.mxu0
  %v3542 = vadd.f32 0.0, %v3541
  %v3543 = vpop.f32.mrf.mxu0
  %v3544 = vpop.f32.mrf.mxu0
  %v3545 = vadd.f32 0.0, %v3544
  %v3546 = vpop.f32.mrf.mxu0
  %3547 = vmatprep.mubr.bf16.mxu0 %v2947
  %3548 = vmatmul.mubr.bf16.gmra.mxu0 %v2946
  %v3549 = vpop.f32.mrf.mxu0
  %v3550 = vadd.f32 0.0, %v3549
  %v3551 = vpop.f32.mrf.mxu0
  %v3552 = vpop.f32.mrf.mxu0
  %v3553 = vadd.f32 0.0, %v3552
  %v3554 = vpop.f32.mrf.mxu0
  %3555 = vdwg.mxu0
  %3556 = vmatprep.subr.bf16.mxu0 0
  %3557 = vmatpush1.bf16.msra.mxu0 %v3338
  %3558 = vmatprep.subr.bf16.mxu0 0
  %3559 = vmatpush1.bf16.msra.mxu0 %v3337
  %3560 = vmatprep.subr.bf16.mxu0 0
  %3561 = vmatpush1.bf16.msra.mxu0 %v3336
  %3562 = vmatprep.subr.bf16.mxu0 0
  %3563 = vmatpush1.bf16.msra.mxu0 %v3335
  %3564 = vmatprep.subr.bf16.mxu0 0
  %3565 = vmatpush1.bf16.msra.mxu0 %v3334
  %3566 = vmatprep.subr.bf16.mxu0 0
  %3567 = vmatpush1.bf16.msra.mxu0 %v3333
  %3568 = vmatprep.subr.bf16.mxu0 0
  %3569 = vmatpush1.bf16.msra.mxu0 %v3332
  %3570 = vmatprep.subr.bf16.mxu0 0
  %3571 = vmatpush1.bf16.msra.mxu0 %v3331
  %3572 = vmatprep.subr.bf16.mxu0 0
  %3573 = vmatpush2.bf16.msra.mxu0 %v3346
  %3574 = vmatprep.subr.bf16.mxu0 0
  %3575 = vmatpush2.bf16.msra.mxu0 %v3345
  %3576 = vmatprep.subr.bf16.mxu0 0
  %3577 = vmatpush2.bf16.msra.mxu0 %v3344
  %3578 = vmatprep.subr.bf16.mxu0 0
  %3579 = vmatpush2.bf16.msra.mxu0 %v3343
  %3580 = vmatprep.subr.bf16.mxu0 0
  %3581 = vmatpush2.bf16.msra.mxu0 %v3342
  %3582 = vmatprep.subr.bf16.mxu0 0
  %3583 = vmatpush2.bf16.msra.mxu0 %v3341
  %3584 = vmatprep.subr.bf16.mxu0 0
  %3585 = vmatpush2.bf16.msra.mxu0 %v3340
  %3586 = vmatprep.subr.bf16.mxu0 0
  %3587 = vmatpush2.bf16.msra.mxu0 %v3339
  %3588 = vmatprep.mubr.bf16.mxu0 %v2886
  %3589 = vmatmul.mubr.bf16.gmra.mxu0 %v2885
  %v3590 = vpop.f32.mrf.mxu0
  %v3591 = vadd.f32 %v3494, %v3590
  %v3592 = vpop.f32.mrf.mxu0
  %v3593 = vpop.f32.mrf.mxu0
  %v3594 = vadd.f32 %v3497, %v3593
  %v3595 = vpop.f32.mrf.mxu0
  %3596 = vmatprep.mubr.bf16.mxu0 %v2895
  %3597 = vmatmul.mubr.bf16.gmra.mxu0 %v2894
  %v3598 = vpop.f32.mrf.mxu0
  %v3599 = vadd.f32 %v3502, %v3598
  %v3600 = vpop.f32.mrf.mxu0
  %v3601 = vpop.f32.mrf.mxu0
  %v3602 = vadd.f32 %v3505, %v3601
  %v3603 = vpop.f32.mrf.mxu0
  %3604 = vmatprep.mubr.bf16.mxu0 %v2904
  %3605 = vmatmul.mubr.bf16.gmra.mxu0 %v2903
  %v3606 = vpop.f32.mrf.mxu0
  %v3607 = vadd.f32 %v3510, %v3606
  %v3608 = vpop.f32.mrf.mxu0
  %v3609 = vpop.f32.mrf.mxu0
  %v3610 = vadd.f32 %v3513, %v3609
  %v3611 = vpop.f32.mrf.mxu0
  %3612 = vmatprep.mubr.bf16.mxu0 %v2913
  %3613 = vmatmul.mubr.bf16.gmra.mxu0 %v2912
  %v3614 = vpop.f32.mrf.mxu0
  %v3615 = vadd.f32 %v3518, %v3614
  %v3616 = vpop.f32.mrf.mxu0
  %v3617 = vpop.f32.mrf.mxu0
  %v3618 = vadd.f32 %v3521, %v3617
  %v3619 = vpop.f32.mrf.mxu0
  %3620 = vmatprep.mubr.bf16.mxu0 %v2922
  %3621 = vmatmul.mubr.bf16.gmra.mxu0 %v2921
  %v3622 = vpop.f32.mrf.mxu0
  %v3623 = vadd.f32 %v3526, %v3622
  %v3624 = vpop.f32.mrf.mxu0
  %v3625 = vpop.f32.mrf.mxu0
  %v3626 = vadd.f32 %v3529, %v3625
  %v3627 = vpop.f32.mrf.mxu0
  %3628 = vmatprep.mubr.bf16.mxu0 %v2931
  %3629 = vmatmul.mubr.bf16.gmra.mxu0 %v2930
  %v3630 = vpop.f32.mrf.mxu0
  %v3631 = vadd.f32 %v3534, %v3630
  %v3632 = vpop.f32.mrf.mxu0
  %v3633 = vpop.f32.mrf.mxu0
  %v3634 = vadd.f32 %v3537, %v3633
  %v3635 = vpop.f32.mrf.mxu0
  %3636 = vmatprep.mubr.bf16.mxu0 %v2940
  %3637 = vmatmul.mubr.bf16.gmra.mxu0 %v2939
  %v3638 = vpop.f32.mrf.mxu0
  %v3639 = vadd.f32 %v3542, %v3638
  %v3640 = vpop.f32.mrf.mxu0
  %v3641 = vpop.f32.mrf.mxu0
  %v3642 = vadd.f32 %v3545, %v3641
  %v3643 = vpop.f32.mrf.mxu0
  %3644 = vmatprep.mubr.bf16.mxu0 %v2949
  %3645 = vmatmul.mubr.bf16.gmra.mxu0 %v2948
  %v3646 = vpop.f32.mrf.mxu0
  %v3647 = vadd.f32 %v3550, %v3646
  %v3648 = vpop.f32.mrf.mxu0
  %v3649 = vpop.f32.mrf.mxu0
  %v3650 = vadd.f32 %v3553, %v3649
  %v3651 = vpop.f32.mrf.mxu0
  %3652 = vdwg.mxu0
  %3653 = vmatprep.subr.bf16.mxu0 0
  %3654 = vmatpush1.bf16.msra.mxu0 %v3354
  %3655 = vmatprep.subr.bf16.mxu0 0
  %3656 = vmatpush1.bf16.msra.mxu0 %v3353
  %3657 = vmatprep.subr.bf16.mxu0 0
  %3658 = vmatpush1.bf16.msra.mxu0 %v3352
  %3659 = vmatprep.subr.bf16.mxu0 0
  %3660 = vmatpush1.bf16.msra.mxu0 %v3351
  %3661 = vmatprep.subr.bf16.mxu0 0
  %3662 = vmatpush1.bf16.msra.mxu0 %v3350
  %3663 = vmatprep.subr.bf16.mxu0 0
  %3664 = vmatpush1.bf16.msra.mxu0 %v3349
  %3665 = vmatprep.subr.bf16.mxu0 0
  %3666 = vmatpush1.bf16.msra.mxu0 %v3348
  %3667 = vmatprep.subr.bf16.mxu0 0
  %3668 = vmatpush1.bf16.msra.mxu0 %v3347
  %3669 = vmatprep.subr.bf16.mxu0 0
  %3670 = vmatpush2.bf16.msra.mxu0 %v3362
  %3671 = vmatprep.subr.bf16.mxu0 0
  %3672 = vmatpush2.bf16.msra.mxu0 %v3361
  %3673 = vmatprep.subr.bf16.mxu0 0
  %3674 = vmatpush2.bf16.msra.mxu0 %v3360
  %3675 = vmatprep.subr.bf16.mxu0 0
  %3676 = vmatpush2.bf16.msra.mxu0 %v3359
  %3677 = vmatprep.subr.bf16.mxu0 0
  %3678 = vmatpush2.bf16.msra.mxu0 %v3358
  %3679 = vmatprep.subr.bf16.mxu0 0
  %3680 = vmatpush2.bf16.msra.mxu0 %v3357
  %3681 = vmatprep.subr.bf16.mxu0 0
  %3682 = vmatpush2.bf16.msra.mxu0 %v3356
  %3683 = vmatprep.subr.bf16.mxu0 0
  %3684 = vmatpush2.bf16.msra.mxu0 %v3355
  %3685 = vmatprep.mubr.bf16.mxu0 %v2888
  %3686 = vmatmul.mubr.bf16.gmra.mxu0 %v2887
  %v3687 = vpop.f32.mrf.mxu0
  %v3688 = vadd.f32 %v3591, %v3687
  %v3689 = vpop.f32.mrf.mxu0
  %v3690 = vpop.f32.mrf.mxu0
  %v3691 = vadd.f32 %v3594, %v3690
  %v3692 = vpop.f32.mrf.mxu0
  %3693 = vmatprep.mubr.bf16.mxu0 %v2897
  %3694 = vmatmul.mubr.bf16.gmra.mxu0 %v2896
  %v3695 = vpop.f32.mrf.mxu0
  %v3696 = vadd.f32 %v3599, %v3695
  %v3697 = vpop.f32.mrf.mxu0
  %v3698 = vpop.f32.mrf.mxu0
  %v3699 = vadd.f32 %v3602, %v3698
  %v3700 = vpop.f32.mrf.mxu0
  %3701 = vmatprep.mubr.bf16.mxu0 %v2906
  %3702 = vmatmul.mubr.bf16.gmra.mxu0 %v2905
  %v3703 = vpop.f32.mrf.mxu0
  %v3704 = vadd.f32 %v3607, %v3703
  %v3705 = vpop.f32.mrf.mxu0
  %v3706 = vpop.f32.mrf.mxu0
  %v3707 = vadd.f32 %v3610, %v3706
  %v3708 = vpop.f32.mrf.mxu0
  %3709 = vmatprep.mubr.bf16.mxu0 %v2915
  %3710 = vmatmul.mubr.bf16.gmra.mxu0 %v2914
  %v3711 = vpop.f32.mrf.mxu0
  %v3712 = vadd.f32 %v3615, %v3711
  %v3713 = vpop.f32.mrf.mxu0
  %v3714 = vpop.f32.mrf.mxu0
  %v3715 = vadd.f32 %v3618, %v3714
  %v3716 = vpop.f32.mrf.mxu0
  %3717 = vmatprep.mubr.bf16.mxu0 %v2924
  %3718 = vmatmul.mubr.bf16.gmra.mxu0 %v2923
  %v3719 = vpop.f32.mrf.mxu0
  %v3720 = vadd.f32 %v3623, %v3719
  %v3721 = vpop.f32.mrf.mxu0
  %v3722 = vpop.f32.mrf.mxu0
  %v3723 = vadd.f32 %v3626, %v3722
  %v3724 = vpop.f32.mrf.mxu0
  %3725 = vmatprep.mubr.bf16.mxu0 %v2933
  %3726 = vmatmul.mubr.bf16.gmra.mxu0 %v2932
  %v3727 = vpop.f32.mrf.mxu0
  %v3728 = vadd.f32 %v3631, %v3727
  %v3729 = vpop.f32.mrf.mxu0
  %v3730 = vpop.f32.mrf.mxu0
  %v3731 = vadd.f32 %v3634, %v3730
  %v3732 = vpop.f32.mrf.mxu0
  %3733 = vmatprep.mubr.bf16.mxu0 %v2942
  %3734 = vmatmul.mubr.bf16.gmra.mxu0 %v2941
  %v3735 = vpop.f32.mrf.mxu0
  %v3736 = vadd.f32 %v3639, %v3735
  %v3737 = vpop.f32.mrf.mxu0
  %v3738 = vpop.f32.mrf.mxu0
  %v3739 = vadd.f32 %v3642, %v3738
  %v3740 = vpop.f32.mrf.mxu0
  %3741 = vmatprep.mubr.bf16.mxu0 %v2951
  %3742 = vmatmul.mubr.bf16.gmra.mxu0 %v2950
  %v3743 = vpop.f32.mrf.mxu0
  %v3744 = vadd.f32 %v3647, %v3743
  %v3745 = vpop.f32.mrf.mxu0
  %v3746 = vpop.f32.mrf.mxu0
  %v3747 = vadd.f32 %v3650, %v3746
  %v3748 = vpop.f32.mrf.mxu0
  %3749 = vdwg.mxu0
  %3750 = vmatprep.subr.bf16.mxu0 0
  %3751 = vmatpush1.bf16.msra.mxu0 %v3370
  %3752 = vmatprep.subr.bf16.mxu0 0
  %3753 = vmatpush1.bf16.msra.mxu0 %v3369
  %3754 = vmatprep.subr.bf16.mxu0 0
  %3755 = vmatpush1.bf16.msra.mxu0 %v3368
  %3756 = vmatprep.subr.bf16.mxu0 0
  %3757 = vmatpush1.bf16.msra.mxu0 %v3367
  %3758 = vmatprep.subr.bf16.mxu0 0
  %3759 = vmatpush1.bf16.msra.mxu0 %v3366
  %3760 = vmatprep.subr.bf16.mxu0 0
  %3761 = vmatpush1.bf16.msra.mxu0 %v3365
  %3762 = vmatprep.subr.bf16.mxu0 0
  %3763 = vmatpush1.bf16.msra.mxu0 %v3364
  %3764 = vmatprep.subr.bf16.mxu0 0
  %3765 = vmatpush1.bf16.msra.mxu0 %v3363
  %3766 = vmatprep.subr.bf16.mxu0 0
  %3767 = vmatpush2.bf16.msra.mxu0 %v3378
  %3768 = vmatprep.subr.bf16.mxu0 0
  %3769 = vmatpush2.bf16.msra.mxu0 %v3377
  %3770 = vmatprep.subr.bf16.mxu0 0
  %3771 = vmatpush2.bf16.msra.mxu0 %v3376
  %3772 = vmatprep.subr.bf16.mxu0 0
  %3773 = vmatpush2.bf16.msra.mxu0 %v3375
  %3774 = vmatprep.subr.bf16.mxu0 0
  %3775 = vmatpush2.bf16.msra.mxu0 %v3374
  %3776 = vmatprep.subr.bf16.mxu0 0
  %3777 = vmatpush2.bf16.msra.mxu0 %v3373
  %3778 = vmatprep.subr.bf16.mxu0 0
  %3779 = vmatpush2.bf16.msra.mxu0 %v3372
  %3780 = vmatprep.subr.bf16.mxu0 0
  %3781 = vmatpush2.bf16.msra.mxu0 %v3371
  %3782 = vmatprep.mubr.bf16.mxu0 %v2890
  %3783 = vmatmul.mubr.bf16.gmra.mxu0 %v2889
  %v3784 = vpop.f32.mrf.mxu0
  %v3785 = vadd.f32 %v3688, %v3784
  %v3786 = vpop.f32.mrf.mxu0
  %v3787 = vpop.f32.mrf.mxu0
  %v3788 = vadd.f32 %v3691, %v3787
  %v3789 = vpop.f32.mrf.mxu0
  %3790 = vmatprep.mubr.bf16.mxu0 %v2899
  %3791 = vmatmul.mubr.bf16.gmra.mxu0 %v2898
  %v3792 = vpop.f32.mrf.mxu0
  %v3793 = vadd.f32 %v3696, %v3792
  %v3794 = vpop.f32.mrf.mxu0
  %v3795 = vpop.f32.mrf.mxu0
  %v3796 = vadd.f32 %v3699, %v3795
  %v3797 = vpop.f32.mrf.mxu0
  %3798 = vmatprep.mubr.bf16.mxu0 %v2908
  %3799 = vmatmul.mubr.bf16.gmra.mxu0 %v2907
  %v3800 = vpop.f32.mrf.mxu0
  %v3801 = vadd.f32 %v3704, %v3800
  %v3802 = vpop.f32.mrf.mxu0
  %v3803 = vpop.f32.mrf.mxu0
  %v3804 = vadd.f32 %v3707, %v3803
  %v3805 = vpop.f32.mrf.mxu0
  %3806 = vmatprep.mubr.bf16.mxu0 %v2917
  %3807 = vmatmul.mubr.bf16.gmra.mxu0 %v2916
  %v3808 = vpop.f32.mrf.mxu0
  %v3809 = vadd.f32 %v3712, %v3808
  %v3810 = vpop.f32.mrf.mxu0
  %v3811 = vpop.f32.mrf.mxu0
  %v3812 = vadd.f32 %v3715, %v3811
  %v3813 = vpop.f32.mrf.mxu0
  %3814 = vmatprep.mubr.bf16.mxu0 %v2926
  %3815 = vmatmul.mubr.bf16.gmra.mxu0 %v2925
  %v3816 = vpop.f32.mrf.mxu0
  %v3817 = vadd.f32 %v3720, %v3816
  %v3818 = vpop.f32.mrf.mxu0
  %v3819 = vpop.f32.mrf.mxu0
  %v3820 = vadd.f32 %v3723, %v3819
  %v3821 = vpop.f32.mrf.mxu0
  %3822 = vmatprep.mubr.bf16.mxu0 %v2935
  %3823 = vmatmul.mubr.bf16.gmra.mxu0 %v2934
  %v3824 = vpop.f32.mrf.mxu0
  %v3825 = vadd.f32 %v3728, %v3824
  %v3826 = vpop.f32.mrf.mxu0
  %v3827 = vpop.f32.mrf.mxu0
  %v3828 = vadd.f32 %v3731, %v3827
  %v3829 = vpop.f32.mrf.mxu0
  %3830 = vmatprep.mubr.bf16.mxu0 %v2944
  %3831 = vmatmul.mubr.bf16.gmra.mxu0 %v2943
  %v3832 = vpop.f32.mrf.mxu0
  %v3833 = vadd.f32 %v3736, %v3832
  %v3834 = vpop.f32.mrf.mxu0
  %v3835 = vpop.f32.mrf.mxu0
  %v3836 = vadd.f32 %v3739, %v3835
  %v3837 = vpop.f32.mrf.mxu0
  %3838 = vmatprep.mubr.bf16.mxu0 %v2953
  %3839 = vmatmul.mubr.bf16.gmra.mxu0 %v2952
  %v3840 = vpop.f32.mrf.mxu0
  %v3841 = vadd.f32 %v3744, %v3840
  %v3842 = vpop.f32.mrf.mxu0
  %v3843 = vpop.f32.mrf.mxu0
  %v3844 = vadd.f32 %v3747, %v3843
  %v3845 = vpop.f32.mrf.mxu0
  %3846 = vdwg.mxu0
  %3847 = vmatprep.subr.bf16.mxu0 0
  %3848 = vmatpush1.bf16.msra.mxu0 %v3386
  %3849 = vmatprep.subr.bf16.mxu0 0
  %3850 = vmatpush1.bf16.msra.mxu0 %v3385
  %3851 = vmatprep.subr.bf16.mxu0 0
  %3852 = vmatpush1.bf16.msra.mxu0 %v3384
  %3853 = vmatprep.subr.bf16.mxu0 0
  %3854 = vmatpush1.bf16.msra.mxu0 %v3383
  %3855 = vmatprep.subr.bf16.mxu0 0
  %3856 = vmatpush1.bf16.msra.mxu0 %v3382
  %3857 = vmatprep.subr.bf16.mxu0 0
  %3858 = vmatpush1.bf16.msra.mxu0 %v3381
  %3859 = vmatprep.subr.bf16.mxu0 0
  %3860 = vmatpush1.bf16.msra.mxu0 %v3380
  %3861 = vmatprep.subr.bf16.mxu0 0
  %3862 = vmatpush1.bf16.msra.mxu0 %v3379
  %3863 = vmatprep.subr.bf16.mxu0 0
  %3864 = vmatpush2.bf16.msra.mxu0 0
  %3865 = vmatprep.subr.bf16.mxu0 0
  %3866 = vmatpush2.bf16.msra.mxu0 0
  %3867 = vmatprep.subr.bf16.mxu0 0
  %3868 = vmatpush2.bf16.msra.mxu0 0
  %3869 = vmatprep.subr.bf16.mxu0 0
  %3870 = vmatpush2.bf16.msra.mxu0 0
  %3871 = vmatprep.subr.bf16.mxu0 0
  %3872 = vmatpush2.bf16.msra.mxu0 0
  %3873 = vmatprep.subr.bf16.mxu0 0
  %3874 = vmatpush2.bf16.msra.mxu0 0
  %3875 = vmatprep.subr.bf16.mxu0 0
  %3876 = vmatpush2.bf16.msra.mxu0 0
  %3877 = vmatprep.subr.bf16.mxu0 0
  %3878 = vmatpush2.bf16.msra.mxu0 0
  %3879 = vmatprep.mubr.bf16.mxu0 0
  %3880 = vmatmul.mubr.bf16.gmra.mxu0 %v2891
  %v3881 = vpop.f32.mrf.mxu0
  %v3882 = vadd.f32 %v3785, %v3881
  %v3883 = vpop.f32.mrf.mxu0
  %v3884 = vpop.f32.mrf.mxu0
  %v3885 = vadd.f32 %v3788, %v3884
  %v3886 = vpop.f32.mrf.mxu0
  %3887 = vmatprep.mubr.bf16.mxu0 0
  %3888 = vmatmul.mubr.bf16.gmra.mxu0 %v2900
  %v3889 = vpop.f32.mrf.mxu0
  %v3890 = vadd.f32 %v3793, %v3889
  %v3891 = vpop.f32.mrf.mxu0
  %v3892 = vpop.f32.mrf.mxu0
  %v3893 = vadd.f32 %v3796, %v3892
  %v3894 = vpop.f32.mrf.mxu0
  %3895 = vmatprep.mubr.bf16.mxu0 0
  %3896 = vmatmul.mubr.bf16.gmra.mxu0 %v2909
  %v3897 = vpop.f32.mrf.mxu0
  %v3898 = vadd.f32 %v3801, %v3897
  %v3899 = vpop.f32.mrf.mxu0
  %v3900 = vpop.f32.mrf.mxu0
  %v3901 = vadd.f32 %v3804, %v3900
  %v3902 = vpop.f32.mrf.mxu0
  %3903 = vmatprep.mubr.bf16.mxu0 0
  %3904 = vmatmul.mubr.bf16.gmra.mxu0 %v2918
  %v3905 = vpop.f32.mrf.mxu0
  %v3906 = vadd.f32 %v3809, %v3905
  %v3907 = vpop.f32.mrf.mxu0
  %v3908 = vpop.f32.mrf.mxu0
  %v3909 = vadd.f32 %v3812, %v3908
  %v3910 = vpop.f32.mrf.mxu0
  %3911 = vmatprep.mubr.bf16.mxu0 0
  %3912 = vmatmul.mubr.bf16.gmra.mxu0 %v2927
  %v3913 = vpop.f32.mrf.mxu0
  %v3914 = vadd.f32 %v3817, %v3913
  %v3915 = vpop.f32.mrf.mxu0
  %v3916 = vpop.f32.mrf.mxu0
  %v3917 = vadd.f32 %v3820, %v3916
  %v3918 = vpop.f32.mrf.mxu0
  %3919 = vmatprep.mubr.bf16.mxu0 0
  %3920 = vmatmul.mubr.bf16.gmra.mxu0 %v2936
  %v3921 = vpop.f32.mrf.mxu0
  %v3922 = vadd.f32 %v3825, %v3921
  %v3923 = vpop.f32.mrf.mxu0
  %v3924 = vpop.f32.mrf.mxu0
  %v3925 = vadd.f32 %v3828, %v3924
  %v3926 = vpop.f32.mrf.mxu0
  %3927 = vmatprep.mubr.bf16.mxu0 0
  %3928 = vmatmul.mubr.bf16.gmra.mxu0 %v2945
  %v3929 = vpop.f32.mrf.mxu0
  %v3930 = vadd.f32 %v3833, %v3929
  %v3931 = vpop.f32.mrf.mxu0
  %v3932 = vpop.f32.mrf.mxu0
  %v3933 = vadd.f32 %v3836, %v3932
  %v3934 = vpop.f32.mrf.mxu0
  %3935 = vmatprep.mubr.bf16.mxu0 0
  %3936 = vmatmul.mubr.bf16.gmra.mxu0 %v2954
  %v3937 = vpop.f32.mrf.mxu0
  %v3938 = vadd.f32 %v3841, %v3937
  %v3939 = vpop.f32.mrf.mxu0
  %v3940 = vpop.f32.mrf.mxu0
  %v3941 = vadd.f32 %v3844, %v3940
  %v3942 = vpop.f32.mrf.mxu0
  %3943 = vdwg.mxu0
  %v3944 = vpack.c.bf16 %v3885, %v3882
  %v3945 = vpack.c.bf16 %v3893, %v3890
  %v3946 = vpack.c.bf16 %v3901, %v3898
  %v3947 = vpack.c.bf16 %v3909, %v3906
  %v3948 = vpack.c.bf16 %v3917, %v3914
  %v3949 = vpack.c.bf16 %v3925, %v3922
  %v3950 = vpack.c.bf16 %v3933, %v3930
  %v3951 = vpack.c.bf16 %v3941, %v3938
  %v3960 = vunpack.c.l.b16 %v3944
  %v3961 = vunpack.c.h.b16 %v3944
  %v3962 = vunpack.c.l.b16 %v3945
  %v3963 = vunpack.c.h.b16 %v3945
  %v3964 = vunpack.c.l.b16 %v3946
  %v3965 = vunpack.c.h.b16 %v3946
  %v3966 = vunpack.c.l.b16 %v3947
  %v3967 = vunpack.c.h.b16 %v3947
  %v3968 = vunpack.c.l.b16 %v3948
  %v3969 = vunpack.c.h.b16 %v3948
  %v3970 = vunpack.c.l.b16 %v3949
  %v3971 = vunpack.c.h.b16 %v3949
  %v3972 = vunpack.c.l.b16 %v3950
  %v3973 = vunpack.c.h.b16 %v3950
  %v3974 = vunpack.c.l.b16 %v3951
  %v3975 = vunpack.c.h.b16 %v3951
  %v3976 = vpack.c.b16 %v3960, %v3960
  %v3977 = vpack.c.b16 %v3961, %v3961
  %v3978 = vpack.c.b16 %v3962, %v3962
  %v3979 = vpack.c.b16 %v3963, %v3963
  %v3980 = vpack.c.b16 %v3964, %v3964
  %v3981 = vpack.c.b16 %v3965, %v3965
  %v3982 = vpack.c.b16 %v3966, %v3966
  %v3983 = vpack.c.b16 %v3967, %v3967
  %v3984 = vpack.c.b16 %v3968, %v3968
  %v3985 = vpack.c.b16 %v3969, %v3969
  %v3986 = vpack.c.b16 %v3970, %v3970
  %v3987 = vpack.c.b16 %v3971, %v3971
  %v3988 = vpack.c.b16 %v3972, %v3972
  %v3989 = vpack.c.b16 %v3973, %v3973
  %v3990 = vpack.c.b16 %v3974, %v3974
  %v3991 = vpack.c.b16 %v3975, %v3975
  %4008 = vst [vmem:[%s4] sm:$0xf] %v3976
  %4009 = vst [vmem:[%s4 + $0x4] sm:$0xf] %v3977
  %4010 = vst [vmem:[%s4 + $0x8] sm:$0xf] %v3978
  %4011 = vst [vmem:[%s4 + $0xc] sm:$0xf] %v3979
  %4012 = vst [vmem:[%s4 + $0x10] sm:$0xf] %v3980
  %4013 = vst [vmem:[%s4 + $0x14] sm:$0xf] %v3981
  %4014 = vst [vmem:[%s4 + $0x18] sm:$0xf] %v3982
  %4015 = vst [vmem:[%s4 + $0x1c] sm:$0xf] %v3983
  %4016 = vst [vmem:[%s4 + $0x20] sm:$0xf] %v3984
  %4017 = vst [vmem:[%s4 + $0x24] sm:$0xf] %v3985
  %4018 = vst [vmem:[%s4 + $0x28] sm:$0xf] %v3986
  %4019 = vst [vmem:[%s4 + $0x2c] sm:$0xf] %v3987
  %4020 = vst [vmem:[%s4 + $0x30] sm:$0xf] %v3988
  %4021 = vst [vmem:[%s4 + $0x34] sm:$0xf] %v3989
  %4022 = vst [vmem:[%s4 + $0x38] sm:$0xf] %v3990
  %4023 = vst [vmem:[%s4 + $0x3c] sm:$0xf] %v3991
  %v4024 = vadd.f32 %v3882, %v3885
  %v4025 = vadd.f32 %v4024, %v3890
  %v4026 = vadd.f32 %v4025, %v3893
  %v4027 = vadd.f32 %v4026, %v3898
  %v4028 = vadd.f32 %v4027, %v3901
  %v4029 = vadd.f32 %v4028, %v3906
  %v4030 = vadd.f32 %v4029, %v3909
  %v4031 = vadd.f32 %v4030, %v3914
  %v4032 = vadd.f32 %v4031, %v3917
  %v4033 = vadd.f32 %v4032, %v3922
  %v4034 = vadd.f32 %v4033, %v3925
  %v4035 = vadd.f32 %v4034, %v3930
  %v4036 = vadd.f32 %v4035, %v3933
  %v4037 = vadd.f32 %v4036, %v3938
  %v4038 = vadd.f32 %v4037, %v3941
  %v4039 = vrot.slane %v4038, 4
  %v4040 = vadd.f32 %v4038, %v4039
  %v4041 = vrot.slane %v4040, 2
  %v4042 = vadd.f32 %v4040, %v4041
  %v4043 = vrot.slane %v4042, 1
  %v4044 = vadd.f32 %v4042, %v4043
  %4045 = vst [vmem:[%s5] sm:$0x1] %v4044
  %v4046 = vmul.f32 %v3882, %v3882
  %v4047 = vmul.f32 %v3885, %v3885
  %v4048 = vmul.f32 %v3890, %v3890
  %v4049 = vmul.f32 %v3893, %v3893
  %v4050 = vmul.f32 %v3898, %v3898
  %v4051 = vmul.f32 %v3901, %v3901
  %v4052 = vmul.f32 %v3906, %v3906
  %v4053 = vmul.f32 %v3909, %v3909
  %v4054 = vmul.f32 %v3914, %v3914
  %v4055 = vmul.f32 %v3917, %v3917
  %v4056 = vmul.f32 %v3922, %v3922
  %v4057 = vmul.f32 %v3925, %v3925
  %v4058 = vmul.f32 %v3930, %v3930
  %v4059 = vmul.f32 %v3933, %v3933
  %v4060 = vmul.f32 %v3938, %v3938
  %v4061 = vmul.f32 %v3941, %v3941
  %v4062 = vadd.f32 %v4046, %v4047
  %v4063 = vadd.f32 %v4062, %v4048
  %v4064 = vadd.f32 %v4063, %v4049
  %v4065 = vadd.f32 %v4064, %v4050
  %v4066 = vadd.f32 %v4065, %v4051
  %v4067 = vadd.f32 %v4066, %v4052
  %v4068 = vadd.f32 %v4067, %v4053
  %v4069 = vadd.f32 %v4068, %v4054
  %v4070 = vadd.f32 %v4069, %v4055
  %v4071 = vadd.f32 %v4070, %v4056
  %v4072 = vadd.f32 %v4071, %v4057
  %v4073 = vadd.f32 %v4072, %v4058
  %v4074 = vadd.f32 %v4073, %v4059
  %v4075 = vadd.f32 %v4074, %v4060
  %v4076 = vadd.f32 %v4075, %v4061
  %v4077 = vrot.slane %v4076, 4
  %v4078 = vadd.f32 %v4076, %v4077
  %v4079 = vrot.slane %v4078, 2
  %v4080 = vadd.f32 %v4078, %v4079
  %v4081 = vrot.slane %v4080, 1
  %v4082 = vadd.f32 %v4080, %v4081
  %4083 = vst [vmem:[%s6] sm:$0x1] %v4082
  // Predicated region
  $region18: #{convgroup_forward.4} parent=0 // pred_check
    _
  $region19: #{convgroup_forward.4} parent=0 // pred_check_branch
    %4085 = sbr.rel (0) target = $region21
  $region20: #{convgroup_forward.4} parent=0 // pred_region
    _
  $region21: #{convgroup_forward.4} parent=0 // pred_fallthru
    _
  // Predicated region
  $region22: #{convgroup_forward.4} parent=0 // pred_check
    _
  $region23: #{convgroup_forward.4} parent=0 // pred_check_branch
    %4087 = sbr.rel (0) target = $region25
  $region24: #{convgroup_forward.4} parent=0 // pred_region
    _
  $region25: #{convgroup_forward.4} parent=0 // pred_fallthru
    _
  // Predicated region
  $region26: #{convgroup_forward.4} parent=0 // pred_check
    _
  $region27: #{convgroup_forward.4} parent=0 // pred_check_branch
    %4089 = sbr.rel (0) target = $region29
  $region28: #{convgroup_forward.4} parent=0 // pred_region
    _
  $region29: #{convgroup_forward.4} parent=0 // pred_fallthru
    _
  // Predicated region
  $region30: #{convgroup_forward.4} parent=0 // pred_check
    _
  $region31: #{convgroup_forward.4} parent=0 // pred_check_branch
    %4091 = sbr.rel (0) target = $region33
  $region32: #{convgroup_forward.4} parent=0 // pred_region
    _
  $region33: #{convgroup_forward.4} parent=0 // pred_fallthru
    _
  // Predicated region
  $region34: #{convgroup_forward.4} parent=0 // pred_check
    _
  $region35: #{convgroup_forward.4} parent=0 // pred_check_branch
    %4093 = sbr.rel (0) target = $region37
  $region36: #{convgroup_forward.4} parent=0 // pred_region
    _
  $region37: #{convgroup_forward.4} parent=0 // pred_fallthru
    _
  // Predicated region
  $region38: #{convgroup_forward.4} parent=0 // pred_check
    _
  $region39: #{convgroup_forward.4} parent=0 // pred_check_branch
    %4095 = sbr.rel (0) target = $region41
  $region40: #{convgroup_forward.4} parent=0 // pred_region
    _
  $region41: #{convgroup_forward.4} parent=0 // pred_fallthru
    _

// kernel: convgroup_forward.3
$region0: #{convgroup_forward.3}
  #allocation0 [shape = 'u32[]', space=smem, size = 0x4, offset = 0x4, fixed_abs, tag = 'smem constant byte address 0x4 - core index']
  #allocation1 [shape = 'u32[144,128]{1,0:T(1,128)}', space=vmem, size = 0x12000, scoped, tag = 'internal scratch']
  #allocation2 [shape = 'bf16[128,128]{1,0:T(8,128)(2,1)}', space=vmem, size = 0x8000, scoped, tag = 'scratch operand']
  %s0 = inlined_call_operand.vmem [shape: bf16[4,2,9,9,8], index: 0, kind: input, shape index: {}]
  %s1 = inlined_call_operand.vmem [shape: bf16[128,128], index: 1, kind: input, shape index: {}]
  %s2 = inlined_call_operand.vmem [shape: bf16[2,8,8,128], index: 2, kind: output, shape index: {0}]
  %s3 = inlined_call_operand.vmem [shape: f32[1,1,128], index: 3, kind: output, shape index: {1}]
  %s4 = inlined_call_operand.vmem [shape: f32[1,1,128], index: 4, kind: output, shape index: {2}]
  %5 = xla_tuple %s2, %s3, %s4
  %s6 = sld [smem:[#allocation0]]
  $region34: #{convgroup_forward.3} parent=0
    _
  %s8 = ssub.s32 1, %s6
  %s9 = scalar_select 0, %s8, %s6
  // Predicated region
  $region2: #{convgroup_forward.3} parent=0 // pred_check
    _
  $region3: #{convgroup_forward.3} parent=0 // pred_check_branch
    %11 = sbr.rel (0) target = $region5
  $region4: #{convgroup_forward.3} parent=0 // pred_region
    _
  $region5: #{convgroup_forward.3} parent=0 // pred_fallthru
    _
  // Predicated region
  $region6: #{convgroup_forward.3} parent=0 // pred_check
    _
  $region7: #{convgroup_forward.3} parent=0 // pred_check_branch
    %13 = sbr.rel (0) target = $region9
  $region8: #{convgroup_forward.3} parent=0 // pred_region
    _
  $region9: #{convgroup_forward.3} parent=0 // pred_fallthru
    _
  %vm15 = vcmask 1044032
  %16 = vst.msk [vmem:[#allocation2] sm:$0xf] %vm15, 0
  %17 = vst.msk [vmem:[#allocation2 + $0x4] sm:$0xf] %vm15, 0
  %18 = vst.msk [vmem:[#allocation2 + $0x8] sm:$0xf] %vm15, 0
  %19 = vst.msk [vmem:[#allocation2 + $0xc] sm:$0xf] %vm15, 0
  %20 = vst.msk [vmem:[#allocation2 + $0x10] sm:$0xf] %vm15, 0
  %21 = vst.msk [vmem:[#allocation2 + $0x14] sm:$0xf] %vm15, 0
  %22 = vst.msk [vmem:[#allocation2 + $0x18] sm:$0xf] %vm15, 0
  %23 = vst.msk [vmem:[#allocation2 + $0x1c] sm:$0xf] %vm15, 0
  %24 = vst.msk [vmem:[#allocation2 + $0x20] sm:$0xf] %vm15, 0
  %25 = vst.msk [vmem:[#allocation2 + $0x24] sm:$0xf] %vm15, 0
  %26 = vst.msk [vmem:[#allocation2 + $0x28] sm:$0xf] %vm15, 0
  %27 = vst.msk [vmem:[#allocation2 + $0x2c] sm:$0xf] %vm15, 0
  %28 = vst.msk [vmem:[#allocation2 + $0x30] sm:$0xf] %vm15, 0
  %29 = vst.msk [vmem:[#allocation2 + $0x34] sm:$0xf] %vm15, 0
  %30 = vst.msk [vmem:[#allocation2 + $0x38] sm:$0xf] %vm15, 0
  %31 = vst.msk [vmem:[#allocation2 + $0x3c] sm:$0xf] %vm15, 0
  %v32 = vld [vmem:[%s0] sm:$0xf]
  %v33 = vld [vmem:[%s0 + $0x8] sm:$0xf]
  %v34 = vld [vmem:[%s0 + $0x10] sm:$0xf]
  %v35 = vld [vmem:[%s0 + $0x18] sm:$0xf]
  %v36 = vld [vmem:[%s0 + $0x20] sm:$0xf]
  %v37 = vld [vmem:[%s0 + $0x28] sm:$0xf]
  %v38 = vld [vmem:[%s0 + $0x30] sm:$0xf]
  %v39 = vld [vmem:[%s0 + $0x38] sm:$0xf]
  %v40 = vld [vmem:[%s0 + $0x48] sm:$0xf]
  %v41 = vld [vmem:[%s0 + $0x50] sm:$0xf]
  %v42 = vld [vmem:[%s0 + $0x58] sm:$0xf]
  %v43 = vld [vmem:[%s0 + $0x60] sm:$0xf]
  %v44 = vld [vmem:[%s0 + $0x68] sm:$0xf]
  %v45 = vld [vmem:[%s0 + $0x70] sm:$0xf]
  %v46 = vld [vmem:[%s0 + $0x78] sm:$0xf]
  %v47 = vld [vmem:[%s0 + $0x80] sm:$0xf]
  %vm48 = vcmask 60416
  %49 = vst.msk [vmem:[#allocation2] sm:$0xf] %vm48, %v32
  %50 = vst.msk [vmem:[#allocation2 + $0x4] sm:$0xf] %vm48, %v33
  %51 = vst.msk [vmem:[#allocation2 + $0x8] sm:$0xf] %vm48, %v34
  %52 = vst.msk [vmem:[#allocation2 + $0xc] sm:$0xf] %vm48, %v35
  %53 = vst.msk [vmem:[#allocation2 + $0x10] sm:$0xf] %vm48, %v36
  %54 = vst.msk [vmem:[#allocation2 + $0x14] sm:$0xf] %vm48, %v37
  %55 = vst.msk [vmem:[#allocation2 + $0x18] sm:$0xf] %vm48, %v38
  %56 = vst.msk [vmem:[#allocation2 + $0x1c] sm:$0xf] %vm48, %v39
  %57 = vst.msk [vmem:[#allocation2 + $0x20] sm:$0xf] %vm48, %v40
  %58 = vst.msk [vmem:[#allocation2 + $0x24] sm:$0xf] %vm48, %v41
  %59 = vst.msk [vmem:[#allocation2 + $0x28] sm:$0xf] %vm48, %v42
  %60 = vst.msk [vmem:[#allocation2 + $0x2c] sm:$0xf] %vm48, %v43
  %61 = vst.msk [vmem:[#allocation2 + $0x30] sm:$0xf] %vm48, %v44
  %62 = vst.msk [vmem:[#allocation2 + $0x34] sm:$0xf] %vm48, %v45
  %63 = vst.msk [vmem:[#allocation2 + $0x38] sm:$0xf] %vm48, %v46
  %64 = vst.msk [vmem:[#allocation2 + $0x3c] sm:$0xf] %vm48, %v47
  %s65 = scalar_lea.vmem %s0, 144
  %v66 = vld [vmem:[%s65] sm:$0xf]
  %v67 = vld [vmem:[%s65 + $0x8] sm:$0xf]
  %v68 = vld [vmem:[%s65 + $0x10] sm:$0xf]
  %v69 = vld [vmem:[%s65 + $0x18] sm:$0xf]
  %v70 = vld [vmem:[%s65 + $0x20] sm:$0xf]
  %v71 = vld [vmem:[%s65 + $0x28] sm:$0xf]
  %v72 = vld [vmem:[%s65 + $0x30] sm:$0xf]
  %v73 = vld [vmem:[%s65 + $0x38] sm:$0xf]
  %v74 = vld [vmem:[%s65 + $0x48] sm:$0xf]
  %v75 = vld [vmem:[%s65 + $0x50] sm:$0xf]
  %v76 = vld [vmem:[%s65 + $0x58] sm:$0xf]
  %v77 = vld [vmem:[%s65 + $0x60] sm:$0xf]
  %v78 = vld [vmem:[%s65 + $0x68] sm:$0xf]
  %v79 = vld [vmem:[%s65 + $0x70] sm:$0xf]
  %v80 = vld [vmem:[%s65 + $0x78] sm:$0xf]
  %v81 = vld [vmem:[%s65 + $0x80] sm:$0xf]
  %98 = vrot.lane.b32.xlu0 %v66, 8
  %v99 = vpop.permute.xlu0 %98
  %100 = vrot.lane.b32.xlu0 %v67, 8
  %v101 = vpop.permute.xlu0 %100
  %102 = vrot.lane.b32.xlu0 %v68, 8
  %v103 = vpop.permute.xlu0 %102
  %104 = vrot.lane.b32.xlu0 %v69, 8
  %v105 = vpop.permute.xlu0 %104
  %106 = vrot.lane.b32.xlu0 %v70, 8
  %v107 = vpop.permute.xlu0 %106
  %108 = vrot.lane.b32.xlu0 %v71, 8
  %v109 = vpop.permute.xlu0 %108
  %110 = vrot.lane.b32.xlu0 %v72, 8
  %v111 = vpop.permute.xlu0 %110
  %112 = vrot.lane.b32.xlu0 %v73, 8
  %v113 = vpop.permute.xlu0 %112
  %114 = vrot.lane.b32.xlu0 %v74, 8
  %v115 = vpop.permute.xlu0 %114
  %116 = vrot.lane.b32.xlu0 %v75, 8
  %v117 = vpop.permute.xlu0 %116
  %118 = vrot.lane.b32.xlu0 %v76, 8
  %v119 = vpop.permute.xlu0 %118
  %120 = vrot.lane.b32.xlu0 %v77, 8
  %v121 = vpop.permute.xlu0 %120
  %122 = vrot.lane.b32.xlu0 %v78, 8
  %v123 = vpop.permute.xlu0 %122
  %124 = vrot.lane.b32.xlu0 %v79, 8
  %v125 = vpop.permute.xlu0 %124
  %126 = vrot.lane.b32.xlu0 %v80, 8
  %v127 = vpop.permute.xlu0 %126
  %128 = vrot.lane.b32.xlu0 %v81, 8
  %v129 = vpop.permute.xlu0 %128
  %vm146 = vcmask 126016
  %147 = vst.msk [vmem:[#allocation2] sm:$0xf] %vm146, %v99
  %148 = vst.msk [vmem:[#allocation2 + $0x4] sm:$0xf] %vm146, %v101
  %149 = vst.msk [vmem:[#allocation2 + $0x8] sm:$0xf] %vm146, %v103
  %150 = vst.msk [vmem:[#allocation2 + $0xc] sm:$0xf] %vm146, %v105
  %151 = vst.msk [vmem:[#allocation2 + $0x10] sm:$0xf] %vm146, %v107
  %152 = vst.msk [vmem:[#allocation2 + $0x14] sm:$0xf] %vm146, %v109
  %153 = vst.msk [vmem:[#allocation2 + $0x18] sm:$0xf] %vm146, %v111
  %154 = vst.msk [vmem:[#allocation2 + $0x1c] sm:$0xf] %vm146, %v113
  %155 = vst.msk [vmem:[#allocation2 + $0x20] sm:$0xf] %vm146, %v115
  %156 = vst.msk [vmem:[#allocation2 + $0x24] sm:$0xf] %vm146, %v117
  %157 = vst.msk [vmem:[#allocation2 + $0x28] sm:$0xf] %vm146, %v119
  %158 = vst.msk [vmem:[#allocation2 + $0x2c] sm:$0xf] %vm146, %v121
  %159 = vst.msk [vmem:[#allocation2 + $0x30] sm:$0xf] %vm146, %v123
  %160 = vst.msk [vmem:[#allocation2 + $0x34] sm:$0xf] %vm146, %v125
  %161 = vst.msk [vmem:[#allocation2 + $0x38] sm:$0xf] %vm146, %v127
  %162 = vst.msk [vmem:[#allocation2 + $0x3c] sm:$0xf] %vm146, %v129
  %v163 = vld [vmem:[%s0] sm:$0xf]
  %v164 = vld [vmem:[%s0 + $0x4] sm:$0x1]
  %v165 = vld [vmem:[%s0 + $0x8] sm:$0xf]
  %v166 = vld [vmem:[%s0 + $0xc] sm:$0x1]
  %v167 = vld [vmem:[%s0 + $0x10] sm:$0xf]
  %v168 = vld [vmem:[%s0 + $0x14] sm:$0x1]
  %v169 = vld [vmem:[%s0 + $0x18] sm:$0xf]
  %v170 = vld [vmem:[%s0 + $0x1c] sm:$0x1]
  %v171 = vld [vmem:[%s0 + $0x20] sm:$0xf]
  %v172 = vld [vmem:[%s0 + $0x24] sm:$0x1]
  %v173 = vld [vmem:[%s0 + $0x28] sm:$0xf]
  %v174 = vld [vmem:[%s0 + $0x2c] sm:$0x1]
  %v175 = vld [vmem:[%s0 + $0x30] sm:$0xf]
  %v176 = vld [vmem:[%s0 + $0x34] sm:$0x1]
  %v177 = vld [vmem:[%s0 + $0x38] sm:$0xf]
  %v178 = vld [vmem:[%s0 + $0x3c] sm:$0x1]
  %v179 = vld [vmem:[%s0 + $0x48] sm:$0xf]
  %v180 = vld [vmem:[%s0 + $0x4c] sm:$0x1]
  %v181 = vld [vmem:[%s0 + $0x50] sm:$0xf]
  %v182 = vld [vmem:[%s0 + $0x54] sm:$0x1]
  %v183 = vld [vmem:[%s0 + $0x58] sm:$0xf]
  %v184 = vld [vmem:[%s0 + $0x5c] sm:$0x1]
  %v185 = vld [vmem:[%s0 + $0x60] sm:$0xf]
  %v186 = vld [vmem:[%s0 + $0x64] sm:$0x1]
  %v187 = vld [vmem:[%s0 + $0x68] sm:$0xf]
  %v188 = vld [vmem:[%s0 + $0x6c] sm:$0x1]
  %v189 = vld [vmem:[%s0 + $0x70] sm:$0xf]
  %v190 = vld [vmem:[%s0 + $0x74] sm:$0x1]
  %v191 = vld [vmem:[%s0 + $0x78] sm:$0xf]
  %v192 = vld [vmem:[%s0 + $0x7c] sm:$0x1]
  %v193 = vld [vmem:[%s0 + $0x80] sm:$0xf]
  %v194 = vld [vmem:[%s0 + $0x84] sm:$0x1]
  %vm195 = vsmask.f32 3328
  %vm196 = vsmask.f32 7440
  %vm197 = vmor %vm195, %vm196
  %v199 = vshrl.u32 %v163, 16
  %v201 = vrot.slane %v199, 4
  %v202 = vshll.u32 %v163, 16
  %v204 = vrot.slane %v202, 5
  %v205 = vor.u32 %v201, %v204
  %v206 = vrot.slane %v205, 4
  %v208 = vshll.u32 %v164, 16
  %v210 = vrot.slane %v208, 5
  %v211 = vsel %vm197, %v206, %v210
  %v213 = vshrl.u32 %v165, 16
  %v215 = vrot.slane %v213, 4
  %v216 = vshll.u32 %v165, 16
  %v218 = vrot.slane %v216, 5
  %v219 = vor.u32 %v215, %v218
  %v220 = vrot.slane %v219, 4
  %v222 = vshll.u32 %v166, 16
  %v224 = vrot.slane %v222, 5
  %v225 = vsel %vm197, %v220, %v224
  %v227 = vshrl.u32 %v167, 16
  %v229 = vrot.slane %v227, 4
  %v230 = vshll.u32 %v167, 16
  %v232 = vrot.slane %v230, 5
  %v233 = vor.u32 %v229, %v232
  %v234 = vrot.slane %v233, 4
  %v236 = vshll.u32 %v168, 16
  %v238 = vrot.slane %v236, 5
  %v239 = vsel %vm197, %v234, %v238
  %v241 = vshrl.u32 %v169, 16
  %v243 = vrot.slane %v241, 4
  %v244 = vshll.u32 %v169, 16
  %v246 = vrot.slane %v244, 5
  %v247 = vor.u32 %v243, %v246
  %v248 = vrot.slane %v247, 4
  %v250 = vshll.u32 %v170, 16
  %v252 = vrot.slane %v250, 5
  %v253 = vsel %vm197, %v248, %v252
  %v255 = vshrl.u32 %v171, 16
  %v257 = vrot.slane %v255, 4
  %v258 = vshll.u32 %v171, 16
  %v260 = vrot.slane %v258, 5
  %v261 = vor.u32 %v257, %v260
  %v262 = vrot.slane %v261, 4
  %v264 = vshll.u32 %v172, 16
  %v266 = vrot.slane %v264, 5
  %v267 = vsel %vm197, %v262, %v266
  %v269 = vshrl.u32 %v173, 16
  %v271 = vrot.slane %v269, 4
  %v272 = vshll.u32 %v173, 16
  %v274 = vrot.slane %v272, 5
  %v275 = vor.u32 %v271, %v274
  %v276 = vrot.slane %v275, 4
  %v278 = vshll.u32 %v174, 16
  %v280 = vrot.slane %v278, 5
  %v281 = vsel %vm197, %v276, %v280
  %v283 = vshrl.u32 %v175, 16
  %v285 = vrot.slane %v283, 4
  %v286 = vshll.u32 %v175, 16
  %v288 = vrot.slane %v286, 5
  %v289 = vor.u32 %v285, %v288
  %v290 = vrot.slane %v289, 4
  %v292 = vshll.u32 %v176, 16
  %v294 = vrot.slane %v292, 5
  %v295 = vsel %vm197, %v290, %v294
  %v297 = vshrl.u32 %v177, 16
  %v299 = vrot.slane %v297, 4
  %v300 = vshll.u32 %v177, 16
  %v302 = vrot.slane %v300, 5
  %v303 = vor.u32 %v299, %v302
  %v304 = vrot.slane %v303, 4
  %v306 = vshll.u32 %v178, 16
  %v308 = vrot.slane %v306, 5
  %v309 = vsel %vm197, %v304, %v308
  %v311 = vshrl.u32 %v179, 16
  %v313 = vrot.slane %v311, 4
  %v314 = vshll.u32 %v179, 16
  %v316 = vrot.slane %v314, 5
  %v317 = vor.u32 %v313, %v316
  %v318 = vrot.slane %v317, 4
  %v320 = vshll.u32 %v180, 16
  %v322 = vrot.slane %v320, 5
  %v323 = vsel %vm197, %v318, %v322
  %v325 = vshrl.u32 %v181, 16
  %v327 = vrot.slane %v325, 4
  %v328 = vshll.u32 %v181, 16
  %v330 = vrot.slane %v328, 5
  %v331 = vor.u32 %v327, %v330
  %v332 = vrot.slane %v331, 4
  %v334 = vshll.u32 %v182, 16
  %v336 = vrot.slane %v334, 5
  %v337 = vsel %vm197, %v332, %v336
  %v339 = vshrl.u32 %v183, 16
  %v341 = vrot.slane %v339, 4
  %v342 = vshll.u32 %v183, 16
  %v344 = vrot.slane %v342, 5
  %v345 = vor.u32 %v341, %v344
  %v346 = vrot.slane %v345, 4
  %v348 = vshll.u32 %v184, 16
  %v350 = vrot.slane %v348, 5
  %v351 = vsel %vm197, %v346, %v350
  %v353 = vshrl.u32 %v185, 16
  %v355 = vrot.slane %v353, 4
  %v356 = vshll.u32 %v185, 16
  %v358 = vrot.slane %v356, 5
  %v359 = vor.u32 %v355, %v358
  %v360 = vrot.slane %v359, 4
  %v362 = vshll.u32 %v186, 16
  %v364 = vrot.slane %v362, 5
  %v365 = vsel %vm197, %v360, %v364
  %v367 = vshrl.u32 %v187, 16
  %v369 = vrot.slane %v367, 4
  %v370 = vshll.u32 %v187, 16
  %v372 = vrot.slane %v370, 5
  %v373 = vor.u32 %v369, %v372
  %v374 = vrot.slane %v373, 4
  %v376 = vshll.u32 %v188, 16
  %v378 = vrot.slane %v376, 5
  %v379 = vsel %vm197, %v374, %v378
  %v381 = vshrl.u32 %v189, 16
  %v383 = vrot.slane %v381, 4
  %v384 = vshll.u32 %v189, 16
  %v386 = vrot.slane %v384, 5
  %v387 = vor.u32 %v383, %v386
  %v388 = vrot.slane %v387, 4
  %v390 = vshll.u32 %v190, 16
  %v392 = vrot.slane %v390, 5
  %v393 = vsel %vm197, %v388, %v392
  %v395 = vshrl.u32 %v191, 16
  %v397 = vrot.slane %v395, 4
  %v398 = vshll.u32 %v191, 16
  %v400 = vrot.slane %v398, 5
  %v401 = vor.u32 %v397, %v400
  %v402 = vrot.slane %v401, 4
  %v404 = vshll.u32 %v192, 16
  %v406 = vrot.slane %v404, 5
  %v407 = vsel %vm197, %v402, %v406
  %v409 = vshrl.u32 %v193, 16
  %v411 = vrot.slane %v409, 4
  %v412 = vshll.u32 %v193, 16
  %v414 = vrot.slane %v412, 5
  %v415 = vor.u32 %v411, %v414
  %v416 = vrot.slane %v415, 4
  %v418 = vshll.u32 %v194, 16
  %v420 = vrot.slane %v418, 5
  %v421 = vsel %vm197, %v416, %v420
  %422 = vrot.lane.b32.xlu0 %v211, 16
  %v423 = vpop.permute.xlu0 %422
  %424 = vrot.lane.b32.xlu0 %v225, 16
  %v425 = vpop.permute.xlu0 %424
  %426 = vrot.lane.b32.xlu0 %v239, 16
  %v427 = vpop.permute.xlu0 %426
  %428 = vrot.lane.b32.xlu0 %v253, 16
  %v429 = vpop.permute.xlu0 %428
  %430 = vrot.lane.b32.xlu0 %v267, 16
  %v431 = vpop.permute.xlu0 %430
  %432 = vrot.lane.b32.xlu0 %v281, 16
  %v433 = vpop.permute.xlu0 %432
  %434 = vrot.lane.b32.xlu0 %v295, 16
  %v435 = vpop.permute.xlu0 %434
  %436 = vrot.lane.b32.xlu0 %v309, 16
  %v437 = vpop.permute.xlu0 %436
  %438 = vrot.lane.b32.xlu0 %v323, 16
  %v439 = vpop.permute.xlu0 %438
  %440 = vrot.lane.b32.xlu0 %v337, 16
  %v441 = vpop.permute.xlu0 %440
  %442 = vrot.lane.b32.xlu0 %v351, 16
  %v443 = vpop.permute.xlu0 %442
  %444 = vrot.lane.b32.xlu0 %v365, 16
  %v445 = vpop.permute.xlu0 %444
  %446 = vrot.lane.b32.xlu0 %v379, 16
  %v447 = vpop.permute.xlu0 %446
  %448 = vrot.lane.b32.xlu0 %v393, 16
  %v449 = vpop.permute.xlu0 %448
  %450 = vrot.lane.b32.xlu0 %v407, 16
  %v451 = vpop.permute.xlu0 %450
  %452 = vrot.lane.b32.xlu0 %v421, 16
  %v453 = vpop.permute.xlu0 %452
  %vm470 = vcmask 191616
  %471 = vst.msk [vmem:[#allocation2] sm:$0xf] %vm470, %v423
  %472 = vst.msk [vmem:[#allocation2 + $0x4] sm:$0xf] %vm470, %v425
  %473 = vst.msk [vmem:[#allocation2 + $0x8] sm:$0xf] %vm470, %v427
  %474 = vst.msk [vmem:[#allocation2 + $0xc] sm:$0xf] %vm470, %v429
  %475 = vst.msk [vmem:[#allocation2 + $0x10] sm:$0xf] %vm470, %v431
  %476 = vst.msk [vmem:[#allocation2 + $0x14] sm:$0xf] %vm470, %v433
  %477 = vst.msk [vmem:[#allocation2 + $0x18] sm:$0xf] %vm470, %v435
  %478 = vst.msk [vmem:[#allocation2 + $0x1c] sm:$0xf] %vm470, %v437
  %479 = vst.msk [vmem:[#allocation2 + $0x20] sm:$0xf] %vm470, %v439
  %480 = vst.msk [vmem:[#allocation2 + $0x24] sm:$0xf] %vm470, %v441
  %481 = vst.msk [vmem:[#allocation2 + $0x28] sm:$0xf] %vm470, %v443
  %482 = vst.msk [vmem:[#allocation2 + $0x2c] sm:$0xf] %vm470, %v445
  %483 = vst.msk [vmem:[#allocation2 + $0x30] sm:$0xf] %vm470, %v447
  %484 = vst.msk [vmem:[#allocation2 + $0x34] sm:$0xf] %vm470, %v449
  %485 = vst.msk [vmem:[#allocation2 + $0x38] sm:$0xf] %vm470, %v451
  %486 = vst.msk [vmem:[#allocation2 + $0x3c] sm:$0xf] %vm470, %v453
  %s487 = scalar_lea.vmem %s0, 288
  %v488 = vld [vmem:[%s487] sm:$0xf]
  %v489 = vld [vmem:[%s487 + $0x8] sm:$0xf]
  %v490 = vld [vmem:[%s487 + $0x10] sm:$0xf]
  %v491 = vld [vmem:[%s487 + $0x18] sm:$0xf]
  %v492 = vld [vmem:[%s487 + $0x20] sm:$0xf]
  %v493 = vld [vmem:[%s487 + $0x28] sm:$0xf]
  %v494 = vld [vmem:[%s487 + $0x30] sm:$0xf]
  %v495 = vld [vmem:[%s487 + $0x38] sm:$0xf]
  %v496 = vld [vmem:[%s487 + $0x48] sm:$0xf]
  %v497 = vld [vmem:[%s487 + $0x50] sm:$0xf]
  %v498 = vld [vmem:[%s487 + $0x58] sm:$0xf]
  %v499 = vld [vmem:[%s487 + $0x60] sm:$0xf]
  %v500 = vld [vmem:[%s487 + $0x68] sm:$0xf]
  %v501 = vld [vmem:[%s487 + $0x70] sm:$0xf]
  %v502 = vld [vmem:[%s487 + $0x78] sm:$0xf]
  %v503 = vld [vmem:[%s487 + $0x80] sm:$0xf]
  %520 = vrot.lane.b32.xlu0 %v488, 24
  %v521 = vpop.permute.xlu0 %520
  %522 = vrot.lane.b32.xlu0 %v489, 24
  %v523 = vpop.permute.xlu0 %522
  %524 = vrot.lane.b32.xlu0 %v490, 24
  %v525 = vpop.permute.xlu0 %524
  %526 = vrot.lane.b32.xlu0 %v491, 24
  %v527 = vpop.permute.xlu0 %526
  %528 = vrot.lane.b32.xlu0 %v492, 24
  %v529 = vpop.permute.xlu0 %528
  %530 = vrot.lane.b32.xlu0 %v493, 24
  %v531 = vpop.permute.xlu0 %530
  %532 = vrot.lane.b32.xlu0 %v494, 24
  %v533 = vpop.permute.xlu0 %532
  %534 = vrot.lane.b32.xlu0 %v495, 24
  %v535 = vpop.permute.xlu0 %534
  %536 = vrot.lane.b32.xlu0 %v496, 24
  %v537 = vpop.permute.xlu0 %536
  %538 = vrot.lane.b32.xlu0 %v497, 24
  %v539 = vpop.permute.xlu0 %538
  %540 = vrot.lane.b32.xlu0 %v498, 24
  %v541 = vpop.permute.xlu0 %540
  %542 = vrot.lane.b32.xlu0 %v499, 24
  %v543 = vpop.permute.xlu0 %542
  %544 = vrot.lane.b32.xlu0 %v500, 24
  %v545 = vpop.permute.xlu0 %544
  %546 = vrot.lane.b32.xlu0 %v501, 24
  %v547 = vpop.permute.xlu0 %546
  %548 = vrot.lane.b32.xlu0 %v502, 24
  %v549 = vpop.permute.xlu0 %548
  %550 = vrot.lane.b32.xlu0 %v503, 24
  %v551 = vpop.permute.xlu0 %550
  %vm568 = vcmask 257216
  %569 = vst.msk [vmem:[#allocation2] sm:$0xf] %vm568, %v521
  %570 = vst.msk [vmem:[#allocation2 + $0x4] sm:$0xf] %vm568, %v523
  %571 = vst.msk [vmem:[#allocation2 + $0x8] sm:$0xf] %vm568, %v525
  %572 = vst.msk [vmem:[#allocation2 + $0xc] sm:$0xf] %vm568, %v527
  %573 = vst.msk [vmem:[#allocation2 + $0x10] sm:$0xf] %vm568, %v529
  %574 = vst.msk [vmem:[#allocation2 + $0x14] sm:$0xf] %vm568, %v531
  %575 = vst.msk [vmem:[#allocation2 + $0x18] sm:$0xf] %vm568, %v533
  %576 = vst.msk [vmem:[#allocation2 + $0x1c] sm:$0xf] %vm568, %v535
  %577 = vst.msk [vmem:[#allocation2 + $0x20] sm:$0xf] %vm568, %v537
  %578 = vst.msk [vmem:[#allocation2 + $0x24] sm:$0xf] %vm568, %v539
  %579 = vst.msk [vmem:[#allocation2 + $0x28] sm:$0xf] %vm568, %v541
  %580 = vst.msk [vmem:[#allocation2 + $0x2c] sm:$0xf] %vm568, %v543
  %581 = vst.msk [vmem:[#allocation2 + $0x30] sm:$0xf] %vm568, %v545
  %582 = vst.msk [vmem:[#allocation2 + $0x34] sm:$0xf] %vm568, %v547
  %583 = vst.msk [vmem:[#allocation2 + $0x38] sm:$0xf] %vm568, %v549
  %584 = vst.msk [vmem:[#allocation2 + $0x3c] sm:$0xf] %vm568, %v551
  %s585 = scalar_lea.vmem %s0, 432
  %v586 = vld [vmem:[%s585] sm:$0xf]
  %v587 = vld [vmem:[%s585 + $0x8] sm:$0xf]
  %v588 = vld [vmem:[%s585 + $0x10] sm:$0xf]
  %v589 = vld [vmem:[%s585 + $0x18] sm:$0xf]
  %v590 = vld [vmem:[%s585 + $0x20] sm:$0xf]
  %v591 = vld [vmem:[%s585 + $0x28] sm:$0xf]
  %v592 = vld [vmem:[%s585 + $0x30] sm:$0xf]
  %v593 = vld [vmem:[%s585 + $0x38] sm:$0xf]
  %v594 = vld [vmem:[%s585 + $0x48] sm:$0xf]
  %v595 = vld [vmem:[%s585 + $0x50] sm:$0xf]
  %v596 = vld [vmem:[%s585 + $0x58] sm:$0xf]
  %v597 = vld [vmem:[%s585 + $0x60] sm:$0xf]
  %v598 = vld [vmem:[%s585 + $0x68] sm:$0xf]
  %v599 = vld [vmem:[%s585 + $0x70] sm:$0xf]
  %v600 = vld [vmem:[%s585 + $0x78] sm:$0xf]
  %v601 = vld [vmem:[%s585 + $0x80] sm:$0xf]
  %618 = vrot.lane.b32.xlu0 %v586, 32
  %v619 = vpop.permute.xlu0 %618
  %620 = vrot.lane.b32.xlu0 %v587, 32
  %v621 = vpop.permute.xlu0 %620
  %622 = vrot.lane.b32.xlu0 %v588, 32
  %v623 = vpop.permute.xlu0 %622
  %624 = vrot.lane.b32.xlu0 %v589, 32
  %v625 = vpop.permute.xlu0 %624
  %626 = vrot.lane.b32.xlu0 %v590, 32
  %v627 = vpop.permute.xlu0 %626
  %628 = vrot.lane.b32.xlu0 %v591, 32
  %v629 = vpop.permute.xlu0 %628
  %630 = vrot.lane.b32.xlu0 %v592, 32
  %v631 = vpop.permute.xlu0 %630
  %632 = vrot.lane.b32.xlu0 %v593, 32
  %v633 = vpop.permute.xlu0 %632
  %634 = vrot.lane.b32.xlu0 %v594, 32
  %v635 = vpop.permute.xlu0 %634
  %636 = vrot.lane.b32.xlu0 %v595, 32
  %v637 = vpop.permute.xlu0 %636
  %638 = vrot.lane.b32.xlu0 %v596, 32
  %v639 = vpop.permute.xlu0 %638
  %640 = vrot.lane.b32.xlu0 %v597, 32
  %v641 = vpop.permute.xlu0 %640
  %642 = vrot.lane.b32.xlu0 %v598, 32
  %v643 = vpop.permute.xlu0 %642
  %644 = vrot.lane.b32.xlu0 %v599, 32
  %v645 = vpop.permute.xlu0 %644
  %646 = vrot.lane.b32.xlu0 %v600, 32
  %v647 = vpop.permute.xlu0 %646
  %648 = vrot.lane.b32.xlu0 %v601, 32
  %v649 = vpop.permute.xlu0 %648
  %vm666 = vcmask 322816
  %667 = vst.msk [vmem:[#allocation2] sm:$0xf] %vm666, %v619
  %668 = vst.msk [vmem:[#allocation2 + $0x4] sm:$0xf] %vm666, %v621
  %669 = vst.msk [vmem:[#allocation2 + $0x8] sm:$0xf] %vm666, %v623
  %670 = vst.msk [vmem:[#allocation2 + $0xc] sm:$0xf] %vm666, %v625
  %671 = vst.msk [vmem:[#allocation2 + $0x10] sm:$0xf] %vm666, %v627
  %672 = vst.msk [vmem:[#allocation2 + $0x14] sm:$0xf] %vm666, %v629
  %673 = vst.msk [vmem:[#allocation2 + $0x18] sm:$0xf] %vm666, %v631
  %674 = vst.msk [vmem:[#allocation2 + $0x1c] sm:$0xf] %vm666, %v633
  %675 = vst.msk [vmem:[#allocation2 + $0x20] sm:$0xf] %vm666, %v635
  %676 = vst.msk [vmem:[#allocation2 + $0x24] sm:$0xf] %vm666, %v637
  %677 = vst.msk [vmem:[#allocation2 + $0x28] sm:$0xf] %vm666, %v639
  %678 = vst.msk [vmem:[#allocation2 + $0x2c] sm:$0xf] %vm666, %v641
  %679 = vst.msk [vmem:[#allocation2 + $0x30] sm:$0xf] %vm666, %v643
  %680 = vst.msk [vmem:[#allocation2 + $0x34] sm:$0xf] %vm666, %v645
  %681 = vst.msk [vmem:[#allocation2 + $0x38] sm:$0xf] %vm666, %v647
  %682 = vst.msk [vmem:[#allocation2 + $0x3c] sm:$0xf] %vm666, %v649
  %v683 = vld [vmem:[%s487] sm:$0xf]
  %v684 = vld [vmem:[%s487 + $0x4] sm:$0x1]
  %v685 = vld [vmem:[%s487 + $0x8] sm:$0xf]
  %v686 = vld [vmem:[%s487 + $0xc] sm:$0x1]
  %v687 = vld [vmem:[%s487 + $0x10] sm:$0xf]
  %v688 = vld [vmem:[%s487 + $0x14] sm:$0x1]
  %v689 = vld [vmem:[%s487 + $0x18] sm:$0xf]
  %v690 = vld [vmem:[%s487 + $0x1c] sm:$0x1]
  %v691 = vld [vmem:[%s487 + $0x20] sm:$0xf]
  %v692 = vld [vmem:[%s487 + $0x24] sm:$0x1]
  %v693 = vld [vmem:[%s487 + $0x28] sm:$0xf]
  %v694 = vld [vmem:[%s487 + $0x2c] sm:$0x1]
  %v695 = vld [vmem:[%s487 + $0x30] sm:$0xf]
  %v696 = vld [vmem:[%s487 + $0x34] sm:$0x1]
  %v697 = vld [vmem:[%s487 + $0x38] sm:$0xf]
  %v698 = vld [vmem:[%s487 + $0x3c] sm:$0x1]
  %v699 = vld [vmem:[%s487 + $0x48] sm:$0xf]
  %v700 = vld [vmem:[%s487 + $0x4c] sm:$0x1]
  %v701 = vld [vmem:[%s487 + $0x50] sm:$0xf]
  %v702 = vld [vmem:[%s487 + $0x54] sm:$0x1]
  %v703 = vld [vmem:[%s487 + $0x58] sm:$0xf]
  %v704 = vld [vmem:[%s487 + $0x5c] sm:$0x1]
  %v705 = vld [vmem:[%s487 + $0x60] sm:$0xf]
  %v706 = vld [vmem:[%s487 + $0x64] sm:$0x1]
  %v707 = vld [vmem:[%s487 + $0x68] sm:$0xf]
  %v708 = vld [vmem:[%s487 + $0x6c] sm:$0x1]
  %v709 = vld [vmem:[%s487 + $0x70] sm:$0xf]
  %v710 = vld [vmem:[%s487 + $0x74] sm:$0x1]
  %v711 = vld [vmem:[%s487 + $0x78] sm:$0xf]
  %v712 = vld [vmem:[%s487 + $0x7c] sm:$0x1]
  %v713 = vld [vmem:[%s487 + $0x80] sm:$0xf]
  %v714 = vld [vmem:[%s487 + $0x84] sm:$0x1]
  %v716 = vshrl.u32 %v683, 16
  %v718 = vrot.slane %v716, 4
  %v719 = vshll.u32 %v683, 16
  %v721 = vrot.slane %v719, 5
  %v722 = vor.u32 %v718, %v721
  %v723 = vrot.slane %v722, 4
  %v725 = vshll.u32 %v684, 16
  %v727 = vrot.slane %v725, 5
  %v728 = vsel %vm197, %v723, %v727
  %v730 = vshrl.u32 %v685, 16
  %v732 = vrot.slane %v730, 4
  %v733 = vshll.u32 %v685, 16
  %v735 = vrot.slane %v733, 5
  %v736 = vor.u32 %v732, %v735
  %v737 = vrot.slane %v736, 4
  %v739 = vshll.u32 %v686, 16
  %v741 = vrot.slane %v739, 5
  %v742 = vsel %vm197, %v737, %v741
  %v744 = vshrl.u32 %v687, 16
  %v746 = vrot.slane %v744, 4
  %v747 = vshll.u32 %v687, 16
  %v749 = vrot.slane %v747, 5
  %v750 = vor.u32 %v746, %v749
  %v751 = vrot.slane %v750, 4
  %v753 = vshll.u32 %v688, 16
  %v755 = vrot.slane %v753, 5
  %v756 = vsel %vm197, %v751, %v755
  %v758 = vshrl.u32 %v689, 16
  %v760 = vrot.slane %v758, 4
  %v761 = vshll.u32 %v689, 16
  %v763 = vrot.slane %v761, 5
  %v764 = vor.u32 %v760, %v763
  %v765 = vrot.slane %v764, 4
  %v767 = vshll.u32 %v690, 16
  %v769 = vrot.slane %v767, 5
  %v770 = vsel %vm197, %v765, %v769
  %v772 = vshrl.u32 %v691, 16
  %v774 = vrot.slane %v772, 4
  %v775 = vshll.u32 %v691, 16
  %v777 = vrot.slane %v775, 5
  %v778 = vor.u32 %v774, %v777
  %v779 = vrot.slane %v778, 4
  %v781 = vshll.u32 %v692, 16
  %v783 = vrot.slane %v781, 5
  %v784 = vsel %vm197, %v779, %v783
  %v786 = vshrl.u32 %v693, 16
  %v788 = vrot.slane %v786, 4
  %v789 = vshll.u32 %v693, 16
  %v791 = vrot.slane %v789, 5
  %v792 = vor.u32 %v788, %v791
  %v793 = vrot.slane %v792, 4
  %v795 = vshll.u32 %v694, 16
  %v797 = vrot.slane %v795, 5
  %v798 = vsel %vm197, %v793, %v797
  %v800 = vshrl.u32 %v695, 16
  %v802 = vrot.slane %v800, 4
  %v803 = vshll.u32 %v695, 16
  %v805 = vrot.slane %v803, 5
  %v806 = vor.u32 %v802, %v805
  %v807 = vrot.slane %v806, 4
  %v809 = vshll.u32 %v696, 16
  %v811 = vrot.slane %v809, 5
  %v812 = vsel %vm197, %v807, %v811
  %v814 = vshrl.u32 %v697, 16
  %v816 = vrot.slane %v814, 4
  %v817 = vshll.u32 %v697, 16
  %v819 = vrot.slane %v817, 5
  %v820 = vor.u32 %v816, %v819
  %v821 = vrot.slane %v820, 4
  %v823 = vshll.u32 %v698, 16
  %v825 = vrot.slane %v823, 5
  %v826 = vsel %vm197, %v821, %v825
  %v828 = vshrl.u32 %v699, 16
  %v830 = vrot.slane %v828, 4
  %v831 = vshll.u32 %v699, 16
  %v833 = vrot.slane %v831, 5
  %v834 = vor.u32 %v830, %v833
  %v835 = vrot.slane %v834, 4
  %v837 = vshll.u32 %v700, 16
  %v839 = vrot.slane %v837, 5
  %v840 = vsel %vm197, %v835, %v839
  %v842 = vshrl.u32 %v701, 16
  %v844 = vrot.slane %v842, 4
  %v845 = vshll.u32 %v701, 16
  %v847 = vrot.slane %v845, 5
  %v848 = vor.u32 %v844, %v847
  %v849 = vrot.slane %v848, 4
  %v851 = vshll.u32 %v702, 16
  %v853 = vrot.slane %v851, 5
  %v854 = vsel %vm197, %v849, %v853
  %v856 = vshrl.u32 %v703, 16
  %v858 = vrot.slane %v856, 4
  %v859 = vshll.u32 %v703, 16
  %v861 = vrot.slane %v859, 5
  %v862 = vor.u32 %v858, %v861
  %v863 = vrot.slane %v862, 4
  %v865 = vshll.u32 %v704, 16
  %v867 = vrot.slane %v865, 5
  %v868 = vsel %vm197, %v863, %v867
  %v870 = vshrl.u32 %v705, 16
  %v872 = vrot.slane %v870, 4
  %v873 = vshll.u32 %v705, 16
  %v875 = vrot.slane %v873, 5
  %v876 = vor.u32 %v872, %v875
  %v877 = vrot.slane %v876, 4
  %v879 = vshll.u32 %v706, 16
  %v881 = vrot.slane %v879, 5
  %v882 = vsel %vm197, %v877, %v881
  %v884 = vshrl.u32 %v707, 16
  %v886 = vrot.slane %v884, 4
  %v887 = vshll.u32 %v707, 16
  %v889 = vrot.slane %v887, 5
  %v890 = vor.u32 %v886, %v889
  %v891 = vrot.slane %v890, 4
  %v893 = vshll.u32 %v708, 16
  %v895 = vrot.slane %v893, 5
  %v896 = vsel %vm197, %v891, %v895
  %v898 = vshrl.u32 %v709, 16
  %v900 = vrot.slane %v898, 4
  %v901 = vshll.u32 %v709, 16
  %v903 = vrot.slane %v901, 5
  %v904 = vor.u32 %v900, %v903
  %v905 = vrot.slane %v904, 4
  %v907 = vshll.u32 %v710, 16
  %v909 = vrot.slane %v907, 5
  %v910 = vsel %vm197, %v905, %v909
  %v912 = vshrl.u32 %v711, 16
  %v914 = vrot.slane %v912, 4
  %v915 = vshll.u32 %v711, 16
  %v917 = vrot.slane %v915, 5
  %v918 = vor.u32 %v914, %v917
  %v919 = vrot.slane %v918, 4
  %v921 = vshll.u32 %v712, 16
  %v923 = vrot.slane %v921, 5
  %v924 = vsel %vm197, %v919, %v923
  %v926 = vshrl.u32 %v713, 16
  %v928 = vrot.slane %v926, 4
  %v929 = vshll.u32 %v713, 16
  %v931 = vrot.slane %v929, 5
  %v932 = vor.u32 %v928, %v931
  %v933 = vrot.slane %v932, 4
  %v935 = vshll.u32 %v714, 16
  %v937 = vrot.slane %v935, 5
  %v938 = vsel %vm197, %v933, %v937
  %939 = vrot.lane.b32.xlu0 %v728, 40
  %v940 = vpop.permute.xlu0 %939
  %941 = vrot.lane.b32.xlu0 %v742, 40
  %v942 = vpop.permute.xlu0 %941
  %943 = vrot.lane.b32.xlu0 %v756, 40
  %v944 = vpop.permute.xlu0 %943
  %945 = vrot.lane.b32.xlu0 %v770, 40
  %v946 = vpop.permute.xlu0 %945
  %947 = vrot.lane.b32.xlu0 %v784, 40
  %v948 = vpop.permute.xlu0 %947
  %949 = vrot.lane.b32.xlu0 %v798, 40
  %v950 = vpop.permute.xlu0 %949
  %951 = vrot.lane.b32.xlu0 %v812, 40
  %v952 = vpop.permute.xlu0 %951
  %953 = vrot.lane.b32.xlu0 %v826, 40
  %v954 = vpop.permute.xlu0 %953
  %955 = vrot.lane.b32.xlu0 %v840, 40
  %v956 = vpop.permute.xlu0 %955
  %957 = vrot.lane.b32.xlu0 %v854, 40
  %v958 = vpop.permute.xlu0 %957
  %959 = vrot.lane.b32.xlu0 %v868, 40
  %v960 = vpop.permute.xlu0 %959
  %961 = vrot.lane.b32.xlu0 %v882, 40
  %v962 = vpop.permute.xlu0 %961
  %963 = vrot.lane.b32.xlu0 %v896, 40
  %v964 = vpop.permute.xlu0 %963
  %965 = vrot.lane.b32.xlu0 %v910, 40
  %v966 = vpop.permute.xlu0 %965
  %967 = vrot.lane.b32.xlu0 %v924, 40
  %v968 = vpop.permute.xlu0 %967
  %969 = vrot.lane.b32.xlu0 %v938, 40
  %v970 = vpop.permute.xlu0 %969
  %vm987 = vcmask 388416
  %988 = vst.msk [vmem:[#allocation2] sm:$0xf] %vm987, %v940
  %989 = vst.msk [vmem:[#allocation2 + $0x4] sm:$0xf] %vm987, %v942
  %990 = vst.msk [vmem:[#allocation2 + $0x8] sm:$0xf] %vm987, %v944
  %991 = vst.msk [vmem:[#allocation2 + $0xc] sm:$0xf] %vm987, %v946
  %992 = vst.msk [vmem:[#allocation2 + $0x10] sm:$0xf] %vm987, %v948
  %993 = vst.msk [vmem:[#allocation2 + $0x14] sm:$0xf] %vm987, %v950
  %994 = vst.msk [vmem:[#allocation2 + $0x18] sm:$0xf] %vm987, %v952
  %995 = vst.msk [vmem:[#allocation2 + $0x1c] sm:$0xf] %vm987, %v954
  %996 = vst.msk [vmem:[#allocation2 + $0x20] sm:$0xf] %vm987, %v956
  %997 = vst.msk [vmem:[#allocation2 + $0x24] sm:$0xf] %vm987, %v958
  %998 = vst.msk [vmem:[#allocation2 + $0x28] sm:$0xf] %vm987, %v960
  %999 = vst.msk [vmem:[#allocation2 + $0x2c] sm:$0xf] %vm987, %v962
  %1000 = vst.msk [vmem:[#allocation2 + $0x30] sm:$0xf] %vm987, %v964
  %1001 = vst.msk [vmem:[#allocation2 + $0x34] sm:$0xf] %vm987, %v966
  %1002 = vst.msk [vmem:[#allocation2 + $0x38] sm:$0xf] %vm987, %v968
  %1003 = vst.msk [vmem:[#allocation2 + $0x3c] sm:$0xf] %vm987, %v970
  %s1004 = scalar_lea.vmem %s0, 8
  %v1005 = vld [vmem:[%s1004] sm:$0xf]
  %v1006 = vld [vmem:[%s1004 + $0x8] sm:$0xf]
  %v1007 = vld [vmem:[%s1004 + $0x10] sm:$0xf]
  %v1008 = vld [vmem:[%s1004 + $0x18] sm:$0xf]
  %v1009 = vld [vmem:[%s1004 + $0x20] sm:$0xf]
  %v1010 = vld [vmem:[%s1004 + $0x28] sm:$0xf]
  %v1011 = vld [vmem:[%s1004 + $0x30] sm:$0xf]
  %v1012 = vld [vmem:[%s1004 + $0x38] sm:$0xf]
  %v1013 = vld [vmem:[%s1004 + $0x48] sm:$0xf]
  %v1014 = vld [vmem:[%s1004 + $0x50] sm:$0xf]
  %v1015 = vld [vmem:[%s1004 + $0x58] sm:$0xf]
  %v1016 = vld [vmem:[%s1004 + $0x60] sm:$0xf]
  %v1017 = vld [vmem:[%s1004 + $0x68] sm:$0xf]
  %v1018 = vld [vmem:[%s1004 + $0x70] sm:$0xf]
  %v1019 = vld [vmem:[%s1004 + $0x78] sm:$0xf]
  %v1020 = vld [vmem:[%s1004 + $0x80] sm:$0xf]
  %1037 = vrot.lane.b32.xlu0 %v1005, 48
  %v1038 = vpop.permute.xlu0 %1037
  %1039 = vrot.lane.b32.xlu0 %v1006, 48
  %v1040 = vpop.permute.xlu0 %1039
  %1041 = vrot.lane.b32.xlu0 %v1007, 48
  %v1042 = vpop.permute.xlu0 %1041
  %1043 = vrot.lane.b32.xlu0 %v1008, 48
  %v1044 = vpop.permute.xlu0 %1043
  %1045 = vrot.lane.b32.xlu0 %v1009, 48
  %v1046 = vpop.permute.xlu0 %1045
  %1047 = vrot.lane.b32.xlu0 %v1010, 48
  %v1048 = vpop.permute.xlu0 %1047
  %1049 = vrot.lane.b32.xlu0 %v1011, 48
  %v1050 = vpop.permute.xlu0 %1049
  %1051 = vrot.lane.b32.xlu0 %v1012, 48
  %v1052 = vpop.permute.xlu0 %1051
  %1053 = vrot.lane.b32.xlu0 %v1013, 48
  %v1054 = vpop.permute.xlu0 %1053
  %1055 = vrot.lane.b32.xlu0 %v1014, 48
  %v1056 = vpop.permute.xlu0 %1055
  %1057 = vrot.lane.b32.xlu0 %v1015, 48
  %v1058 = vpop.permute.xlu0 %1057
  %1059 = vrot.lane.b32.xlu0 %v1016, 48
  %v1060 = vpop.permute.xlu0 %1059
  %1061 = vrot.lane.b32.xlu0 %v1017, 48
  %v1062 = vpop.permute.xlu0 %1061
  %1063 = vrot.lane.b32.xlu0 %v1018, 48
  %v1064 = vpop.permute.xlu0 %1063
  %1065 = vrot.lane.b32.xlu0 %v1019, 48
  %v1066 = vpop.permute.xlu0 %1065
  %1067 = vrot.lane.b32.xlu0 %v1020, 48
  %v1068 = vpop.permute.xlu0 %1067
  %vm1085 = vcmask 454016
  %1086 = vst.msk [vmem:[#allocation2] sm:$0xf] %vm1085, %v1038
  %1087 = vst.msk [vmem:[#allocation2 + $0x4] sm:$0xf] %vm1085, %v1040
  %1088 = vst.msk [vmem:[#allocation2 + $0x8] sm:$0xf] %vm1085, %v1042
  %1089 = vst.msk [vmem:[#allocation2 + $0xc] sm:$0xf] %vm1085, %v1044
  %1090 = vst.msk [vmem:[#allocation2 + $0x10] sm:$0xf] %vm1085, %v1046
  %1091 = vst.msk [vmem:[#allocation2 + $0x14] sm:$0xf] %vm1085, %v1048
  %1092 = vst.msk [vmem:[#allocation2 + $0x18] sm:$0xf] %vm1085, %v1050
  %1093 = vst.msk [vmem:[#allocation2 + $0x1c] sm:$0xf] %vm1085, %v1052
  %1094 = vst.msk [vmem:[#allocation2 + $0x20] sm:$0xf] %vm1085, %v1054
  %1095 = vst.msk [vmem:[#allocation2 + $0x24] sm:$0xf] %vm1085, %v1056
  %1096 = vst.msk [vmem:[#allocation2 + $0x28] sm:$0xf] %vm1085, %v1058
  %1097 = vst.msk [vmem:[#allocation2 + $0x2c] sm:$0xf] %vm1085, %v1060
  %1098 = vst.msk [vmem:[#allocation2 + $0x30] sm:$0xf] %vm1085, %v1062
  %1099 = vst.msk [vmem:[#allocation2 + $0x34] sm:$0xf] %vm1085, %v1064
  %1100 = vst.msk [vmem:[#allocation2 + $0x38] sm:$0xf] %vm1085, %v1066
  %1101 = vst.msk [vmem:[#allocation2 + $0x3c] sm:$0xf] %vm1085, %v1068
  %s1102 = scalar_lea.vmem %s0, 152
  %v1103 = vld [vmem:[%s1102] sm:$0xf]
  %v1104 = vld [vmem:[%s1102 + $0x8] sm:$0xf]
  %v1105 = vld [vmem:[%s1102 + $0x10] sm:$0xf]
  %v1106 = vld [vmem:[%s1102 + $0x18] sm:$0xf]
  %v1107 = vld [vmem:[%s1102 + $0x20] sm:$0xf]
  %v1108 = vld [vmem:[%s1102 + $0x28] sm:$0xf]
  %v1109 = vld [vmem:[%s1102 + $0x30] sm:$0xf]
  %v1110 = vld [vmem:[%s1102 + $0x38] sm:$0xf]
  %v1111 = vld [vmem:[%s1102 + $0x48] sm:$0xf]
  %v1112 = vld [vmem:[%s1102 + $0x50] sm:$0xf]
  %v1113 = vld [vmem:[%s1102 + $0x58] sm:$0xf]
  %v1114 = vld [vmem:[%s1102 + $0x60] sm:$0xf]
  %v1115 = vld [vmem:[%s1102 + $0x68] sm:$0xf]
  %v1116 = vld [vmem:[%s1102 + $0x70] sm:$0xf]
  %v1117 = vld [vmem:[%s1102 + $0x78] sm:$0xf]
  %v1118 = vld [vmem:[%s1102 + $0x80] sm:$0xf]
  %1135 = vrot.lane.b32.xlu0 %v1103, 56
  %v1136 = vpop.permute.xlu0 %1135
  %1137 = vrot.lane.b32.xlu0 %v1104, 56
  %v1138 = vpop.permute.xlu0 %1137
  %1139 = vrot.lane.b32.xlu0 %v1105, 56
  %v1140 = vpop.permute.xlu0 %1139
  %1141 = vrot.lane.b32.xlu0 %v1106, 56
  %v1142 = vpop.permute.xlu0 %1141
  %1143 = vrot.lane.b32.xlu0 %v1107, 56
  %v1144 = vpop.permute.xlu0 %1143
  %1145 = vrot.lane.b32.xlu0 %v1108, 56
  %v1146 = vpop.permute.xlu0 %1145
  %1147 = vrot.lane.b32.xlu0 %v1109, 56
  %v1148 = vpop.permute.xlu0 %1147
  %1149 = vrot.lane.b32.xlu0 %v1110, 56
  %v1150 = vpop.permute.xlu0 %1149
  %1151 = vrot.lane.b32.xlu0 %v1111, 56
  %v1152 = vpop.permute.xlu0 %1151
  %1153 = vrot.lane.b32.xlu0 %v1112, 56
  %v1154 = vpop.permute.xlu0 %1153
  %1155 = vrot.lane.b32.xlu0 %v1113, 56
  %v1156 = vpop.permute.xlu0 %1155
  %1157 = vrot.lane.b32.xlu0 %v1114, 56
  %v1158 = vpop.permute.xlu0 %1157
  %1159 = vrot.lane.b32.xlu0 %v1115, 56
  %v1160 = vpop.permute.xlu0 %1159
  %1161 = vrot.lane.b32.xlu0 %v1116, 56
  %v1162 = vpop.permute.xlu0 %1161
  %1163 = vrot.lane.b32.xlu0 %v1117, 56
  %v1164 = vpop.permute.xlu0 %1163
  %1165 = vrot.lane.b32.xlu0 %v1118, 56
  %v1166 = vpop.permute.xlu0 %1165
  %vm1183 = vcmask 519616
  %1184 = vst.msk [vmem:[#allocation2] sm:$0xf] %vm1183, %v1136
  %1185 = vst.msk [vmem:[#allocation2 + $0x4] sm:$0xf] %vm1183, %v1138
  %1186 = vst.msk [vmem:[#allocation2 + $0x8] sm:$0xf] %vm1183, %v1140
  %1187 = vst.msk [vmem:[#allocation2 + $0xc] sm:$0xf] %vm1183, %v1142
  %1188 = vst.msk [vmem:[#allocation2 + $0x10] sm:$0xf] %vm1183, %v1144
  %1189 = vst.msk [vmem:[#allocation2 + $0x14] sm:$0xf] %vm1183, %v1146
  %1190 = vst.msk [vmem:[#allocation2 + $0x18] sm:$0xf] %vm1183, %v1148
  %1191 = vst.msk [vmem:[#allocation2 + $0x1c] sm:$0xf] %vm1183, %v1150
  %1192 = vst.msk [vmem:[#allocation2 + $0x20] sm:$0xf] %vm1183, %v1152
  %1193 = vst.msk [vmem:[#allocation2 + $0x24] sm:$0xf] %vm1183, %v1154
  %1194 = vst.msk [vmem:[#allocation2 + $0x28] sm:$0xf] %vm1183, %v1156
  %1195 = vst.msk [vmem:[#allocation2 + $0x2c] sm:$0xf] %vm1183, %v1158
  %1196 = vst.msk [vmem:[#allocation2 + $0x30] sm:$0xf] %vm1183, %v1160
  %1197 = vst.msk [vmem:[#allocation2 + $0x34] sm:$0xf] %vm1183, %v1162
  %1198 = vst.msk [vmem:[#allocation2 + $0x38] sm:$0xf] %vm1183, %v1164
  %1199 = vst.msk [vmem:[#allocation2 + $0x3c] sm:$0xf] %vm1183, %v1166
  %v1200 = vld [vmem:[%s1004] sm:$0xf]
  %v1201 = vld [vmem:[%s1004 + $0x4] sm:$0x1]
  %v1202 = vld [vmem:[%s1004 + $0x8] sm:$0xf]
  %v1203 = vld [vmem:[%s1004 + $0xc] sm:$0x1]
  %v1204 = vld [vmem:[%s1004 + $0x10] sm:$0xf]
  %v1205 = vld [vmem:[%s1004 + $0x14] sm:$0x1]
  %v1206 = vld [vmem:[%s1004 + $0x18] sm:$0xf]
  %v1207 = vld [vmem:[%s1004 + $0x1c] sm:$0x1]
  %v1208 = vld [vmem:[%s1004 + $0x20] sm:$0xf]
  %v1209 = vld [vmem:[%s1004 + $0x24] sm:$0x1]
  %v1210 = vld [vmem:[%s1004 + $0x28] sm:$0xf]
  %v1211 = vld [vmem:[%s1004 + $0x2c] sm:$0x1]
  %v1212 = vld [vmem:[%s1004 + $0x30] sm:$0xf]
  %v1213 = vld [vmem:[%s1004 + $0x34] sm:$0x1]
  %v1214 = vld [vmem:[%s1004 + $0x38] sm:$0xf]
  %v1215 = vld [vmem:[%s1004 + $0x3c] sm:$0x1]
  %v1216 = vld [vmem:[%s1004 + $0x48] sm:$0xf]
  %v1217 = vld [vmem:[%s1004 + $0x4c] sm:$0x1]
  %v1218 = vld [vmem:[%s1004 + $0x50] sm:$0xf]
  %v1219 = vld [vmem:[%s1004 + $0x54] sm:$0x1]
  %v1220 = vld [vmem:[%s1004 + $0x58] sm:$0xf]
  %v1221 = vld [vmem:[%s1004 + $0x5c] sm:$0x1]
  %v1222 = vld [vmem:[%s1004 + $0x60] sm:$0xf]
  %v1223 = vld [vmem:[%s1004 + $0x64] sm:$0x1]
  %v1224 = vld [vmem:[%s1004 + $0x68] sm:$0xf]
  %v1225 = vld [vmem:[%s1004 + $0x6c] sm:$0x1]
  %v1226 = vld [vmem:[%s1004 + $0x70] sm:$0xf]
  %v1227 = vld [vmem:[%s1004 + $0x74] sm:$0x1]
  %v1228 = vld [vmem:[%s1004 + $0x78] sm:$0xf]
  %v1229 = vld [vmem:[%s1004 + $0x7c] sm:$0x1]
  %v1230 = vld [vmem:[%s1004 + $0x80] sm:$0xf]
  %v1231 = vld [vmem:[%s1004 + $0x84] sm:$0x1]
  %v1233 = vshrl.u32 %v1200, 16
  %v1235 = vrot.slane %v1233, 4
  %v1236 = vshll.u32 %v1200, 16
  %v1238 = vrot.slane %v1236, 5
  %v1239 = vor.u32 %v1235, %v1238
  %v1240 = vrot.slane %v1239, 4
  %v1242 = vshll.u32 %v1201, 16
  %v1244 = vrot.slane %v1242, 5
  %v1245 = vsel %vm197, %v1240, %v1244
  %v1247 = vshrl.u32 %v1202, 16
  %v1249 = vrot.slane %v1247, 4
  %v1250 = vshll.u32 %v1202, 16
  %v1252 = vrot.slane %v1250, 5
  %v1253 = vor.u32 %v1249, %v1252
  %v1254 = vrot.slane %v1253, 4
  %v1256 = vshll.u32 %v1203, 16
  %v1258 = vrot.slane %v1256, 5
  %v1259 = vsel %vm197, %v1254, %v1258
  %v1261 = vshrl.u32 %v1204, 16
  %v1263 = vrot.slane %v1261, 4
  %v1264 = vshll.u32 %v1204, 16
  %v1266 = vrot.slane %v1264, 5
  %v1267 = vor.u32 %v1263, %v1266
  %v1268 = vrot.slane %v1267, 4
  %v1270 = vshll.u32 %v1205, 16
  %v1272 = vrot.slane %v1270, 5
  %v1273 = vsel %vm197, %v1268, %v1272
  %v1275 = vshrl.u32 %v1206, 16
  %v1277 = vrot.slane %v1275, 4
  %v1278 = vshll.u32 %v1206, 16
  %v1280 = vrot.slane %v1278, 5
  %v1281 = vor.u32 %v1277, %v1280
  %v1282 = vrot.slane %v1281, 4
  %v1284 = vshll.u32 %v1207, 16
  %v1286 = vrot.slane %v1284, 5
  %v1287 = vsel %vm197, %v1282, %v1286
  %v1289 = vshrl.u32 %v1208, 16
  %v1291 = vrot.slane %v1289, 4
  %v1292 = vshll.u32 %v1208, 16
  %v1294 = vrot.slane %v1292, 5
  %v1295 = vor.u32 %v1291, %v1294
  %v1296 = vrot.slane %v1295, 4
  %v1298 = vshll.u32 %v1209, 16
  %v1300 = vrot.slane %v1298, 5
  %v1301 = vsel %vm197, %v1296, %v1300
  %v1303 = vshrl.u32 %v1210, 16
  %v1305 = vrot.slane %v1303, 4
  %v1306 = vshll.u32 %v1210, 16
  %v1308 = vrot.slane %v1306, 5
  %v1309 = vor.u32 %v1305, %v1308
  %v1310 = vrot.slane %v1309, 4
  %v1312 = vshll.u32 %v1211, 16
  %v1314 = vrot.slane %v1312, 5
  %v1315 = vsel %vm197, %v1310, %v1314
  %v1317 = vshrl.u32 %v1212, 16
  %v1319 = vrot.slane %v1317, 4
  %v1320 = vshll.u32 %v1212, 16
  %v1322 = vrot.slane %v1320, 5
  %v1323 = vor.u32 %v1319, %v1322
  %v1324 = vrot.slane %v1323, 4
  %v1326 = vshll.u32 %v1213, 16
  %v1328 = vrot.slane %v1326, 5
  %v1329 = vsel %vm197, %v1324, %v1328
  %v1331 = vshrl.u32 %v1214, 16
  %v1333 = vrot.slane %v1331, 4
  %v1334 = vshll.u32 %v1214, 16
  %v1336 = vrot.slane %v1334, 5
  %v1337 = vor.u32 %v1333, %v1336
  %v1338 = vrot.slane %v1337, 4
  %v1340 = vshll.u32 %v1215, 16
  %v1342 = vrot.slane %v1340, 5
  %v1343 = vsel %vm197, %v1338, %v1342
  %v1345 = vshrl.u32 %v1216, 16
  %v1347 = vrot.slane %v1345, 4
  %v1348 = vshll.u32 %v1216, 16
  %v1350 = vrot.slane %v1348, 5
  %v1351 = vor.u32 %v1347, %v1350
  %v1352 = vrot.slane %v1351, 4
  %v1354 = vshll.u32 %v1217, 16
  %v1356 = vrot.slane %v1354, 5
  %v1357 = vsel %vm197, %v1352, %v1356
  %v1359 = vshrl.u32 %v1218, 16
  %v1361 = vrot.slane %v1359, 4
  %v1362 = vshll.u32 %v1218, 16
  %v1364 = vrot.slane %v1362, 5
  %v1365 = vor.u32 %v1361, %v1364
  %v1366 = vrot.slane %v1365, 4
  %v1368 = vshll.u32 %v1219, 16
  %v1370 = vrot.slane %v1368, 5
  %v1371 = vsel %vm197, %v1366, %v1370
  %v1373 = vshrl.u32 %v1220, 16
  %v1375 = vrot.slane %v1373, 4
  %v1376 = vshll.u32 %v1220, 16
  %v1378 = vrot.slane %v1376, 5
  %v1379 = vor.u32 %v1375, %v1378
  %v1380 = vrot.slane %v1379, 4
  %v1382 = vshll.u32 %v1221, 16
  %v1384 = vrot.slane %v1382, 5
  %v1385 = vsel %vm197, %v1380, %v1384
  %v1387 = vshrl.u32 %v1222, 16
  %v1389 = vrot.slane %v1387, 4
  %v1390 = vshll.u32 %v1222, 16
  %v1392 = vrot.slane %v1390, 5
  %v1393 = vor.u32 %v1389, %v1392
  %v1394 = vrot.slane %v1393, 4
  %v1396 = vshll.u32 %v1223, 16
  %v1398 = vrot.slane %v1396, 5
  %v1399 = vsel %vm197, %v1394, %v1398
  %v1401 = vshrl.u32 %v1224, 16
  %v1403 = vrot.slane %v1401, 4
  %v1404 = vshll.u32 %v1224, 16
  %v1406 = vrot.slane %v1404, 5
  %v1407 = vor.u32 %v1403, %v1406
  %v1408 = vrot.slane %v1407, 4
  %v1410 = vshll.u32 %v1225, 16
  %v1412 = vrot.slane %v1410, 5
  %v1413 = vsel %vm197, %v1408, %v1412
  %v1415 = vshrl.u32 %v1226, 16
  %v1417 = vrot.slane %v1415, 4
  %v1418 = vshll.u32 %v1226, 16
  %v1420 = vrot.slane %v1418, 5
  %v1421 = vor.u32 %v1417, %v1420
  %v1422 = vrot.slane %v1421, 4
  %v1424 = vshll.u32 %v1227, 16
  %v1426 = vrot.slane %v1424, 5
  %v1427 = vsel %vm197, %v1422, %v1426
  %v1429 = vshrl.u32 %v1228, 16
  %v1431 = vrot.slane %v1429, 4
  %v1432 = vshll.u32 %v1228, 16
  %v1434 = vrot.slane %v1432, 5
  %v1435 = vor.u32 %v1431, %v1434
  %v1436 = vrot.slane %v1435, 4
  %v1438 = vshll.u32 %v1229, 16
  %v1440 = vrot.slane %v1438, 5
  %v1441 = vsel %vm197, %v1436, %v1440
  %v1443 = vshrl.u32 %v1230, 16
  %v1445 = vrot.slane %v1443, 4
  %v1446 = vshll.u32 %v1230, 16
  %v1448 = vrot.slane %v1446, 5
  %v1449 = vor.u32 %v1445, %v1448
  %v1450 = vrot.slane %v1449, 4
  %v1452 = vshll.u32 %v1231, 16
  %v1454 = vrot.slane %v1452, 5
  %v1455 = vsel %vm197, %v1450, %v1454
  %1456 = vrot.lane.b32.xlu0 %v1245, 64
  %v1457 = vpop.permute.xlu0 %1456
  %1458 = vrot.lane.b32.xlu0 %v1259, 64
  %v1459 = vpop.permute.xlu0 %1458
  %1460 = vrot.lane.b32.xlu0 %v1273, 64
  %v1461 = vpop.permute.xlu0 %1460
  %1462 = vrot.lane.b32.xlu0 %v1287, 64
  %v1463 = vpop.permute.xlu0 %1462
  %1464 = vrot.lane.b32.xlu0 %v1301, 64
  %v1465 = vpop.permute.xlu0 %1464
  %1466 = vrot.lane.b32.xlu0 %v1315, 64
  %v1467 = vpop.permute.xlu0 %1466
  %1468 = vrot.lane.b32.xlu0 %v1329, 64
  %v1469 = vpop.permute.xlu0 %1468
  %1470 = vrot.lane.b32.xlu0 %v1343, 64
  %v1471 = vpop.permute.xlu0 %1470
  %1472 = vrot.lane.b32.xlu0 %v1357, 64
  %v1473 = vpop.permute.xlu0 %1472
  %1474 = vrot.lane.b32.xlu0 %v1371, 64
  %v1475 = vpop.permute.xlu0 %1474
  %1476 = vrot.lane.b32.xlu0 %v1385, 64
  %v1477 = vpop.permute.xlu0 %1476
  %1478 = vrot.lane.b32.xlu0 %v1399, 64
  %v1479 = vpop.permute.xlu0 %1478
  %1480 = vrot.lane.b32.xlu0 %v1413, 64
  %v1481 = vpop.permute.xlu0 %1480
  %1482 = vrot.lane.b32.xlu0 %v1427, 64
  %v1483 = vpop.permute.xlu0 %1482
  %1484 = vrot.lane.b32.xlu0 %v1441, 64
  %v1485 = vpop.permute.xlu0 %1484
  %1486 = vrot.lane.b32.xlu0 %v1455, 64
  %v1487 = vpop.permute.xlu0 %1486
  %vm1504 = vcmask 585216
  %1505 = vst.msk [vmem:[#allocation2] sm:$0xf] %vm1504, %v1457
  %1506 = vst.msk [vmem:[#allocation2 + $0x4] sm:$0xf] %vm1504, %v1459
  %1507 = vst.msk [vmem:[#allocation2 + $0x8] sm:$0xf] %vm1504, %v1461
  %1508 = vst.msk [vmem:[#allocation2 + $0xc] sm:$0xf] %vm1504, %v1463
  %1509 = vst.msk [vmem:[#allocation2 + $0x10] sm:$0xf] %vm1504, %v1465
  %1510 = vst.msk [vmem:[#allocation2 + $0x14] sm:$0xf] %vm1504, %v1467
  %1511 = vst.msk [vmem:[#allocation2 + $0x18] sm:$0xf] %vm1504, %v1469
  %1512 = vst.msk [vmem:[#allocation2 + $0x1c] sm:$0xf] %vm1504, %v1471
  %1513 = vst.msk [vmem:[#allocation2 + $0x20] sm:$0xf] %vm1504, %v1473
  %1514 = vst.msk [vmem:[#allocation2 + $0x24] sm:$0xf] %vm1504, %v1475
  %1515 = vst.msk [vmem:[#allocation2 + $0x28] sm:$0xf] %vm1504, %v1477
  %1516 = vst.msk [vmem:[#allocation2 + $0x2c] sm:$0xf] %vm1504, %v1479
  %1517 = vst.msk [vmem:[#allocation2 + $0x30] sm:$0xf] %vm1504, %v1481
  %1518 = vst.msk [vmem:[#allocation2 + $0x34] sm:$0xf] %vm1504, %v1483
  %1519 = vst.msk [vmem:[#allocation2 + $0x38] sm:$0xf] %vm1504, %v1485
  %1520 = vst.msk [vmem:[#allocation2 + $0x3c] sm:$0xf] %vm1504, %v1487
  %v1521 = vld [vmem:[#allocation2] sm:$0xf]
  %v1522 = vld [vmem:[#allocation2 + $0x4] sm:$0xf]
  %v1523 = vld [vmem:[#allocation2 + $0x8] sm:$0xf]
  %v1524 = vld [vmem:[#allocation2 + $0xc] sm:$0xf]
  %v1525 = vld [vmem:[#allocation2 + $0x10] sm:$0xf]
  %v1526 = vld [vmem:[#allocation2 + $0x14] sm:$0xf]
  %v1527 = vld [vmem:[#allocation2 + $0x18] sm:$0xf]
  %v1528 = vld [vmem:[#allocation2 + $0x1c] sm:$0xf]
  %v1529 = vld [vmem:[#allocation2 + $0x20] sm:$0xf]
  %v1530 = vld [vmem:[#allocation2 + $0x24] sm:$0xf]
  %v1531 = vld [vmem:[#allocation2 + $0x28] sm:$0xf]
  %v1532 = vld [vmem:[#allocation2 + $0x2c] sm:$0xf]
  %v1533 = vld [vmem:[#allocation2 + $0x30] sm:$0xf]
  %v1534 = vld [vmem:[#allocation2 + $0x34] sm:$0xf]
  %v1535 = vld [vmem:[#allocation2 + $0x38] sm:$0xf]
  %v1536 = vld [vmem:[#allocation2 + $0x3c] sm:$0xf]
  %v1537 = vld [vmem:[%s1] sm:$0xf]
  %v1538 = vld [vmem:[%s1 + $0x4] sm:$0xf]
  %v1539 = vld [vmem:[%s1 + $0x8] sm:$0xf]
  %v1540 = vld [vmem:[%s1 + $0xc] sm:$0xf]
  %v1541 = vld [vmem:[%s1 + $0x10] sm:$0xf]
  %v1542 = vld [vmem:[%s1 + $0x14] sm:$0xf]
  %v1543 = vld [vmem:[%s1 + $0x18] sm:$0xf]
  %v1544 = vld [vmem:[%s1 + $0x1c] sm:$0xf]
  %v1545 = vld [vmem:[%s1 + $0x20] sm:$0xf]
  %v1546 = vld [vmem:[%s1 + $0x24] sm:$0xf]
  %v1547 = vld [vmem:[%s1 + $0x28] sm:$0xf]
  %v1548 = vld [vmem:[%s1 + $0x2c] sm:$0xf]
  %v1549 = vld [vmem:[%s1 + $0x30] sm:$0xf]
  %v1550 = vld [vmem:[%s1 + $0x34] sm:$0xf]
  %v1551 = vld [vmem:[%s1 + $0x38] sm:$0xf]
  %v1552 = vld [vmem:[%s1 + $0x3c] sm:$0xf]
  %v1569 = vunpack.c.l.b16 %v1521
  %v1570 = vunpack.c.l.b16 %v1522
  %v1571 = vunpack.c.l.b16 %v1523
  %v1572 = vunpack.c.l.b16 %v1524
  %v1573 = vunpack.c.l.b16 %v1525
  %v1574 = vunpack.c.l.b16 %v1526
  %v1575 = vunpack.c.l.b16 %v1527
  %v1576 = vunpack.c.l.b16 %v1528
  %v1577 = vunpack.c.l.b16 %v1529
  %v1578 = vunpack.c.l.b16 %v1530
  %v1579 = vunpack.c.l.b16 %v1531
  %v1580 = vunpack.c.l.b16 %v1532
  %v1581 = vunpack.c.l.b16 %v1533
  %v1582 = vunpack.c.l.b16 %v1534
  %v1583 = vunpack.c.l.b16 %v1535
  %v1584 = vunpack.c.l.b16 %v1536
  %v1585 = vpack.c.b16 %v1570, %v1569
  %v1586 = vpack.c.b16 %v1572, %v1571
  %v1587 = vpack.c.b16 %v1574, %v1573
  %v1588 = vpack.c.b16 %v1576, %v1575
  %v1589 = vpack.c.b16 %v1578, %v1577
  %v1590 = vpack.c.b16 %v1580, %v1579
  %v1591 = vpack.c.b16 %v1582, %v1581
  %v1592 = vpack.c.b16 %v1584, %v1583
  %v1617 = vunpack.c.l.b16 %v1537
  %v1618 = vunpack.c.l.b16 %v1538
  %v1619 = vunpack.c.l.b16 %v1539
  %v1620 = vunpack.c.l.b16 %v1540
  %v1621 = vunpack.c.l.b16 %v1541
  %v1622 = vunpack.c.l.b16 %v1542
  %v1623 = vunpack.c.l.b16 %v1543
  %v1624 = vunpack.c.l.b16 %v1544
  %v1625 = vunpack.c.l.b16 %v1545
  %v1626 = vunpack.c.l.b16 %v1546
  %v1627 = vunpack.c.l.b16 %v1547
  %v1628 = vunpack.c.l.b16 %v1548
  %v1629 = vunpack.c.l.b16 %v1549
  %v1630 = vunpack.c.l.b16 %v1550
  %v1631 = vunpack.c.l.b16 %v1551
  %v1632 = vunpack.c.l.b16 %v1552
  %v1633 = vpack.c.b16 %v1618, %v1617
  %v1634 = vpack.c.b16 %v1620, %v1619
  %v1635 = vpack.c.b16 %v1622, %v1621
  %v1636 = vpack.c.b16 %v1624, %v1623
  %v1637 = vpack.c.b16 %v1626, %v1625
  %v1638 = vpack.c.b16 %v1628, %v1627
  %v1639 = vpack.c.b16 %v1630, %v1629
  %v1640 = vpack.c.b16 %v1632, %v1631
  %1649 = vmatprep.subr.bf16.mxu0 0
  %1650 = vmatpush1.bf16.msra.mxu0 %v1640
  %1651 = vmatprep.subr.bf16.mxu0 0
  %1652 = vmatpush1.bf16.msra.mxu0 %v1639
  %1653 = vmatprep.subr.bf16.mxu0 0
  %1654 = vmatpush1.bf16.msra.mxu0 %v1638
  %1655 = vmatprep.subr.bf16.mxu0 0
  %1656 = vmatpush1.bf16.msra.mxu0 %v1637
  %1657 = vmatprep.subr.bf16.mxu0 0
  %1658 = vmatpush1.bf16.msra.mxu0 %v1636
  %1659 = vmatprep.subr.bf16.mxu0 0
  %1660 = vmatpush1.bf16.msra.mxu0 %v1635
  %1661 = vmatprep.subr.bf16.mxu0 0
  %1662 = vmatpush1.bf16.msra.mxu0 %v1634
  %1663 = vmatprep.subr.bf16.mxu0 0
  %1664 = vmatpush1.bf16.msra.mxu0 %v1633
  %1665 = vmatprep.subr.bf16.mxu0 0
  %1666 = vmatpush2.bf16.msra.mxu0 0
  %1667 = vmatprep.subr.bf16.mxu0 0
  %1668 = vmatpush2.bf16.msra.mxu0 0
  %1669 = vmatprep.subr.bf16.mxu0 0
  %1670 = vmatpush2.bf16.msra.mxu0 0
  %1671 = vmatprep.subr.bf16.mxu0 0
  %1672 = vmatpush2.bf16.msra.mxu0 0
  %1673 = vmatprep.subr.bf16.mxu0 0
  %1674 = vmatpush2.bf16.msra.mxu0 0
  %1675 = vmatprep.subr.bf16.mxu0 0
  %1676 = vmatpush2.bf16.msra.mxu0 0
  %1677 = vmatprep.subr.bf16.mxu0 0
  %1678 = vmatpush2.bf16.msra.mxu0 0
  %1679 = vmatprep.subr.bf16.mxu0 0
  %1680 = vmatpush2.bf16.msra.mxu0 0
  %1681 = vmatprep.mubr.bf16.mxu0 0
  %1682 = vmatmul.mubr.bf16.gmra.mxu0 %v1585
  %v1683 = vpop.f32.mrf.mxu0
  %v1684 = vadd.f32 0.0, %v1683
  %v1685 = vpop.f32.mrf.mxu0
  %v1686 = vpop.f32.mrf.mxu0
  %v1687 = vadd.f32 0.0, %v1686
  %v1688 = vpop.f32.mrf.mxu0
  %1689 = vmatprep.mubr.bf16.mxu0 0
  %1690 = vmatmul.mubr.bf16.gmra.mxu0 %v1586
  %v1691 = vpop.f32.mrf.mxu0
  %v1692 = vadd.f32 0.0, %v1691
  %v1693 = vpop.f32.mrf.mxu0
  %v1694 = vpop.f32.mrf.mxu0
  %v1695 = vadd.f32 0.0, %v1694
  %v1696 = vpop.f32.mrf.mxu0
  %1697 = vmatprep.mubr.bf16.mxu0 0
  %1698 = vmatmul.mubr.bf16.gmra.mxu0 %v1587
  %v1699 = vpop.f32.mrf.mxu0
  %v1700 = vadd.f32 0.0, %v1699
  %v1701 = vpop.f32.mrf.mxu0
  %v1702 = vpop.f32.mrf.mxu0
  %v1703 = vadd.f32 0.0, %v1702
  %v1704 = vpop.f32.mrf.mxu0
  %1705 = vmatprep.mubr.bf16.mxu0 0
  %1706 = vmatmul.mubr.bf16.gmra.mxu0 %v1588
  %v1707 = vpop.f32.mrf.mxu0
  %v1708 = vadd.f32 0.0, %v1707
  %v1709 = vpop.f32.mrf.mxu0
  %v1710 = vpop.f32.mrf.mxu0
  %v1711 = vadd.f32 0.0, %v1710
  %v1712 = vpop.f32.mrf.mxu0
  %1713 = vmatprep.mubr.bf16.mxu0 0
  %1714 = vmatmul.mubr.bf16.gmra.mxu0 %v1589
  %v1715 = vpop.f32.mrf.mxu0
  %v1716 = vadd.f32 0.0, %v1715
  %v1717 = vpop.f32.mrf.mxu0
  %v1718 = vpop.f32.mrf.mxu0
  %v1719 = vadd.f32 0.0, %v1718
  %v1720 = vpop.f32.mrf.mxu0
  %1721 = vmatprep.mubr.bf16.mxu0 0
  %1722 = vmatmul.mubr.bf16.gmra.mxu0 %v1590
  %v1723 = vpop.f32.mrf.mxu0
  %v1724 = vadd.f32 0.0, %v1723
  %v1725 = vpop.f32.mrf.mxu0
  %v1726 = vpop.f32.mrf.mxu0
  %v1727 = vadd.f32 0.0, %v1726
  %v1728 = vpop.f32.mrf.mxu0
  %1729 = vmatprep.mubr.bf16.mxu0 0
  %1730 = vmatmul.mubr.bf16.gmra.mxu0 %v1591
  %v1731 = vpop.f32.mrf.mxu0
  %v1732 = vadd.f32 0.0, %v1731
  %v1733 = vpop.f32.mrf.mxu0
  %v1734 = vpop.f32.mrf.mxu0
  %v1735 = vadd.f32 0.0, %v1734
  %v1736 = vpop.f32.mrf.mxu0
  %1737 = vmatprep.mubr.bf16.mxu0 0
  %1738 = vmatmul.mubr.bf16.gmra.mxu0 %v1592
  %v1739 = vpop.f32.mrf.mxu0
  %v1740 = vadd.f32 0.0, %v1739
  %v1741 = vpop.f32.mrf.mxu0
  %v1742 = vpop.f32.mrf.mxu0
  %v1743 = vadd.f32 0.0, %v1742
  %v1744 = vpop.f32.mrf.mxu0
  %1745 = vdwg.mxu0
  %v1746 = vld [vmem:[%s65] sm:$0xf]
  %v1747 = vld [vmem:[%s65 + $0x8] sm:$0xf]
  %v1748 = vld [vmem:[%s65 + $0x10] sm:$0xf]
  %v1749 = vld [vmem:[%s65 + $0x18] sm:$0xf]
  %v1750 = vld [vmem:[%s65 + $0x20] sm:$0xf]
  %v1751 = vld [vmem:[%s65 + $0x28] sm:$0xf]
  %v1752 = vld [vmem:[%s65 + $0x30] sm:$0xf]
  %v1753 = vld [vmem:[%s65 + $0x38] sm:$0xf]
  %v1754 = vld [vmem:[%s65 + $0x48] sm:$0xf]
  %v1755 = vld [vmem:[%s65 + $0x50] sm:$0xf]
  %v1756 = vld [vmem:[%s65 + $0x58] sm:$0xf]
  %v1757 = vld [vmem:[%s65 + $0x60] sm:$0xf]
  %v1758 = vld [vmem:[%s65 + $0x68] sm:$0xf]
  %v1759 = vld [vmem:[%s65 + $0x70] sm:$0xf]
  %v1760 = vld [vmem:[%s65 + $0x78] sm:$0xf]
  %v1761 = vld [vmem:[%s65 + $0x80] sm:$0xf]
  %1762 = vst.msk [vmem:[#allocation2] sm:$0xf] %vm48, %v1746
  %1763 = vst.msk [vmem:[#allocation2 + $0x4] sm:$0xf] %vm48, %v1747
  %1764 = vst.msk [vmem:[#allocation2 + $0x8] sm:$0xf] %vm48, %v1748
  %1765 = vst.msk [vmem:[#allocation2 + $0xc] sm:$0xf] %vm48, %v1749
  %1766 = vst.msk [vmem:[#allocation2 + $0x10] sm:$0xf] %vm48, %v1750
  %1767 = vst.msk [vmem:[#allocation2 + $0x14] sm:$0xf] %vm48, %v1751
  %1768 = vst.msk [vmem:[#allocation2 + $0x18] sm:$0xf] %vm48, %v1752
  %1769 = vst.msk [vmem:[#allocation2 + $0x1c] sm:$0xf] %vm48, %v1753
  %1770 = vst.msk [vmem:[#allocation2 + $0x20] sm:$0xf] %vm48, %v1754
  %1771 = vst.msk [vmem:[#allocation2 + $0x24] sm:$0xf] %vm48, %v1755
  %1772 = vst.msk [vmem:[#allocation2 + $0x28] sm:$0xf] %vm48, %v1756
  %1773 = vst.msk [vmem:[#allocation2 + $0x2c] sm:$0xf] %vm48, %v1757
  %1774 = vst.msk [vmem:[#allocation2 + $0x30] sm:$0xf] %vm48, %v1758
  %1775 = vst.msk [vmem:[#allocation2 + $0x34] sm:$0xf] %vm48, %v1759
  %1776 = vst.msk [vmem:[#allocation2 + $0x38] sm:$0xf] %vm48, %v1760
  %1777 = vst.msk [vmem:[#allocation2 + $0x3c] sm:$0xf] %vm48, %v1761
  %v1778 = vld [vmem:[%s0] sm:$0xf]
  %v1779 = vld [vmem:[%s0 + $0x4] sm:$0x1]
  %v1780 = vld [vmem:[%s0 + $0x8] sm:$0xf]
  %v1781 = vld [vmem:[%s0 + $0xc] sm:$0x1]
  %v1782 = vld [vmem:[%s0 + $0x10] sm:$0xf]
  %v1783 = vld [vmem:[%s0 + $0x14] sm:$0x1]
  %v1784 = vld [vmem:[%s0 + $0x18] sm:$0xf]
  %v1785 = vld [vmem:[%s0 + $0x1c] sm:$0x1]
  %v1786 = vld [vmem:[%s0 + $0x20] sm:$0xf]
  %v1787 = vld [vmem:[%s0 + $0x24] sm:$0x1]
  %v1788 = vld [vmem:[%s0 + $0x28] sm:$0xf]
  %v1789 = vld [vmem:[%s0 + $0x2c] sm:$0x1]
  %v1790 = vld [vmem:[%s0 + $0x30] sm:$0xf]
  %v1791 = vld [vmem:[%s0 + $0x34] sm:$0x1]
  %v1792 = vld [vmem:[%s0 + $0x38] sm:$0xf]
  %v1793 = vld [vmem:[%s0 + $0x3c] sm:$0x1]
  %v1794 = vld [vmem:[%s0 + $0x48] sm:$0xf]
  %v1795 = vld [vmem:[%s0 + $0x4c] sm:$0x1]
  %v1796 = vld [vmem:[%s0 + $0x50] sm:$0xf]
  %v1797 = vld [vmem:[%s0 + $0x54] sm:$0x1]
  %v1798 = vld [vmem:[%s0 + $0x58] sm:$0xf]
  %v1799 = vld [vmem:[%s0 + $0x5c] sm:$0x1]
  %v1800 = vld [vmem:[%s0 + $0x60] sm:$0xf]
  %v1801 = vld [vmem:[%s0 + $0x64] sm:$0x1]
  %v1802 = vld [vmem:[%s0 + $0x68] sm:$0xf]
  %v1803 = vld [vmem:[%s0 + $0x6c] sm:$0x1]
  %v1804 = vld [vmem:[%s0 + $0x70] sm:$0xf]
  %v1805 = vld [vmem:[%s0 + $0x74] sm:$0x1]
  %v1806 = vld [vmem:[%s0 + $0x78] sm:$0xf]
  %v1807 = vld [vmem:[%s0 + $0x7c] sm:$0x1]
  %v1808 = vld [vmem:[%s0 + $0x80] sm:$0xf]
  %v1809 = vld [vmem:[%s0 + $0x84] sm:$0x1]
  %v1811 = vshrl.u32 %v1778, 16
  %v1813 = vrot.slane %v1811, 4
  %v1814 = vshll.u32 %v1778, 16
  %v1816 = vrot.slane %v1814, 5
  %v1817 = vor.u32 %v1813, %v1816
  %v1818 = vrot.slane %v1817, 4
  %v1820 = vshll.u32 %v1779, 16
  %v1822 = vrot.slane %v1820, 5
  %v1823 = vsel %vm197, %v1818, %v1822
  %v1825 = vshrl.u32 %v1780, 16
  %v1827 = vrot.slane %v1825, 4
  %v1828 = vshll.u32 %v1780, 16
  %v1830 = vrot.slane %v1828, 5
  %v1831 = vor.u32 %v1827, %v1830
  %v1832 = vrot.slane %v1831, 4
  %v1834 = vshll.u32 %v1781, 16
  %v1836 = vrot.slane %v1834, 5
  %v1837 = vsel %vm197, %v1832, %v1836
  %v1839 = vshrl.u32 %v1782, 16
  %v1841 = vrot.slane %v1839, 4
  %v1842 = vshll.u32 %v1782, 16
  %v1844 = vrot.slane %v1842, 5
  %v1845 = vor.u32 %v1841, %v1844
  %v1846 = vrot.slane %v1845, 4
  %v1848 = vshll.u32 %v1783, 16
  %v1850 = vrot.slane %v1848, 5
  %v1851 = vsel %vm197, %v1846, %v1850
  %v1853 = vshrl.u32 %v1784, 16
  %v1855 = vrot.slane %v1853, 4
  %v1856 = vshll.u32 %v1784, 16
  %v1858 = vrot.slane %v1856, 5
  %v1859 = vor.u32 %v1855, %v1858
  %v1860 = vrot.slane %v1859, 4
  %v1862 = vshll.u32 %v1785, 16
  %v1864 = vrot.slane %v1862, 5
  %v1865 = vsel %vm197, %v1860, %v1864
  %v1867 = vshrl.u32 %v1786, 16
  %v1869 = vrot.slane %v1867, 4
  %v1870 = vshll.u32 %v1786, 16
  %v1872 = vrot.slane %v1870, 5
  %v1873 = vor.u32 %v1869, %v1872
  %v1874 = vrot.slane %v1873, 4
  %v1876 = vshll.u32 %v1787, 16
  %v1878 = vrot.slane %v1876, 5
  %v1879 = vsel %vm197, %v1874, %v1878
  %v1881 = vshrl.u32 %v1788, 16
  %v1883 = vrot.slane %v1881, 4
  %v1884 = vshll.u32 %v1788, 16
  %v1886 = vrot.slane %v1884, 5
  %v1887 = vor.u32 %v1883, %v1886
  %v1888 = vrot.slane %v1887, 4
  %v1890 = vshll.u32 %v1789, 16
  %v1892 = vrot.slane %v1890, 5
  %v1893 = vsel %vm197, %v1888, %v1892
  %v1895 = vshrl.u32 %v1790, 16
  %v1897 = vrot.slane %v1895, 4
  %v1898 = vshll.u32 %v1790, 16
  %v1900 = vrot.slane %v1898, 5
  %v1901 = vor.u32 %v1897, %v1900
  %v1902 = vrot.slane %v1901, 4
  %v1904 = vshll.u32 %v1791, 16
  %v1906 = vrot.slane %v1904, 5
  %v1907 = vsel %vm197, %v1902, %v1906
  %v1909 = vshrl.u32 %v1792, 16
  %v1911 = vrot.slane %v1909, 4
  %v1912 = vshll.u32 %v1792, 16
  %v1914 = vrot.slane %v1912, 5
  %v1915 = vor.u32 %v1911, %v1914
  %v1916 = vrot.slane %v1915, 4
  %v1918 = vshll.u32 %v1793, 16
  %v1920 = vrot.slane %v1918, 5
  %v1921 = vsel %vm197, %v1916, %v1920
  %v1923 = vshrl.u32 %v1794, 16
  %v1925 = vrot.slane %v1923, 4
  %v1926 = vshll.u32 %v1794, 16
  %v1928 = vrot.slane %v1926, 5
  %v1929 = vor.u32 %v1925, %v1928
  %v1930 = vrot.slane %v1929, 4
  %v1932 = vshll.u32 %v1795, 16
  %v1934 = vrot.slane %v1932, 5
  %v1935 = vsel %vm197, %v1930, %v1934
  %v1937 = vshrl.u32 %v1796, 16
  %v1939 = vrot.slane %v1937, 4
  %v1940 = vshll.u32 %v1796, 16
  %v1942 = vrot.slane %v1940, 5
  %v1943 = vor.u32 %v1939, %v1942
  %v1944 = vrot.slane %v1943, 4
  %v1946 = vshll.u32 %v1797, 16
  %v1948 = vrot.slane %v1946, 5
  %v1949 = vsel %vm197, %v1944, %v1948
  %v1951 = vshrl.u32 %v1798, 16
  %v1953 = vrot.slane %v1951, 4
  %v1954 = vshll.u32 %v1798, 16
  %v1956 = vrot.slane %v1954, 5
  %v1957 = vor.u32 %v1953, %v1956
  %v1958 = vrot.slane %v1957, 4
  %v1960 = vshll.u32 %v1799, 16
  %v1962 = vrot.slane %v1960, 5
  %v1963 = vsel %vm197, %v1958, %v1962
  %v1965 = vshrl.u32 %v1800, 16
  %v1967 = vrot.slane %v1965, 4
  %v1968 = vshll.u32 %v1800, 16
  %v1970 = vrot.slane %v1968, 5
  %v1971 = vor.u32 %v1967, %v1970
  %v1972 = vrot.slane %v1971, 4
  %v1974 = vshll.u32 %v1801, 16
  %v1976 = vrot.slane %v1974, 5
  %v1977 = vsel %vm197, %v1972, %v1976
  %v1979 = vshrl.u32 %v1802, 16
  %v1981 = vrot.slane %v1979, 4
  %v1982 = vshll.u32 %v1802, 16
  %v1984 = vrot.slane %v1982, 5
  %v1985 = vor.u32 %v1981, %v1984
  %v1986 = vrot.slane %v1985, 4
  %v1988 = vshll.u32 %v1803, 16
  %v1990 = vrot.slane %v1988, 5
  %v1991 = vsel %vm197, %v1986, %v1990
  %v1993 = vshrl.u32 %v1804, 16
  %v1995 = vrot.slane %v1993, 4
  %v1996 = vshll.u32 %v1804, 16
  %v1998 = vrot.slane %v1996, 5
  %v1999 = vor.u32 %v1995, %v1998
  %v2000 = vrot.slane %v1999, 4
  %v2002 = vshll.u32 %v1805, 16
  %v2004 = vrot.slane %v2002, 5
  %v2005 = vsel %vm197, %v2000, %v2004
  %v2007 = vshrl.u32 %v1806, 16
  %v2009 = vrot.slane %v2007, 4
  %v2010 = vshll.u32 %v1806, 16
  %v2012 = vrot.slane %v2010, 5
  %v2013 = vor.u32 %v2009, %v2012
  %v2014 = vrot.slane %v2013, 4
  %v2016 = vshll.u32 %v1807, 16
  %v2018 = vrot.slane %v2016, 5
  %v2019 = vsel %vm197, %v2014, %v2018
  %v2021 = vshrl.u32 %v1808, 16
  %v2023 = vrot.slane %v2021, 4
  %v2024 = vshll.u32 %v1808, 16
  %v2026 = vrot.slane %v2024, 5
  %v2027 = vor.u32 %v2023, %v2026
  %v2028 = vrot.slane %v2027, 4
  %v2030 = vshll.u32 %v1809, 16
  %v2032 = vrot.slane %v2030, 5
  %v2033 = vsel %vm197, %v2028, %v2032
  %2034 = vrot.lane.b32.xlu0 %v1823, 8
  %v2035 = vpop.permute.xlu0 %2034
  %2036 = vrot.lane.b32.xlu0 %v1837, 8
  %v2037 = vpop.permute.xlu0 %2036
  %2038 = vrot.lane.b32.xlu0 %v1851, 8
  %v2039 = vpop.permute.xlu0 %2038
  %2040 = vrot.lane.b32.xlu0 %v1865, 8
  %v2041 = vpop.permute.xlu0 %2040
  %2042 = vrot.lane.b32.xlu0 %v1879, 8
  %v2043 = vpop.permute.xlu0 %2042
  %2044 = vrot.lane.b32.xlu0 %v1893, 8
  %v2045 = vpop.permute.xlu0 %2044
  %2046 = vrot.lane.b32.xlu0 %v1907, 8
  %v2047 = vpop.permute.xlu0 %2046
  %2048 = vrot.lane.b32.xlu0 %v1921, 8
  %v2049 = vpop.permute.xlu0 %2048
  %2050 = vrot.lane.b32.xlu0 %v1935, 8
  %v2051 = vpop.permute.xlu0 %2050
  %2052 = vrot.lane.b32.xlu0 %v1949, 8
  %v2053 = vpop.permute.xlu0 %2052
  %2054 = vrot.lane.b32.xlu0 %v1963, 8
  %v2055 = vpop.permute.xlu0 %2054
  %2056 = vrot.lane.b32.xlu0 %v1977, 8
  %v2057 = vpop.permute.xlu0 %2056
  %2058 = vrot.lane.b32.xlu0 %v1991, 8
  %v2059 = vpop.permute.xlu0 %2058
  %2060 = vrot.lane.b32.xlu0 %v2005, 8
  %v2061 = vpop.permute.xlu0 %2060
  %2062 = vrot.lane.b32.xlu0 %v2019, 8
  %v2063 = vpop.permute.xlu0 %2062
  %2064 = vrot.lane.b32.xlu0 %v2033, 8
  %v2065 = vpop.permute.xlu0 %2064
  %2082 = vst.msk [vmem:[#allocation2] sm:$0xf] %vm146, %v2035
  %2083 = vst.msk [vmem:[#allocation2 + $0x4] sm:$0xf] %vm146, %v2037
  %2084 = vst.msk [vmem:[#allocation2 + $0x8] sm:$0xf] %vm146, %v2039
  %2085 = vst.msk [vmem:[#allocation2 + $0xc] sm:$0xf] %vm146, %v2041
  %2086 = vst.msk [vmem:[#allocation2 + $0x10] sm:$0xf] %vm146, %v2043
  %2087 = vst.msk [vmem:[#allocation2 + $0x14] sm:$0xf] %vm146, %v2045
  %2088 = vst.msk [vmem:[#allocation2 + $0x18] sm:$0xf] %vm146, %v2047
  %2089 = vst.msk [vmem:[#allocation2 + $0x1c] sm:$0xf] %vm146, %v2049
  %2090 = vst.msk [vmem:[#allocation2 + $0x20] sm:$0xf] %vm146, %v2051
  %2091 = vst.msk [vmem:[#allocation2 + $0x24] sm:$0xf] %vm146, %v2053
  %2092 = vst.msk [vmem:[#allocation2 + $0x28] sm:$0xf] %vm146, %v2055
  %2093 = vst.msk [vmem:[#allocation2 + $0x2c] sm:$0xf] %vm146, %v2057
  %2094 = vst.msk [vmem:[#allocation2 + $0x30] sm:$0xf] %vm146, %v2059
  %2095 = vst.msk [vmem:[#allocation2 + $0x34] sm:$0xf] %vm146, %v2061
  %2096 = vst.msk [vmem:[#allocation2 + $0x38] sm:$0xf] %vm146, %v2063
  %2097 = vst.msk [vmem:[#allocation2 + $0x3c] sm:$0xf] %vm146, %v2065
  %v2098 = vld [vmem:[%s65] sm:$0xf]
  %v2099 = vld [vmem:[%s65 + $0x4] sm:$0x1]
  %v2100 = vld [vmem:[%s65 + $0x8] sm:$0xf]
  %v2101 = vld [vmem:[%s65 + $0xc] sm:$0x1]
  %v2102 = vld [vmem:[%s65 + $0x10] sm:$0xf]
  %v2103 = vld [vmem:[%s65 + $0x14] sm:$0x1]
  %v2104 = vld [vmem:[%s65 + $0x18] sm:$0xf]
  %v2105 = vld [vmem:[%s65 + $0x1c] sm:$0x1]
  %v2106 = vld [vmem:[%s65 + $0x20] sm:$0xf]
  %v2107 = vld [vmem:[%s65 + $0x24] sm:$0x1]
  %v2108 = vld [vmem:[%s65 + $0x28] sm:$0xf]
  %v2109 = vld [vmem:[%s65 + $0x2c] sm:$0x1]
  %v2110 = vld [vmem:[%s65 + $0x30] sm:$0xf]
  %v2111 = vld [vmem:[%s65 + $0x34] sm:$0x1]
  %v2112 = vld [vmem:[%s65 + $0x38] sm:$0xf]
  %v2113 = vld [vmem:[%s65 + $0x3c] sm:$0x1]
  %v2114 = vld [vmem:[%s65 + $0x48] sm:$0xf]
  %v2115 = vld [vmem:[%s65 + $0x4c] sm:$0x1]
  %v2116 = vld [vmem:[%s65 + $0x50] sm:$0xf]
  %v2117 = vld [vmem:[%s65 + $0x54] sm:$0x1]
  %v2118 = vld [vmem:[%s65 + $0x58] sm:$0xf]
  %v2119 = vld [vmem:[%s65 + $0x5c] sm:$0x1]
  %v2120 = vld [vmem:[%s65 + $0x60] sm:$0xf]
  %v2121 = vld [vmem:[%s65 + $0x64] sm:$0x1]
  %v2122 = vld [vmem:[%s65 + $0x68] sm:$0xf]
  %v2123 = vld [vmem:[%s65 + $0x6c] sm:$0x1]
  %v2124 = vld [vmem:[%s65 + $0x70] sm:$0xf]
  %v2125 = vld [vmem:[%s65 + $0x74] sm:$0x1]
  %v2126 = vld [vmem:[%s65 + $0x78] sm:$0xf]
  %v2127 = vld [vmem:[%s65 + $0x7c] sm:$0x1]
  %v2128 = vld [vmem:[%s65 + $0x80] sm:$0xf]
  %v2129 = vld [vmem:[%s65 + $0x84] sm:$0x1]
  %v2131 = vshrl.u32 %v2098, 16
  %v2133 = vrot.slane %v2131, 4
  %v2134 = vshll.u32 %v2098, 16
  %v2136 = vrot.slane %v2134, 5
  %v2137 = vor.u32 %v2133, %v2136
  %v2138 = vrot.slane %v2137, 4
  %v2140 = vshll.u32 %v2099, 16
  %v2142 = vrot.slane %v2140, 5
  %v2143 = vsel %vm197, %v2138, %v2142
  %v2145 = vshrl.u32 %v2100, 16
  %v2147 = vrot.slane %v2145, 4
  %v2148 = vshll.u32 %v2100, 16
  %v2150 = vrot.slane %v2148, 5
  %v2151 = vor.u32 %v2147, %v2150
  %v2152 = vrot.slane %v2151, 4
  %v2154 = vshll.u32 %v2101, 16
  %v2156 = vrot.slane %v2154, 5
  %v2157 = vsel %vm197, %v2152, %v2156
  %v2159 = vshrl.u32 %v2102, 16
  %v2161 = vrot.slane %v2159, 4
  %v2162 = vshll.u32 %v2102, 16
  %v2164 = vrot.slane %v2162, 5
  %v2165 = vor.u32 %v2161, %v2164
  %v2166 = vrot.slane %v2165, 4
  %v2168 = vshll.u32 %v2103, 16
  %v2170 = vrot.slane %v2168, 5
  %v2171 = vsel %vm197, %v2166, %v2170
  %v2173 = vshrl.u32 %v2104, 16
  %v2175 = vrot.slane %v2173, 4
  %v2176 = vshll.u32 %v2104, 16
  %v2178 = vrot.slane %v2176, 5
  %v2179 = vor.u32 %v2175, %v2178
  %v2180 = vrot.slane %v2179, 4
  %v2182 = vshll.u32 %v2105, 16
  %v2184 = vrot.slane %v2182, 5
  %v2185 = vsel %vm197, %v2180, %v2184
  %v2187 = vshrl.u32 %v2106, 16
  %v2189 = vrot.slane %v2187, 4
  %v2190 = vshll.u32 %v2106, 16
  %v2192 = vrot.slane %v2190, 5
  %v2193 = vor.u32 %v2189, %v2192
  %v2194 = vrot.slane %v2193, 4
  %v2196 = vshll.u32 %v2107, 16
  %v2198 = vrot.slane %v2196, 5
  %v2199 = vsel %vm197, %v2194, %v2198
  %v2201 = vshrl.u32 %v2108, 16
  %v2203 = vrot.slane %v2201, 4
  %v2204 = vshll.u32 %v2108, 16
  %v2206 = vrot.slane %v2204, 5
  %v2207 = vor.u32 %v2203, %v2206
  %v2208 = vrot.slane %v2207, 4
  %v2210 = vshll.u32 %v2109, 16
  %v2212 = vrot.slane %v2210, 5
  %v2213 = vsel %vm197, %v2208, %v2212
  %v2215 = vshrl.u32 %v2110, 16
  %v2217 = vrot.slane %v2215, 4
  %v2218 = vshll.u32 %v2110, 16
  %v2220 = vrot.slane %v2218, 5
  %v2221 = vor.u32 %v2217, %v2220
  %v2222 = vrot.slane %v2221, 4
  %v2224 = vshll.u32 %v2111, 16
  %v2226 = vrot.slane %v2224, 5
  %v2227 = vsel %vm197, %v2222, %v2226
  %v2229 = vshrl.u32 %v2112, 16
  %v2231 = vrot.slane %v2229, 4
  %v2232 = vshll.u32 %v2112, 16
  %v2234 = vrot.slane %v2232, 5
  %v2235 = vor.u32 %v2231, %v2234
  %v2236 = vrot.slane %v2235, 4
  %v2238 = vshll.u32 %v2113, 16
  %v2240 = vrot.slane %v2238, 5
  %v2241 = vsel %vm197, %v2236, %v2240
  %v2243 = vshrl.u32 %v2114, 16
  %v2245 = vrot.slane %v2243, 4
  %v2246 = vshll.u32 %v2114, 16
  %v2248 = vrot.slane %v2246, 5
  %v2249 = vor.u32 %v2245, %v2248
  %v2250 = vrot.slane %v2249, 4
  %v2252 = vshll.u32 %v2115, 16
  %v2254 = vrot.slane %v2252, 5
  %v2255 = vsel %vm197, %v2250, %v2254
  %v2257 = vshrl.u32 %v2116, 16
  %v2259 = vrot.slane %v2257, 4
  %v2260 = vshll.u32 %v2116, 16
  %v2262 = vrot.slane %v2260, 5
  %v2263 = vor.u32 %v2259, %v2262
  %v2264 = vrot.slane %v2263, 4
  %v2266 = vshll.u32 %v2117, 16
  %v2268 = vrot.slane %v2266, 5
  %v2269 = vsel %vm197, %v2264, %v2268
  %v2271 = vshrl.u32 %v2118, 16
  %v2273 = vrot.slane %v2271, 4
  %v2274 = vshll.u32 %v2118, 16
  %v2276 = vrot.slane %v2274, 5
  %v2277 = vor.u32 %v2273, %v2276
  %v2278 = vrot.slane %v2277, 4
  %v2280 = vshll.u32 %v2119, 16
  %v2282 = vrot.slane %v2280, 5
  %v2283 = vsel %vm197, %v2278, %v2282
  %v2285 = vshrl.u32 %v2120, 16
  %v2287 = vrot.slane %v2285, 4
  %v2288 = vshll.u32 %v2120, 16
  %v2290 = vrot.slane %v2288, 5
  %v2291 = vor.u32 %v2287, %v2290
  %v2292 = vrot.slane %v2291, 4
  %v2294 = vshll.u32 %v2121, 16
  %v2296 = vrot.slane %v2294, 5
  %v2297 = vsel %vm197, %v2292, %v2296
  %v2299 = vshrl.u32 %v2122, 16
  %v2301 = vrot.slane %v2299, 4
  %v2302 = vshll.u32 %v2122, 16
  %v2304 = vrot.slane %v2302, 5
  %v2305 = vor.u32 %v2301, %v2304
  %v2306 = vrot.slane %v2305, 4
  %v2308 = vshll.u32 %v2123, 16
  %v2310 = vrot.slane %v2308, 5
  %v2311 = vsel %vm197, %v2306, %v2310
  %v2313 = vshrl.u32 %v2124, 16
  %v2315 = vrot.slane %v2313, 4
  %v2316 = vshll.u32 %v2124, 16
  %v2318 = vrot.slane %v2316, 5
  %v2319 = vor.u32 %v2315, %v2318
  %v2320 = vrot.slane %v2319, 4
  %v2322 = vshll.u32 %v2125, 16
  %v2324 = vrot.slane %v2322, 5
  %v2325 = vsel %vm197, %v2320, %v2324
  %v2327 = vshrl.u32 %v2126, 16
  %v2329 = vrot.slane %v2327, 4
  %v2330 = vshll.u32 %v2126, 16
  %v2332 = vrot.slane %v2330, 5
  %v2333 = vor.u32 %v2329, %v2332
  %v2334 = vrot.slane %v2333, 4
  %v2336 = vshll.u32 %v2127, 16
  %v2338 = vrot.slane %v2336, 5
  %v2339 = vsel %vm197, %v2334, %v2338
  %v2341 = vshrl.u32 %v2128, 16
  %v2343 = vrot.slane %v2341, 4
  %v2344 = vshll.u32 %v2128, 16
  %v2346 = vrot.slane %v2344, 5
  %v2347 = vor.u32 %v2343, %v2346
  %v2348 = vrot.slane %v2347, 4
  %v2350 = vshll.u32 %v2129, 16
  %v2352 = vrot.slane %v2350, 5
  %v2353 = vsel %vm197, %v2348, %v2352
  %2354 = vrot.lane.b32.xlu0 %v2143, 16
  %v2355 = vpop.permute.xlu0 %2354
  %2356 = vrot.lane.b32.xlu0 %v2157, 16
  %v2357 = vpop.permute.xlu0 %2356
  %2358 = vrot.lane.b32.xlu0 %v2171, 16
  %v2359 = vpop.permute.xlu0 %2358
  %2360 = vrot.lane.b32.xlu0 %v2185, 16
  %v2361 = vpop.permute.xlu0 %2360
  %2362 = vrot.lane.b32.xlu0 %v2199, 16
  %v2363 = vpop.permute.xlu0 %2362
  %2364 = vrot.lane.b32.xlu0 %v2213, 16
  %v2365 = vpop.permute.xlu0 %2364
  %2366 = vrot.lane.b32.xlu0 %v2227, 16
  %v2367 = vpop.permute.xlu0 %2366
  %2368 = vrot.lane.b32.xlu0 %v2241, 16
  %v2369 = vpop.permute.xlu0 %2368
  %2370 = vrot.lane.b32.xlu0 %v2255, 16
  %v2371 = vpop.permute.xlu0 %2370
  %2372 = vrot.lane.b32.xlu0 %v2269, 16
  %v2373 = vpop.permute.xlu0 %2372
  %2374 = vrot.lane.b32.xlu0 %v2283, 16
  %v2375 = vpop.permute.xlu0 %2374
  %2376 = vrot.lane.b32.xlu0 %v2297, 16
  %v2377 = vpop.permute.xlu0 %2376
  %2378 = vrot.lane.b32.xlu0 %v2311, 16
  %v2379 = vpop.permute.xlu0 %2378
  %2380 = vrot.lane.b32.xlu0 %v2325, 16
  %v2381 = vpop.permute.xlu0 %2380
  %2382 = vrot.lane.b32.xlu0 %v2339, 16
  %v2383 = vpop.permute.xlu0 %2382
  %2384 = vrot.lane.b32.xlu0 %v2353, 16
  %v2385 = vpop.permute.xlu0 %2384
  %2402 = vst.msk [vmem:[#allocation2] sm:$0xf] %vm470, %v2355
  %2403 = vst.msk [vmem:[#allocation2 + $0x4] sm:$0xf] %vm470, %v2357
  %2404 = vst.msk [vmem:[#allocation2 + $0x8] sm:$0xf] %vm470, %v2359
  %2405 = vst.msk [vmem:[#allocation2 + $0xc] sm:$0xf] %vm470, %v2361
  %2406 = vst.msk [vmem:[#allocation2 + $0x10] sm:$0xf] %vm470, %v2363
  %2407 = vst.msk [vmem:[#allocation2 + $0x14] sm:$0xf] %vm470, %v2365
  %2408 = vst.msk [vmem:[#allocation2 + $0x18] sm:$0xf] %vm470, %v2367
  %2409 = vst.msk [vmem:[#allocation2 + $0x1c] sm:$0xf] %vm470, %v2369
  %2410 = vst.msk [vmem:[#allocation2 + $0x20] sm:$0xf] %vm470, %v2371
  %2411 = vst.msk [vmem:[#allocation2 + $0x24] sm:$0xf] %vm470, %v2373
  %2412 = vst.msk [vmem:[#allocation2 + $0x28] sm:$0xf] %vm470, %v2375
  %2413 = vst.msk [vmem:[#allocation2 + $0x2c] sm:$0xf] %vm470, %v2377
  %2414 = vst.msk [vmem:[#allocation2 + $0x30] sm:$0xf] %vm470, %v2379
  %2415 = vst.msk [vmem:[#allocation2 + $0x34] sm:$0xf] %vm470, %v2381
  %2416 = vst.msk [vmem:[#allocation2 + $0x38] sm:$0xf] %vm470, %v2383
  %2417 = vst.msk [vmem:[#allocation2 + $0x3c] sm:$0xf] %vm470, %v2385
  %v2418 = vld [vmem:[%s585] sm:$0xf]
  %v2419 = vld [vmem:[%s585 + $0x8] sm:$0xf]
  %v2420 = vld [vmem:[%s585 + $0x10] sm:$0xf]
  %v2421 = vld [vmem:[%s585 + $0x18] sm:$0xf]
  %v2422 = vld [vmem:[%s585 + $0x20] sm:$0xf]
  %v2423 = vld [vmem:[%s585 + $0x28] sm:$0xf]
  %v2424 = vld [vmem:[%s585 + $0x30] sm:$0xf]
  %v2425 = vld [vmem:[%s585 + $0x38] sm:$0xf]
  %v2426 = vld [vmem:[%s585 + $0x48] sm:$0xf]
  %v2427 = vld [vmem:[%s585 + $0x50] sm:$0xf]
  %v2428 = vld [vmem:[%s585 + $0x58] sm:$0xf]
  %v2429 = vld [vmem:[%s585 + $0x60] sm:$0xf]
  %v2430 = vld [vmem:[%s585 + $0x68] sm:$0xf]
  %v2431 = vld [vmem:[%s585 + $0x70] sm:$0xf]
  %v2432 = vld [vmem:[%s585 + $0x78] sm:$0xf]
  %v2433 = vld [vmem:[%s585 + $0x80] sm:$0xf]
  %2450 = vrot.lane.b32.xlu0 %v2418, 24
  %v2451 = vpop.permute.xlu0 %2450
  %2452 = vrot.lane.b32.xlu0 %v2419, 24
  %v2453 = vpop.permute.xlu0 %2452
  %2454 = vrot.lane.b32.xlu0 %v2420, 24
  %v2455 = vpop.permute.xlu0 %2454
  %2456 = vrot.lane.b32.xlu0 %v2421, 24
  %v2457 = vpop.permute.xlu0 %2456
  %2458 = vrot.lane.b32.xlu0 %v2422, 24
  %v2459 = vpop.permute.xlu0 %2458
  %2460 = vrot.lane.b32.xlu0 %v2423, 24
  %v2461 = vpop.permute.xlu0 %2460
  %2462 = vrot.lane.b32.xlu0 %v2424, 24
  %v2463 = vpop.permute.xlu0 %2462
  %2464 = vrot.lane.b32.xlu0 %v2425, 24
  %v2465 = vpop.permute.xlu0 %2464
  %2466 = vrot.lane.b32.xlu0 %v2426, 24
  %v2467 = vpop.permute.xlu0 %2466
  %2468 = vrot.lane.b32.xlu0 %v2427, 24
  %v2469 = vpop.permute.xlu0 %2468
  %2470 = vrot.lane.b32.xlu0 %v2428, 24
  %v2471 = vpop.permute.xlu0 %2470
  %2472 = vrot.lane.b32.xlu0 %v2429, 24
  %v2473 = vpop.permute.xlu0 %2472
  %2474 = vrot.lane.b32.xlu0 %v2430, 24
  %v2475 = vpop.permute.xlu0 %2474
  %2476 = vrot.lane.b32.xlu0 %v2431, 24
  %v2477 = vpop.permute.xlu0 %2476
  %2478 = vrot.lane.b32.xlu0 %v2432, 24
  %v2479 = vpop.permute.xlu0 %2478
  %2480 = vrot.lane.b32.xlu0 %v2433, 24
  %v2481 = vpop.permute.xlu0 %2480
  %2498 = vst.msk [vmem:[#allocation2] sm:$0xf] %vm568, %v2451
  %2499 = vst.msk [vmem:[#allocation2 + $0x4] sm:$0xf] %vm568, %v2453
  %2500 = vst.msk [vmem:[#allocation2 + $0x8] sm:$0xf] %vm568, %v2455
  %2501 = vst.msk [vmem:[#allocation2 + $0xc] sm:$0xf] %vm568, %v2457
  %2502 = vst.msk [vmem:[#allocation2 + $0x10] sm:$0xf] %vm568, %v2459
  %2503 = vst.msk [vmem:[#allocation2 + $0x14] sm:$0xf] %vm568, %v2461
  %2504 = vst.msk [vmem:[#allocation2 + $0x18] sm:$0xf] %vm568, %v2463
  %2505 = vst.msk [vmem:[#allocation2 + $0x1c] sm:$0xf] %vm568, %v2465
  %2506 = vst.msk [vmem:[#allocation2 + $0x20] sm:$0xf] %vm568, %v2467
  %2507 = vst.msk [vmem:[#allocation2 + $0x24] sm:$0xf] %vm568, %v2469
  %2508 = vst.msk [vmem:[#allocation2 + $0x28] sm:$0xf] %vm568, %v2471
  %2509 = vst.msk [vmem:[#allocation2 + $0x2c] sm:$0xf] %vm568, %v2473
  %2510 = vst.msk [vmem:[#allocation2 + $0x30] sm:$0xf] %vm568, %v2475
  %2511 = vst.msk [vmem:[#allocation2 + $0x34] sm:$0xf] %vm568, %v2477
  %2512 = vst.msk [vmem:[#allocation2 + $0x38] sm:$0xf] %vm568, %v2479
  %2513 = vst.msk [vmem:[#allocation2 + $0x3c] sm:$0xf] %vm568, %v2481
  %v2514 = vld [vmem:[%s487] sm:$0xf]
  %v2515 = vld [vmem:[%s487 + $0x4] sm:$0x1]
  %v2516 = vld [vmem:[%s487 + $0x8] sm:$0xf]
  %v2517 = vld [vmem:[%s487 + $0xc] sm:$0x1]
  %v2518 = vld [vmem:[%s487 + $0x10] sm:$0xf]
  %v2519 = vld [vmem:[%s487 + $0x14] sm:$0x1]
  %v2520 = vld [vmem:[%s487 + $0x18] sm:$0xf]
  %v2521 = vld [vmem:[%s487 + $0x1c] sm:$0x1]
  %v2522 = vld [vmem:[%s487 + $0x20] sm:$0xf]
  %v2523 = vld [vmem:[%s487 + $0x24] sm:$0x1]
  %v2524 = vld [vmem:[%s487 + $0x28] sm:$0xf]
  %v2525 = vld [vmem:[%s487 + $0x2c] sm:$0x1]
  %v2526 = vld [vmem:[%s487 + $0x30] sm:$0xf]
  %v2527 = vld [vmem:[%s487 + $0x34] sm:$0x1]
  %v2528 = vld [vmem:[%s487 + $0x38] sm:$0xf]
  %v2529 = vld [vmem:[%s487 + $0x3c] sm:$0x1]
  %v2530 = vld [vmem:[%s487 + $0x48] sm:$0xf]
  %v2531 = vld [vmem:[%s487 + $0x4c] sm:$0x1]
  %v2532 = vld [vmem:[%s487 + $0x50] sm:$0xf]
  %v2533 = vld [vmem:[%s487 + $0x54] sm:$0x1]
  %v2534 = vld [vmem:[%s487 + $0x58] sm:$0xf]
  %v2535 = vld [vmem:[%s487 + $0x5c] sm:$0x1]
  %v2536 = vld [vmem:[%s487 + $0x60] sm:$0xf]
  %v2537 = vld [vmem:[%s487 + $0x64] sm:$0x1]
  %v2538 = vld [vmem:[%s487 + $0x68] sm:$0xf]
  %v2539 = vld [vmem:[%s487 + $0x6c] sm:$0x1]
  %v2540 = vld [vmem:[%s487 + $0x70] sm:$0xf]
  %v2541 = vld [vmem:[%s487 + $0x74] sm:$0x1]
  %v2542 = vld [vmem:[%s487 + $0x78] sm:$0xf]
  %v2543 = vld [vmem:[%s487 + $0x7c] sm:$0x1]
  %v2544 = vld [vmem:[%s487 + $0x80] sm:$0xf]
  %v2545 = vld [vmem:[%s487 + $0x84] sm:$0x1]
  %v2547 = vshrl.u32 %v2514, 16
  %v2549 = vrot.slane %v2547, 4
  %v2550 = vshll.u32 %v2514, 16
  %v2552 = vrot.slane %v2550, 5
  %v2553 = vor.u32 %v2549, %v2552
  %v2554 = vrot.slane %v2553, 4
  %v2556 = vshll.u32 %v2515, 16
  %v2558 = vrot.slane %v2556, 5
  %v2559 = vsel %vm197, %v2554, %v2558
  %v2561 = vshrl.u32 %v2516, 16
  %v2563 = vrot.slane %v2561, 4
  %v2564 = vshll.u32 %v2516, 16
  %v2566 = vrot.slane %v2564, 5
  %v2567 = vor.u32 %v2563, %v2566
  %v2568 = vrot.slane %v2567, 4
  %v2570 = vshll.u32 %v2517, 16
  %v2572 = vrot.slane %v2570, 5
  %v2573 = vsel %vm197, %v2568, %v2572
  %v2575 = vshrl.u32 %v2518, 16
  %v2577 = vrot.slane %v2575, 4
  %v2578 = vshll.u32 %v2518, 16
  %v2580 = vrot.slane %v2578, 5
  %v2581 = vor.u32 %v2577, %v2580
  %v2582 = vrot.slane %v2581, 4
  %v2584 = vshll.u32 %v2519, 16
  %v2586 = vrot.slane %v2584, 5
  %v2587 = vsel %vm197, %v2582, %v2586
  %v2589 = vshrl.u32 %v2520, 16
  %v2591 = vrot.slane %v2589, 4
  %v2592 = vshll.u32 %v2520, 16
  %v2594 = vrot.slane %v2592, 5
  %v2595 = vor.u32 %v2591, %v2594
  %v2596 = vrot.slane %v2595, 4
  %v2598 = vshll.u32 %v2521, 16
  %v2600 = vrot.slane %v2598, 5
  %v2601 = vsel %vm197, %v2596, %v2600
  %v2603 = vshrl.u32 %v2522, 16
  %v2605 = vrot.slane %v2603, 4
  %v2606 = vshll.u32 %v2522, 16
  %v2608 = vrot.slane %v2606, 5
  %v2609 = vor.u32 %v2605, %v2608
  %v2610 = vrot.slane %v2609, 4
  %v2612 = vshll.u32 %v2523, 16
  %v2614 = vrot.slane %v2612, 5
  %v2615 = vsel %vm197, %v2610, %v2614
  %v2617 = vshrl.u32 %v2524, 16
  %v2619 = vrot.slane %v2617, 4
  %v2620 = vshll.u32 %v2524, 16
  %v2622 = vrot.slane %v2620, 5
  %v2623 = vor.u32 %v2619, %v2622
  %v2624 = vrot.slane %v2623, 4
  %v2626 = vshll.u32 %v2525, 16
  %v2628 = vrot.slane %v2626, 5
  %v2629 = vsel %vm197, %v2624, %v2628
  %v2631 = vshrl.u32 %v2526, 16
  %v2633 = vrot.slane %v2631, 4
  %v2634 = vshll.u32 %v2526, 16
  %v2636 = vrot.slane %v2634, 5
  %v2637 = vor.u32 %v2633, %v2636
  %v2638 = vrot.slane %v2637, 4
  %v2640 = vshll.u32 %v2527, 16
  %v2642 = vrot.slane %v2640, 5
  %v2643 = vsel %vm197, %v2638, %v2642
  %v2645 = vshrl.u32 %v2528, 16
  %v2647 = vrot.slane %v2645, 4
  %v2648 = vshll.u32 %v2528, 16
  %v2650 = vrot.slane %v2648, 5
  %v2651 = vor.u32 %v2647, %v2650
  %v2652 = vrot.slane %v2651, 4
  %v2654 = vshll.u32 %v2529, 16
  %v2656 = vrot.slane %v2654, 5
  %v2657 = vsel %vm197, %v2652, %v2656
  %v2659 = vshrl.u32 %v2530, 16
  %v2661 = vrot.slane %v2659, 4
  %v2662 = vshll.u32 %v2530, 16
  %v2664 = vrot.slane %v2662, 5
  %v2665 = vor.u32 %v2661, %v2664
  %v2666 = vrot.slane %v2665, 4
  %v2668 = vshll.u32 %v2531, 16
  %v2670 = vrot.slane %v2668, 5
  %v2671 = vsel %vm197, %v2666, %v2670
  %v2673 = vshrl.u32 %v2532, 16
  %v2675 = vrot.slane %v2673, 4
  %v2676 = vshll.u32 %v2532, 16
  %v2678 = vrot.slane %v2676, 5
  %v2679 = vor.u32 %v2675, %v2678
  %v2680 = vrot.slane %v2679, 4
  %v2682 = vshll.u32 %v2533, 16
  %v2684 = vrot.slane %v2682, 5
  %v2685 = vsel %vm197, %v2680, %v2684
  %v2687 = vshrl.u32 %v2534, 16
  %v2689 = vrot.slane %v2687, 4
  %v2690 = vshll.u32 %v2534, 16
  %v2692 = vrot.slane %v2690, 5
  %v2693 = vor.u32 %v2689, %v2692
  %v2694 = vrot.slane %v2693, 4
  %v2696 = vshll.u32 %v2535, 16
  %v2698 = vrot.slane %v2696, 5
  %v2699 = vsel %vm197, %v2694, %v2698
  %v2701 = vshrl.u32 %v2536, 16
  %v2703 = vrot.slane %v2701, 4
  %v2704 = vshll.u32 %v2536, 16
  %v2706 = vrot.slane %v2704, 5
  %v2707 = vor.u32 %v2703, %v2706
  %v2708 = vrot.slane %v2707, 4
  %v2710 = vshll.u32 %v2537, 16
  %v2712 = vrot.slane %v2710, 5
  %v2713 = vsel %vm197, %v2708, %v2712
  %v2715 = vshrl.u32 %v2538, 16
  %v2717 = vrot.slane %v2715, 4
  %v2718 = vshll.u32 %v2538, 16
  %v2720 = vrot.slane %v2718, 5
  %v2721 = vor.u32 %v2717, %v2720
  %v2722 = vrot.slane %v2721, 4
  %v2724 = vshll.u32 %v2539, 16
  %v2726 = vrot.slane %v2724, 5
  %v2727 = vsel %vm197, %v2722, %v2726
  %v2729 = vshrl.u32 %v2540, 16
  %v2731 = vrot.slane %v2729, 4
  %v2732 = vshll.u32 %v2540, 16
  %v2734 = vrot.slane %v2732, 5
  %v2735 = vor.u32 %v2731, %v2734
  %v2736 = vrot.slane %v2735, 4
  %v2738 = vshll.u32 %v2541, 16
  %v2740 = vrot.slane %v2738, 5
  %v2741 = vsel %vm197, %v2736, %v2740
  %v2743 = vshrl.u32 %v2542, 16
  %v2745 = vrot.slane %v2743, 4
  %v2746 = vshll.u32 %v2542, 16
  %v2748 = vrot.slane %v2746, 5
  %v2749 = vor.u32 %v2745, %v2748
  %v2750 = vrot.slane %v2749, 4
  %v2752 = vshll.u32 %v2543, 16
  %v2754 = vrot.slane %v2752, 5
  %v2755 = vsel %vm197, %v2750, %v2754
  %v2757 = vshrl.u32 %v2544, 16
  %v2759 = vrot.slane %v2757, 4
  %v2760 = vshll.u32 %v2544, 16
  %v2762 = vrot.slane %v2760, 5
  %v2763 = vor.u32 %v2759, %v2762
  %v2764 = vrot.slane %v2763, 4
  %v2766 = vshll.u32 %v2545, 16
  %v2768 = vrot.slane %v2766, 5
  %v2769 = vsel %vm197, %v2764, %v2768
  %2770 = vrot.lane.b32.xlu0 %v2559, 32
  %v2771 = vpop.permute.xlu0 %2770
  %2772 = vrot.lane.b32.xlu0 %v2573, 32
  %v2773 = vpop.permute.xlu0 %2772
  %2774 = vrot.lane.b32.xlu0 %v2587, 32
  %v2775 = vpop.permute.xlu0 %2774
  %2776 = vrot.lane.b32.xlu0 %v2601, 32
  %v2777 = vpop.permute.xlu0 %2776
  %2778 = vrot.lane.b32.xlu0 %v2615, 32
  %v2779 = vpop.permute.xlu0 %2778
  %2780 = vrot.lane.b32.xlu0 %v2629, 32
  %v2781 = vpop.permute.xlu0 %2780
  %2782 = vrot.lane.b32.xlu0 %v2643, 32
  %v2783 = vpop.permute.xlu0 %2782
  %2784 = vrot.lane.b32.xlu0 %v2657, 32
  %v2785 = vpop.permute.xlu0 %2784
  %2786 = vrot.lane.b32.xlu0 %v2671, 32
  %v2787 = vpop.permute.xlu0 %2786
  %2788 = vrot.lane.b32.xlu0 %v2685, 32
  %v2789 = vpop.permute.xlu0 %2788
  %2790 = vrot.lane.b32.xlu0 %v2699, 32
  %v2791 = vpop.permute.xlu0 %2790
  %2792 = vrot.lane.b32.xlu0 %v2713, 32
  %v2793 = vpop.permute.xlu0 %2792
  %2794 = vrot.lane.b32.xlu0 %v2727, 32
  %v2795 = vpop.permute.xlu0 %2794
  %2796 = vrot.lane.b32.xlu0 %v2741, 32
  %v2797 = vpop.permute.xlu0 %2796
  %2798 = vrot.lane.b32.xlu0 %v2755, 32
  %v2799 = vpop.permute.xlu0 %2798
  %2800 = vrot.lane.b32.xlu0 %v2769, 32
  %v2801 = vpop.permute.xlu0 %2800
  %2818 = vst.msk [vmem:[#allocation2] sm:$0xf] %vm666, %v2771
  %2819 = vst.msk [vmem:[#allocation2 + $0x4] sm:$0xf] %vm666, %v2773
  %2820 = vst.msk [vmem:[#allocation2 + $0x8] sm:$0xf] %vm666, %v2775
  %2821 = vst.msk [vmem:[#allocation2 + $0xc] sm:$0xf] %vm666, %v2777
  %2822 = vst.msk [vmem:[#allocation2 + $0x10] sm:$0xf] %vm666, %v2779
  %2823 = vst.msk [vmem:[#allocation2 + $0x14] sm:$0xf] %vm666, %v2781
  %2824 = vst.msk [vmem:[#allocation2 + $0x18] sm:$0xf] %vm666, %v2783
  %2825 = vst.msk [vmem:[#allocation2 + $0x1c] sm:$0xf] %vm666, %v2785
  %2826 = vst.msk [vmem:[#allocation2 + $0x20] sm:$0xf] %vm666, %v2787
  %2827 = vst.msk [vmem:[#allocation2 + $0x24] sm:$0xf] %vm666, %v2789
  %2828 = vst.msk [vmem:[#allocation2 + $0x28] sm:$0xf] %vm666, %v2791
  %2829 = vst.msk [vmem:[#allocation2 + $0x2c] sm:$0xf] %vm666, %v2793
  %2830 = vst.msk [vmem:[#allocation2 + $0x30] sm:$0xf] %vm666, %v2795
  %2831 = vst.msk [vmem:[#allocation2 + $0x34] sm:$0xf] %vm666, %v2797
  %2832 = vst.msk [vmem:[#allocation2 + $0x38] sm:$0xf] %vm666, %v2799
  %2833 = vst.msk [vmem:[#allocation2 + $0x3c] sm:$0xf] %vm666, %v2801
  %v2834 = vld [vmem:[%s585] sm:$0xf]
  %v2835 = vld [vmem:[%s585 + $0x4] sm:$0x1]
  %v2836 = vld [vmem:[%s585 + $0x8] sm:$0xf]
  %v2837 = vld [vmem:[%s585 + $0xc] sm:$0x1]
  %v2838 = vld [vmem:[%s585 + $0x10] sm:$0xf]
  %v2839 = vld [vmem:[%s585 + $0x14] sm:$0x1]
  %v2840 = vld [vmem:[%s585 + $0x18] sm:$0xf]
  %v2841 = vld [vmem:[%s585 + $0x1c] sm:$0x1]
  %v2842 = vld [vmem:[%s585 + $0x20] sm:$0xf]
  %v2843 = vld [vmem:[%s585 + $0x24] sm:$0x1]
  %v2844 = vld [vmem:[%s585 + $0x28] sm:$0xf]
  %v2845 = vld [vmem:[%s585 + $0x2c] sm:$0x1]
  %v2846 = vld [vmem:[%s585 + $0x30] sm:$0xf]
  %v2847 = vld [vmem:[%s585 + $0x34] sm:$0x1]
  %v2848 = vld [vmem:[%s585 + $0x38] sm:$0xf]
  %v2849 = vld [vmem:[%s585 + $0x3c] sm:$0x1]
  %v2850 = vld [vmem:[%s585 + $0x48] sm:$0xf]
  %v2851 = vld [vmem:[%s585 + $0x4c] sm:$0x1]
  %v2852 = vld [vmem:[%s585 + $0x50] sm:$0xf]
  %v2853 = vld [vmem:[%s585 + $0x54] sm:$0x1]
  %v2854 = vld [vmem:[%s585 + $0x58] sm:$0xf]
  %v2855 = vld [vmem:[%s585 + $0x5c] sm:$0x1]
  %v2856 = vld [vmem:[%s585 + $0x60] sm:$0xf]
  %v2857 = vld [vmem:[%s585 + $0x64] sm:$0x1]
  %v2858 = vld [vmem:[%s585 + $0x68] sm:$0xf]
  %v2859 = vld [vmem:[%s585 + $0x6c] sm:$0x1]
  %v2860 = vld [vmem:[%s585 + $0x70] sm:$0xf]
  %v2861 = vld [vmem:[%s585 + $0x74] sm:$0x1]
  %v2862 = vld [vmem:[%s585 + $0x78] sm:$0xf]
  %v2863 = vld [vmem:[%s585 + $0x7c] sm:$0x1]
  %v2864 = vld [vmem:[%s585 + $0x80] sm:$0xf]
  %v2865 = vld [vmem:[%s585 + $0x84] sm:$0x1]
  %v2867 = vshrl.u32 %v2834, 16
  %v2869 = vrot.slane %v2867, 4
  %v2870 = vshll.u32 %v2834, 16
  %v2872 = vrot.slane %v2870, 5
  %v2873 = vor.u32 %v2869, %v2872
  %v2874 = vrot.slane %v2873, 4
  %v2876 = vshll.u32 %v2835, 16
  %v2878 = vrot.slane %v2876, 5
  %v2879 = vsel %vm197, %v2874, %v2878
  %v2881 = vshrl.u32 %v2836, 16
  %v2883 = vrot.slane %v2881, 4
  %v2884 = vshll.u32 %v2836, 16
  %v2886 = vrot.slane %v2884, 5
  %v2887 = vor.u32 %v2883, %v2886
  %v2888 = vrot.slane %v2887, 4
  %v2890 = vshll.u32 %v2837, 16
  %v2892 = vrot.slane %v2890, 5
  %v2893 = vsel %vm197, %v2888, %v2892
  %v2895 = vshrl.u32 %v2838, 16
  %v2897 = vrot.slane %v2895, 4
  %v2898 = vshll.u32 %v2838, 16
  %v2900 = vrot.slane %v2898, 5
  %v2901 = vor.u32 %v2897, %v2900
  %v2902 = vrot.slane %v2901, 4
  %v2904 = vshll.u32 %v2839, 16
  %v2906 = vrot.slane %v2904, 5
  %v2907 = vsel %vm197, %v2902, %v2906
  %v2909 = vshrl.u32 %v2840, 16
  %v2911 = vrot.slane %v2909, 4
  %v2912 = vshll.u32 %v2840, 16
  %v2914 = vrot.slane %v2912, 5
  %v2915 = vor.u32 %v2911, %v2914
  %v2916 = vrot.slane %v2915, 4
  %v2918 = vshll.u32 %v2841, 16
  %v2920 = vrot.slane %v2918, 5
  %v2921 = vsel %vm197, %v2916, %v2920
  %v2923 = vshrl.u32 %v2842, 16
  %v2925 = vrot.slane %v2923, 4
  %v2926 = vshll.u32 %v2842, 16
  %v2928 = vrot.slane %v2926, 5
  %v2929 = vor.u32 %v2925, %v2928
  %v2930 = vrot.slane %v2929, 4
  %v2932 = vshll.u32 %v2843, 16
  %v2934 = vrot.slane %v2932, 5
  %v2935 = vsel %vm197, %v2930, %v2934
  %v2937 = vshrl.u32 %v2844, 16
  %v2939 = vrot.slane %v2937, 4
  %v2940 = vshll.u32 %v2844, 16
  %v2942 = vrot.slane %v2940, 5
  %v2943 = vor.u32 %v2939, %v2942
  %v2944 = vrot.slane %v2943, 4
  %v2946 = vshll.u32 %v2845, 16
  %v2948 = vrot.slane %v2946, 5
  %v2949 = vsel %vm197, %v2944, %v2948
  %v2951 = vshrl.u32 %v2846, 16
  %v2953 = vrot.slane %v2951, 4
  %v2954 = vshll.u32 %v2846, 16
  %v2956 = vrot.slane %v2954, 5
  %v2957 = vor.u32 %v2953, %v2956
  %v2958 = vrot.slane %v2957, 4
  %v2960 = vshll.u32 %v2847, 16
  %v2962 = vrot.slane %v2960, 5
  %v2963 = vsel %vm197, %v2958, %v2962
  %v2965 = vshrl.u32 %v2848, 16
  %v2967 = vrot.slane %v2965, 4
  %v2968 = vshll.u32 %v2848, 16
  %v2970 = vrot.slane %v2968, 5
  %v2971 = vor.u32 %v2967, %v2970
  %v2972 = vrot.slane %v2971, 4
  %v2974 = vshll.u32 %v2849, 16
  %v2976 = vrot.slane %v2974, 5
  %v2977 = vsel %vm197, %v2972, %v2976
  %v2979 = vshrl.u32 %v2850, 16
  %v2981 = vrot.slane %v2979, 4
  %v2982 = vshll.u32 %v2850, 16
  %v2984 = vrot.slane %v2982, 5
  %v2985 = vor.u32 %v2981, %v2984
  %v2986 = vrot.slane %v2985, 4
  %v2988 = vshll.u32 %v2851, 16
  %v2990 = vrot.slane %v2988, 5
  %v2991 = vsel %vm197, %v2986, %v2990
  %v2993 = vshrl.u32 %v2852, 16
  %v2995 = vrot.slane %v2993, 4
  %v2996 = vshll.u32 %v2852, 16
  %v2998 = vrot.slane %v2996, 5
  %v2999 = vor.u32 %v2995, %v2998
  %v3000 = vrot.slane %v2999, 4
  %v3002 = vshll.u32 %v2853, 16
  %v3004 = vrot.slane %v3002, 5
  %v3005 = vsel %vm197, %v3000, %v3004
  %v3007 = vshrl.u32 %v2854, 16
  %v3009 = vrot.slane %v3007, 4
  %v3010 = vshll.u32 %v2854, 16
  %v3012 = vrot.slane %v3010, 5
  %v3013 = vor.u32 %v3009, %v3012
  %v3014 = vrot.slane %v3013, 4
  %v3016 = vshll.u32 %v2855, 16
  %v3018 = vrot.slane %v3016, 5
  %v3019 = vsel %vm197, %v3014, %v3018
  %v3021 = vshrl.u32 %v2856, 16
  %v3023 = vrot.slane %v3021, 4
  %v3024 = vshll.u32 %v2856, 16
  %v3026 = vrot.slane %v3024, 5
  %v3027 = vor.u32 %v3023, %v3026
  %v3028 = vrot.slane %v3027, 4
  %v3030 = vshll.u32 %v2857, 16
  %v3032 = vrot.slane %v3030, 5
  %v3033 = vsel %vm197, %v3028, %v3032
  %v3035 = vshrl.u32 %v2858, 16
  %v3037 = vrot.slane %v3035, 4
  %v3038 = vshll.u32 %v2858, 16
  %v3040 = vrot.slane %v3038, 5
  %v3041 = vor.u32 %v3037, %v3040
  %v3042 = vrot.slane %v3041, 4
  %v3044 = vshll.u32 %v2859, 16
  %v3046 = vrot.slane %v3044, 5
  %v3047 = vsel %vm197, %v3042, %v3046
  %v3049 = vshrl.u32 %v2860, 16
  %v3051 = vrot.slane %v3049, 4
  %v3052 = vshll.u32 %v2860, 16
  %v3054 = vrot.slane %v3052, 5
  %v3055 = vor.u32 %v3051, %v3054
  %v3056 = vrot.slane %v3055, 4
  %v3058 = vshll.u32 %v2861, 16
  %v3060 = vrot.slane %v3058, 5
  %v3061 = vsel %vm197, %v3056, %v3060
  %v3063 = vshrl.u32 %v2862, 16
  %v3065 = vrot.slane %v3063, 4
  %v3066 = vshll.u32 %v2862, 16
  %v3068 = vrot.slane %v3066, 5
  %v3069 = vor.u32 %v3065, %v3068
  %v3070 = vrot.slane %v3069, 4
  %v3072 = vshll.u32 %v2863, 16
  %v3074 = vrot.slane %v3072, 5
  %v3075 = vsel %vm197, %v3070, %v3074
  %v3077 = vshrl.u32 %v2864, 16
  %v3079 = vrot.slane %v3077, 4
  %v3080 = vshll.u32 %v2864, 16
  %v3082 = vrot.slane %v3080, 5
  %v3083 = vor.u32 %v3079, %v3082
  %v3084 = vrot.slane %v3083, 4
  %v3086 = vshll.u32 %v2865, 16
  %v3088 = vrot.slane %v3086, 5
  %v3089 = vsel %vm197, %v3084, %v3088
  %3090 = vrot.lane.b32.xlu0 %v2879, 40
  %v3091 = vpop.permute.xlu0 %3090
  %3092 = vrot.lane.b32.xlu0 %v2893, 40
  %v3093 = vpop.permute.xlu0 %3092
  %3094 = vrot.lane.b32.xlu0 %v2907, 40
  %v3095 = vpop.permute.xlu0 %3094
  %3096 = vrot.lane.b32.xlu0 %v2921, 40
  %v3097 = vpop.permute.xlu0 %3096
  %3098 = vrot.lane.b32.xlu0 %v2935, 40
  %v3099 = vpop.permute.xlu0 %3098
  %3100 = vrot.lane.b32.xlu0 %v2949, 40
  %v3101 = vpop.permute.xlu0 %3100
  %3102 = vrot.lane.b32.xlu0 %v2963, 40
  %v3103 = vpop.permute.xlu0 %3102
  %3104 = vrot.lane.b32.xlu0 %v2977, 40
  %v3105 = vpop.permute.xlu0 %3104
  %3106 = vrot.lane.b32.xlu0 %v2991, 40
  %v3107 = vpop.permute.xlu0 %3106
  %3108 = vrot.lane.b32.xlu0 %v3005, 40
  %v3109 = vpop.permute.xlu0 %3108
  %3110 = vrot.lane.b32.xlu0 %v3019, 40
  %v3111 = vpop.permute.xlu0 %3110
  %3112 = vrot.lane.b32.xlu0 %v3033, 40
  %v3113 = vpop.permute.xlu0 %3112
  %3114 = vrot.lane.b32.xlu0 %v3047, 40
  %v3115 = vpop.permute.xlu0 %3114
  %3116 = vrot.lane.b32.xlu0 %v3061, 40
  %v3117 = vpop.permute.xlu0 %3116
  %3118 = vrot.lane.b32.xlu0 %v3075, 40
  %v3119 = vpop.permute.xlu0 %3118
  %3120 = vrot.lane.b32.xlu0 %v3089, 40
  %v3121 = vpop.permute.xlu0 %3120
  %3138 = vst.msk [vmem:[#allocation2] sm:$0xf] %vm987, %v3091
  %3139 = vst.msk [vmem:[#allocation2 + $0x4] sm:$0xf] %vm987, %v3093
  %3140 = vst.msk [vmem:[#allocation2 + $0x8] sm:$0xf] %vm987, %v3095
  %3141 = vst.msk [vmem:[#allocation2 + $0xc] sm:$0xf] %vm987, %v3097
  %3142 = vst.msk [vmem:[#allocation2 + $0x10] sm:$0xf] %vm987, %v3099
  %3143 = vst.msk [vmem:[#allocation2 + $0x14] sm:$0xf] %vm987, %v3101
  %3144 = vst.msk [vmem:[#allocation2 + $0x18] sm:$0xf] %vm987, %v3103
  %3145 = vst.msk [vmem:[#allocation2 + $0x1c] sm:$0xf] %vm987, %v3105
  %3146 = vst.msk [vmem:[#allocation2 + $0x20] sm:$0xf] %vm987, %v3107
  %3147 = vst.msk [vmem:[#allocation2 + $0x24] sm:$0xf] %vm987, %v3109
  %3148 = vst.msk [vmem:[#allocation2 + $0x28] sm:$0xf] %vm987, %v3111
  %3149 = vst.msk [vmem:[#allocation2 + $0x2c] sm:$0xf] %vm987, %v3113
  %3150 = vst.msk [vmem:[#allocation2 + $0x30] sm:$0xf] %vm987, %v3115
  %3151 = vst.msk [vmem:[#allocation2 + $0x34] sm:$0xf] %vm987, %v3117
  %3152 = vst.msk [vmem:[#allocation2 + $0x38] sm:$0xf] %vm987, %v3119
  %3153 = vst.msk [vmem:[#allocation2 + $0x3c] sm:$0xf] %vm987, %v3121
  %v3154 = vld [vmem:[%s1102] sm:$0xf]
  %v3155 = vld [vmem:[%s1102 + $0x8] sm:$0xf]
  %v3156 = vld [vmem:[%s1102 + $0x10] sm:$0xf]
  %v3157 = vld [vmem:[%s1102 + $0x18] sm:$0xf]
  %v3158 = vld [vmem:[%s1102 + $0x20] sm:$0xf]
  %v3159 = vld [vmem:[%s1102 + $0x28] sm:$0xf]
  %v3160 = vld [vmem:[%s1102 + $0x30] sm:$0xf]
  %v3161 = vld [vmem:[%s1102 + $0x38] sm:$0xf]
  %v3162 = vld [vmem:[%s1102 + $0x48] sm:$0xf]
  %v3163 = vld [vmem:[%s1102 + $0x50] sm:$0xf]
  %v3164 = vld [vmem:[%s1102 + $0x58] sm:$0xf]
  %v3165 = vld [vmem:[%s1102 + $0x60] sm:$0xf]
  %v3166 = vld [vmem:[%s1102 + $0x68] sm:$0xf]
  %v3167 = vld [vmem:[%s1102 + $0x70] sm:$0xf]
  %v3168 = vld [vmem:[%s1102 + $0x78] sm:$0xf]
  %v3169 = vld [vmem:[%s1102 + $0x80] sm:$0xf]
  %3186 = vrot.lane.b32.xlu0 %v3154, 48
  %v3187 = vpop.permute.xlu0 %3186
  %3188 = vrot.lane.b32.xlu0 %v3155, 48
  %v3189 = vpop.permute.xlu0 %3188
  %3190 = vrot.lane.b32.xlu0 %v3156, 48
  %v3191 = vpop.permute.xlu0 %3190
  %3192 = vrot.lane.b32.xlu0 %v3157, 48
  %v3193 = vpop.permute.xlu0 %3192
  %3194 = vrot.lane.b32.xlu0 %v3158, 48
  %v3195 = vpop.permute.xlu0 %3194
  %3196 = vrot.lane.b32.xlu0 %v3159, 48
  %v3197 = vpop.permute.xlu0 %3196
  %3198 = vrot.lane.b32.xlu0 %v3160, 48
  %v3199 = vpop.permute.xlu0 %3198
  %3200 = vrot.lane.b32.xlu0 %v3161, 48
  %v3201 = vpop.permute.xlu0 %3200
  %3202 = vrot.lane.b32.xlu0 %v3162, 48
  %v3203 = vpop.permute.xlu0 %3202
  %3204 = vrot.lane.b32.xlu0 %v3163, 48
  %v3205 = vpop.permute.xlu0 %3204
  %3206 = vrot.lane.b32.xlu0 %v3164, 48
  %v3207 = vpop.permute.xlu0 %3206
  %3208 = vrot.lane.b32.xlu0 %v3165, 48
  %v3209 = vpop.permute.xlu0 %3208
  %3210 = vrot.lane.b32.xlu0 %v3166, 48
  %v3211 = vpop.permute.xlu0 %3210
  %3212 = vrot.lane.b32.xlu0 %v3167, 48
  %v3213 = vpop.permute.xlu0 %3212
  %3214 = vrot.lane.b32.xlu0 %v3168, 48
  %v3215 = vpop.permute.xlu0 %3214
  %3216 = vrot.lane.b32.xlu0 %v3169, 48
  %v3217 = vpop.permute.xlu0 %3216
  %3234 = vst.msk [vmem:[#allocation2] sm:$0xf] %vm1085, %v3187
  %3235 = vst.msk [vmem:[#allocation2 + $0x4] sm:$0xf] %vm1085, %v3189
  %3236 = vst.msk [vmem:[#allocation2 + $0x8] sm:$0xf] %vm1085, %v3191
  %3237 = vst.msk [vmem:[#allocation2 + $0xc] sm:$0xf] %vm1085, %v3193
  %3238 = vst.msk [vmem:[#allocation2 + $0x10] sm:$0xf] %vm1085, %v3195
  %3239 = vst.msk [vmem:[#allocation2 + $0x14] sm:$0xf] %vm1085, %v3197
  %3240 = vst.msk [vmem:[#allocation2 + $0x18] sm:$0xf] %vm1085, %v3199
  %3241 = vst.msk [vmem:[#allocation2 + $0x1c] sm:$0xf] %vm1085, %v3201
  %3242 = vst.msk [vmem:[#allocation2 + $0x20] sm:$0xf] %vm1085, %v3203
  %3243 = vst.msk [vmem:[#allocation2 + $0x24] sm:$0xf] %vm1085, %v3205
  %3244 = vst.msk [vmem:[#allocation2 + $0x28] sm:$0xf] %vm1085, %v3207
  %3245 = vst.msk [vmem:[#allocation2 + $0x2c] sm:$0xf] %vm1085, %v3209
  %3246 = vst.msk [vmem:[#allocation2 + $0x30] sm:$0xf] %vm1085, %v3211
  %3247 = vst.msk [vmem:[#allocation2 + $0x34] sm:$0xf] %vm1085, %v3213
  %3248 = vst.msk [vmem:[#allocation2 + $0x38] sm:$0xf] %vm1085, %v3215
  %3249 = vst.msk [vmem:[#allocation2 + $0x3c] sm:$0xf] %vm1085, %v3217
  %v3250 = vld [vmem:[%s1004] sm:$0xf]
  %v3251 = vld [vmem:[%s1004 + $0x4] sm:$0x1]
  %v3252 = vld [vmem:[%s1004 + $0x8] sm:$0xf]
  %v3253 = vld [vmem:[%s1004 + $0xc] sm:$0x1]
  %v3254 = vld [vmem:[%s1004 + $0x10] sm:$0xf]
  %v3255 = vld [vmem:[%s1004 + $0x14] sm:$0x1]
  %v3256 = vld [vmem:[%s1004 + $0x18] sm:$0xf]
  %v3257 = vld [vmem:[%s1004 + $0x1c] sm:$0x1]
  %v3258 = vld [vmem:[%s1004 + $0x20] sm:$0xf]
  %v3259 = vld [vmem:[%s1004 + $0x24] sm:$0x1]
  %v3260 = vld [vmem:[%s1004 + $0x28] sm:$0xf]
  %v3261 = vld [vmem:[%s1004 + $0x2c] sm:$0x1]
  %v3262 = vld [vmem:[%s1004 + $0x30] sm:$0xf]
  %v3263 = vld [vmem:[%s1004 + $0x34] sm:$0x1]
  %v3264 = vld [vmem:[%s1004 + $0x38] sm:$0xf]
  %v3265 = vld [vmem:[%s1004 + $0x3c] sm:$0x1]
  %v3266 = vld [vmem:[%s1004 + $0x48] sm:$0xf]
  %v3267 = vld [vmem:[%s1004 + $0x4c] sm:$0x1]
  %v3268 = vld [vmem:[%s1004 + $0x50] sm:$0xf]
  %v3269 = vld [vmem:[%s1004 + $0x54] sm:$0x1]
  %v3270 = vld [vmem:[%s1004 + $0x58] sm:$0xf]
  %v3271 = vld [vmem:[%s1004 + $0x5c] sm:$0x1]
  %v3272 = vld [vmem:[%s1004 + $0x60] sm:$0xf]
  %v3273 = vld [vmem:[%s1004 + $0x64] sm:$0x1]
  %v3274 = vld [vmem:[%s1004 + $0x68] sm:$0xf]
  %v3275 = vld [vmem:[%s1004 + $0x6c] sm:$0x1]
  %v3276 = vld [vmem:[%s1004 + $0x70] sm:$0xf]
  %v3277 = vld [vmem:[%s1004 + $0x74] sm:$0x1]
  %v3278 = vld [vmem:[%s1004 + $0x78] sm:$0xf]
  %v3279 = vld [vmem:[%s1004 + $0x7c] sm:$0x1]
  %v3280 = vld [vmem:[%s1004 + $0x80] sm:$0xf]
  %v3281 = vld [vmem:[%s1004 + $0x84] sm:$0x1]
  %v3283 = vshrl.u32 %v3250, 16
  %v3285 = vrot.slane %v3283, 4
  %v3286 = vshll.u32 %v3250, 16
  %v3288 = vrot.slane %v3286, 5
  %v3289 = vor.u32 %v3285, %v3288
  %v3290 = vrot.slane %v3289, 4
  %v3292 = vshll.u32 %v3251, 16
  %v3294 = vrot.slane %v3292, 5
  %v3295 = vsel %vm197, %v3290, %v3294
  %v3297 = vshrl.u32 %v3252, 16
  %v3299 = vrot.slane %v3297, 4
  %v3300 = vshll.u32 %v3252, 16
  %v3302 = vrot.slane %v3300, 5
  %v3303 = vor.u32 %v3299, %v3302
  %v3304 = vrot.slane %v3303, 4
  %v3306 = vshll.u32 %v3253, 16
  %v3308 = vrot.slane %v3306, 5
  %v3309 = vsel %vm197, %v3304, %v3308
  %v3311 = vshrl.u32 %v3254, 16
  %v3313 = vrot.slane %v3311, 4
  %v3314 = vshll.u32 %v3254, 16
  %v3316 = vrot.slane %v3314, 5
  %v3317 = vor.u32 %v3313, %v3316
  %v3318 = vrot.slane %v3317, 4
  %v3320 = vshll.u32 %v3255, 16
  %v3322 = vrot.slane %v3320, 5
  %v3323 = vsel %vm197, %v3318, %v3322
  %v3325 = vshrl.u32 %v3256, 16
  %v3327 = vrot.slane %v3325, 4
  %v3328 = vshll.u32 %v3256, 16
  %v3330 = vrot.slane %v3328, 5
  %v3331 = vor.u32 %v3327, %v3330
  %v3332 = vrot.slane %v3331, 4
  %v3334 = vshll.u32 %v3257, 16
  %v3336 = vrot.slane %v3334, 5
  %v3337 = vsel %vm197, %v3332, %v3336
  %v3339 = vshrl.u32 %v3258, 16
  %v3341 = vrot.slane %v3339, 4
  %v3342 = vshll.u32 %v3258, 16
  %v3344 = vrot.slane %v3342, 5
  %v3345 = vor.u32 %v3341, %v3344
  %v3346 = vrot.slane %v3345, 4
  %v3348 = vshll.u32 %v3259, 16
  %v3350 = vrot.slane %v3348, 5
  %v3351 = vsel %vm197, %v3346, %v3350
  %v3353 = vshrl.u32 %v3260, 16
  %v3355 = vrot.slane %v3353, 4
  %v3356 = vshll.u32 %v3260, 16
  %v3358 = vrot.slane %v3356, 5
  %v3359 = vor.u32 %v3355, %v3358
  %v3360 = vrot.slane %v3359, 4
  %v3362 = vshll.u32 %v3261, 16
  %v3364 = vrot.slane %v3362, 5
  %v3365 = vsel %vm197, %v3360, %v3364
  %v3367 = vshrl.u32 %v3262, 16
  %v3369 = vrot.slane %v3367, 4
  %v3370 = vshll.u32 %v3262, 16
  %v3372 = vrot.slane %v3370, 5
  %v3373 = vor.u32 %v3369, %v3372
  %v3374 = vrot.slane %v3373, 4
  %v3376 = vshll.u32 %v3263, 16
  %v3378 = vrot.slane %v3376, 5
  %v3379 = vsel %vm197, %v3374, %v3378
  %v3381 = vshrl.u32 %v3264, 16
  %v3383 = vrot.slane %v3381, 4
  %v3384 = vshll.u32 %v3264, 16
  %v3386 = vrot.slane %v3384, 5
  %v3387 = vor.u32 %v3383, %v3386
  %v3388 = vrot.slane %v3387, 4
  %v3390 = vshll.u32 %v3265, 16
  %v3392 = vrot.slane %v3390, 5
  %v3393 = vsel %vm197, %v3388, %v3392
  %v3395 = vshrl.u32 %v3266, 16
  %v3397 = vrot.slane %v3395, 4
  %v3398 = vshll.u32 %v3266, 16
  %v3400 = vrot.slane %v3398, 5
  %v3401 = vor.u32 %v3397, %v3400
  %v3402 = vrot.slane %v3401, 4
  %v3404 = vshll.u32 %v3267, 16
  %v3406 = vrot.slane %v3404, 5
  %v3407 = vsel %vm197, %v3402, %v3406
  %v3409 = vshrl.u32 %v3268, 16
  %v3411 = vrot.slane %v3409, 4
  %v3412 = vshll.u32 %v3268, 16
  %v3414 = vrot.slane %v3412, 5
  %v3415 = vor.u32 %v3411, %v3414
  %v3416 = vrot.slane %v3415, 4
  %v3418 = vshll.u32 %v3269, 16
  %v3420 = vrot.slane %v3418, 5
  %v3421 = vsel %vm197, %v3416, %v3420
  %v3423 = vshrl.u32 %v3270, 16
  %v3425 = vrot.slane %v3423, 4
  %v3426 = vshll.u32 %v3270, 16
  %v3428 = vrot.slane %v3426, 5
  %v3429 = vor.u32 %v3425, %v3428
  %v3430 = vrot.slane %v3429, 4
  %v3432 = vshll.u32 %v3271, 16
  %v3434 = vrot.slane %v3432, 5
  %v3435 = vsel %vm197, %v3430, %v3434
  %v3437 = vshrl.u32 %v3272, 16
  %v3439 = vrot.slane %v3437, 4
  %v3440 = vshll.u32 %v3272, 16
  %v3442 = vrot.slane %v3440, 5
  %v3443 = vor.u32 %v3439, %v3442
  %v3444 = vrot.slane %v3443, 4
  %v3446 = vshll.u32 %v3273, 16
  %v3448 = vrot.slane %v3446, 5
  %v3449 = vsel %vm197, %v3444, %v3448
  %v3451 = vshrl.u32 %v3274, 16
  %v3453 = vrot.slane %v3451, 4
  %v3454 = vshll.u32 %v3274, 16
  %v3456 = vrot.slane %v3454, 5
  %v3457 = vor.u32 %v3453, %v3456
  %v3458 = vrot.slane %v3457, 4
  %v3460 = vshll.u32 %v3275, 16
  %v3462 = vrot.slane %v3460, 5
  %v3463 = vsel %vm197, %v3458, %v3462
  %v3465 = vshrl.u32 %v3276, 16
  %v3467 = vrot.slane %v3465, 4
  %v3468 = vshll.u32 %v3276, 16
  %v3470 = vrot.slane %v3468, 5
  %v3471 = vor.u32 %v3467, %v3470
  %v3472 = vrot.slane %v3471, 4
  %v3474 = vshll.u32 %v3277, 16
  %v3476 = vrot.slane %v3474, 5
  %v3477 = vsel %vm197, %v3472, %v3476
  %v3479 = vshrl.u32 %v3278, 16
  %v3481 = vrot.slane %v3479, 4
  %v3482 = vshll.u32 %v3278, 16
  %v3484 = vrot.slane %v3482, 5
  %v3485 = vor.u32 %v3481, %v3484
  %v3486 = vrot.slane %v3485, 4
  %v3488 = vshll.u32 %v3279, 16
  %v3490 = vrot.slane %v3488, 5
  %v3491 = vsel %vm197, %v3486, %v3490
  %v3493 = vshrl.u32 %v3280, 16
  %v3495 = vrot.slane %v3493, 4
  %v3496 = vshll.u32 %v3280, 16
  %v3498 = vrot.slane %v3496, 5
  %v3499 = vor.u32 %v3495, %v3498
  %v3500 = vrot.slane %v3499, 4
  %v3502 = vshll.u32 %v3281, 16
  %v3504 = vrot.slane %v3502, 5
  %v3505 = vsel %vm197, %v3500, %v3504
  %3506 = vrot.lane.b32.xlu0 %v3295, 56
  %v3507 = vpop.permute.xlu0 %3506
  %3508 = vrot.lane.b32.xlu0 %v3309, 56
  %v3509 = vpop.permute.xlu0 %3508
  %3510 = vrot.lane.b32.xlu0 %v3323, 56
  %v3511 = vpop.permute.xlu0 %3510
  %3512 = vrot.lane.b32.xlu0 %v3337, 56
  %v3513 = vpop.permute.xlu0 %3512
  %3514 = vrot.lane.b32.xlu0 %v3351, 56
  %v3515 = vpop.permute.xlu0 %3514
  %3516 = vrot.lane.b32.xlu0 %v3365, 56
  %v3517 = vpop.permute.xlu0 %3516
  %3518 = vrot.lane.b32.xlu0 %v3379, 56
  %v3519 = vpop.permute.xlu0 %3518
  %3520 = vrot.lane.b32.xlu0 %v3393, 56
  %v3521 = vpop.permute.xlu0 %3520
  %3522 = vrot.lane.b32.xlu0 %v3407, 56
  %v3523 = vpop.permute.xlu0 %3522
  %3524 = vrot.lane.b32.xlu0 %v3421, 56
  %v3525 = vpop.permute.xlu0 %3524
  %3526 = vrot.lane.b32.xlu0 %v3435, 56
  %v3527 = vpop.permute.xlu0 %3526
  %3528 = vrot.lane.b32.xlu0 %v3449, 56
  %v3529 = vpop.permute.xlu0 %3528
  %3530 = vrot.lane.b32.xlu0 %v3463, 56
  %v3531 = vpop.permute.xlu0 %3530
  %3532 = vrot.lane.b32.xlu0 %v3477, 56
  %v3533 = vpop.permute.xlu0 %3532
  %3534 = vrot.lane.b32.xlu0 %v3491, 56
  %v3535 = vpop.permute.xlu0 %3534
  %3536 = vrot.lane.b32.xlu0 %v3505, 56
  %v3537 = vpop.permute.xlu0 %3536
  %3554 = vst.msk [vmem:[#allocation2] sm:$0xf] %vm1183, %v3507
  %3555 = vst.msk [vmem:[#allocation2 + $0x4] sm:$0xf] %vm1183, %v3509
  %3556 = vst.msk [vmem:[#allocation2 + $0x8] sm:$0xf] %vm1183, %v3511
  %3557 = vst.msk [vmem:[#allocation2 + $0xc] sm:$0xf] %vm1183, %v3513
  %3558 = vst.msk [vmem:[#allocation2 + $0x10] sm:$0xf] %vm1183, %v3515
  %3559 = vst.msk [vmem:[#allocation2 + $0x14] sm:$0xf] %vm1183, %v3517
  %3560 = vst.msk [vmem:[#allocation2 + $0x18] sm:$0xf] %vm1183, %v3519
  %3561 = vst.msk [vmem:[#allocation2 + $0x1c] sm:$0xf] %vm1183, %v3521
  %3562 = vst.msk [vmem:[#allocation2 + $0x20] sm:$0xf] %vm1183, %v3523
  %3563 = vst.msk [vmem:[#allocation2 + $0x24] sm:$0xf] %vm1183, %v3525
  %3564 = vst.msk [vmem:[#allocation2 + $0x28] sm:$0xf] %vm1183, %v3527
  %3565 = vst.msk [vmem:[#allocation2 + $0x2c] sm:$0xf] %vm1183, %v3529
  %3566 = vst.msk [vmem:[#allocation2 + $0x30] sm:$0xf] %vm1183, %v3531
  %3567 = vst.msk [vmem:[#allocation2 + $0x34] sm:$0xf] %vm1183, %v3533
  %3568 = vst.msk [vmem:[#allocation2 + $0x38] sm:$0xf] %vm1183, %v3535
  %3569 = vst.msk [vmem:[#allocation2 + $0x3c] sm:$0xf] %vm1183, %v3537
  %v3570 = vld [vmem:[%s1102] sm:$0xf]
  %v3571 = vld [vmem:[%s1102 + $0x4] sm:$0x1]
  %v3572 = vld [vmem:[%s1102 + $0x8] sm:$0xf]
  %v3573 = vld [vmem:[%s1102 + $0xc] sm:$0x1]
  %v3574 = vld [vmem:[%s1102 + $0x10] sm:$0xf]
  %v3575 = vld [vmem:[%s1102 + $0x14] sm:$0x1]
  %v3576 = vld [vmem:[%s1102 + $0x18] sm:$0xf]
  %v3577 = vld [vmem:[%s1102 + $0x1c] sm:$0x1]
  %v3578 = vld [vmem:[%s1102 + $0x20] sm:$0xf]
  %v3579 = vld [vmem:[%s1102 + $0x24] sm:$0x1]
  %v3580 = vld [vmem:[%s1102 + $0x28] sm:$0xf]
  %v3581 = vld [vmem:[%s1102 + $0x2c] sm:$0x1]
  %v3582 = vld [vmem:[%s1102 + $0x30] sm:$0xf]
  %v3583 = vld [vmem:[%s1102 + $0x34] sm:$0x1]
  %v3584 = vld [vmem:[%s1102 + $0x38] sm:$0xf]
  %v3585 = vld [vmem:[%s1102 + $0x3c] sm:$0x1]
  %v3586 = vld [vmem:[%s1102 + $0x48] sm:$0xf]
  %v3587 = vld [vmem:[%s1102 + $0x4c] sm:$0x1]
  %v3588 = vld [vmem:[%s1102 + $0x50] sm:$0xf]
  %v3589 = vld [vmem:[%s1102 + $0x54] sm:$0x1]
  %v3590 = vld [vmem:[%s1102 + $0x58] sm:$0xf]
  %v3591 = vld [vmem:[%s1102 + $0x5c] sm:$0x1]
  %v3592 = vld [vmem:[%s1102 + $0x60] sm:$0xf]
  %v3593 = vld [vmem:[%s1102 + $0x64] sm:$0x1]
  %v3594 = vld [vmem:[%s1102 + $0x68] sm:$0xf]
  %v3595 = vld [vmem:[%s1102 + $0x6c] sm:$0x1]
  %v3596 = vld [vmem:[%s1102 + $0x70] sm:$0xf]
  %v3597 = vld [vmem:[%s1102 + $0x74] sm:$0x1]
  %v3598 = vld [vmem:[%s1102 + $0x78] sm:$0xf]
  %v3599 = vld [vmem:[%s1102 + $0x7c] sm:$0x1]
  %v3600 = vld [vmem:[%s1102 + $0x80] sm:$0xf]
  %v3601 = vld [vmem:[%s1102 + $0x84] sm:$0x1]
  %v3603 = vshrl.u32 %v3570, 16
  %v3605 = vrot.slane %v3603, 4
  %v3606 = vshll.u32 %v3570, 16
  %v3608 = vrot.slane %v3606, 5
  %v3609 = vor.u32 %v3605, %v3608
  %v3610 = vrot.slane %v3609, 4
  %v3612 = vshll.u32 %v3571, 16
  %v3614 = vrot.slane %v3612, 5
  %v3615 = vsel %vm197, %v3610, %v3614
  %v3617 = vshrl.u32 %v3572, 16
  %v3619 = vrot.slane %v3617, 4
  %v3620 = vshll.u32 %v3572, 16
  %v3622 = vrot.slane %v3620, 5
  %v3623 = vor.u32 %v3619, %v3622
  %v3624 = vrot.slane %v3623, 4
  %v3626 = vshll.u32 %v3573, 16
  %v3628 = vrot.slane %v3626, 5
  %v3629 = vsel %vm197, %v3624, %v3628
  %v3631 = vshrl.u32 %v3574, 16
  %v3633 = vrot.slane %v3631, 4
  %v3634 = vshll.u32 %v3574, 16
  %v3636 = vrot.slane %v3634, 5
  %v3637 = vor.u32 %v3633, %v3636
  %v3638 = vrot.slane %v3637, 4
  %v3640 = vshll.u32 %v3575, 16
  %v3642 = vrot.slane %v3640, 5
  %v3643 = vsel %vm197, %v3638, %v3642
  %v3645 = vshrl.u32 %v3576, 16
  %v3647 = vrot.slane %v3645, 4
  %v3648 = vshll.u32 %v3576, 16
  %v3650 = vrot.slane %v3648, 5
  %v3651 = vor.u32 %v3647, %v3650
  %v3652 = vrot.slane %v3651, 4
  %v3654 = vshll.u32 %v3577, 16
  %v3656 = vrot.slane %v3654, 5
  %v3657 = vsel %vm197, %v3652, %v3656
  %v3659 = vshrl.u32 %v3578, 16
  %v3661 = vrot.slane %v3659, 4
  %v3662 = vshll.u32 %v3578, 16
  %v3664 = vrot.slane %v3662, 5
  %v3665 = vor.u32 %v3661, %v3664
  %v3666 = vrot.slane %v3665, 4
  %v3668 = vshll.u32 %v3579, 16
  %v3670 = vrot.slane %v3668, 5
  %v3671 = vsel %vm197, %v3666, %v3670
  %v3673 = vshrl.u32 %v3580, 16
  %v3675 = vrot.slane %v3673, 4
  %v3676 = vshll.u32 %v3580, 16
  %v3678 = vrot.slane %v3676, 5
  %v3679 = vor.u32 %v3675, %v3678
  %v3680 = vrot.slane %v3679, 4
  %v3682 = vshll.u32 %v3581, 16
  %v3684 = vrot.slane %v3682, 5
  %v3685 = vsel %vm197, %v3680, %v3684
  %v3687 = vshrl.u32 %v3582, 16
  %v3689 = vrot.slane %v3687, 4
  %v3690 = vshll.u32 %v3582, 16
  %v3692 = vrot.slane %v3690, 5
  %v3693 = vor.u32 %v3689, %v3692
  %v3694 = vrot.slane %v3693, 4
  %v3696 = vshll.u32 %v3583, 16
  %v3698 = vrot.slane %v3696, 5
  %v3699 = vsel %vm197, %v3694, %v3698
  %v3701 = vshrl.u32 %v3584, 16
  %v3703 = vrot.slane %v3701, 4
  %v3704 = vshll.u32 %v3584, 16
  %v3706 = vrot.slane %v3704, 5
  %v3707 = vor.u32 %v3703, %v3706
  %v3708 = vrot.slane %v3707, 4
  %v3710 = vshll.u32 %v3585, 16
  %v3712 = vrot.slane %v3710, 5
  %v3713 = vsel %vm197, %v3708, %v3712
  %v3715 = vshrl.u32 %v3586, 16
  %v3717 = vrot.slane %v3715, 4
  %v3718 = vshll.u32 %v3586, 16
  %v3720 = vrot.slane %v3718, 5
  %v3721 = vor.u32 %v3717, %v3720
  %v3722 = vrot.slane %v3721, 4
  %v3724 = vshll.u32 %v3587, 16
  %v3726 = vrot.slane %v3724, 5
  %v3727 = vsel %vm197, %v3722, %v3726
  %v3729 = vshrl.u32 %v3588, 16
  %v3731 = vrot.slane %v3729, 4
  %v3732 = vshll.u32 %v3588, 16
  %v3734 = vrot.slane %v3732, 5
  %v3735 = vor.u32 %v3731, %v3734
  %v3736 = vrot.slane %v3735, 4
  %v3738 = vshll.u32 %v3589, 16
  %v3740 = vrot.slane %v3738, 5
  %v3741 = vsel %vm197, %v3736, %v3740
  %v3743 = vshrl.u32 %v3590, 16
  %v3745 = vrot.slane %v3743, 4
  %v3746 = vshll.u32 %v3590, 16
  %v3748 = vrot.slane %v3746, 5
  %v3749 = vor.u32 %v3745, %v3748
  %v3750 = vrot.slane %v3749, 4
  %v3752 = vshll.u32 %v3591, 16
  %v3754 = vrot.slane %v3752, 5
  %v3755 = vsel %vm197, %v3750, %v3754
  %v3757 = vshrl.u32 %v3592, 16
  %v3759 = vrot.slane %v3757, 4
  %v3760 = vshll.u32 %v3592, 16
  %v3762 = vrot.slane %v3760, 5
  %v3763 = vor.u32 %v3759, %v3762
  %v3764 = vrot.slane %v3763, 4
  %v3766 = vshll.u32 %v3593, 16
  %v3768 = vrot.slane %v3766, 5
  %v3769 = vsel %vm197, %v3764, %v3768
  %v3771 = vshrl.u32 %v3594, 16
  %v3773 = vrot.slane %v3771, 4
  %v3774 = vshll.u32 %v3594, 16
  %v3776 = vrot.slane %v3774, 5
  %v3777 = vor.u32 %v3773, %v3776
  %v3778 = vrot.slane %v3777, 4
  %v3780 = vshll.u32 %v3595, 16
  %v3782 = vrot.slane %v3780, 5
  %v3783 = vsel %vm197, %v3778, %v3782
  %v3785 = vshrl.u32 %v3596, 16
  %v3787 = vrot.slane %v3785, 4
  %v3788 = vshll.u32 %v3596, 16
  %v3790 = vrot.slane %v3788, 5
  %v3791 = vor.u32 %v3787, %v3790
  %v3792 = vrot.slane %v3791, 4
  %v3794 = vshll.u32 %v3597, 16
  %v3796 = vrot.slane %v3794, 5
  %v3797 = vsel %vm197, %v3792, %v3796
  %v3799 = vshrl.u32 %v3598, 16
  %v3801 = vrot.slane %v3799, 4
  %v3802 = vshll.u32 %v3598, 16
  %v3804 = vrot.slane %v3802, 5
  %v3805 = vor.u32 %v3801, %v3804
  %v3806 = vrot.slane %v3805, 4
  %v3808 = vshll.u32 %v3599, 16
  %v3810 = vrot.slane %v3808, 5
  %v3811 = vsel %vm197, %v3806, %v3810
  %v3813 = vshrl.u32 %v3600, 16
  %v3815 = vrot.slane %v3813, 4
  %v3816 = vshll.u32 %v3600, 16
  %v3818 = vrot.slane %v3816, 5
  %v3819 = vor.u32 %v3815, %v3818
  %v3820 = vrot.slane %v3819, 4
  %v3822 = vshll.u32 %v3601, 16
  %v3824 = vrot.slane %v3822, 5
  %v3825 = vsel %vm197, %v3820, %v3824
  %3826 = vrot.lane.b32.xlu0 %v3615, 64
  %v3827 = vpop.permute.xlu0 %3826
  %3828 = vrot.lane.b32.xlu0 %v3629, 64
  %v3829 = vpop.permute.xlu0 %3828
  %3830 = vrot.lane.b32.xlu0 %v3643, 64
  %v3831 = vpop.permute.xlu0 %3830
  %3832 = vrot.lane.b32.xlu0 %v3657, 64
  %v3833 = vpop.permute.xlu0 %3832
  %3834 = vrot.lane.b32.xlu0 %v3671, 64
  %v3835 = vpop.permute.xlu0 %3834
  %3836 = vrot.lane.b32.xlu0 %v3685, 64
  %v3837 = vpop.permute.xlu0 %3836
  %3838 = vrot.lane.b32.xlu0 %v3699, 64
  %v3839 = vpop.permute.xlu0 %3838
  %3840 = vrot.lane.b32.xlu0 %v3713, 64
  %v3841 = vpop.permute.xlu0 %3840
  %3842 = vrot.lane.b32.xlu0 %v3727, 64
  %v3843 = vpop.permute.xlu0 %3842
  %3844 = vrot.lane.b32.xlu0 %v3741, 64
  %v3845 = vpop.permute.xlu0 %3844
  %3846 = vrot.lane.b32.xlu0 %v3755, 64
  %v3847 = vpop.permute.xlu0 %3846
  %3848 = vrot.lane.b32.xlu0 %v3769, 64
  %v3849 = vpop.permute.xlu0 %3848
  %3850 = vrot.lane.b32.xlu0 %v3783, 64
  %v3851 = vpop.permute.xlu0 %3850
  %3852 = vrot.lane.b32.xlu0 %v3797, 64
  %v3853 = vpop.permute.xlu0 %3852
  %3854 = vrot.lane.b32.xlu0 %v3811, 64
  %v3855 = vpop.permute.xlu0 %3854
  %3856 = vrot.lane.b32.xlu0 %v3825, 64
  %v3857 = vpop.permute.xlu0 %3856
  %3874 = vst.msk [vmem:[#allocation2] sm:$0xf] %vm1504, %v3827
  %3875 = vst.msk [vmem:[#allocation2 + $0x4] sm:$0xf] %vm1504, %v3829
  %3876 = vst.msk [vmem:[#allocation2 + $0x8] sm:$0xf] %vm1504, %v3831
  %3877 = vst.msk [vmem:[#allocation2 + $0xc] sm:$0xf] %vm1504, %v3833
  %3878 = vst.msk [vmem:[#allocation2 + $0x10] sm:$0xf] %vm1504, %v3835
  %3879 = vst.msk [vmem:[#allocation2 + $0x14] sm:$0xf] %vm1504, %v3837
  %3880 = vst.msk [vmem:[#allocation2 + $0x18] sm:$0xf] %vm1504, %v3839
  %3881 = vst.msk [vmem:[#allocation2 + $0x1c] sm:$0xf] %vm1504, %v3841
  %3882 = vst.msk [vmem:[#allocation2 + $0x20] sm:$0xf] %vm1504, %v3843
  %3883 = vst.msk [vmem:[#allocation2 + $0x24] sm:$0xf] %vm1504, %v3845
  %3884 = vst.msk [vmem:[#allocation2 + $0x28] sm:$0xf] %vm1504, %v3847
  %3885 = vst.msk [vmem:[#allocation2 + $0x2c] sm:$0xf] %vm1504, %v3849
  %3886 = vst.msk [vmem:[#allocation2 + $0x30] sm:$0xf] %vm1504, %v3851
  %3887 = vst.msk [vmem:[#allocation2 + $0x34] sm:$0xf] %vm1504, %v3853
  %3888 = vst.msk [vmem:[#allocation2 + $0x38] sm:$0xf] %vm1504, %v3855
  %3889 = vst.msk [vmem:[#allocation2 + $0x3c] sm:$0xf] %vm1504, %v3857
  %v3890 = vld [vmem:[#allocation2] sm:$0xf]
  %v3891 = vld [vmem:[#allocation2 + $0x4] sm:$0xf]
  %v3892 = vld [vmem:[#allocation2 + $0x8] sm:$0xf]
  %v3893 = vld [vmem:[#allocation2 + $0xc] sm:$0xf]
  %v3894 = vld [vmem:[#allocation2 + $0x10] sm:$0xf]
  %v3895 = vld [vmem:[#allocation2 + $0x14] sm:$0xf]
  %v3896 = vld [vmem:[#allocation2 + $0x18] sm:$0xf]
  %v3897 = vld [vmem:[#allocation2 + $0x1c] sm:$0xf]
  %v3898 = vld [vmem:[#allocation2 + $0x20] sm:$0xf]
  %v3899 = vld [vmem:[#allocation2 + $0x24] sm:$0xf]
  %v3900 = vld [vmem:[#allocation2 + $0x28] sm:$0xf]
  %v3901 = vld [vmem:[#allocation2 + $0x2c] sm:$0xf]
  %v3902 = vld [vmem:[#allocation2 + $0x30] sm:$0xf]
  %v3903 = vld [vmem:[#allocation2 + $0x34] sm:$0xf]
  %v3904 = vld [vmem:[#allocation2 + $0x38] sm:$0xf]
  %v3905 = vld [vmem:[#allocation2 + $0x3c] sm:$0xf]
  %v3906 = vld [vmem:[%s1] sm:$0xf]
  %v3907 = vld [vmem:[%s1 + $0x4] sm:$0xf]
  %v3908 = vld [vmem:[%s1 + $0x8] sm:$0xf]
  %v3909 = vld [vmem:[%s1 + $0xc] sm:$0xf]
  %v3910 = vld [vmem:[%s1 + $0x10] sm:$0xf]
  %v3911 = vld [vmem:[%s1 + $0x14] sm:$0xf]
  %v3912 = vld [vmem:[%s1 + $0x18] sm:$0xf]
  %v3913 = vld [vmem:[%s1 + $0x1c] sm:$0xf]
  %v3914 = vld [vmem:[%s1 + $0x20] sm:$0xf]
  %v3915 = vld [vmem:[%s1 + $0x24] sm:$0xf]
  %v3916 = vld [vmem:[%s1 + $0x28] sm:$0xf]
  %v3917 = vld [vmem:[%s1 + $0x2c] sm:$0xf]
  %v3918 = vld [vmem:[%s1 + $0x30] sm:$0xf]
  %v3919 = vld [vmem:[%s1 + $0x34] sm:$0xf]
  %v3920 = vld [vmem:[%s1 + $0x38] sm:$0xf]
  %v3921 = vld [vmem:[%s1 + $0x3c] sm:$0xf]
  %v3938 = vunpack.c.l.b16 %v3890
  %v3939 = vunpack.c.l.b16 %v3891
  %v3940 = vunpack.c.l.b16 %v3892
  %v3941 = vunpack.c.l.b16 %v3893
  %v3942 = vunpack.c.l.b16 %v3894
  %v3943 = vunpack.c.l.b16 %v3895
  %v3944 = vunpack.c.l.b16 %v3896
  %v3945 = vunpack.c.l.b16 %v3897
  %v3946 = vunpack.c.l.b16 %v3898
  %v3947 = vunpack.c.l.b16 %v3899
  %v3948 = vunpack.c.l.b16 %v3900
  %v3949 = vunpack.c.l.b16 %v3901
  %v3950 = vunpack.c.l.b16 %v3902
  %v3951 = vunpack.c.l.b16 %v3903
  %v3952 = vunpack.c.l.b16 %v3904
  %v3953 = vunpack.c.l.b16 %v3905
  %v3954 = vpack.c.b16 %v3939, %v3938
  %v3955 = vpack.c.b16 %v3941, %v3940
  %v3956 = vpack.c.b16 %v3943, %v3942
  %v3957 = vpack.c.b16 %v3945, %v3944
  %v3958 = vpack.c.b16 %v3947, %v3946
  %v3959 = vpack.c.b16 %v3949, %v3948
  %v3960 = vpack.c.b16 %v3951, %v3950
  %v3961 = vpack.c.b16 %v3953, %v3952
  %v3986 = vunpack.c.l.b16 %v3906
  %v3987 = vunpack.c.l.b16 %v3907
  %v3988 = vunpack.c.l.b16 %v3908
  %v3989 = vunpack.c.l.b16 %v3909
  %v3990 = vunpack.c.l.b16 %v3910
  %v3991 = vunpack.c.l.b16 %v3911
  %v3992 = vunpack.c.l.b16 %v3912
  %v3993 = vunpack.c.l.b16 %v3913
  %v3994 = vunpack.c.l.b16 %v3914
  %v3995 = vunpack.c.l.b16 %v3915
  %v3996 = vunpack.c.l.b16 %v3916
  %v3997 = vunpack.c.l.b16 %v3917
  %v3998 = vunpack.c.l.b16 %v3918
  %v3999 = vunpack.c.l.b16 %v3919
  %v4000 = vunpack.c.l.b16 %v3920
  %v4001 = vunpack.c.l.b16 %v3921
  %v4002 = vpack.c.b16 %v3987, %v3986
  %v4003 = vpack.c.b16 %v3989, %v3988
  %v4004 = vpack.c.b16 %v3991, %v3990
  %v4005 = vpack.c.b16 %v3993, %v3992
  %v4006 = vpack.c.b16 %v3995, %v3994
  %v4007 = vpack.c.b16 %v3997, %v3996
  %v4008 = vpack.c.b16 %v3999, %v3998
  %v4009 = vpack.c.b16 %v4001, %v4000
  %4018 = vmatprep.subr.bf16.mxu0 0
  %4019 = vmatpush1.bf16.msra.mxu0 %v4009
  %4020 = vmatprep.subr.bf16.mxu0 0
  %4021 = vmatpush1.bf16.msra.mxu0 %v4008
  %4022 = vmatprep.subr.bf16.mxu0 0
  %4023 = vmatpush1.bf16.msra.mxu0 %v4007
  %4024 = vmatprep.subr.bf16.mxu0 0
  %4025 = vmatpush1.bf16.msra.mxu0 %v4006
  %4026 = vmatprep.subr.bf16.mxu0 0
  %4027 = vmatpush1.bf16.msra.mxu0 %v4005
  %4028 = vmatprep.subr.bf16.mxu0 0
  %4029 = vmatpush1.bf16.msra.mxu0 %v4004
  %4030 = vmatprep.subr.bf16.mxu0 0
  %4031 = vmatpush1.bf16.msra.mxu0 %v4003
  %4032 = vmatprep.subr.bf16.mxu0 0
  %4033 = vmatpush1.bf16.msra.mxu0 %v4002
  %4034 = vmatprep.subr.bf16.mxu0 0
  %4035 = vmatpush2.bf16.msra.mxu0 0
  %4036 = vmatprep.subr.bf16.mxu0 0
  %4037 = vmatpush2.bf16.msra.mxu0 0
  %4038 = vmatprep.subr.bf16.mxu0 0
  %4039 = vmatpush2.bf16.msra.mxu0 0
  %4040 = vmatprep.subr.bf16.mxu0 0
  %4041 = vmatpush2.bf16.msra.mxu0 0
  %4042 = vmatprep.subr.bf16.mxu0 0
  %4043 = vmatpush2.bf16.msra.mxu0 0
  %4044 = vmatprep.subr.bf16.mxu0 0
  %4045 = vmatpush2.bf16.msra.mxu0 0
  %4046 = vmatprep.subr.bf16.mxu0 0
  %4047 = vmatpush2.bf16.msra.mxu0 0
  %4048 = vmatprep.subr.bf16.mxu0 0
  %4049 = vmatpush2.bf16.msra.mxu0 0
  %4050 = vmatprep.mubr.bf16.mxu0 0
  %4051 = vmatmul.mubr.bf16.gmra.mxu0 %v3954
  %v4052 = vpop.f32.mrf.mxu0
  %v4053 = vadd.f32 0.0, %v4052
  %v4054 = vpop.f32.mrf.mxu0
  %v4055 = vpop.f32.mrf.mxu0
  %v4056 = vadd.f32 0.0, %v4055
  %v4057 = vpop.f32.mrf.mxu0
  %4058 = vmatprep.mubr.bf16.mxu0 0
  %4059 = vmatmul.mubr.bf16.gmra.mxu0 %v3955
  %v4060 = vpop.f32.mrf.mxu0
  %v4061 = vadd.f32 0.0, %v4060
  %v4062 = vpop.f32.mrf.mxu0
  %v4063 = vpop.f32.mrf.mxu0
  %v4064 = vadd.f32 0.0, %v4063
  %v4065 = vpop.f32.mrf.mxu0
  %4066 = vmatprep.mubr.bf16.mxu0 0
  %4067 = vmatmul.mubr.bf16.gmra.mxu0 %v3956
  %v4068 = vpop.f32.mrf.mxu0
  %v4069 = vadd.f32 0.0, %v4068
  %v4070 = vpop.f32.mrf.mxu0
  %v4071 = vpop.f32.mrf.mxu0
  %v4072 = vadd.f32 0.0, %v4071
  %v4073 = vpop.f32.mrf.mxu0
  %4074 = vmatprep.mubr.bf16.mxu0 0
  %4075 = vmatmul.mubr.bf16.gmra.mxu0 %v3957
  %v4076 = vpop.f32.mrf.mxu0
  %v4077 = vadd.f32 0.0, %v4076
  %v4078 = vpop.f32.mrf.mxu0
  %v4079 = vpop.f32.mrf.mxu0
  %v4080 = vadd.f32 0.0, %v4079
  %v4081 = vpop.f32.mrf.mxu0
  %4082 = vmatprep.mubr.bf16.mxu0 0
  %4083 = vmatmul.mubr.bf16.gmra.mxu0 %v3958
  %v4084 = vpop.f32.mrf.mxu0
  %v4085 = vadd.f32 0.0, %v4084
  %v4086 = vpop.f32.mrf.mxu0
  %v4087 = vpop.f32.mrf.mxu0
  %v4088 = vadd.f32 0.0, %v4087
  %v4089 = vpop.f32.mrf.mxu0
  %4090 = vmatprep.mubr.bf16.mxu0 0
  %4091 = vmatmul.mubr.bf16.gmra.mxu0 %v3959
  %v4092 = vpop.f32.mrf.mxu0
  %v4093 = vadd.f32 0.0, %v4092
  %v4094 = vpop.f32.mrf.mxu0
  %v4095 = vpop.f32.mrf.mxu0
  %v4096 = vadd.f32 0.0, %v4095
  %v4097 = vpop.f32.mrf.mxu0
  %4098 = vmatprep.mubr.bf16.mxu0 0
  %4099 = vmatmul.mubr.bf16.gmra.mxu0 %v3960
  %v4100 = vpop.f32.mrf.mxu0
  %v4101 = vadd.f32 0.0, %v4100
  %v4102 = vpop.f32.mrf.mxu0
  %v4103 = vpop.f32.mrf.mxu0
  %v4104 = vadd.f32 0.0, %v4103
  %v4105 = vpop.f32.mrf.mxu0
  %4106 = vmatprep.mubr.bf16.mxu0 0
  %4107 = vmatmul.mubr.bf16.gmra.mxu0 %v3961
  %v4108 = vpop.f32.mrf.mxu0
  %v4109 = vadd.f32 0.0, %v4108
  %v4110 = vpop.f32.mrf.mxu0
  %v4111 = vpop.f32.mrf.mxu0
  %v4112 = vadd.f32 0.0, %v4111
  %v4113 = vpop.f32.mrf.mxu0
  %4114 = vdwg.mxu0
  %v4115 = vmax.f32 %v1684, %v4053
  %v4116 = vmax.f32 %v1687, %v4056
  %v4117 = vmax.f32 %v1692, %v4061
  %v4118 = vmax.f32 %v1695, %v4064
  %v4119 = vmax.f32 %v1700, %v4069
  %v4120 = vmax.f32 %v1703, %v4072
  %v4121 = vmax.f32 %v1708, %v4077
  %v4122 = vmax.f32 %v1711, %v4080
  %v4123 = vmax.f32 %v1716, %v4085
  %v4124 = vmax.f32 %v1719, %v4088
  %v4125 = vmax.f32 %v1724, %v4093
  %v4126 = vmax.f32 %v1727, %v4096
  %v4127 = vmax.f32 %v1732, %v4101
  %v4128 = vmax.f32 %v1735, %v4104
  %v4129 = vmax.f32 %v1740, %v4109
  %v4130 = vmax.f32 %v1743, %v4112
  %v4131 = vld [vmem:[%s487] sm:$0xf]
  %v4132 = vld [vmem:[%s487 + $0x8] sm:$0xf]
  %v4133 = vld [vmem:[%s487 + $0x10] sm:$0xf]
  %v4134 = vld [vmem:[%s487 + $0x18] sm:$0xf]
  %v4135 = vld [vmem:[%s487 + $0x20] sm:$0xf]
  %v4136 = vld [vmem:[%s487 + $0x28] sm:$0xf]
  %v4137 = vld [vmem:[%s487 + $0x30] sm:$0xf]
  %v4138 = vld [vmem:[%s487 + $0x38] sm:$0xf]
  %v4139 = vld [vmem:[%s487 + $0x48] sm:$0xf]
  %v4140 = vld [vmem:[%s487 + $0x50] sm:$0xf]
  %v4141 = vld [vmem:[%s487 + $0x58] sm:$0xf]
  %v4142 = vld [vmem:[%s487 + $0x60] sm:$0xf]
  %v4143 = vld [vmem:[%s487 + $0x68] sm:$0xf]
  %v4144 = vld [vmem:[%s487 + $0x70] sm:$0xf]
  %v4145 = vld [vmem:[%s487 + $0x78] sm:$0xf]
  %v4146 = vld [vmem:[%s487 + $0x80] sm:$0xf]
  %4147 = vst.msk [vmem:[#allocation2] sm:$0xf] %vm48, %v4131
  %4148 = vst.msk [vmem:[#allocation2 + $0x4] sm:$0xf] %vm48, %v4132
  %4149 = vst.msk [vmem:[#allocation2 + $0x8] sm:$0xf] %vm48, %v4133
  %4150 = vst.msk [vmem:[#allocation2 + $0xc] sm:$0xf] %vm48, %v4134
  %4151 = vst.msk [vmem:[#allocation2 + $0x10] sm:$0xf] %vm48, %v4135
  %4152 = vst.msk [vmem:[#allocation2 + $0x14] sm:$0xf] %vm48, %v4136
  %4153 = vst.msk [vmem:[#allocation2 + $0x18] sm:$0xf] %vm48, %v4137
  %4154 = vst.msk [vmem:[#allocation2 + $0x1c] sm:$0xf] %vm48, %v4138
  %4155 = vst.msk [vmem:[#allocation2 + $0x20] sm:$0xf] %vm48, %v4139
  %4156 = vst.msk [vmem:[#allocation2 + $0x24] sm:$0xf] %vm48, %v4140
  %4157 = vst.msk [vmem:[#allocation2 + $0x28] sm:$0xf] %vm48, %v4141
  %4158 = vst.msk [vmem:[#allocation2 + $0x2c] sm:$0xf] %vm48, %v4142
  %4159 = vst.msk [vmem:[#allocation2 + $0x30] sm:$0xf] %vm48, %v4143
  %4160 = vst.msk [vmem:[#allocation2 + $0x34] sm:$0xf] %vm48, %v4144
  %4161 = vst.msk [vmem:[#allocation2 + $0x38] sm:$0xf] %vm48, %v4145
  %4162 = vst.msk [vmem:[#allocation2 + $0x3c] sm:$0xf] %vm48, %v4146
  %v4163 = vld [vmem:[%s585] sm:$0xf]
  %v4164 = vld [vmem:[%s585 + $0x8] sm:$0xf]
  %v4165 = vld [vmem:[%s585 + $0x10] sm:$0xf]
  %v4166 = vld [vmem:[%s585 + $0x18] sm:$0xf]
  %v4167 = vld [vmem:[%s585 + $0x20] sm:$0xf]
  %v4168 = vld [vmem:[%s585 + $0x28] sm:$0xf]
  %v4169 = vld [vmem:[%s585 + $0x30] sm:$0xf]
  %v4170 = vld [vmem:[%s585 + $0x38] sm:$0xf]
  %v4171 = vld [vmem:[%s585 + $0x48] sm:$0xf]
  %v4172 = vld [vmem:[%s585 + $0x50] sm:$0xf]
  %v4173 = vld [vmem:[%s585 + $0x58] sm:$0xf]
  %v4174 = vld [vmem:[%s585 + $0x60] sm:$0xf]
  %v4175 = vld [vmem:[%s585 + $0x68] sm:$0xf]
  %v4176 = vld [vmem:[%s585 + $0x70] sm:$0xf]
  %v4177 = vld [vmem:[%s585 + $0x78] sm:$0xf]
  %v4178 = vld [vmem:[%s585 + $0x80] sm:$0xf]
  %4195 = vrot.lane.b32.xlu0 %v4163, 8
  %v4196 = vpop.permute.xlu0 %4195
  %4197 = vrot.lane.b32.xlu0 %v4164, 8
  %v4198 = vpop.permute.xlu0 %4197
  %4199 = vrot.lane.b32.xlu0 %v4165, 8
  %v4200 = vpop.permute.xlu0 %4199
  %4201 = vrot.lane.b32.xlu0 %v4166, 8
  %v4202 = vpop.permute.xlu0 %4201
  %4203 = vrot.lane.b32.xlu0 %v4167, 8
  %v4204 = vpop.permute.xlu0 %4203
  %4205 = vrot.lane.b32.xlu0 %v4168, 8
  %v4206 = vpop.permute.xlu0 %4205
  %4207 = vrot.lane.b32.xlu0 %v4169, 8
  %v4208 = vpop.permute.xlu0 %4207
  %4209 = vrot.lane.b32.xlu0 %v4170, 8
  %v4210 = vpop.permute.xlu0 %4209
  %4211 = vrot.lane.b32.xlu0 %v4171, 8
  %v4212 = vpop.permute.xlu0 %4211
  %4213 = vrot.lane.b32.xlu0 %v4172, 8
  %v4214 = vpop.permute.xlu0 %4213
  %4215 = vrot.lane.b32.xlu0 %v4173, 8
  %v4216 = vpop.permute.xlu0 %4215
  %4217 = vrot.lane.b32.xlu0 %v4174, 8
  %v4218 = vpop.permute.xlu0 %4217
  %4219 = vrot.lane.b32.xlu0 %v4175, 8
  %v4220 = vpop.permute.xlu0 %4219
  %4221 = vrot.lane.b32.xlu0 %v4176, 8
  %v4222 = vpop.permute.xlu0 %4221
  %4223 = vrot.lane.b32.xlu0 %v4177, 8
  %v4224 = vpop.permute.xlu0 %4223
  %4225 = vrot.lane.b32.xlu0 %v4178, 8
  %v4226 = vpop.permute.xlu0 %4225
  %4243 = vst.msk [vmem:[#allocation2] sm:$0xf] %vm146, %v4196
  %4244 = vst.msk [vmem:[#allocation2 + $0x4] sm:$0xf] %vm146, %v4198
  %4245 = vst.msk [vmem:[#allocation2 + $0x8] sm:$0xf] %vm146, %v4200
  %4246 = vst.msk [vmem:[#allocation2 + $0xc] sm:$0xf] %vm146, %v4202
  %4247 = vst.msk [vmem:[#allocation2 + $0x10] sm:$0xf] %vm146, %v4204
  %4248 = vst.msk [vmem:[#allocation2 + $0x14] sm:$0xf] %vm146, %v4206
  %4249 = vst.msk [vmem:[#allocation2 + $0x18] sm:$0xf] %vm146, %v4208
  %4250 = vst.msk [vmem:[#allocation2 + $0x1c] sm:$0xf] %vm146, %v4210
  %4251 = vst.msk [vmem:[#allocation2 + $0x20] sm:$0xf] %vm146, %v4212
  %4252 = vst.msk [vmem:[#allocation2 + $0x24] sm:$0xf] %vm146, %v4214
  %4253 = vst.msk [vmem:[#allocation2 + $0x28] sm:$0xf] %vm146, %v4216
  %4254 = vst.msk [vmem:[#allocation2 + $0x2c] sm:$0xf] %vm146, %v4218
  %4255 = vst.msk [vmem:[#allocation2 + $0x30] sm:$0xf] %vm146, %v4220
  %4256 = vst.msk [vmem:[#allocation2 + $0x34] sm:$0xf] %vm146, %v4222
  %4257 = vst.msk [vmem:[#allocation2 + $0x38] sm:$0xf] %vm146, %v4224
  %4258 = vst.msk [vmem:[#allocation2 + $0x3c] sm:$0xf] %vm146, %v4226
  %v4259 = vld [vmem:[%s487] sm:$0xf]
  %v4260 = vld [vmem:[%s487 + $0x4] sm:$0x1]
  %v4261 = vld [vmem:[%s487 + $0x8] sm:$0xf]
  %v4262 = vld [vmem:[%s487 + $0xc] sm:$0x1]
  %v4263 = vld [vmem:[%s487 + $0x10] sm:$0xf]
  %v4264 = vld [vmem:[%s487 + $0x14] sm:$0x1]
  %v4265 = vld [vmem:[%s487 + $0x18] sm:$0xf]
  %v4266 = vld [vmem:[%s487 + $0x1c] sm:$0x1]
  %v4267 = vld [vmem:[%s487 + $0x20] sm:$0xf]
  %v4268 = vld [vmem:[%s487 + $0x24] sm:$0x1]
  %v4269 = vld [vmem:[%s487 + $0x28] sm:$0xf]
  %v4270 = vld [vmem:[%s487 + $0x2c] sm:$0x1]
  %v4271 = vld [vmem:[%s487 + $0x30] sm:$0xf]
  %v4272 = vld [vmem:[%s487 + $0x34] sm:$0x1]
  %v4273 = vld [vmem:[%s487 + $0x38] sm:$0xf]
  %v4274 = vld [vmem:[%s487 + $0x3c] sm:$0x1]
  %v4275 = vld [vmem:[%s487 + $0x48] sm:$0xf]
  %v4276 = vld [vmem:[%s487 + $0x4c] sm:$0x1]
  %v4277 = vld [vmem:[%s487 + $0x50] sm:$0xf]
  %v4278 = vld [vmem:[%s487 + $0x54] sm:$0x1]
  %v4279 = vld [vmem:[%s487 + $0x58] sm:$0xf]
  %v4280 = vld [vmem:[%s487 + $0x5c] sm:$0x1]
  %v4281 = vld [vmem:[%s487 + $0x60] sm:$0xf]
  %v4282 = vld [vmem:[%s487 + $0x64] sm:$0x1]
  %v4283 = vld [vmem:[%s487 + $0x68] sm:$0xf]
  %v4284 = vld [vmem:[%s487 + $0x6c] sm:$0x1]
  %v4285 = vld [vmem:[%s487 + $0x70] sm:$0xf]
  %v4286 = vld [vmem:[%s487 + $0x74] sm:$0x1]
  %v4287 = vld [vmem:[%s487 + $0x78] sm:$0xf]
  %v4288 = vld [vmem:[%s487 + $0x7c] sm:$0x1]
  %v4289 = vld [vmem:[%s487 + $0x80] sm:$0xf]
  %v4290 = vld [vmem:[%s487 + $0x84] sm:$0x1]
  %v4292 = vshrl.u32 %v4259, 16
  %v4294 = vrot.slane %v4292, 4
  %v4295 = vshll.u32 %v4259, 16
  %v4297 = vrot.slane %v4295, 5
  %v4298 = vor.u32 %v4294, %v4297
  %v4299 = vrot.slane %v4298, 4
  %v4301 = vshll.u32 %v4260, 16
  %v4303 = vrot.slane %v4301, 5
  %v4304 = vsel %vm197, %v4299, %v4303
  %v4306 = vshrl.u32 %v4261, 16
  %v4308 = vrot.slane %v4306, 4
  %v4309 = vshll.u32 %v4261, 16
  %v4311 = vrot.slane %v4309, 5
  %v4312 = vor.u32 %v4308, %v4311
  %v4313 = vrot.slane %v4312, 4
  %v4315 = vshll.u32 %v4262, 16
  %v4317 = vrot.slane %v4315, 5
  %v4318 = vsel %vm197, %v4313, %v4317
  %v4320 = vshrl.u32 %v4263, 16
  %v4322 = vrot.slane %v4320, 4
  %v4323 = vshll.u32 %v4263, 16
  %v4325 = vrot.slane %v4323, 5
  %v4326 = vor.u32 %v4322, %v4325
  %v4327 = vrot.slane %v4326, 4
  %v4329 = vshll.u32 %v4264, 16
  %v4331 = vrot.slane %v4329, 5
  %v4332 = vsel %vm197, %v4327, %v4331
  %v4334 = vshrl.u32 %v4265, 16
  %v4336 = vrot.slane %v4334, 4
  %v4337 = vshll.u32 %v4265, 16
  %v4339 = vrot.slane %v4337, 5
  %v4340 = vor.u32 %v4336, %v4339
  %v4341 = vrot.slane %v4340, 4
  %v4343 = vshll.u32 %v4266, 16
  %v4345 = vrot.slane %v4343, 5
  %v4346 = vsel %vm197, %v4341, %v4345
  %v4348 = vshrl.u32 %v4267, 16
  %v4350 = vrot.slane %v4348, 4
  %v4351 = vshll.u32 %v4267, 16
  %v4353 = vrot.slane %v4351, 5
  %v4354 = vor.u32 %v4350, %v4353
  %v4355 = vrot.slane %v4354, 4
  %v4357 = vshll.u32 %v4268, 16
  %v4359 = vrot.slane %v4357, 5
  %v4360 = vsel %vm197, %v4355, %v4359
  %v4362 = vshrl.u32 %v4269, 16
  %v4364 = vrot.slane %v4362, 4
  %v4365 = vshll.u32 %v4269, 16
  %v4367 = vrot.slane %v4365, 5
  %v4368 = vor.u32 %v4364, %v4367
  %v4369 = vrot.slane %v4368, 4
  %v4371 = vshll.u32 %v4270, 16
  %v4373 = vrot.slane %v4371, 5
  %v4374 = vsel %vm197, %v4369, %v4373
  %v4376 = vshrl.u32 %v4271, 16
  %v4378 = vrot.slane %v4376, 4
  %v4379 = vshll.u32 %v4271, 16
  %v4381 = vrot.slane %v4379, 5
  %v4382 = vor.u32 %v4378, %v4381
  %v4383 = vrot.slane %v4382, 4
  %v4385 = vshll.u32 %v4272, 16
  %v4387 = vrot.slane %v4385, 5
  %v4388 = vsel %vm197, %v4383, %v4387
  %v4390 = vshrl.u32 %v4273, 16
  %v4392 = vrot.slane %v4390, 4
  %v4393 = vshll.u32 %v4273, 16
  %v4395 = vrot.slane %v4393, 5
  %v4396 = vor.u32 %v4392, %v4395
  %v4397 = vrot.slane %v4396, 4
  %v4399 = vshll.u32 %v4274, 16
  %v4401 = vrot.slane %v4399, 5
  %v4402 = vsel %vm197, %v4397, %v4401
  %v4404 = vshrl.u32 %v4275, 16
  %v4406 = vrot.slane %v4404, 4
  %v4407 = vshll.u32 %v4275, 16
  %v4409 = vrot.slane %v4407, 5
  %v4410 = vor.u32 %v4406, %v4409
  %v4411 = vrot.slane %v4410, 4
  %v4413 = vshll.u32 %v4276, 16
  %v4415 = vrot.slane %v4413, 5
  %v4416 = vsel %vm197, %v4411, %v4415
  %v4418 = vshrl.u32 %v4277, 16
  %v4420 = vrot.slane %v4418, 4
  %v4421 = vshll.u32 %v4277, 16
  %v4423 = vrot.slane %v4421, 5
  %v4424 = vor.u32 %v4420, %v4423
  %v4425 = vrot.slane %v4424, 4
  %v4427 = vshll.u32 %v4278, 16
  %v4429 = vrot.slane %v4427, 5
  %v4430 = vsel %vm197, %v4425, %v4429
  %v4432 = vshrl.u32 %v4279, 16
  %v4434 = vrot.slane %v4432, 4
  %v4435 = vshll.u32 %v4279, 16
  %v4437 = vrot.slane %v4435, 5
  %v4438 = vor.u32 %v4434, %v4437
  %v4439 = vrot.slane %v4438, 4
  %v4441 = vshll.u32 %v4280, 16
  %v4443 = vrot.slane %v4441, 5
  %v4444 = vsel %vm197, %v4439, %v4443
  %v4446 = vshrl.u32 %v4281, 16
  %v4448 = vrot.slane %v4446, 4
  %v4449 = vshll.u32 %v4281, 16
  %v4451 = vrot.slane %v4449, 5
  %v4452 = vor.u32 %v4448, %v4451
  %v4453 = vrot.slane %v4452, 4
  %v4455 = vshll.u32 %v4282, 16
  %v4457 = vrot.slane %v4455, 5
  %v4458 = vsel %vm197, %v4453, %v4457
  %v4460 = vshrl.u32 %v4283, 16
  %v4462 = vrot.slane %v4460, 4
  %v4463 = vshll.u32 %v4283, 16
  %v4465 = vrot.slane %v4463, 5
  %v4466 = vor.u32 %v4462, %v4465
  %v4467 = vrot.slane %v4466, 4
  %v4469 = vshll.u32 %v4284, 16
  %v4471 = vrot.slane %v4469, 5
  %v4472 = vsel %vm197, %v4467, %v4471
  %v4474 = vshrl.u32 %v4285, 16
  %v4476 = vrot.slane %v4474, 4
  %v4477 = vshll.u32 %v4285, 16
  %v4479 = vrot.slane %v4477, 5
  %v4480 = vor.u32 %v4476, %v4479
  %v4481 = vrot.slane %v4480, 4
  %v4483 = vshll.u32 %v4286, 16
  %v4485 = vrot.slane %v4483, 5
  %v4486 = vsel %vm197, %v4481, %v4485
  %v4488 = vshrl.u32 %v4287, 16
  %v4490 = vrot.slane %v4488, 4
  %v4491 = vshll.u32 %v4287, 16
  %v4493 = vrot.slane %v4491, 5
  %v4494 = vor.u32 %v4490, %v4493
  %v4495 = vrot.slane %v4494, 4
  %v4497 = vshll.u32 %v4288, 16
  %v4499 = vrot.slane %v4497, 5
  %v4500 = vsel %vm197, %v4495, %v4499
  %v4502 = vshrl.u32 %v4289, 16
  %v4504 = vrot.slane %v4502, 4
  %v4505 = vshll.u32 %v4289, 16
  %v4507 = vrot.slane %v4505, 5
  %v4508 = vor.u32 %v4504, %v4507
  %v4509 = vrot.slane %v4508, 4
  %v4511 = vshll.u32 %v4290, 16
  %v4513 = vrot.slane %v4511, 5
  %v4514 = vsel %vm197, %v4509, %v4513
  %4515 = vrot.lane.b32.xlu0 %v4304, 16
  %v4516 = vpop.permute.xlu0 %4515
  %4517 = vrot.lane.b32.xlu0 %v4318, 16
  %v4518 = vpop.permute.xlu0 %4517
  %4519 = vrot.lane.b32.xlu0 %v4332, 16
  %v4520 = vpop.permute.xlu0 %4519
  %4521 = vrot.lane.b32.xlu0 %v4346, 16
  %v4522 = vpop.permute.xlu0 %4521
  %4523 = vrot.lane.b32.xlu0 %v4360, 16
  %v4524 = vpop.permute.xlu0 %4523
  %4525 = vrot.lane.b32.xlu0 %v4374, 16
  %v4526 = vpop.permute.xlu0 %4525
  %4527 = vrot.lane.b32.xlu0 %v4388, 16
  %v4528 = vpop.permute.xlu0 %4527
  %4529 = vrot.lane.b32.xlu0 %v4402, 16
  %v4530 = vpop.permute.xlu0 %4529
  %4531 = vrot.lane.b32.xlu0 %v4416, 16
  %v4532 = vpop.permute.xlu0 %4531
  %4533 = vrot.lane.b32.xlu0 %v4430, 16
  %v4534 = vpop.permute.xlu0 %4533
  %4535 = vrot.lane.b32.xlu0 %v4444, 16
  %v4536 = vpop.permute.xlu0 %4535
  %4537 = vrot.lane.b32.xlu0 %v4458, 16
  %v4538 = vpop.permute.xlu0 %4537
  %4539 = vrot.lane.b32.xlu0 %v4472, 16
  %v4540 = vpop.permute.xlu0 %4539
  %4541 = vrot.lane.b32.xlu0 %v4486, 16
  %v4542 = vpop.permute.xlu0 %4541
  %4543 = vrot.lane.b32.xlu0 %v4500, 16
  %v4544 = vpop.permute.xlu0 %4543
  %4545 = vrot.lane.b32.xlu0 %v4514, 16
  %v4546 = vpop.permute.xlu0 %4545
  %4563 = vst.msk [vmem:[#allocation2] sm:$0xf] %vm470, %v4516
  %4564 = vst.msk [vmem:[#allocation2 + $0x4] sm:$0xf] %vm470, %v4518
  %4565 = vst.msk [vmem:[#allocation2 + $0x8] sm:$0xf] %vm470, %v4520
  %4566 = vst.msk [vmem:[#allocation2 + $0xc] sm:$0xf] %vm470, %v4522
  %4567 = vst.msk [vmem:[#allocation2 + $0x10] sm:$0xf] %vm470, %v4524
  %4568 = vst.msk [vmem:[#allocation2 + $0x14] sm:$0xf] %vm470, %v4526
  %4569 = vst.msk [vmem:[#allocation2 + $0x18] sm:$0xf] %vm470, %v4528
  %4570 = vst.msk [vmem:[#allocation2 + $0x1c] sm:$0xf] %vm470, %v4530
  %4571 = vst.msk [vmem:[#allocation2 + $0x20] sm:$0xf] %vm470, %v4532
  %4572 = vst.msk [vmem:[#allocation2 + $0x24] sm:$0xf] %vm470, %v4534
  %4573 = vst.msk [vmem:[#allocation2 + $0x28] sm:$0xf] %vm470, %v4536
  %4574 = vst.msk [vmem:[#allocation2 + $0x2c] sm:$0xf] %vm470, %v4538
  %4575 = vst.msk [vmem:[#allocation2 + $0x30] sm:$0xf] %vm470, %v4540
  %4576 = vst.msk [vmem:[#allocation2 + $0x34] sm:$0xf] %vm470, %v4542
  %4577 = vst.msk [vmem:[#allocation2 + $0x38] sm:$0xf] %vm470, %v4544
  %4578 = vst.msk [vmem:[#allocation2 + $0x3c] sm:$0xf] %vm470, %v4546
  %v4579 = vld [vmem:[%s1004] sm:$0xf]
  %v4580 = vld [vmem:[%s1004 + $0x8] sm:$0xf]
  %v4581 = vld [vmem:[%s1004 + $0x10] sm:$0xf]
  %v4582 = vld [vmem:[%s1004 + $0x18] sm:$0xf]
  %v4583 = vld [vmem:[%s1004 + $0x20] sm:$0xf]
  %v4584 = vld [vmem:[%s1004 + $0x28] sm:$0xf]
  %v4585 = vld [vmem:[%s1004 + $0x30] sm:$0xf]
  %v4586 = vld [vmem:[%s1004 + $0x38] sm:$0xf]
  %v4587 = vld [vmem:[%s1004 + $0x48] sm:$0xf]
  %v4588 = vld [vmem:[%s1004 + $0x50] sm:$0xf]
  %v4589 = vld [vmem:[%s1004 + $0x58] sm:$0xf]
  %v4590 = vld [vmem:[%s1004 + $0x60] sm:$0xf]
  %v4591 = vld [vmem:[%s1004 + $0x68] sm:$0xf]
  %v4592 = vld [vmem:[%s1004 + $0x70] sm:$0xf]
  %v4593 = vld [vmem:[%s1004 + $0x78] sm:$0xf]
  %v4594 = vld [vmem:[%s1004 + $0x80] sm:$0xf]
  %4611 = vrot.lane.b32.xlu0 %v4579, 24
  %v4612 = vpop.permute.xlu0 %4611
  %4613 = vrot.lane.b32.xlu0 %v4580, 24
  %v4614 = vpop.permute.xlu0 %4613
  %4615 = vrot.lane.b32.xlu0 %v4581, 24
  %v4616 = vpop.permute.xlu0 %4615
  %4617 = vrot.lane.b32.xlu0 %v4582, 24
  %v4618 = vpop.permute.xlu0 %4617
  %4619 = vrot.lane.b32.xlu0 %v4583, 24
  %v4620 = vpop.permute.xlu0 %4619
  %4621 = vrot.lane.b32.xlu0 %v4584, 24
  %v4622 = vpop.permute.xlu0 %4621
  %4623 = vrot.lane.b32.xlu0 %v4585, 24
  %v4624 = vpop.permute.xlu0 %4623
  %4625 = vrot.lane.b32.xlu0 %v4586, 24
  %v4626 = vpop.permute.xlu0 %4625
  %4627 = vrot.lane.b32.xlu0 %v4587, 24
  %v4628 = vpop.permute.xlu0 %4627
  %4629 = vrot.lane.b32.xlu0 %v4588, 24
  %v4630 = vpop.permute.xlu0 %4629
  %4631 = vrot.lane.b32.xlu0 %v4589, 24
  %v4632 = vpop.permute.xlu0 %4631
  %4633 = vrot.lane.b32.xlu0 %v4590, 24
  %v4634 = vpop.permute.xlu0 %4633
  %4635 = vrot.lane.b32.xlu0 %v4591, 24
  %v4636 = vpop.permute.xlu0 %4635
  %4637 = vrot.lane.b32.xlu0 %v4592, 24
  %v4638 = vpop.permute.xlu0 %4637
  %4639 = vrot.lane.b32.xlu0 %v4593, 24
  %v4640 = vpop.permute.xlu0 %4639
  %4641 = vrot.lane.b32.xlu0 %v4594, 24
  %v4642 = vpop.permute.xlu0 %4641
  %4659 = vst.msk [vmem:[#allocation2] sm:$0xf] %vm568, %v4612
  %4660 = vst.msk [vmem:[#allocation2 + $0x4] sm:$0xf] %vm568, %v4614
  %4661 = vst.msk [vmem:[#allocation2 + $0x8] sm:$0xf] %vm568, %v4616
  %4662 = vst.msk [vmem:[#allocation2 + $0xc] sm:$0xf] %vm568, %v4618
  %4663 = vst.msk [vmem:[#allocation2 + $0x10] sm:$0xf] %vm568, %v4620
  %4664 = vst.msk [vmem:[#allocation2 + $0x14] sm:$0xf] %vm568, %v4622
  %4665 = vst.msk [vmem:[#allocation2 + $0x18] sm:$0xf] %vm568, %v4624
  %4666 = vst.msk [vmem:[#allocation2 + $0x1c] sm:$0xf] %vm568, %v4626
  %4667 = vst.msk [vmem:[#allocation2 + $0x20] sm:$0xf] %vm568, %v4628
  %4668 = vst.msk [vmem:[#allocation2 + $0x24] sm:$0xf] %vm568, %v4630
  %4669 = vst.msk [vmem:[#allocation2 + $0x28] sm:$0xf] %vm568, %v4632
  %4670 = vst.msk [vmem:[#allocation2 + $0x2c] sm:$0xf] %vm568, %v4634
  %4671 = vst.msk [vmem:[#allocation2 + $0x30] sm:$0xf] %vm568, %v4636
  %4672 = vst.msk [vmem:[#allocation2 + $0x34] sm:$0xf] %vm568, %v4638
  %4673 = vst.msk [vmem:[#allocation2 + $0x38] sm:$0xf] %vm568, %v4640
  %4674 = vst.msk [vmem:[#allocation2 + $0x3c] sm:$0xf] %vm568, %v4642
  %v4675 = vld [vmem:[%s1102] sm:$0xf]
  %v4676 = vld [vmem:[%s1102 + $0x8] sm:$0xf]
  %v4677 = vld [vmem:[%s1102 + $0x10] sm:$0xf]
  %v4678 = vld [vmem:[%s1102 + $0x18] sm:$0xf]
  %v4679 = vld [vmem:[%s1102 + $0x20] sm:$0xf]
  %v4680 = vld [vmem:[%s1102 + $0x28] sm:$0xf]
  %v4681 = vld [vmem:[%s1102 + $0x30] sm:$0xf]
  %v4682 = vld [vmem:[%s1102 + $0x38] sm:$0xf]
  %v4683 = vld [vmem:[%s1102 + $0x48] sm:$0xf]
  %v4684 = vld [vmem:[%s1102 + $0x50] sm:$0xf]
  %v4685 = vld [vmem:[%s1102 + $0x58] sm:$0xf]
  %v4686 = vld [vmem:[%s1102 + $0x60] sm:$0xf]
  %v4687 = vld [vmem:[%s1102 + $0x68] sm:$0xf]
  %v4688 = vld [vmem:[%s1102 + $0x70] sm:$0xf]
  %v4689 = vld [vmem:[%s1102 + $0x78] sm:$0xf]
  %v4690 = vld [vmem:[%s1102 + $0x80] sm:$0xf]
  %4707 = vrot.lane.b32.xlu0 %v4675, 32
  %v4708 = vpop.permute.xlu0 %4707
  %4709 = vrot.lane.b32.xlu0 %v4676, 32
  %v4710 = vpop.permute.xlu0 %4709
  %4711 = vrot.lane.b32.xlu0 %v4677, 32
  %v4712 = vpop.permute.xlu0 %4711
  %4713 = vrot.lane.b32.xlu0 %v4678, 32
  %v4714 = vpop.permute.xlu0 %4713
  %4715 = vrot.lane.b32.xlu0 %v4679, 32
  %v4716 = vpop.permute.xlu0 %4715
  %4717 = vrot.lane.b32.xlu0 %v4680, 32
  %v4718 = vpop.permute.xlu0 %4717
  %4719 = vrot.lane.b32.xlu0 %v4681, 32
  %v4720 = vpop.permute.xlu0 %4719
  %4721 = vrot.lane.b32.xlu0 %v4682, 32
  %v4722 = vpop.permute.xlu0 %4721
  %4723 = vrot.lane.b32.xlu0 %v4683, 32
  %v4724 = vpop.permute.xlu0 %4723
  %4725 = vrot.lane.b32.xlu0 %v4684, 32
  %v4726 = vpop.permute.xlu0 %4725
  %4727 = vrot.lane.b32.xlu0 %v4685, 32
  %v4728 = vpop.permute.xlu0 %4727
  %4729 = vrot.lane.b32.xlu0 %v4686, 32
  %v4730 = vpop.permute.xlu0 %4729
  %4731 = vrot.lane.b32.xlu0 %v4687, 32
  %v4732 = vpop.permute.xlu0 %4731
  %4733 = vrot.lane.b32.xlu0 %v4688, 32
  %v4734 = vpop.permute.xlu0 %4733
  %4735 = vrot.lane.b32.xlu0 %v4689, 32
  %v4736 = vpop.permute.xlu0 %4735
  %4737 = vrot.lane.b32.xlu0 %v4690, 32
  %v4738 = vpop.permute.xlu0 %4737
  %4755 = vst.msk [vmem:[#allocation2] sm:$0xf] %vm666, %v4708
  %4756 = vst.msk [vmem:[#allocation2 + $0x4] sm:$0xf] %vm666, %v4710
  %4757 = vst.msk [vmem:[#allocation2 + $0x8] sm:$0xf] %vm666, %v4712
  %4758 = vst.msk [vmem:[#allocation2 + $0xc] sm:$0xf] %vm666, %v4714
  %4759 = vst.msk [vmem:[#allocation2 + $0x10] sm:$0xf] %vm666, %v4716
  %4760 = vst.msk [vmem:[#allocation2 + $0x14] sm:$0xf] %vm666, %v4718
  %4761 = vst.msk [vmem:[#allocation2 + $0x18] sm:$0xf] %vm666, %v4720
  %4762 = vst.msk [vmem:[#allocation2 + $0x1c] sm:$0xf] %vm666, %v4722
  %4763 = vst.msk [vmem:[#allocation2 + $0x20] sm:$0xf] %vm666, %v4724
  %4764 = vst.msk [vmem:[#allocation2 + $0x24] sm:$0xf] %vm666, %v4726
  %4765 = vst.msk [vmem:[#allocation2 + $0x28] sm:$0xf] %vm666, %v4728
  %4766 = vst.msk [vmem:[#allocation2 + $0x2c] sm:$0xf] %vm666, %v4730
  %4767 = vst.msk [vmem:[#allocation2 + $0x30] sm:$0xf] %vm666, %v4732
  %4768 = vst.msk [vmem:[#allocation2 + $0x34] sm:$0xf] %vm666, %v4734
  %4769 = vst.msk [vmem:[#allocation2 + $0x38] sm:$0xf] %vm666, %v4736
  %4770 = vst.msk [vmem:[#allocation2 + $0x3c] sm:$0xf] %vm666, %v4738
  %v4771 = vld [vmem:[%s1004] sm:$0xf]
  %v4772 = vld [vmem:[%s1004 + $0x4] sm:$0x1]
  %v4773 = vld [vmem:[%s1004 + $0x8] sm:$0xf]
  %v4774 = vld [vmem:[%s1004 + $0xc] sm:$0x1]
  %v4775 = vld [vmem:[%s1004 + $0x10] sm:$0xf]
  %v4776 = vld [vmem:[%s1004 + $0x14] sm:$0x1]
  %v4777 = vld [vmem:[%s1004 + $0x18] sm:$0xf]
  %v4778 = vld [vmem:[%s1004 + $0x1c] sm:$0x1]
  %v4779 = vld [vmem:[%s1004 + $0x20] sm:$0xf]
  %v4780 = vld [vmem:[%s1004 + $0x24] sm:$0x1]
  %v4781 = vld [vmem:[%s1004 + $0x28] sm:$0xf]
  %v4782 = vld [vmem:[%s1004 + $0x2c] sm:$0x1]
  %v4783 = vld [vmem:[%s1004 + $0x30] sm:$0xf]
  %v4784 = vld [vmem:[%s1004 + $0x34] sm:$0x1]
  %v4785 = vld [vmem:[%s1004 + $0x38] sm:$0xf]
  %v4786 = vld [vmem:[%s1004 + $0x3c] sm:$0x1]
  %v4787 = vld [vmem:[%s1004 + $0x48] sm:$0xf]
  %v4788 = vld [vmem:[%s1004 + $0x4c] sm:$0x1]
  %v4789 = vld [vmem:[%s1004 + $0x50] sm:$0xf]
  %v4790 = vld [vmem:[%s1004 + $0x54] sm:$0x1]
  %v4791 = vld [vmem:[%s1004 + $0x58] sm:$0xf]
  %v4792 = vld [vmem:[%s1004 + $0x5c] sm:$0x1]
  %v4793 = vld [vmem:[%s1004 + $0x60] sm:$0xf]
  %v4794 = vld [vmem:[%s1004 + $0x64] sm:$0x1]
  %v4795 = vld [vmem:[%s1004 + $0x68] sm:$0xf]
  %v4796 = vld [vmem:[%s1004 + $0x6c] sm:$0x1]
  %v4797 = vld [vmem:[%s1004 + $0x70] sm:$0xf]
  %v4798 = vld [vmem:[%s1004 + $0x74] sm:$0x1]
  %v4799 = vld [vmem:[%s1004 + $0x78] sm:$0xf]
  %v4800 = vld [vmem:[%s1004 + $0x7c] sm:$0x1]
  %v4801 = vld [vmem:[%s1004 + $0x80] sm:$0xf]
  %v4802 = vld [vmem:[%s1004 + $0x84] sm:$0x1]
  %v4804 = vshrl.u32 %v4771, 16
  %v4806 = vrot.slane %v4804, 4
  %v4807 = vshll.u32 %v4771, 16
  %v4809 = vrot.slane %v4807, 5
  %v4810 = vor.u32 %v4806, %v4809
  %v4811 = vrot.slane %v4810, 4
  %v4813 = vshll.u32 %v4772, 16
  %v4815 = vrot.slane %v4813, 5
  %v4816 = vsel %vm197, %v4811, %v4815
  %v4818 = vshrl.u32 %v4773, 16
  %v4820 = vrot.slane %v4818, 4
  %v4821 = vshll.u32 %v4773, 16
  %v4823 = vrot.slane %v4821, 5
  %v4824 = vor.u32 %v4820, %v4823
  %v4825 = vrot.slane %v4824, 4
  %v4827 = vshll.u32 %v4774, 16
  %v4829 = vrot.slane %v4827, 5
  %v4830 = vsel %vm197, %v4825, %v4829
  %v4832 = vshrl.u32 %v4775, 16
  %v4834 = vrot.slane %v4832, 4
  %v4835 = vshll.u32 %v4775, 16
  %v4837 = vrot.slane %v4835, 5
  %v4838 = vor.u32 %v4834, %v4837
  %v4839 = vrot.slane %v4838, 4
  %v4841 = vshll.u32 %v4776, 16
  %v4843 = vrot.slane %v4841, 5
  %v4844 = vsel %vm197, %v4839, %v4843
  %v4846 = vshrl.u32 %v4777, 16
  %v4848 = vrot.slane %v4846, 4
  %v4849 = vshll.u32 %v4777, 16
  %v4851 = vrot.slane %v4849, 5
  %v4852 = vor.u32 %v4848, %v4851
  %v4853 = vrot.slane %v4852, 4
  %v4855 = vshll.u32 %v4778, 16
  %v4857 = vrot.slane %v4855, 5
  %v4858 = vsel %vm197, %v4853, %v4857
  %v4860 = vshrl.u32 %v4779, 16
  %v4862 = vrot.slane %v4860, 4
  %v4863 = vshll.u32 %v4779, 16
  %v4865 = vrot.slane %v4863, 5
  %v4866 = vor.u32 %v4862, %v4865
  %v4867 = vrot.slane %v4866, 4
  %v4869 = vshll.u32 %v4780, 16
  %v4871 = vrot.slane %v4869, 5
  %v4872 = vsel %vm197, %v4867, %v4871
  %v4874 = vshrl.u32 %v4781, 16
  %v4876 = vrot.slane %v4874, 4
  %v4877 = vshll.u32 %v4781, 16
  %v4879 = vrot.slane %v4877, 5
  %v4880 = vor.u32 %v4876, %v4879
  %v4881 = vrot.slane %v4880, 4
  %v4883 = vshll.u32 %v4782, 16
  %v4885 = vrot.slane %v4883, 5
  %v4886 = vsel %vm197, %v4881, %v4885
  %v4888 = vshrl.u32 %v4783, 16
  %v4890 = vrot.slane %v4888, 4
  %v4891 = vshll.u32 %v4783, 16
  %v4893 = vrot.slane %v4891, 5
  %v4894 = vor.u32 %v4890, %v4893
  %v4895 = vrot.slane %v4894, 4
  %v4897 = vshll.u32 %v4784, 16
  %v4899 = vrot.slane %v4897, 5
  %v4900 = vsel %vm197, %v4895, %v4899
  %v4902 = vshrl.u32 %v4785, 16
  %v4904 = vrot.slane %v4902, 4
  %v4905 = vshll.u32 %v4785, 16
  %v4907 = vrot.slane %v4905, 5
  %v4908 = vor.u32 %v4904, %v4907
  %v4909 = vrot.slane %v4908, 4
  %v4911 = vshll.u32 %v4786, 16
  %v4913 = vrot.slane %v4911, 5
  %v4914 = vsel %vm197, %v4909, %v4913
  %v4916 = vshrl.u32 %v4787, 16
  %v4918 = vrot.slane %v4916, 4
  %v4919 = vshll.u32 %v4787, 16
  %v4921 = vrot.slane %v4919, 5
  %v4922 = vor.u32 %v4918, %v4921
  %v4923 = vrot.slane %v4922, 4
  %v4925 = vshll.u32 %v4788, 16
  %v4927 = vrot.slane %v4925, 5
  %v4928 = vsel %vm197, %v4923, %v4927
  %v4930 = vshrl.u32 %v4789, 16
  %v4932 = vrot.slane %v4930, 4
  %v4933 = vshll.u32 %v4789, 16
  %v4935 = vrot.slane %v4933, 5
  %v4936 = vor.u32 %v4932, %v4935
  %v4937 = vrot.slane %v4936, 4
  %v4939 = vshll.u32 %v4790, 16
  %v4941 = vrot.slane %v4939, 5
  %v4942 = vsel %vm197, %v4937, %v4941
  %v4944 = vshrl.u32 %v4791, 16
  %v4946 = vrot.slane %v4944, 4
  %v4947 = vshll.u32 %v4791, 16
  %v4949 = vrot.slane %v4947, 5
  %v4950 = vor.u32 %v4946, %v4949
  %v4951 = vrot.slane %v4950, 4
  %v4953 = vshll.u32 %v4792, 16
  %v4955 = vrot.slane %v4953, 5
  %v4956 = vsel %vm197, %v4951, %v4955
  %v4958 = vshrl.u32 %v4793, 16
  %v4960 = vrot.slane %v4958, 4
  %v4961 = vshll.u32 %v4793, 16
  %v4963 = vrot.slane %v4961, 5
  %v4964 = vor.u32 %v4960, %v4963
  %v4965 = vrot.slane %v4964, 4
  %v4967 = vshll.u32 %v4794, 16
  %v4969 = vrot.slane %v4967, 5
  %v4970 = vsel %vm197, %v4965, %v4969
  %v4972 = vshrl.u32 %v4795, 16
  %v4974 = vrot.slane %v4972, 4
  %v4975 = vshll.u32 %v4795, 16
  %v4977 = vrot.slane %v4975, 5
  %v4978 = vor.u32 %v4974, %v4977
  %v4979 = vrot.slane %v4978, 4
  %v4981 = vshll.u32 %v4796, 16
  %v4983 = vrot.slane %v4981, 5
  %v4984 = vsel %vm197, %v4979, %v4983
  %v4986 = vshrl.u32 %v4797, 16
  %v4988 = vrot.slane %v4986, 4
  %v4989 = vshll.u32 %v4797, 16
  %v4991 = vrot.slane %v4989, 5
  %v4992 = vor.u32 %v4988, %v4991
  %v4993 = vrot.slane %v4992, 4
  %v4995 = vshll.u32 %v4798, 16
  %v4997 = vrot.slane %v4995, 5
  %v4998 = vsel %vm197, %v4993, %v4997
  %v5000 = vshrl.u32 %v4799, 16
  %v5002 = vrot.slane %v5000, 4
  %v5003 = vshll.u32 %v4799, 16
  %v5005 = vrot.slane %v5003, 5
  %v5006 = vor.u32 %v5002, %v5005
  %v5007 = vrot.slane %v5006, 4
  %v5009 = vshll.u32 %v4800, 16
  %v5011 = vrot.slane %v5009, 5
  %v5012 = vsel %vm197, %v5007, %v5011
  %v5014 = vshrl.u32 %v4801, 16
  %v5016 = vrot.slane %v5014, 4
  %v5017 = vshll.u32 %v4801, 16
  %v5019 = vrot.slane %v5017, 5
  %v5020 = vor.u32 %v5016, %v5019
  %v5021 = vrot.slane %v5020, 4
  %v5023 = vshll.u32 %v4802, 16
  %v5025 = vrot.slane %v5023, 5
  %v5026 = vsel %vm197, %v5021, %v5025
  %5027 = vrot.lane.b32.xlu0 %v4816, 40
  %v5028 = vpop.permute.xlu0 %5027
  %5029 = vrot.lane.b32.xlu0 %v4830, 40
  %v5030 = vpop.permute.xlu0 %5029
  %5031 = vrot.lane.b32.xlu0 %v4844, 40
  %v5032 = vpop.permute.xlu0 %5031
  %5033 = vrot.lane.b32.xlu0 %v4858, 40
  %v5034 = vpop.permute.xlu0 %5033
  %5035 = vrot.lane.b32.xlu0 %v4872, 40
  %v5036 = vpop.permute.xlu0 %5035
  %5037 = vrot.lane.b32.xlu0 %v4886, 40
  %v5038 = vpop.permute.xlu0 %5037
  %5039 = vrot.lane.b32.xlu0 %v4900, 40
  %v5040 = vpop.permute.xlu0 %5039
  %5041 = vrot.lane.b32.xlu0 %v4914, 40
  %v5042 = vpop.permute.xlu0 %5041
  %5043 = vrot.lane.b32.xlu0 %v4928, 40
  %v5044 = vpop.permute.xlu0 %5043
  %5045 = vrot.lane.b32.xlu0 %v4942, 40
  %v5046 = vpop.permute.xlu0 %5045
  %5047 = vrot.lane.b32.xlu0 %v4956, 40
  %v5048 = vpop.permute.xlu0 %5047
  %5049 = vrot.lane.b32.xlu0 %v4970, 40
  %v5050 = vpop.permute.xlu0 %5049
  %5051 = vrot.lane.b32.xlu0 %v4984, 40
  %v5052 = vpop.permute.xlu0 %5051
  %5053 = vrot.lane.b32.xlu0 %v4998, 40
  %v5054 = vpop.permute.xlu0 %5053
  %5055 = vrot.lane.b32.xlu0 %v5012, 40
  %v5056 = vpop.permute.xlu0 %5055
  %5057 = vrot.lane.b32.xlu0 %v5026, 40
  %v5058 = vpop.permute.xlu0 %5057
  %5075 = vst.msk [vmem:[#allocation2] sm:$0xf] %vm987, %v5028
  %5076 = vst.msk [vmem:[#allocation2 + $0x4] sm:$0xf] %vm987, %v5030
  %5077 = vst.msk [vmem:[#allocation2 + $0x8] sm:$0xf] %vm987, %v5032
  %5078 = vst.msk [vmem:[#allocation2 + $0xc] sm:$0xf] %vm987, %v5034
  %5079 = vst.msk [vmem:[#allocation2 + $0x10] sm:$0xf] %vm987, %v5036
  %5080 = vst.msk [vmem:[#allocation2 + $0x14] sm:$0xf] %vm987, %v5038
  %5081 = vst.msk [vmem:[#allocation2 + $0x18] sm:$0xf] %vm987, %v5040
  %5082 = vst.msk [vmem:[#allocation2 + $0x1c] sm:$0xf] %vm987, %v5042
  %5083 = vst.msk [vmem:[#allocation2 + $0x20] sm:$0xf] %vm987, %v5044
  %5084 = vst.msk [vmem:[#allocation2 + $0x24] sm:$0xf] %vm987, %v5046
  %5085 = vst.msk [vmem:[#allocation2 + $0x28] sm:$0xf] %vm987, %v5048
  %5086 = vst.msk [vmem:[#allocation2 + $0x2c] sm:$0xf] %vm987, %v5050
  %5087 = vst.msk [vmem:[#allocation2 + $0x30] sm:$0xf] %vm987, %v5052
  %5088 = vst.msk [vmem:[#allocation2 + $0x34] sm:$0xf] %vm987, %v5054
  %5089 = vst.msk [vmem:[#allocation2 + $0x38] sm:$0xf] %vm987, %v5056
  %5090 = vst.msk [vmem:[#allocation2 + $0x3c] sm:$0xf] %vm987, %v5058
  %s5091 = scalar_lea.vmem %s0, 296
  %v5092 = vld [vmem:[%s5091] sm:$0xf]
  %v5093 = vld [vmem:[%s5091 + $0x8] sm:$0xf]
  %v5094 = vld [vmem:[%s5091 + $0x10] sm:$0xf]
  %v5095 = vld [vmem:[%s5091 + $0x18] sm:$0xf]
  %v5096 = vld [vmem:[%s5091 + $0x20] sm:$0xf]
  %v5097 = vld [vmem:[%s5091 + $0x28] sm:$0xf]
  %v5098 = vld [vmem:[%s5091 + $0x30] sm:$0xf]
  %v5099 = vld [vmem:[%s5091 + $0x38] sm:$0xf]
  %v5100 = vld [vmem:[%s5091 + $0x48] sm:$0xf]
  %v5101 = vld [vmem:[%s5091 + $0x50] sm:$0xf]
  %v5102 = vld [vmem:[%s5091 + $0x58] sm:$0xf]
  %v5103 = vld [vmem:[%s5091 + $0x60] sm:$0xf]
  %v5104 = vld [vmem:[%s5091 + $0x68] sm:$0xf]
  %v5105 = vld [vmem:[%s5091 + $0x70] sm:$0xf]
  %v5106 = vld [vmem:[%s5091 + $0x78] sm:$0xf]
  %v5107 = vld [vmem:[%s5091 + $0x80] sm:$0xf]
  %5124 = vrot.lane.b32.xlu0 %v5092, 48
  %v5125 = vpop.permute.xlu0 %5124
  %5126 = vrot.lane.b32.xlu0 %v5093, 48
  %v5127 = vpop.permute.xlu0 %5126
  %5128 = vrot.lane.b32.xlu0 %v5094, 48
  %v5129 = vpop.permute.xlu0 %5128
  %5130 = vrot.lane.b32.xlu0 %v5095, 48
  %v5131 = vpop.permute.xlu0 %5130
  %5132 = vrot.lane.b32.xlu0 %v5096, 48
  %v5133 = vpop.permute.xlu0 %5132
  %5134 = vrot.lane.b32.xlu0 %v5097, 48
  %v5135 = vpop.permute.xlu0 %5134
  %5136 = vrot.lane.b32.xlu0 %v5098, 48
  %v5137 = vpop.permute.xlu0 %5136
  %5138 = vrot.lane.b32.xlu0 %v5099, 48
  %v5139 = vpop.permute.xlu0 %5138
  %5140 = vrot.lane.b32.xlu0 %v5100, 48
  %v5141 = vpop.permute.xlu0 %5140
  %5142 = vrot.lane.b32.xlu0 %v5101, 48
  %v5143 = vpop.permute.xlu0 %5142
  %5144 = vrot.lane.b32.xlu0 %v5102, 48
  %v5145 = vpop.permute.xlu0 %5144
  %5146 = vrot.lane.b32.xlu0 %v5103, 48
  %v5147 = vpop.permute.xlu0 %5146
  %5148 = vrot.lane.b32.xlu0 %v5104, 48
  %v5149 = vpop.permute.xlu0 %5148
  %5150 = vrot.lane.b32.xlu0 %v5105, 48
  %v5151 = vpop.permute.xlu0 %5150
  %5152 = vrot.lane.b32.xlu0 %v5106, 48
  %v5153 = vpop.permute.xlu0 %5152
  %5154 = vrot.lane.b32.xlu0 %v5107, 48
  %v5155 = vpop.permute.xlu0 %5154
  %5172 = vst.msk [vmem:[#allocation2] sm:$0xf] %vm1085, %v5125
  %5173 = vst.msk [vmem:[#allocation2 + $0x4] sm:$0xf] %vm1085, %v5127
  %5174 = vst.msk [vmem:[#allocation2 + $0x8] sm:$0xf] %vm1085, %v5129
  %5175 = vst.msk [vmem:[#allocation2 + $0xc] sm:$0xf] %vm1085, %v5131
  %5176 = vst.msk [vmem:[#allocation2 + $0x10] sm:$0xf] %vm1085, %v5133
  %5177 = vst.msk [vmem:[#allocation2 + $0x14] sm:$0xf] %vm1085, %v5135
  %5178 = vst.msk [vmem:[#allocation2 + $0x18] sm:$0xf] %vm1085, %v5137
  %5179 = vst.msk [vmem:[#allocation2 + $0x1c] sm:$0xf] %vm1085, %v5139
  %5180 = vst.msk [vmem:[#allocation2 + $0x20] sm:$0xf] %vm1085, %v5141
  %5181 = vst.msk [vmem:[#allocation2 + $0x24] sm:$0xf] %vm1085, %v5143
  %5182 = vst.msk [vmem:[#allocation2 + $0x28] sm:$0xf] %vm1085, %v5145
  %5183 = vst.msk [vmem:[#allocation2 + $0x2c] sm:$0xf] %vm1085, %v5147
  %5184 = vst.msk [vmem:[#allocation2 + $0x30] sm:$0xf] %vm1085, %v5149
  %5185 = vst.msk [vmem:[#allocation2 + $0x34] sm:$0xf] %vm1085, %v5151
  %5186 = vst.msk [vmem:[#allocation2 + $0x38] sm:$0xf] %vm1085, %v5153
  %5187 = vst.msk [vmem:[#allocation2 + $0x3c] sm:$0xf] %vm1085, %v5155
  %s5188 = scalar_lea.vmem %s0, 440
  %v5189 = vld [vmem:[%s5188] sm:$0xf]
  %v5190 = vld [vmem:[%s5188 + $0x8] sm:$0xf]
  %v5191 = vld [vmem:[%s5188 + $0x10] sm:$0xf]
  %v5192 = vld [vmem:[%s5188 + $0x18] sm:$0xf]
  %v5193 = vld [vmem:[%s5188 + $0x20] sm:$0xf]
  %v5194 = vld [vmem:[%s5188 + $0x28] sm:$0xf]
  %v5195 = vld [vmem:[%s5188 + $0x30] sm:$0xf]
  %v5196 = vld [vmem:[%s5188 + $0x38] sm:$0xf]
  %v5197 = vld [vmem:[%s5188 + $0x48] sm:$0xf]
  %v5198 = vld [vmem:[%s5188 + $0x50] sm:$0xf]
  %v5199 = vld [vmem:[%s5188 + $0x58] sm:$0xf]
  %v5200 = vld [vmem:[%s5188 + $0x60] sm:$0xf]
  %v5201 = vld [vmem:[%s5188 + $0x68] sm:$0xf]
  %v5202 = vld [vmem:[%s5188 + $0x70] sm:$0xf]
  %v5203 = vld [vmem:[%s5188 + $0x78] sm:$0xf]
  %v5204 = vld [vmem:[%s5188 + $0x80] sm:$0xf]
  %5221 = vrot.lane.b32.xlu0 %v5189, 56
  %v5222 = vpop.permute.xlu0 %5221
  %5223 = vrot.lane.b32.xlu0 %v5190, 56
  %v5224 = vpop.permute.xlu0 %5223
  %5225 = vrot.lane.b32.xlu0 %v5191, 56
  %v5226 = vpop.permute.xlu0 %5225
  %5227 = vrot.lane.b32.xlu0 %v5192, 56
  %v5228 = vpop.permute.xlu0 %5227
  %5229 = vrot.lane.b32.xlu0 %v5193, 56
  %v5230 = vpop.permute.xlu0 %5229
  %5231 = vrot.lane.b32.xlu0 %v5194, 56
  %v5232 = vpop.permute.xlu0 %5231
  %5233 = vrot.lane.b32.xlu0 %v5195, 56
  %v5234 = vpop.permute.xlu0 %5233
  %5235 = vrot.lane.b32.xlu0 %v5196, 56
  %v5236 = vpop.permute.xlu0 %5235
  %5237 = vrot.lane.b32.xlu0 %v5197, 56
  %v5238 = vpop.permute.xlu0 %5237
  %5239 = vrot.lane.b32.xlu0 %v5198, 56
  %v5240 = vpop.permute.xlu0 %5239
  %5241 = vrot.lane.b32.xlu0 %v5199, 56
  %v5242 = vpop.permute.xlu0 %5241
  %5243 = vrot.lane.b32.xlu0 %v5200, 56
  %v5244 = vpop.permute.xlu0 %5243
  %5245 = vrot.lane.b32.xlu0 %v5201, 56
  %v5246 = vpop.permute.xlu0 %5245
  %5247 = vrot.lane.b32.xlu0 %v5202, 56
  %v5248 = vpop.permute.xlu0 %5247
  %5249 = vrot.lane.b32.xlu0 %v5203, 56
  %v5250 = vpop.permute.xlu0 %5249
  %5251 = vrot.lane.b32.xlu0 %v5204, 56
  %v5252 = vpop.permute.xlu0 %5251
  %5269 = vst.msk [vmem:[#allocation2] sm:$0xf] %vm1183, %v5222
  %5270 = vst.msk [vmem:[#allocation2 + $0x4] sm:$0xf] %vm1183, %v5224
  %5271 = vst.msk [vmem:[#allocation2 + $0x8] sm:$0xf] %vm1183, %v5226
  %5272 = vst.msk [vmem:[#allocation2 + $0xc] sm:$0xf] %vm1183, %v5228
  %5273 = vst.msk [vmem:[#allocation2 + $0x10] sm:$0xf] %vm1183, %v5230
  %5274 = vst.msk [vmem:[#allocation2 + $0x14] sm:$0xf] %vm1183, %v5232
  %5275 = vst.msk [vmem:[#allocation2 + $0x18] sm:$0xf] %vm1183, %v5234
  %5276 = vst.msk [vmem:[#allocation2 + $0x1c] sm:$0xf] %vm1183, %v5236
  %5277 = vst.msk [vmem:[#allocation2 + $0x20] sm:$0xf] %vm1183, %v5238
  %5278 = vst.msk [vmem:[#allocation2 + $0x24] sm:$0xf] %vm1183, %v5240
  %5279 = vst.msk [vmem:[#allocation2 + $0x28] sm:$0xf] %vm1183, %v5242
  %5280 = vst.msk [vmem:[#allocation2 + $0x2c] sm:$0xf] %vm1183, %v5244
  %5281 = vst.msk [vmem:[#allocation2 + $0x30] sm:$0xf] %vm1183, %v5246
  %5282 = vst.msk [vmem:[#allocation2 + $0x34] sm:$0xf] %vm1183, %v5248
  %5283 = vst.msk [vmem:[#allocation2 + $0x38] sm:$0xf] %vm1183, %v5250
  %5284 = vst.msk [vmem:[#allocation2 + $0x3c] sm:$0xf] %vm1183, %v5252
  %v5285 = vld [vmem:[%s5091] sm:$0xf]
  %v5286 = vld [vmem:[%s5091 + $0x4] sm:$0x1]
  %v5287 = vld [vmem:[%s5091 + $0x8] sm:$0xf]
  %v5288 = vld [vmem:[%s5091 + $0xc] sm:$0x1]
  %v5289 = vld [vmem:[%s5091 + $0x10] sm:$0xf]
  %v5290 = vld [vmem:[%s5091 + $0x14] sm:$0x1]
  %v5291 = vld [vmem:[%s5091 + $0x18] sm:$0xf]
  %v5292 = vld [vmem:[%s5091 + $0x1c] sm:$0x1]
  %v5293 = vld [vmem:[%s5091 + $0x20] sm:$0xf]
  %v5294 = vld [vmem:[%s5091 + $0x24] sm:$0x1]
  %v5295 = vld [vmem:[%s5091 + $0x28] sm:$0xf]
  %v5296 = vld [vmem:[%s5091 + $0x2c] sm:$0x1]
  %v5297 = vld [vmem:[%s5091 + $0x30] sm:$0xf]
  %v5298 = vld [vmem:[%s5091 + $0x34] sm:$0x1]
  %v5299 = vld [vmem:[%s5091 + $0x38] sm:$0xf]
  %v5300 = vld [vmem:[%s5091 + $0x3c] sm:$0x1]
  %v5301 = vld [vmem:[%s5091 + $0x48] sm:$0xf]
  %v5302 = vld [vmem:[%s5091 + $0x4c] sm:$0x1]
  %v5303 = vld [vmem:[%s5091 + $0x50] sm:$0xf]
  %v5304 = vld [vmem:[%s5091 + $0x54] sm:$0x1]
  %v5305 = vld [vmem:[%s5091 + $0x58] sm:$0xf]
  %v5306 = vld [vmem:[%s5091 + $0x5c] sm:$0x1]
  %v5307 = vld [vmem:[%s5091 + $0x60] sm:$0xf]
  %v5308 = vld [vmem:[%s5091 + $0x64] sm:$0x1]
  %v5309 = vld [vmem:[%s5091 + $0x68] sm:$0xf]
  %v5310 = vld [vmem:[%s5091 + $0x6c] sm:$0x1]
  %v5311 = vld [vmem:[%s5091 + $0x70] sm:$0xf]
  %v5312 = vld [vmem:[%s5091 + $0x74] sm:$0x1]
  %v5313 = vld [vmem:[%s5091 + $0x78] sm:$0xf]
  %v5314 = vld [vmem:[%s5091 + $0x7c] sm:$0x1]
  %v5315 = vld [vmem:[%s5091 + $0x80] sm:$0xf]
  %v5316 = vld [vmem:[%s5091 + $0x84] sm:$0x1]
  %v5318 = vshrl.u32 %v5285, 16
  %v5320 = vrot.slane %v5318, 4
  %v5321 = vshll.u32 %v5285, 16
  %v5323 = vrot.slane %v5321, 5
  %v5324 = vor.u32 %v5320, %v5323
  %v5325 = vrot.slane %v5324, 4
  %v5327 = vshll.u32 %v5286, 16
  %v5329 = vrot.slane %v5327, 5
  %v5330 = vsel %vm197, %v5325, %v5329
  %v5332 = vshrl.u32 %v5287, 16
  %v5334 = vrot.slane %v5332, 4
  %v5335 = vshll.u32 %v5287, 16
  %v5337 = vrot.slane %v5335, 5
  %v5338 = vor.u32 %v5334, %v5337
  %v5339 = vrot.slane %v5338, 4
  %v5341 = vshll.u32 %v5288, 16
  %v5343 = vrot.slane %v5341, 5
  %v5344 = vsel %vm197, %v5339, %v5343
  %v5346 = vshrl.u32 %v5289, 16
  %v5348 = vrot.slane %v5346, 4
  %v5349 = vshll.u32 %v5289, 16
  %v5351 = vrot.slane %v5349, 5
  %v5352 = vor.u32 %v5348, %v5351
  %v5353 = vrot.slane %v5352, 4
  %v5355 = vshll.u32 %v5290, 16
  %v5357 = vrot.slane %v5355, 5
  %v5358 = vsel %vm197, %v5353, %v5357
  %v5360 = vshrl.u32 %v5291, 16
  %v5362 = vrot.slane %v5360, 4
  %v5363 = vshll.u32 %v5291, 16
  %v5365 = vrot.slane %v5363, 5
  %v5366 = vor.u32 %v5362, %v5365
  %v5367 = vrot.slane %v5366, 4
  %v5369 = vshll.u32 %v5292, 16
  %v5371 = vrot.slane %v5369, 5
  %v5372 = vsel %vm197, %v5367, %v5371
  %v5374 = vshrl.u32 %v5293, 16
  %v5376 = vrot.slane %v5374, 4
  %v5377 = vshll.u32 %v5293, 16
  %v5379 = vrot.slane %v5377, 5
  %v5380 = vor.u32 %v5376, %v5379
  %v5381 = vrot.slane %v5380, 4
  %v5383 = vshll.u32 %v5294, 16
  %v5385 = vrot.slane %v5383, 5
  %v5386 = vsel %vm197, %v5381, %v5385
  %v5388 = vshrl.u32 %v5295, 16
  %v5390 = vrot.slane %v5388, 4
  %v5391 = vshll.u32 %v5295, 16
  %v5393 = vrot.slane %v5391, 5
  %v5394 = vor.u32 %v5390, %v5393
  %v5395 = vrot.slane %v5394, 4
  %v5397 = vshll.u32 %v5296, 16
  %v5399 = vrot.slane %v5397, 5
  %v5400 = vsel %vm197, %v5395, %v5399
  %v5402 = vshrl.u32 %v5297, 16
  %v5404 = vrot.slane %v5402, 4
  %v5405 = vshll.u32 %v5297, 16
  %v5407 = vrot.slane %v5405, 5
  %v5408 = vor.u32 %v5404, %v5407
  %v5409 = vrot.slane %v5408, 4
  %v5411 = vshll.u32 %v5298, 16
  %v5413 = vrot.slane %v5411, 5
  %v5414 = vsel %vm197, %v5409, %v5413
  %v5416 = vshrl.u32 %v5299, 16
  %v5418 = vrot.slane %v5416, 4
  %v5419 = vshll.u32 %v5299, 16
  %v5421 = vrot.slane %v5419, 5
  %v5422 = vor.u32 %v5418, %v5421
  %v5423 = vrot.slane %v5422, 4
  %v5425 = vshll.u32 %v5300, 16
  %v5427 = vrot.slane %v5425, 5
  %v5428 = vsel %vm197, %v5423, %v5427
  %v5430 = vshrl.u32 %v5301, 16
  %v5432 = vrot.slane %v5430, 4
  %v5433 = vshll.u32 %v5301, 16
  %v5435 = vrot.slane %v5433, 5
  %v5436 = vor.u32 %v5432, %v5435
  %v5437 = vrot.slane %v5436, 4
  %v5439 = vshll.u32 %v5302, 16
  %v5441 = vrot.slane %v5439, 5
  %v5442 = vsel %vm197, %v5437, %v5441
  %v5444 = vshrl.u32 %v5303, 16
  %v5446 = vrot.slane %v5444, 4
  %v5447 = vshll.u32 %v5303, 16
  %v5449 = vrot.slane %v5447, 5
  %v5450 = vor.u32 %v5446, %v5449
  %v5451 = vrot.slane %v5450, 4
  %v5453 = vshll.u32 %v5304, 16
  %v5455 = vrot.slane %v5453, 5
  %v5456 = vsel %vm197, %v5451, %v5455
  %v5458 = vshrl.u32 %v5305, 16
  %v5460 = vrot.slane %v5458, 4
  %v5461 = vshll.u32 %v5305, 16
  %v5463 = vrot.slane %v5461, 5
  %v5464 = vor.u32 %v5460, %v5463
  %v5465 = vrot.slane %v5464, 4
  %v5467 = vshll.u32 %v5306, 16
  %v5469 = vrot.slane %v5467, 5
  %v5470 = vsel %vm197, %v5465, %v5469
  %v5472 = vshrl.u32 %v5307, 16
  %v5474 = vrot.slane %v5472, 4
  %v5475 = vshll.u32 %v5307, 16
  %v5477 = vrot.slane %v5475, 5
  %v5478 = vor.u32 %v5474, %v5477
  %v5479 = vrot.slane %v5478, 4
  %v5481 = vshll.u32 %v5308, 16
  %v5483 = vrot.slane %v5481, 5
  %v5484 = vsel %vm197, %v5479, %v5483
  %v5486 = vshrl.u32 %v5309, 16
  %v5488 = vrot.slane %v5486, 4
  %v5489 = vshll.u32 %v5309, 16
  %v5491 = vrot.slane %v5489, 5
  %v5492 = vor.u32 %v5488, %v5491
  %v5493 = vrot.slane %v5492, 4
  %v5495 = vshll.u32 %v5310, 16
  %v5497 = vrot.slane %v5495, 5
  %v5498 = vsel %vm197, %v5493, %v5497
  %v5500 = vshrl.u32 %v5311, 16
  %v5502 = vrot.slane %v5500, 4
  %v5503 = vshll.u32 %v5311, 16
  %v5505 = vrot.slane %v5503, 5
  %v5506 = vor.u32 %v5502, %v5505
  %v5507 = vrot.slane %v5506, 4
  %v5509 = vshll.u32 %v5312, 16
  %v5511 = vrot.slane %v5509, 5
  %v5512 = vsel %vm197, %v5507, %v5511
  %v5514 = vshrl.u32 %v5313, 16
  %v5516 = vrot.slane %v5514, 4
  %v5517 = vshll.u32 %v5313, 16
  %v5519 = vrot.slane %v5517, 5
  %v5520 = vor.u32 %v5516, %v5519
  %v5521 = vrot.slane %v5520, 4
  %v5523 = vshll.u32 %v5314, 16
  %v5525 = vrot.slane %v5523, 5
  %v5526 = vsel %vm197, %v5521, %v5525
  %v5528 = vshrl.u32 %v5315, 16
  %v5530 = vrot.slane %v5528, 4
  %v5531 = vshll.u32 %v5315, 16
  %v5533 = vrot.slane %v5531, 5
  %v5534 = vor.u32 %v5530, %v5533
  %v5535 = vrot.slane %v5534, 4
  %v5537 = vshll.u32 %v5316, 16
  %v5539 = vrot.slane %v5537, 5
  %v5540 = vsel %vm197, %v5535, %v5539
  %5541 = vrot.lane.b32.xlu0 %v5330, 64
  %v5542 = vpop.permute.xlu0 %5541
  %5543 = vrot.lane.b32.xlu0 %v5344, 64
  %v5544 = vpop.permute.xlu0 %5543
  %5545 = vrot.lane.b32.xlu0 %v5358, 64
  %v5546 = vpop.permute.xlu0 %5545
  %5547 = vrot.lane.b32.xlu0 %v5372, 64
  %v5548 = vpop.permute.xlu0 %5547
  %5549 = vrot.lane.b32.xlu0 %v5386, 64
  %v5550 = vpop.permute.xlu0 %5549
  %5551 = vrot.lane.b32.xlu0 %v5400, 64
  %v5552 = vpop.permute.xlu0 %5551
  %5553 = vrot.lane.b32.xlu0 %v5414, 64
  %v5554 = vpop.permute.xlu0 %5553
  %5555 = vrot.lane.b32.xlu0 %v5428, 64
  %v5556 = vpop.permute.xlu0 %5555
  %5557 = vrot.lane.b32.xlu0 %v5442, 64
  %v5558 = vpop.permute.xlu0 %5557
  %5559 = vrot.lane.b32.xlu0 %v5456, 64
  %v5560 = vpop.permute.xlu0 %5559
  %5561 = vrot.lane.b32.xlu0 %v5470, 64
  %v5562 = vpop.permute.xlu0 %5561
  %5563 = vrot.lane.b32.xlu0 %v5484, 64
  %v5564 = vpop.permute.xlu0 %5563
  %5565 = vrot.lane.b32.xlu0 %v5498, 64
  %v5566 = vpop.permute.xlu0 %5565
  %5567 = vrot.lane.b32.xlu0 %v5512, 64
  %v5568 = vpop.permute.xlu0 %5567
  %5569 = vrot.lane.b32.xlu0 %v5526, 64
  %v5570 = vpop.permute.xlu0 %5569
  %5571 = vrot.lane.b32.xlu0 %v5540, 64
  %v5572 = vpop.permute.xlu0 %5571
  %5589 = vst.msk [vmem:[#allocation2] sm:$0xf] %vm1504, %v5542
  %5590 = vst.msk [vmem:[#allocation2 + $0x4] sm:$0xf] %vm1504, %v5544
  %5591 = vst.msk [vmem:[#allocation2 + $0x8] sm:$0xf] %vm1504, %v5546
  %5592 = vst.msk [vmem:[#allocation2 + $0xc] sm:$0xf] %vm1504, %v5548
  %5593 = vst.msk [vmem:[#allocation2 + $0x10] sm:$0xf] %vm1504, %v5550
  %5594 = vst.msk [vmem:[#allocation2 + $0x14] sm:$0xf] %vm1504, %v5552
  %5595 = vst.msk [vmem:[#allocation2 + $0x18] sm:$0xf] %vm1504, %v5554
  %5596 = vst.msk [vmem:[#allocation2 + $0x1c] sm:$0xf] %vm1504, %v5556
  %5597 = vst.msk [vmem:[#allocation2 + $0x20] sm:$0xf] %vm1504, %v5558
  %5598 = vst.msk [vmem:[#allocation2 + $0x24] sm:$0xf] %vm1504, %v5560
  %5599 = vst.msk [vmem:[#allocation2 + $0x28] sm:$0xf] %vm1504, %v5562
  %5600 = vst.msk [vmem:[#allocation2 + $0x2c] sm:$0xf] %vm1504, %v5564
  %5601 = vst.msk [vmem:[#allocation2 + $0x30] sm:$0xf] %vm1504, %v5566
  %5602 = vst.msk [vmem:[#allocation2 + $0x34] sm:$0xf] %vm1504, %v5568
  %5603 = vst.msk [vmem:[#allocation2 + $0x38] sm:$0xf] %vm1504, %v5570
  %5604 = vst.msk [vmem:[#allocation2 + $0x3c] sm:$0xf] %vm1504, %v5572
  %v5605 = vld [vmem:[#allocation2] sm:$0xf]
  %v5606 = vld [vmem:[#allocation2 + $0x4] sm:$0xf]
  %v5607 = vld [vmem:[#allocation2 + $0x8] sm:$0xf]
  %v5608 = vld [vmem:[#allocation2 + $0xc] sm:$0xf]
  %v5609 = vld [vmem:[#allocation2 + $0x10] sm:$0xf]
  %v5610 = vld [vmem:[#allocation2 + $0x14] sm:$0xf]
  %v5611 = vld [vmem:[#allocation2 + $0x18] sm:$0xf]
  %v5612 = vld [vmem:[#allocation2 + $0x1c] sm:$0xf]
  %v5613 = vld [vmem:[#allocation2 + $0x20] sm:$0xf]
  %v5614 = vld [vmem:[#allocation2 + $0x24] sm:$0xf]
  %v5615 = vld [vmem:[#allocation2 + $0x28] sm:$0xf]
  %v5616 = vld [vmem:[#allocation2 + $0x2c] sm:$0xf]
  %v5617 = vld [vmem:[#allocation2 + $0x30] sm:$0xf]
  %v5618 = vld [vmem:[#allocation2 + $0x34] sm:$0xf]
  %v5619 = vld [vmem:[#allocation2 + $0x38] sm:$0xf]
  %v5620 = vld [vmem:[#allocation2 + $0x3c] sm:$0xf]
  %v5621 = vld [vmem:[%s1] sm:$0xf]
  %v5622 = vld [vmem:[%s1 + $0x4] sm:$0xf]
  %v5623 = vld [vmem:[%s1 + $0x8] sm:$0xf]
  %v5624 = vld [vmem:[%s1 + $0xc] sm:$0xf]
  %v5625 = vld [vmem:[%s1 + $0x10] sm:$0xf]
  %v5626 = vld [vmem:[%s1 + $0x14] sm:$0xf]
  %v5627 = vld [vmem:[%s1 + $0x18] sm:$0xf]
  %v5628 = vld [vmem:[%s1 + $0x1c] sm:$0xf]
  %v5629 = vld [vmem:[%s1 + $0x20] sm:$0xf]
  %v5630 = vld [vmem:[%s1 + $0x24] sm:$0xf]
  %v5631 = vld [vmem:[%s1 + $0x28] sm:$0xf]
  %v5632 = vld [vmem:[%s1 + $0x2c] sm:$0xf]
  %v5633 = vld [vmem:[%s1 + $0x30] sm:$0xf]
  %v5634 = vld [vmem:[%s1 + $0x34] sm:$0xf]
  %v5635 = vld [vmem:[%s1 + $0x38] sm:$0xf]
  %v5636 = vld [vmem:[%s1 + $0x3c] sm:$0xf]
  %v5653 = vunpack.c.l.b16 %v5605
  %v5654 = vunpack.c.l.b16 %v5606
  %v5655 = vunpack.c.l.b16 %v5607
  %v5656 = vunpack.c.l.b16 %v5608
  %v5657 = vunpack.c.l.b16 %v5609
  %v5658 = vunpack.c.l.b16 %v5610
  %v5659 = vunpack.c.l.b16 %v5611
  %v5660 = vunpack.c.l.b16 %v5612
  %v5661 = vunpack.c.l.b16 %v5613
  %v5662 = vunpack.c.l.b16 %v5614
  %v5663 = vunpack.c.l.b16 %v5615
  %v5664 = vunpack.c.l.b16 %v5616
  %v5665 = vunpack.c.l.b16 %v5617
  %v5666 = vunpack.c.l.b16 %v5618
  %v5667 = vunpack.c.l.b16 %v5619
  %v5668 = vunpack.c.l.b16 %v5620
  %v5669 = vpack.c.b16 %v5654, %v5653
  %v5670 = vpack.c.b16 %v5656, %v5655
  %v5671 = vpack.c.b16 %v5658, %v5657
  %v5672 = vpack.c.b16 %v5660, %v5659
  %v5673 = vpack.c.b16 %v5662, %v5661
  %v5674 = vpack.c.b16 %v5664, %v5663
  %v5675 = vpack.c.b16 %v5666, %v5665
  %v5676 = vpack.c.b16 %v5668, %v5667
  %v5701 = vunpack.c.l.b16 %v5621
  %v5702 = vunpack.c.l.b16 %v5622
  %v5703 = vunpack.c.l.b16 %v5623
  %v5704 = vunpack.c.l.b16 %v5624
  %v5705 = vunpack.c.l.b16 %v5625
  %v5706 = vunpack.c.l.b16 %v5626
  %v5707 = vunpack.c.l.b16 %v5627
  %v5708 = vunpack.c.l.b16 %v5628
  %v5709 = vunpack.c.l.b16 %v5629
  %v5710 = vunpack.c.l.b16 %v5630
  %v5711 = vunpack.c.l.b16 %v5631
  %v5712 = vunpack.c.l.b16 %v5632
  %v5713 = vunpack.c.l.b16 %v5633
  %v5714 = vunpack.c.l.b16 %v5634
  %v5715 = vunpack.c.l.b16 %v5635
  %v5716 = vunpack.c.l.b16 %v5636
  %v5717 = vpack.c.b16 %v5702, %v5701
  %v5718 = vpack.c.b16 %v5704, %v5703
  %v5719 = vpack.c.b16 %v5706, %v5705
  %v5720 = vpack.c.b16 %v5708, %v5707
  %v5721 = vpack.c.b16 %v5710, %v5709
  %v5722 = vpack.c.b16 %v5712, %v5711
  %v5723 = vpack.c.b16 %v5714, %v5713
  %v5724 = vpack.c.b16 %v5716, %v5715
  %5733 = vmatprep.subr.bf16.mxu0 0
  %5734 = vmatpush1.bf16.msra.mxu0 %v5724
  %5735 = vmatprep.subr.bf16.mxu0 0
  %5736 = vmatpush1.bf16.msra.mxu0 %v5723
  %5737 = vmatprep.subr.bf16.mxu0 0
  %5738 = vmatpush1.bf16.msra.mxu0 %v5722
  %5739 = vmatprep.subr.bf16.mxu0 0
  %5740 = vmatpush1.bf16.msra.mxu0 %v5721
  %5741 = vmatprep.subr.bf16.mxu0 0
  %5742 = vmatpush1.bf16.msra.mxu0 %v5720
  %5743 = vmatprep.subr.bf16.mxu0 0
  %5744 = vmatpush1.bf16.msra.mxu0 %v5719
  %5745 = vmatprep.subr.bf16.mxu0 0
  %5746 = vmatpush1.bf16.msra.mxu0 %v5718
  %5747 = vmatprep.subr.bf16.mxu0 0
  %5748 = vmatpush1.bf16.msra.mxu0 %v5717
  %5749 = vmatprep.subr.bf16.mxu0 0
  %5750 = vmatpush2.bf16.msra.mxu0 0
  %5751 = vmatprep.subr.bf16.mxu0 0
  %5752 = vmatpush2.bf16.msra.mxu0 0
  %5753 = vmatprep.subr.bf16.mxu0 0
  %5754 = vmatpush2.bf16.msra.mxu0 0
  %5755 = vmatprep.subr.bf16.mxu0 0
  %5756 = vmatpush2.bf16.msra.mxu0 0
  %5757 = vmatprep.subr.bf16.mxu0 0
  %5758 = vmatpush2.bf16.msra.mxu0 0
  %5759 = vmatprep.subr.bf16.mxu0 0
  %5760 = vmatpush2.bf16.msra.mxu0 0
  %5761 = vmatprep.subr.bf16.mxu0 0
  %5762 = vmatpush2.bf16.msra.mxu0 0
  %5763 = vmatprep.subr.bf16.mxu0 0
  %5764 = vmatpush2.bf16.msra.mxu0 0
  %5765 = vmatprep.mubr.bf16.mxu0 0
  %5766 = vmatmul.mubr.bf16.gmra.mxu0 %v5669
  %v5767 = vpop.f32.mrf.mxu0
  %v5768 = vadd.f32 0.0, %v5767
  %v5769 = vpop.f32.mrf.mxu0
  %v5770 = vpop.f32.mrf.mxu0
  %v5771 = vadd.f32 0.0, %v5770
  %v5772 = vpop.f32.mrf.mxu0
  %5773 = vmatprep.mubr.bf16.mxu0 0
  %5774 = vmatmul.mubr.bf16.gmra.mxu0 %v5670
  %v5775 = vpop.f32.mrf.mxu0
  %v5776 = vadd.f32 0.0, %v5775
  %v5777 = vpop.f32.mrf.mxu0
  %v5778 = vpop.f32.mrf.mxu0
  %v5779 = vadd.f32 0.0, %v5778
  %v5780 = vpop.f32.mrf.mxu0
  %5781 = vmatprep.mubr.bf16.mxu0 0
  %5782 = vmatmul.mubr.bf16.gmra.mxu0 %v5671
  %v5783 = vpop.f32.mrf.mxu0
  %v5784 = vadd.f32 0.0, %v5783
  %v5785 = vpop.f32.mrf.mxu0
  %v5786 = vpop.f32.mrf.mxu0
  %v5787 = vadd.f32 0.0, %v5786
  %v5788 = vpop.f32.mrf.mxu0
  %5789 = vmatprep.mubr.bf16.mxu0 0
  %5790 = vmatmul.mubr.bf16.gmra.mxu0 %v5672
  %v5791 = vpop.f32.mrf.mxu0
  %v5792 = vadd.f32 0.0, %v5791
  %v5793 = vpop.f32.mrf.mxu0
  %v5794 = vpop.f32.mrf.mxu0
  %v5795 = vadd.f32 0.0, %v5794
  %v5796 = vpop.f32.mrf.mxu0
  %5797 = vmatprep.mubr.bf16.mxu0 0
  %5798 = vmatmul.mubr.bf16.gmra.mxu0 %v5673
  %v5799 = vpop.f32.mrf.mxu0
  %v5800 = vadd.f32 0.0, %v5799
  %v5801 = vpop.f32.mrf.mxu0
  %v5802 = vpop.f32.mrf.mxu0
  %v5803 = vadd.f32 0.0, %v5802
  %v5804 = vpop.f32.mrf.mxu0
  %5805 = vmatprep.mubr.bf16.mxu0 0
  %5806 = vmatmul.mubr.bf16.gmra.mxu0 %v5674
  %v5807 = vpop.f32.mrf.mxu0
  %v5808 = vadd.f32 0.0, %v5807
  %v5809 = vpop.f32.mrf.mxu0
  %v5810 = vpop.f32.mrf.mxu0
  %v5811 = vadd.f32 0.0, %v5810
  %v5812 = vpop.f32.mrf.mxu0
  %5813 = vmatprep.mubr.bf16.mxu0 0
  %5814 = vmatmul.mubr.bf16.gmra.mxu0 %v5675
  %v5815 = vpop.f32.mrf.mxu0
  %v5816 = vadd.f32 0.0, %v5815
  %v5817 = vpop.f32.mrf.mxu0
  %v5818 = vpop.f32.mrf.mxu0
  %v5819 = vadd.f32 0.0, %v5818
  %v5820 = vpop.f32.mrf.mxu0
  %5821 = vmatprep.mubr.bf16.mxu0 0
  %5822 = vmatmul.mubr.bf16.gmra.mxu0 %v5676
  %v5823 = vpop.f32.mrf.mxu0
  %v5824 = vadd.f32 0.0, %v5823
  %v5825 = vpop.f32.mrf.mxu0
  %v5826 = vpop.f32.mrf.mxu0
  %v5827 = vadd.f32 0.0, %v5826
  %v5828 = vpop.f32.mrf.mxu0
  %5829 = vdwg.mxu0
  %v5830 = vmax.f32 %v4115, %v5768
  %v5831 = vmax.f32 %v4116, %v5771
  %v5832 = vmax.f32 %v4117, %v5776
  %v5833 = vmax.f32 %v4118, %v5779
  %v5834 = vmax.f32 %v4119, %v5784
  %v5835 = vmax.f32 %v4120, %v5787
  %v5836 = vmax.f32 %v4121, %v5792
  %v5837 = vmax.f32 %v4122, %v5795
  %v5838 = vmax.f32 %v4123, %v5800
  %v5839 = vmax.f32 %v4124, %v5803
  %v5840 = vmax.f32 %v4125, %v5808
  %v5841 = vmax.f32 %v4126, %v5811
  %v5842 = vmax.f32 %v4127, %v5816
  %v5843 = vmax.f32 %v4128, %v5819
  %v5844 = vmax.f32 %v4129, %v5824
  %v5845 = vmax.f32 %v4130, %v5827
  %v5846 = vld [vmem:[%s585] sm:$0xf]
  %v5847 = vld [vmem:[%s585 + $0x8] sm:$0xf]
  %v5848 = vld [vmem:[%s585 + $0x10] sm:$0xf]
  %v5849 = vld [vmem:[%s585 + $0x18] sm:$0xf]
  %v5850 = vld [vmem:[%s585 + $0x20] sm:$0xf]
  %v5851 = vld [vmem:[%s585 + $0x28] sm:$0xf]
  %v5852 = vld [vmem:[%s585 + $0x30] sm:$0xf]
  %v5853 = vld [vmem:[%s585 + $0x38] sm:$0xf]
  %v5854 = vld [vmem:[%s585 + $0x48] sm:$0xf]
  %v5855 = vld [vmem:[%s585 + $0x50] sm:$0xf]
  %v5856 = vld [vmem:[%s585 + $0x58] sm:$0xf]
  %v5857 = vld [vmem:[%s585 + $0x60] sm:$0xf]
  %v5858 = vld [vmem:[%s585 + $0x68] sm:$0xf]
  %v5859 = vld [vmem:[%s585 + $0x70] sm:$0xf]
  %v5860 = vld [vmem:[%s585 + $0x78] sm:$0xf]
  %v5861 = vld [vmem:[%s585 + $0x80] sm:$0xf]
  %5862 = vst.msk [vmem:[#allocation2] sm:$0xf] %vm48, %v5846
  %5863 = vst.msk [vmem:[#allocation2 + $0x4] sm:$0xf] %vm48, %v5847
  %5864 = vst.msk [vmem:[#allocation2 + $0x8] sm:$0xf] %vm48, %v5848
  %5865 = vst.msk [vmem:[#allocation2 + $0xc] sm:$0xf] %vm48, %v5849
  %5866 = vst.msk [vmem:[#allocation2 + $0x10] sm:$0xf] %vm48, %v5850
  %5867 = vst.msk [vmem:[#allocation2 + $0x14] sm:$0xf] %vm48, %v5851
  %5868 = vst.msk [vmem:[#allocation2 + $0x18] sm:$0xf] %vm48, %v5852
  %5869 = vst.msk [vmem:[#allocation2 + $0x1c] sm:$0xf] %vm48, %v5853
  %5870 = vst.msk [vmem:[#allocation2 + $0x20] sm:$0xf] %vm48, %v5854
  %5871 = vst.msk [vmem:[#allocation2 + $0x24] sm:$0xf] %vm48, %v5855
  %5872 = vst.msk [vmem:[#allocation2 + $0x28] sm:$0xf] %vm48, %v5856
  %5873 = vst.msk [vmem:[#allocation2 + $0x2c] sm:$0xf] %vm48, %v5857
  %5874 = vst.msk [vmem:[#allocation2 + $0x30] sm:$0xf] %vm48, %v5858
  %5875 = vst.msk [vmem:[#allocation2 + $0x34] sm:$0xf] %vm48, %v5859
  %5876 = vst.msk [vmem:[#allocation2 + $0x38] sm:$0xf] %vm48, %v5860
  %5877 = vst.msk [vmem:[#allocation2 + $0x3c] sm:$0xf] %vm48, %v5861
  %v5878 = vld [vmem:[%s487] sm:$0xf]
  %v5879 = vld [vmem:[%s487 + $0x4] sm:$0x1]
  %v5880 = vld [vmem:[%s487 + $0x8] sm:$0xf]
  %v5881 = vld [vmem:[%s487 + $0xc] sm:$0x1]
  %v5882 = vld [vmem:[%s487 + $0x10] sm:$0xf]
  %v5883 = vld [vmem:[%s487 + $0x14] sm:$0x1]
  %v5884 = vld [vmem:[%s487 + $0x18] sm:$0xf]
  %v5885 = vld [vmem:[%s487 + $0x1c] sm:$0x1]
  %v5886 = vld [vmem:[%s487 + $0x20] sm:$0xf]
  %v5887 = vld [vmem:[%s487 + $0x24] sm:$0x1]
  %v5888 = vld [vmem:[%s487 + $0x28] sm:$0xf]
  %v5889 = vld [vmem:[%s487 + $0x2c] sm:$0x1]
  %v5890 = vld [vmem:[%s487 + $0x30] sm:$0xf]
  %v5891 = vld [vmem:[%s487 + $0x34] sm:$0x1]
  %v5892 = vld [vmem:[%s487 + $0x38] sm:$0xf]
  %v5893 = vld [vmem:[%s487 + $0x3c] sm:$0x1]
  %v5894 = vld [vmem:[%s487 + $0x48] sm:$0xf]
  %v5895 = vld [vmem:[%s487 + $0x4c] sm:$0x1]
  %v5896 = vld [vmem:[%s487 + $0x50] sm:$0xf]
  %v5897 = vld [vmem:[%s487 + $0x54] sm:$0x1]
  %v5898 = vld [vmem:[%s487 + $0x58] sm:$0xf]
  %v5899 = vld [vmem:[%s487 + $0x5c] sm:$0x1]
  %v5900 = vld [vmem:[%s487 + $0x60] sm:$0xf]
  %v5901 = vld [vmem:[%s487 + $0x64] sm:$0x1]
  %v5902 = vld [vmem:[%s487 + $0x68] sm:$0xf]
  %v5903 = vld [vmem:[%s487 + $0x6c] sm:$0x1]
  %v5904 = vld [vmem:[%s487 + $0x70] sm:$0xf]
  %v5905 = vld [vmem:[%s487 + $0x74] sm:$0x1]
  %v5906 = vld [vmem:[%s487 + $0x78] sm:$0xf]
  %v5907 = vld [vmem:[%s487 + $0x7c] sm:$0x1]
  %v5908 = vld [vmem:[%s487 + $0x80] sm:$0xf]
  %v5909 = vld [vmem:[%s487 + $0x84] sm:$0x1]
  %v5911 = vshrl.u32 %v5878, 16
  %v5913 = vrot.slane %v5911, 4
  %v5914 = vshll.u32 %v5878, 16
  %v5916 = vrot.slane %v5914, 5
  %v5917 = vor.u32 %v5913, %v5916
  %v5918 = vrot.slane %v5917, 4
  %v5920 = vshll.u32 %v5879, 16
  %v5922 = vrot.slane %v5920, 5
  %v5923 = vsel %vm197, %v5918, %v5922
  %v5925 = vshrl.u32 %v5880, 16
  %v5927 = vrot.slane %v5925, 4
  %v5928 = vshll.u32 %v5880, 16
  %v5930 = vrot.slane %v5928, 5
  %v5931 = vor.u32 %v5927, %v5930
  %v5932 = vrot.slane %v5931, 4
  %v5934 = vshll.u32 %v5881, 16
  %v5936 = vrot.slane %v5934, 5
  %v5937 = vsel %vm197, %v5932, %v5936
  %v5939 = vshrl.u32 %v5882, 16
  %v5941 = vrot.slane %v5939, 4
  %v5942 = vshll.u32 %v5882, 16
  %v5944 = vrot.slane %v5942, 5
  %v5945 = vor.u32 %v5941, %v5944
  %v5946 = vrot.slane %v5945, 4
  %v5948 = vshll.u32 %v5883, 16
  %v5950 = vrot.slane %v5948, 5
  %v5951 = vsel %vm197, %v5946, %v5950
  %v5953 = vshrl.u32 %v5884, 16
  %v5955 = vrot.slane %v5953, 4
  %v5956 = vshll.u32 %v5884, 16
  %v5958 = vrot.slane %v5956, 5
  %v5959 = vor.u32 %v5955, %v5958
  %v5960 = vrot.slane %v5959, 4
  %v5962 = vshll.u32 %v5885, 16
  %v5964 = vrot.slane %v5962, 5
  %v5965 = vsel %vm197, %v5960, %v5964
  %v5967 = vshrl.u32 %v5886, 16
  %v5969 = vrot.slane %v5967, 4
  %v5970 = vshll.u32 %v5886, 16
  %v5972 = vrot.slane %v5970, 5
  %v5973 = vor.u32 %v5969, %v5972
  %v5974 = vrot.slane %v5973, 4
  %v5976 = vshll.u32 %v5887, 16
  %v5978 = vrot.slane %v5976, 5
  %v5979 = vsel %vm197, %v5974, %v5978
  %v5981 = vshrl.u32 %v5888, 16
  %v5983 = vrot.slane %v5981, 4
  %v5984 = vshll.u32 %v5888, 16
  %v5986 = vrot.slane %v5984, 5
  %v5987 = vor.u32 %v5983, %v5986
  %v5988 = vrot.slane %v5987, 4
  %v5990 = vshll.u32 %v5889, 16
  %v5992 = vrot.slane %v5990, 5
  %v5993 = vsel %vm197, %v5988, %v5992
  %v5995 = vshrl.u32 %v5890, 16
  %v5997 = vrot.slane %v5995, 4
  %v5998 = vshll.u32 %v5890, 16
  %v6000 = vrot.slane %v5998, 5
  %v6001 = vor.u32 %v5997, %v6000
  %v6002 = vrot.slane %v6001, 4
  %v6004 = vshll.u32 %v5891, 16
  %v6006 = vrot.slane %v6004, 5
  %v6007 = vsel %vm197, %v6002, %v6006
  %v6009 = vshrl.u32 %v5892, 16
  %v6011 = vrot.slane %v6009, 4
  %v6012 = vshll.u32 %v5892, 16
  %v6014 = vrot.slane %v6012, 5
  %v6015 = vor.u32 %v6011, %v6014
  %v6016 = vrot.slane %v6015, 4
  %v6018 = vshll.u32 %v5893, 16
  %v6020 = vrot.slane %v6018, 5
  %v6021 = vsel %vm197, %v6016, %v6020
  %v6023 = vshrl.u32 %v5894, 16
  %v6025 = vrot.slane %v6023, 4
  %v6026 = vshll.u32 %v5894, 16
  %v6028 = vrot.slane %v6026, 5
  %v6029 = vor.u32 %v6025, %v6028
  %v6030 = vrot.slane %v6029, 4
  %v6032 = vshll.u32 %v5895, 16
  %v6034 = vrot.slane %v6032, 5
  %v6035 = vsel %vm197, %v6030, %v6034
  %v6037 = vshrl.u32 %v5896, 16
  %v6039 = vrot.slane %v6037, 4
  %v6040 = vshll.u32 %v5896, 16
  %v6042 = vrot.slane %v6040, 5
  %v6043 = vor.u32 %v6039, %v6042
  %v6044 = vrot.slane %v6043, 4
  %v6046 = vshll.u32 %v5897, 16
  %v6048 = vrot.slane %v6046, 5
  %v6049 = vsel %vm197, %v6044, %v6048
  %v6051 = vshrl.u32 %v5898, 16
  %v6053 = vrot.slane %v6051, 4
  %v6054 = vshll.u32 %v5898, 16
  %v6056 = vrot.slane %v6054, 5
  %v6057 = vor.u32 %v6053, %v6056
  %v6058 = vrot.slane %v6057, 4
  %v6060 = vshll.u32 %v5899, 16
  %v6062 = vrot.slane %v6060, 5
  %v6063 = vsel %vm197, %v6058, %v6062
  %v6065 = vshrl.u32 %v5900, 16
  %v6067 = vrot.slane %v6065, 4
  %v6068 = vshll.u32 %v5900, 16
  %v6070 = vrot.slane %v6068, 5
  %v6071 = vor.u32 %v6067, %v6070
  %v6072 = vrot.slane %v6071, 4
  %v6074 = vshll.u32 %v5901, 16
  %v6076 = vrot.slane %v6074, 5
  %v6077 = vsel %vm197, %v6072, %v6076
  %v6079 = vshrl.u32 %v5902, 16
  %v6081 = vrot.slane %v6079, 4
  %v6082 = vshll.u32 %v5902, 16
  %v6084 = vrot.slane %v6082, 5
  %v6085 = vor.u32 %v6081, %v6084
  %v6086 = vrot.slane %v6085, 4
  %v6088 = vshll.u32 %v5903, 16
  %v6090 = vrot.slane %v6088, 5
  %v6091 = vsel %vm197, %v6086, %v6090
  %v6093 = vshrl.u32 %v5904, 16
  %v6095 = vrot.slane %v6093, 4
  %v6096 = vshll.u32 %v5904, 16
  %v6098 = vrot.slane %v6096, 5
  %v6099 = vor.u32 %v6095, %v6098
  %v6100 = vrot.slane %v6099, 4
  %v6102 = vshll.u32 %v5905, 16
  %v6104 = vrot.slane %v6102, 5
  %v6105 = vsel %vm197, %v6100, %v6104
  %v6107 = vshrl.u32 %v5906, 16
  %v6109 = vrot.slane %v6107, 4
  %v6110 = vshll.u32 %v5906, 16
  %v6112 = vrot.slane %v6110, 5
  %v6113 = vor.u32 %v6109, %v6112
  %v6114 = vrot.slane %v6113, 4
  %v6116 = vshll.u32 %v5907, 16
  %v6118 = vrot.slane %v6116, 5
  %v6119 = vsel %vm197, %v6114, %v6118
  %v6121 = vshrl.u32 %v5908, 16
  %v6123 = vrot.slane %v6121, 4
  %v6124 = vshll.u32 %v5908, 16
  %v6126 = vrot.slane %v6124, 5
  %v6127 = vor.u32 %v6123, %v6126
  %v6128 = vrot.slane %v6127, 4
  %v6130 = vshll.u32 %v5909, 16
  %v6132 = vrot.slane %v6130, 5
  %v6133 = vsel %vm197, %v6128, %v6132
  %6134 = vrot.lane.b32.xlu0 %v5923, 8
  %v6135 = vpop.permute.xlu0 %6134
  %6136 = vrot.lane.b32.xlu0 %v5937, 8
  %v6137 = vpop.permute.xlu0 %6136
  %6138 = vrot.lane.b32.xlu0 %v5951, 8
  %v6139 = vpop.permute.xlu0 %6138
  %6140 = vrot.lane.b32.xlu0 %v5965, 8
  %v6141 = vpop.permute.xlu0 %6140
  %6142 = vrot.lane.b32.xlu0 %v5979, 8
  %v6143 = vpop.permute.xlu0 %6142
  %6144 = vrot.lane.b32.xlu0 %v5993, 8
  %v6145 = vpop.permute.xlu0 %6144
  %6146 = vrot.lane.b32.xlu0 %v6007, 8
  %v6147 = vpop.permute.xlu0 %6146
  %6148 = vrot.lane.b32.xlu0 %v6021, 8
  %v6149 = vpop.permute.xlu0 %6148
  %6150 = vrot.lane.b32.xlu0 %v6035, 8
  %v6151 = vpop.permute.xlu0 %6150
  %6152 = vrot.lane.b32.xlu0 %v6049, 8
  %v6153 = vpop.permute.xlu0 %6152
  %6154 = vrot.lane.b32.xlu0 %v6063, 8
  %v6155 = vpop.permute.xlu0 %6154
  %6156 = vrot.lane.b32.xlu0 %v6077, 8
  %v6157 = vpop.permute.xlu0 %6156
  %6158 = vrot.lane.b32.xlu0 %v6091, 8
  %v6159 = vpop.permute.xlu0 %6158
  %6160 = vrot.lane.b32.xlu0 %v6105, 8
  %v6161 = vpop.permute.xlu0 %6160
  %6162 = vrot.lane.b32.xlu0 %v6119, 8
  %v6163 = vpop.permute.xlu0 %6162
  %6164 = vrot.lane.b32.xlu0 %v6133, 8
  %v6165 = vpop.permute.xlu0 %6164
  %6182 = vst.msk [vmem:[#allocation2] sm:$0xf] %vm146, %v6135
  %6183 = vst.msk [vmem:[#allocation2 + $0x4] sm:$0xf] %vm146, %v6137
  %6184 = vst.msk [vmem:[#allocation2 + $0x8] sm:$0xf] %vm146, %v6139
  %6185 = vst.msk [vmem:[#allocation2 + $0xc] sm:$0xf] %vm146, %v6141
  %6186 = vst.msk [vmem:[#allocation2 + $0x10] sm:$0xf] %vm146, %v6143
  %6187 = vst.msk [vmem:[#allocation2 + $0x14] sm:$0xf] %vm146, %v6145
  %6188 = vst.msk [vmem:[#allocation2 + $0x18] sm:$0xf] %vm146, %v6147
  %6189 = vst.msk [vmem:[#allocation2 + $0x1c] sm:$0xf] %vm146, %v6149
  %6190 = vst.msk [vmem:[#allocation2 + $0x20] sm:$0xf] %vm146, %v6151
  %6191 = vst.msk [vmem:[#allocation2 + $0x24] sm:$0xf] %vm146, %v6153
  %6192 = vst.msk [vmem:[#allocation2 + $0x28] sm:$0xf] %vm146, %v6155
  %6193 = vst.msk [vmem:[#allocation2 + $0x2c] sm:$0xf] %vm146, %v6157
  %6194 = vst.msk [vmem:[#allocation2 + $0x30] sm:$0xf] %vm146, %v6159
  %6195 = vst.msk [vmem:[#allocation2 + $0x34] sm:$0xf] %vm146, %v6161
  %6196 = vst.msk [vmem:[#allocation2 + $0x38] sm:$0xf] %vm146, %v6163
  %6197 = vst.msk [vmem:[#allocation2 + $0x3c] sm:$0xf] %vm146, %v6165
  %v6198 = vld [vmem:[%s585] sm:$0xf]
  %v6199 = vld [vmem:[%s585 + $0x4] sm:$0x1]
  %v6200 = vld [vmem:[%s585 + $0x8] sm:$0xf]
  %v6201 = vld [vmem:[%s585 + $0xc] sm:$0x1]
  %v6202 = vld [vmem:[%s585 + $0x10] sm:$0xf]
  %v6203 = vld [vmem:[%s585 + $0x14] sm:$0x1]
  %v6204 = vld [vmem:[%s585 + $0x18] sm:$0xf]
  %v6205 = vld [vmem:[%s585 + $0x1c] sm:$0x1]
  %v6206 = vld [vmem:[%s585 + $0x20] sm:$0xf]
  %v6207 = vld [vmem:[%s585 + $0x24] sm:$0x1]
  %v6208 = vld [vmem:[%s585 + $0x28] sm:$0xf]
  %v6209 = vld [vmem:[%s585 + $0x2c] sm:$0x1]
  %v6210 = vld [vmem:[%s585 + $0x30] sm:$0xf]
  %v6211 = vld [vmem:[%s585 + $0x34] sm:$0x1]
  %v6212 = vld [vmem:[%s585 + $0x38] sm:$0xf]
  %v6213 = vld [vmem:[%s585 + $0x3c] sm:$0x1]
  %v6214 = vld [vmem:[%s585 + $0x48] sm:$0xf]
  %v6215 = vld [vmem:[%s585 + $0x4c] sm:$0x1]
  %v6216 = vld [vmem:[%s585 + $0x50] sm:$0xf]
  %v6217 = vld [vmem:[%s585 + $0x54] sm:$0x1]
  %v6218 = vld [vmem:[%s585 + $0x58] sm:$0xf]
  %v6219 = vld [vmem:[%s585 + $0x5c] sm:$0x1]
  %v6220 = vld [vmem:[%s585 + $0x60] sm:$0xf]
  %v6221 = vld [vmem:[%s585 + $0x64] sm:$0x1]
  %v6222 = vld [vmem:[%s585 + $0x68] sm:$0xf]
  %v6223 = vld [vmem:[%s585 + $0x6c] sm:$0x1]
  %v6224 = vld [vmem:[%s585 + $0x70] sm:$0xf]
  %v6225 = vld [vmem:[%s585 + $0x74] sm:$0x1]
  %v6226 = vld [vmem:[%s585 + $0x78] sm:$0xf]
  %v6227 = vld [vmem:[%s585 + $0x7c] sm:$0x1]
  %v6228 = vld [vmem:[%s585 + $0x80] sm:$0xf]
  %v6229 = vld [vmem:[%s585 + $0x84] sm:$0x1]
  %v6231 = vshrl.u32 %v6198, 16
  %v6233 = vrot.slane %v6231, 4
  %v6234 = vshll.u32 %v6198, 16
  %v6236 = vrot.slane %v6234, 5
  %v6237 = vor.u32 %v6233, %v6236
  %v6238 = vrot.slane %v6237, 4
  %v6240 = vshll.u32 %v6199, 16
  %v6242 = vrot.slane %v6240, 5
  %v6243 = vsel %vm197, %v6238, %v6242
  %v6245 = vshrl.u32 %v6200, 16
  %v6247 = vrot.slane %v6245, 4
  %v6248 = vshll.u32 %v6200, 16
  %v6250 = vrot.slane %v6248, 5
  %v6251 = vor.u32 %v6247, %v6250
  %v6252 = vrot.slane %v6251, 4
  %v6254 = vshll.u32 %v6201, 16
  %v6256 = vrot.slane %v6254, 5
  %v6257 = vsel %vm197, %v6252, %v6256
  %v6259 = vshrl.u32 %v6202, 16
  %v6261 = vrot.slane %v6259, 4
  %v6262 = vshll.u32 %v6202, 16
  %v6264 = vrot.slane %v6262, 5
  %v6265 = vor.u32 %v6261, %v6264
  %v6266 = vrot.slane %v6265, 4
  %v6268 = vshll.u32 %v6203, 16
  %v6270 = vrot.slane %v6268, 5
  %v6271 = vsel %vm197, %v6266, %v6270
  %v6273 = vshrl.u32 %v6204, 16
  %v6275 = vrot.slane %v6273, 4
  %v6276 = vshll.u32 %v6204, 16
  %v6278 = vrot.slane %v6276, 5
  %v6279 = vor.u32 %v6275, %v6278
  %v6280 = vrot.slane %v6279, 4
  %v6282 = vshll.u32 %v6205, 16
  %v6284 = vrot.slane %v6282, 5
  %v6285 = vsel %vm197, %v6280, %v6284
  %v6287 = vshrl.u32 %v6206, 16
  %v6289 = vrot.slane %v6287, 4
  %v6290 = vshll.u32 %v6206, 16
  %v6292 = vrot.slane %v6290, 5
  %v6293 = vor.u32 %v6289, %v6292
  %v6294 = vrot.slane %v6293, 4
  %v6296 = vshll.u32 %v6207, 16
  %v6298 = vrot.slane %v6296, 5
  %v6299 = vsel %vm197, %v6294, %v6298
  %v6301 = vshrl.u32 %v6208, 16
  %v6303 = vrot.slane %v6301, 4
  %v6304 = vshll.u32 %v6208, 16
  %v6306 = vrot.slane %v6304, 5
  %v6307 = vor.u32 %v6303, %v6306
  %v6308 = vrot.slane %v6307, 4
  %v6310 = vshll.u32 %v6209, 16
  %v6312 = vrot.slane %v6310, 5
  %v6313 = vsel %vm197, %v6308, %v6312
  %v6315 = vshrl.u32 %v6210, 16
  %v6317 = vrot.slane %v6315, 4
  %v6318 = vshll.u32 %v6210, 16
  %v6320 = vrot.slane %v6318, 5
  %v6321 = vor.u32 %v6317, %v6320
  %v6322 = vrot.slane %v6321, 4
  %v6324 = vshll.u32 %v6211, 16
  %v6326 = vrot.slane %v6324, 5
  %v6327 = vsel %vm197, %v6322, %v6326
  %v6329 = vshrl.u32 %v6212, 16
  %v6331 = vrot.slane %v6329, 4
  %v6332 = vshll.u32 %v6212, 16
  %v6334 = vrot.slane %v6332, 5
  %v6335 = vor.u32 %v6331, %v6334
  %v6336 = vrot.slane %v6335, 4
  %v6338 = vshll.u32 %v6213, 16
  %v6340 = vrot.slane %v6338, 5
  %v6341 = vsel %vm197, %v6336, %v6340
  %v6343 = vshrl.u32 %v6214, 16
  %v6345 = vrot.slane %v6343, 4
  %v6346 = vshll.u32 %v6214, 16
  %v6348 = vrot.slane %v6346, 5
  %v6349 = vor.u32 %v6345, %v6348
  %v6350 = vrot.slane %v6349, 4
  %v6352 = vshll.u32 %v6215, 16
  %v6354 = vrot.slane %v6352, 5
  %v6355 = vsel %vm197, %v6350, %v6354
  %v6357 = vshrl.u32 %v6216, 16
  %v6359 = vrot.slane %v6357, 4
  %v6360 = vshll.u32 %v6216, 16
  %v6362 = vrot.slane %v6360, 5
  %v6363 = vor.u32 %v6359, %v6362
  %v6364 = vrot.slane %v6363, 4
  %v6366 = vshll.u32 %v6217, 16
  %v6368 = vrot.slane %v6366, 5
  %v6369 = vsel %vm197, %v6364, %v6368
  %v6371 = vshrl.u32 %v6218, 16
  %v6373 = vrot.slane %v6371, 4
  %v6374 = vshll.u32 %v6218, 16
  %v6376 = vrot.slane %v6374, 5
  %v6377 = vor.u32 %v6373, %v6376
  %v6378 = vrot.slane %v6377, 4
  %v6380 = vshll.u32 %v6219, 16
  %v6382 = vrot.slane %v6380, 5
  %v6383 = vsel %vm197, %v6378, %v6382
  %v6385 = vshrl.u32 %v6220, 16
  %v6387 = vrot.slane %v6385, 4
  %v6388 = vshll.u32 %v6220, 16
  %v6390 = vrot.slane %v6388, 5
  %v6391 = vor.u32 %v6387, %v6390
  %v6392 = vrot.slane %v6391, 4
  %v6394 = vshll.u32 %v6221, 16
  %v6396 = vrot.slane %v6394, 5
  %v6397 = vsel %vm197, %v6392, %v6396
  %v6399 = vshrl.u32 %v6222, 16
  %v6401 = vrot.slane %v6399, 4
  %v6402 = vshll.u32 %v6222, 16
  %v6404 = vrot.slane %v6402, 5
  %v6405 = vor.u32 %v6401, %v6404
  %v6406 = vrot.slane %v6405, 4
  %v6408 = vshll.u32 %v6223, 16
  %v6410 = vrot.slane %v6408, 5
  %v6411 = vsel %vm197, %v6406, %v6410
  %v6413 = vshrl.u32 %v6224, 16
  %v6415 = vrot.slane %v6413, 4
  %v6416 = vshll.u32 %v6224, 16
  %v6418 = vrot.slane %v6416, 5
  %v6419 = vor.u32 %v6415, %v6418
  %v6420 = vrot.slane %v6419, 4
  %v6422 = vshll.u32 %v6225, 16
  %v6424 = vrot.slane %v6422, 5
  %v6425 = vsel %vm197, %v6420, %v6424
  %v6427 = vshrl.u32 %v6226, 16
  %v6429 = vrot.slane %v6427, 4
  %v6430 = vshll.u32 %v6226, 16
  %v6432 = vrot.slane %v6430, 5
  %v6433 = vor.u32 %v6429, %v6432
  %v6434 = vrot.slane %v6433, 4
  %v6436 = vshll.u32 %v6227, 16
  %v6438 = vrot.slane %v6436, 5
  %v6439 = vsel %vm197, %v6434, %v6438
  %v6441 = vshrl.u32 %v6228, 16
  %v6443 = vrot.slane %v6441, 4
  %v6444 = vshll.u32 %v6228, 16
  %v6446 = vrot.slane %v6444, 5
  %v6447 = vor.u32 %v6443, %v6446
  %v6448 = vrot.slane %v6447, 4
  %v6450 = vshll.u32 %v6229, 16
  %v6452 = vrot.slane %v6450, 5
  %v6453 = vsel %vm197, %v6448, %v6452
  %6454 = vrot.lane.b32.xlu0 %v6243, 16
  %v6455 = vpop.permute.xlu0 %6454
  %6456 = vrot.lane.b32.xlu0 %v6257, 16
  %v6457 = vpop.permute.xlu0 %6456
  %6458 = vrot.lane.b32.xlu0 %v6271, 16
  %v6459 = vpop.permute.xlu0 %6458
  %6460 = vrot.lane.b32.xlu0 %v6285, 16
  %v6461 = vpop.permute.xlu0 %6460
  %6462 = vrot.lane.b32.xlu0 %v6299, 16
  %v6463 = vpop.permute.xlu0 %6462
  %6464 = vrot.lane.b32.xlu0 %v6313, 16
  %v6465 = vpop.permute.xlu0 %6464
  %6466 = vrot.lane.b32.xlu0 %v6327, 16
  %v6467 = vpop.permute.xlu0 %6466
  %6468 = vrot.lane.b32.xlu0 %v6341, 16
  %v6469 = vpop.permute.xlu0 %6468
  %6470 = vrot.lane.b32.xlu0 %v6355, 16
  %v6471 = vpop.permute.xlu0 %6470
  %6472 = vrot.lane.b32.xlu0 %v6369, 16
  %v6473 = vpop.permute.xlu0 %6472
  %6474 = vrot.lane.b32.xlu0 %v6383, 16
  %v6475 = vpop.permute.xlu0 %6474
  %6476 = vrot.lane.b32.xlu0 %v6397, 16
  %v6477 = vpop.permute.xlu0 %6476
  %6478 = vrot.lane.b32.xlu0 %v6411, 16
  %v6479 = vpop.permute.xlu0 %6478
  %6480 = vrot.lane.b32.xlu0 %v6425, 16
  %v6481 = vpop.permute.xlu0 %6480
  %6482 = vrot.lane.b32.xlu0 %v6439, 16
  %v6483 = vpop.permute.xlu0 %6482
  %6484 = vrot.lane.b32.xlu0 %v6453, 16
  %v6485 = vpop.permute.xlu0 %6484
  %6502 = vst.msk [vmem:[#allocation2] sm:$0xf] %vm470, %v6455
  %6503 = vst.msk [vmem:[#allocation2 + $0x4] sm:$0xf] %vm470, %v6457
  %6504 = vst.msk [vmem:[#allocation2 + $0x8] sm:$0xf] %vm470, %v6459
  %6505 = vst.msk [vmem:[#allocation2 + $0xc] sm:$0xf] %vm470, %v6461
  %6506 = vst.msk [vmem:[#allocation2 + $0x10] sm:$0xf] %vm470, %v6463
  %6507 = vst.msk [vmem:[#allocation2 + $0x14] sm:$0xf] %vm470, %v6465
  %6508 = vst.msk [vmem:[#allocation2 + $0x18] sm:$0xf] %vm470, %v6467
  %6509 = vst.msk [vmem:[#allocation2 + $0x1c] sm:$0xf] %vm470, %v6469
  %6510 = vst.msk [vmem:[#allocation2 + $0x20] sm:$0xf] %vm470, %v6471
  %6511 = vst.msk [vmem:[#allocation2 + $0x24] sm:$0xf] %vm470, %v6473
  %6512 = vst.msk [vmem:[#allocation2 + $0x28] sm:$0xf] %vm470, %v6475
  %6513 = vst.msk [vmem:[#allocation2 + $0x2c] sm:$0xf] %vm470, %v6477
  %6514 = vst.msk [vmem:[#allocation2 + $0x30] sm:$0xf] %vm470, %v6479
  %6515 = vst.msk [vmem:[#allocation2 + $0x34] sm:$0xf] %vm470, %v6481
  %6516 = vst.msk [vmem:[#allocation2 + $0x38] sm:$0xf] %vm470, %v6483
  %6517 = vst.msk [vmem:[#allocation2 + $0x3c] sm:$0xf] %vm470, %v6485
  %v6518 = vld [vmem:[%s1102] sm:$0xf]
  %v6519 = vld [vmem:[%s1102 + $0x8] sm:$0xf]
  %v6520 = vld [vmem:[%s1102 + $0x10] sm:$0xf]
  %v6521 = vld [vmem:[%s1102 + $0x18] sm:$0xf]
  %v6522 = vld [vmem:[%s1102 + $0x20] sm:$0xf]
  %v6523 = vld [vmem:[%s1102 + $0x28] sm:$0xf]
  %v6524 = vld [vmem:[%s1102 + $0x30] sm:$0xf]
  %v6525 = vld [vmem:[%s1102 + $0x38] sm:$0xf]
  %v6526 = vld [vmem:[%s1102 + $0x48] sm:$0xf]
  %v6527 = vld [vmem:[%s1102 + $0x50] sm:$0xf]
  %v6528 = vld [vmem:[%s1102 + $0x58] sm:$0xf]
  %v6529 = vld [vmem:[%s1102 + $0x60] sm:$0xf]
  %v6530 = vld [vmem:[%s1102 + $0x68] sm:$0xf]
  %v6531 = vld [vmem:[%s1102 + $0x70] sm:$0xf]
  %v6532 = vld [vmem:[%s1102 + $0x78] sm:$0xf]
  %v6533 = vld [vmem:[%s1102 + $0x80] sm:$0xf]
  %6550 = vrot.lane.b32.xlu0 %v6518, 24
  %v6551 = vpop.permute.xlu0 %6550
  %6552 = vrot.lane.b32.xlu0 %v6519, 24
  %v6553 = vpop.permute.xlu0 %6552
  %6554 = vrot.lane.b32.xlu0 %v6520, 24
  %v6555 = vpop.permute.xlu0 %6554
  %6556 = vrot.lane.b32.xlu0 %v6521, 24
  %v6557 = vpop.permute.xlu0 %6556
  %6558 = vrot.lane.b32.xlu0 %v6522, 24
  %v6559 = vpop.permute.xlu0 %6558
  %6560 = vrot.lane.b32.xlu0 %v6523, 24
  %v6561 = vpop.permute.xlu0 %6560
  %6562 = vrot.lane.b32.xlu0 %v6524, 24
  %v6563 = vpop.permute.xlu0 %6562
  %6564 = vrot.lane.b32.xlu0 %v6525, 24
  %v6565 = vpop.permute.xlu0 %6564
  %6566 = vrot.lane.b32.xlu0 %v6526, 24
  %v6567 = vpop.permute.xlu0 %6566
  %6568 = vrot.lane.b32.xlu0 %v6527, 24
  %v6569 = vpop.permute.xlu0 %6568
  %6570 = vrot.lane.b32.xlu0 %v6528, 24
  %v6571 = vpop.permute.xlu0 %6570
  %6572 = vrot.lane.b32.xlu0 %v6529, 24
  %v6573 = vpop.permute.xlu0 %6572
  %6574 = vrot.lane.b32.xlu0 %v6530, 24
  %v6575 = vpop.permute.xlu0 %6574
  %6576 = vrot.lane.b32.xlu0 %v6531, 24
  %v6577 = vpop.permute.xlu0 %6576
  %6578 = vrot.lane.b32.xlu0 %v6532, 24
  %v6579 = vpop.permute.xlu0 %6578
  %6580 = vrot.lane.b32.xlu0 %v6533, 24
  %v6581 = vpop.permute.xlu0 %6580
  %6598 = vst.msk [vmem:[#allocation2] sm:$0xf] %vm568, %v6551
  %6599 = vst.msk [vmem:[#allocation2 + $0x4] sm:$0xf] %vm568, %v6553
  %6600 = vst.msk [vmem:[#allocation2 + $0x8] sm:$0xf] %vm568, %v6555
  %6601 = vst.msk [vmem:[#allocation2 + $0xc] sm:$0xf] %vm568, %v6557
  %6602 = vst.msk [vmem:[#allocation2 + $0x10] sm:$0xf] %vm568, %v6559
  %6603 = vst.msk [vmem:[#allocation2 + $0x14] sm:$0xf] %vm568, %v6561
  %6604 = vst.msk [vmem:[#allocation2 + $0x18] sm:$0xf] %vm568, %v6563
  %6605 = vst.msk [vmem:[#allocation2 + $0x1c] sm:$0xf] %vm568, %v6565
  %6606 = vst.msk [vmem:[#allocation2 + $0x20] sm:$0xf] %vm568, %v6567
  %6607 = vst.msk [vmem:[#allocation2 + $0x24] sm:$0xf] %vm568, %v6569
  %6608 = vst.msk [vmem:[#allocation2 + $0x28] sm:$0xf] %vm568, %v6571
  %6609 = vst.msk [vmem:[#allocation2 + $0x2c] sm:$0xf] %vm568, %v6573
  %6610 = vst.msk [vmem:[#allocation2 + $0x30] sm:$0xf] %vm568, %v6575
  %6611 = vst.msk [vmem:[#allocation2 + $0x34] sm:$0xf] %vm568, %v6577
  %6612 = vst.msk [vmem:[#allocation2 + $0x38] sm:$0xf] %vm568, %v6579
  %6613 = vst.msk [vmem:[#allocation2 + $0x3c] sm:$0xf] %vm568, %v6581
  %v6614 = vld [vmem:[%s1004] sm:$0xf]
  %v6615 = vld [vmem:[%s1004 + $0x4] sm:$0x1]
  %v6616 = vld [vmem:[%s1004 + $0x8] sm:$0xf]
  %v6617 = vld [vmem:[%s1004 + $0xc] sm:$0x1]
  %v6618 = vld [vmem:[%s1004 + $0x10] sm:$0xf]
  %v6619 = vld [vmem:[%s1004 + $0x14] sm:$0x1]
  %v6620 = vld [vmem:[%s1004 + $0x18] sm:$0xf]
  %v6621 = vld [vmem:[%s1004 + $0x1c] sm:$0x1]
  %v6622 = vld [vmem:[%s1004 + $0x20] sm:$0xf]
  %v6623 = vld [vmem:[%s1004 + $0x24] sm:$0x1]
  %v6624 = vld [vmem:[%s1004 + $0x28] sm:$0xf]
  %v6625 = vld [vmem:[%s1004 + $0x2c] sm:$0x1]
  %v6626 = vld [vmem:[%s1004 + $0x30] sm:$0xf]
  %v6627 = vld [vmem:[%s1004 + $0x34] sm:$0x1]
  %v6628 = vld [vmem:[%s1004 + $0x38] sm:$0xf]
  %v6629 = vld [vmem:[%s1004 + $0x3c] sm:$0x1]
  %v6630 = vld [vmem:[%s1004 + $0x48] sm:$0xf]
  %v6631 = vld [vmem:[%s1004 + $0x4c] sm:$0x1]
  %v6632 = vld [vmem:[%s1004 + $0x50] sm:$0xf]
  %v6633 = vld [vmem:[%s1004 + $0x54] sm:$0x1]
  %v6634 = vld [vmem:[%s1004 + $0x58] sm:$0xf]
  %v6635 = vld [vmem:[%s1004 + $0x5c] sm:$0x1]
  %v6636 = vld [vmem:[%s1004 + $0x60] sm:$0xf]
  %v6637 = vld [vmem:[%s1004 + $0x64] sm:$0x1]
  %v6638 = vld [vmem:[%s1004 + $0x68] sm:$0xf]
  %v6639 = vld [vmem:[%s1004 + $0x6c] sm:$0x1]
  %v6640 = vld [vmem:[%s1004 + $0x70] sm:$0xf]
  %v6641 = vld [vmem:[%s1004 + $0x74] sm:$0x1]
  %v6642 = vld [vmem:[%s1004 + $0x78] sm:$0xf]
  %v6643 = vld [vmem:[%s1004 + $0x7c] sm:$0x1]
  %v6644 = vld [vmem:[%s1004 + $0x80] sm:$0xf]
  %v6645 = vld [vmem:[%s1004 + $0x84] sm:$0x1]
  %v6647 = vshrl.u32 %v6614, 16
  %v6649 = vrot.slane %v6647, 4
  %v6650 = vshll.u32 %v6614, 16
  %v6652 = vrot.slane %v6650, 5
  %v6653 = vor.u32 %v6649, %v6652
  %v6654 = vrot.slane %v6653, 4
  %v6656 = vshll.u32 %v6615, 16
  %v6658 = vrot.slane %v6656, 5
  %v6659 = vsel %vm197, %v6654, %v6658
  %v6661 = vshrl.u32 %v6616, 16
  %v6663 = vrot.slane %v6661, 4
  %v6664 = vshll.u32 %v6616, 16
  %v6666 = vrot.slane %v6664, 5
  %v6667 = vor.u32 %v6663, %v6666
  %v6668 = vrot.slane %v6667, 4
  %v6670 = vshll.u32 %v6617, 16
  %v6672 = vrot.slane %v6670, 5
  %v6673 = vsel %vm197, %v6668, %v6672
  %v6675 = vshrl.u32 %v6618, 16
  %v6677 = vrot.slane %v6675, 4
  %v6678 = vshll.u32 %v6618, 16
  %v6680 = vrot.slane %v6678, 5
  %v6681 = vor.u32 %v6677, %v6680
  %v6682 = vrot.slane %v6681, 4
  %v6684 = vshll.u32 %v6619, 16
  %v6686 = vrot.slane %v6684, 5
  %v6687 = vsel %vm197, %v6682, %v6686
  %v6689 = vshrl.u32 %v6620, 16
  %v6691 = vrot.slane %v6689, 4
  %v6692 = vshll.u32 %v6620, 16
  %v6694 = vrot.slane %v6692, 5
  %v6695 = vor.u32 %v6691, %v6694
  %v6696 = vrot.slane %v6695, 4
  %v6698 = vshll.u32 %v6621, 16
  %v6700 = vrot.slane %v6698, 5
  %v6701 = vsel %vm197, %v6696, %v6700
  %v6703 = vshrl.u32 %v6622, 16
  %v6705 = vrot.slane %v6703, 4
  %v6706 = vshll.u32 %v6622, 16
  %v6708 = vrot.slane %v6706, 5
  %v6709 = vor.u32 %v6705, %v6708
  %v6710 = vrot.slane %v6709, 4
  %v6712 = vshll.u32 %v6623, 16
  %v6714 = vrot.slane %v6712, 5
  %v6715 = vsel %vm197, %v6710, %v6714
  %v6717 = vshrl.u32 %v6624, 16
  %v6719 = vrot.slane %v6717, 4
  %v6720 = vshll.u32 %v6624, 16
  %v6722 = vrot.slane %v6720, 5
  %v6723 = vor.u32 %v6719, %v6722
  %v6724 = vrot.slane %v6723, 4
  %v6726 = vshll.u32 %v6625, 16
  %v6728 = vrot.slane %v6726, 5
  %v6729 = vsel %vm197, %v6724, %v6728
  %v6731 = vshrl.u32 %v6626, 16
  %v6733 = vrot.slane %v6731, 4
  %v6734 = vshll.u32 %v6626, 16
  %v6736 = vrot.slane %v6734, 5
  %v6737 = vor.u32 %v6733, %v6736
  %v6738 = vrot.slane %v6737, 4
  %v6740 = vshll.u32 %v6627, 16
  %v6742 = vrot.slane %v6740, 5
  %v6743 = vsel %vm197, %v6738, %v6742
  %v6745 = vshrl.u32 %v6628, 16
  %v6747 = vrot.slane %v6745, 4
  %v6748 = vshll.u32 %v6628, 16
  %v6750 = vrot.slane %v6748, 5
  %v6751 = vor.u32 %v6747, %v6750
  %v6752 = vrot.slane %v6751, 4
  %v6754 = vshll.u32 %v6629, 16
  %v6756 = vrot.slane %v6754, 5
  %v6757 = vsel %vm197, %v6752, %v6756
  %v6759 = vshrl.u32 %v6630, 16
  %v6761 = vrot.slane %v6759, 4
  %v6762 = vshll.u32 %v6630, 16
  %v6764 = vrot.slane %v6762, 5
  %v6765 = vor.u32 %v6761, %v6764
  %v6766 = vrot.slane %v6765, 4
  %v6768 = vshll.u32 %v6631, 16
  %v6770 = vrot.slane %v6768, 5
  %v6771 = vsel %vm197, %v6766, %v6770
  %v6773 = vshrl.u32 %v6632, 16
  %v6775 = vrot.slane %v6773, 4
  %v6776 = vshll.u32 %v6632, 16
  %v6778 = vrot.slane %v6776, 5
  %v6779 = vor.u32 %v6775, %v6778
  %v6780 = vrot.slane %v6779, 4
  %v6782 = vshll.u32 %v6633, 16
  %v6784 = vrot.slane %v6782, 5
  %v6785 = vsel %vm197, %v6780, %v6784
  %v6787 = vshrl.u32 %v6634, 16
  %v6789 = vrot.slane %v6787, 4
  %v6790 = vshll.u32 %v6634, 16
  %v6792 = vrot.slane %v6790, 5
  %v6793 = vor.u32 %v6789, %v6792
  %v6794 = vrot.slane %v6793, 4
  %v6796 = vshll.u32 %v6635, 16
  %v6798 = vrot.slane %v6796, 5
  %v6799 = vsel %vm197, %v6794, %v6798
  %v6801 = vshrl.u32 %v6636, 16
  %v6803 = vrot.slane %v6801, 4
  %v6804 = vshll.u32 %v6636, 16
  %v6806 = vrot.slane %v6804, 5
  %v6807 = vor.u32 %v6803, %v6806
  %v6808 = vrot.slane %v6807, 4
  %v6810 = vshll.u32 %v6637, 16
  %v6812 = vrot.slane %v6810, 5
  %v6813 = vsel %vm197, %v6808, %v6812
  %v6815 = vshrl.u32 %v6638, 16
  %v6817 = vrot.slane %v6815, 4
  %v6818 = vshll.u32 %v6638, 16
  %v6820 = vrot.slane %v6818, 5
  %v6821 = vor.u32 %v6817, %v6820
  %v6822 = vrot.slane %v6821, 4
  %v6824 = vshll.u32 %v6639, 16
  %v6826 = vrot.slane %v6824, 5
  %v6827 = vsel %vm197, %v6822, %v6826
  %v6829 = vshrl.u32 %v6640, 16
  %v6831 = vrot.slane %v6829, 4
  %v6832 = vshll.u32 %v6640, 16
  %v6834 = vrot.slane %v6832, 5
  %v6835 = vor.u32 %v6831, %v6834
  %v6836 = vrot.slane %v6835, 4
  %v6838 = vshll.u32 %v6641, 16
  %v6840 = vrot.slane %v6838, 5
  %v6841 = vsel %vm197, %v6836, %v6840
  %v6843 = vshrl.u32 %v6642, 16
  %v6845 = vrot.slane %v6843, 4
  %v6846 = vshll.u32 %v6642, 16
  %v6848 = vrot.slane %v6846, 5
  %v6849 = vor.u32 %v6845, %v6848
  %v6850 = vrot.slane %v6849, 4
  %v6852 = vshll.u32 %v6643, 16
  %v6854 = vrot.slane %v6852, 5
  %v6855 = vsel %vm197, %v6850, %v6854
  %v6857 = vshrl.u32 %v6644, 16
  %v6859 = vrot.slane %v6857, 4
  %v6860 = vshll.u32 %v6644, 16
  %v6862 = vrot.slane %v6860, 5
  %v6863 = vor.u32 %v6859, %v6862
  %v6864 = vrot.slane %v6863, 4
  %v6866 = vshll.u32 %v6645, 16
  %v6868 = vrot.slane %v6866, 5
  %v6869 = vsel %vm197, %v6864, %v6868
  %6870 = vrot.lane.b32.xlu0 %v6659, 32
  %v6871 = vpop.permute.xlu0 %6870
  %6872 = vrot.lane.b32.xlu0 %v6673, 32
  %v6873 = vpop.permute.xlu0 %6872
  %6874 = vrot.lane.b32.xlu0 %v6687, 32
  %v6875 = vpop.permute.xlu0 %6874
  %6876 = vrot.lane.b32.xlu0 %v6701, 32
  %v6877 = vpop.permute.xlu0 %6876
  %6878 = vrot.lane.b32.xlu0 %v6715, 32
  %v6879 = vpop.permute.xlu0 %6878
  %6880 = vrot.lane.b32.xlu0 %v6729, 32
  %v6881 = vpop.permute.xlu0 %6880
  %6882 = vrot.lane.b32.xlu0 %v6743, 32
  %v6883 = vpop.permute.xlu0 %6882
  %6884 = vrot.lane.b32.xlu0 %v6757, 32
  %v6885 = vpop.permute.xlu0 %6884
  %6886 = vrot.lane.b32.xlu0 %v6771, 32
  %v6887 = vpop.permute.xlu0 %6886
  %6888 = vrot.lane.b32.xlu0 %v6785, 32
  %v6889 = vpop.permute.xlu0 %6888
  %6890 = vrot.lane.b32.xlu0 %v6799, 32
  %v6891 = vpop.permute.xlu0 %6890
  %6892 = vrot.lane.b32.xlu0 %v6813, 32
  %v6893 = vpop.permute.xlu0 %6892
  %6894 = vrot.lane.b32.xlu0 %v6827, 32
  %v6895 = vpop.permute.xlu0 %6894
  %6896 = vrot.lane.b32.xlu0 %v6841, 32
  %v6897 = vpop.permute.xlu0 %6896
  %6898 = vrot.lane.b32.xlu0 %v6855, 32
  %v6899 = vpop.permute.xlu0 %6898
  %6900 = vrot.lane.b32.xlu0 %v6869, 32
  %v6901 = vpop.permute.xlu0 %6900
  %6918 = vst.msk [vmem:[#allocation2] sm:$0xf] %vm666, %v6871
  %6919 = vst.msk [vmem:[#allocation2 + $0x4] sm:$0xf] %vm666, %v6873
  %6920 = vst.msk [vmem:[#allocation2 + $0x8] sm:$0xf] %vm666, %v6875
  %6921 = vst.msk [vmem:[#allocation2 + $0xc] sm:$0xf] %vm666, %v6877
  %6922 = vst.msk [vmem:[#allocation2 + $0x10] sm:$0xf] %vm666, %v6879
  %6923 = vst.msk [vmem:[#allocation2 + $0x14] sm:$0xf] %vm666, %v6881
  %6924 = vst.msk [vmem:[#allocation2 + $0x18] sm:$0xf] %vm666, %v6883
  %6925 = vst.msk [vmem:[#allocation2 + $0x1c] sm:$0xf] %vm666, %v6885
  %6926 = vst.msk [vmem:[#allocation2 + $0x20] sm:$0xf] %vm666, %v6887
  %6927 = vst.msk [vmem:[#allocation2 + $0x24] sm:$0xf] %vm666, %v6889
  %6928 = vst.msk [vmem:[#allocation2 + $0x28] sm:$0xf] %vm666, %v6891
  %6929 = vst.msk [vmem:[#allocation2 + $0x2c] sm:$0xf] %vm666, %v6893
  %6930 = vst.msk [vmem:[#allocation2 + $0x30] sm:$0xf] %vm666, %v6895
  %6931 = vst.msk [vmem:[#allocation2 + $0x34] sm:$0xf] %vm666, %v6897
  %6932 = vst.msk [vmem:[#allocation2 + $0x38] sm:$0xf] %vm666, %v6899
  %6933 = vst.msk [vmem:[#allocation2 + $0x3c] sm:$0xf] %vm666, %v6901
  %v6934 = vld [vmem:[%s1102] sm:$0xf]
  %v6935 = vld [vmem:[%s1102 + $0x4] sm:$0x1]
  %v6936 = vld [vmem:[%s1102 + $0x8] sm:$0xf]
  %v6937 = vld [vmem:[%s1102 + $0xc] sm:$0x1]
  %v6938 = vld [vmem:[%s1102 + $0x10] sm:$0xf]
  %v6939 = vld [vmem:[%s1102 + $0x14] sm:$0x1]
  %v6940 = vld [vmem:[%s1102 + $0x18] sm:$0xf]
  %v6941 = vld [vmem:[%s1102 + $0x1c] sm:$0x1]
  %v6942 = vld [vmem:[%s1102 + $0x20] sm:$0xf]
  %v6943 = vld [vmem:[%s1102 + $0x24] sm:$0x1]
  %v6944 = vld [vmem:[%s1102 + $0x28] sm:$0xf]
  %v6945 = vld [vmem:[%s1102 + $0x2c] sm:$0x1]
  %v6946 = vld [vmem:[%s1102 + $0x30] sm:$0xf]
  %v6947 = vld [vmem:[%s1102 + $0x34] sm:$0x1]
  %v6948 = vld [vmem:[%s1102 + $0x38] sm:$0xf]
  %v6949 = vld [vmem:[%s1102 + $0x3c] sm:$0x1]
  %v6950 = vld [vmem:[%s1102 + $0x48] sm:$0xf]
  %v6951 = vld [vmem:[%s1102 + $0x4c] sm:$0x1]
  %v6952 = vld [vmem:[%s1102 + $0x50] sm:$0xf]
  %v6953 = vld [vmem:[%s1102 + $0x54] sm:$0x1]
  %v6954 = vld [vmem:[%s1102 + $0x58] sm:$0xf]
  %v6955 = vld [vmem:[%s1102 + $0x5c] sm:$0x1]
  %v6956 = vld [vmem:[%s1102 + $0x60] sm:$0xf]
  %v6957 = vld [vmem:[%s1102 + $0x64] sm:$0x1]
  %v6958 = vld [vmem:[%s1102 + $0x68] sm:$0xf]
  %v6959 = vld [vmem:[%s1102 + $0x6c] sm:$0x1]
  %v6960 = vld [vmem:[%s1102 + $0x70] sm:$0xf]
  %v6961 = vld [vmem:[%s1102 + $0x74] sm:$0x1]
  %v6962 = vld [vmem:[%s1102 + $0x78] sm:$0xf]
  %v6963 = vld [vmem:[%s1102 + $0x7c] sm:$0x1]
  %v6964 = vld [vmem:[%s1102 + $0x80] sm:$0xf]
  %v6965 = vld [vmem:[%s1102 + $0x84] sm:$0x1]
  %v6967 = vshrl.u32 %v6934, 16
  %v6969 = vrot.slane %v6967, 4
  %v6970 = vshll.u32 %v6934, 16
  %v6972 = vrot.slane %v6970, 5
  %v6973 = vor.u32 %v6969, %v6972
  %v6974 = vrot.slane %v6973, 4
  %v6976 = vshll.u32 %v6935, 16
  %v6978 = vrot.slane %v6976, 5
  %v6979 = vsel %vm197, %v6974, %v6978
  %v6981 = vshrl.u32 %v6936, 16
  %v6983 = vrot.slane %v6981, 4
  %v6984 = vshll.u32 %v6936, 16
  %v6986 = vrot.slane %v6984, 5
  %v6987 = vor.u32 %v6983, %v6986
  %v6988 = vrot.slane %v6987, 4
  %v6990 = vshll.u32 %v6937, 16
  %v6992 = vrot.slane %v6990, 5
  %v6993 = vsel %vm197, %v6988, %v6992
  %v6995 = vshrl.u32 %v6938, 16
  %v6997 = vrot.slane %v6995, 4
  %v6998 = vshll.u32 %v6938, 16
  %v7000 = vrot.slane %v6998, 5
  %v7001 = vor.u32 %v6997, %v7000
  %v7002 = vrot.slane %v7001, 4
  %v7004 = vshll.u32 %v6939, 16
  %v7006 = vrot.slane %v7004, 5
  %v7007 = vsel %vm197, %v7002, %v7006
  %v7009 = vshrl.u32 %v6940, 16
  %v7011 = vrot.slane %v7009, 4
  %v7012 = vshll.u32 %v6940, 16
  %v7014 = vrot.slane %v7012, 5
  %v7015 = vor.u32 %v7011, %v7014
  %v7016 = vrot.slane %v7015, 4
  %v7018 = vshll.u32 %v6941, 16
  %v7020 = vrot.slane %v7018, 5
  %v7021 = vsel %vm197, %v7016, %v7020
  %v7023 = vshrl.u32 %v6942, 16
  %v7025 = vrot.slane %v7023, 4
  %v7026 = vshll.u32 %v6942, 16
  %v7028 = vrot.slane %v7026, 5
  %v7029 = vor.u32 %v7025, %v7028
  %v7030 = vrot.slane %v7029, 4
  %v7032 = vshll.u32 %v6943, 16
  %v7034 = vrot.slane %v7032, 5
  %v7035 = vsel %vm197, %v7030, %v7034
  %v7037 = vshrl.u32 %v6944, 16
  %v7039 = vrot.slane %v7037, 4
  %v7040 = vshll.u32 %v6944, 16
  %v7042 = vrot.slane %v7040, 5
  %v7043 = vor.u32 %v7039, %v7042
  %v7044 = vrot.slane %v7043, 4
  %v7046 = vshll.u32 %v6945, 16
  %v7048 = vrot.slane %v7046, 5
  %v7049 = vsel %vm197, %v7044, %v7048
  %v7051 = vshrl.u32 %v6946, 16
  %v7053 = vrot.slane %v7051, 4
  %v7054 = vshll.u32 %v6946, 16
  %v7056 = vrot.slane %v7054, 5
  %v7057 = vor.u32 %v7053, %v7056
  %v7058 = vrot.slane %v7057, 4
  %v7060 = vshll.u32 %v6947, 16
  %v7062 = vrot.slane %v7060, 5
  %v7063 = vsel %vm197, %v7058, %v7062
  %v7065 = vshrl.u32 %v6948, 16
  %v7067 = vrot.slane %v7065, 4
  %v7068 = vshll.u32 %v6948, 16
  %v7070 = vrot.slane %v7068, 5
  %v7071 = vor.u32 %v7067, %v7070
  %v7072 = vrot.slane %v7071, 4
  %v7074 = vshll.u32 %v6949, 16
  %v7076 = vrot.slane %v7074, 5
  %v7077 = vsel %vm197, %v7072, %v7076
  %v7079 = vshrl.u32 %v6950, 16
  %v7081 = vrot.slane %v7079, 4
  %v7082 = vshll.u32 %v6950, 16
  %v7084 = vrot.slane %v7082, 5
  %v7085 = vor.u32 %v7081, %v7084
  %v7086 = vrot.slane %v7085, 4
  %v7088 = vshll.u32 %v6951, 16
  %v7090 = vrot.slane %v7088, 5
  %v7091 = vsel %vm197, %v7086, %v7090
  %v7093 = vshrl.u32 %v6952, 16
  %v7095 = vrot.slane %v7093, 4
  %v7096 = vshll.u32 %v6952, 16
  %v7098 = vrot.slane %v7096, 5
  %v7099 = vor.u32 %v7095, %v7098
  %v7100 = vrot.slane %v7099, 4
  %v7102 = vshll.u32 %v6953, 16
  %v7104 = vrot.slane %v7102, 5
  %v7105 = vsel %vm197, %v7100, %v7104
  %v7107 = vshrl.u32 %v6954, 16
  %v7109 = vrot.slane %v7107, 4
  %v7110 = vshll.u32 %v6954, 16
  %v7112 = vrot.slane %v7110, 5
  %v7113 = vor.u32 %v7109, %v7112
  %v7114 = vrot.slane %v7113, 4
  %v7116 = vshll.u32 %v6955, 16
  %v7118 = vrot.slane %v7116, 5
  %v7119 = vsel %vm197, %v7114, %v7118
  %v7121 = vshrl.u32 %v6956, 16
  %v7123 = vrot.slane %v7121, 4
  %v7124 = vshll.u32 %v6956, 16
  %v7126 = vrot.slane %v7124, 5
  %v7127 = vor.u32 %v7123, %v7126
  %v7128 = vrot.slane %v7127, 4
  %v7130 = vshll.u32 %v6957, 16
  %v7132 = vrot.slane %v7130, 5
  %v7133 = vsel %vm197, %v7128, %v7132
  %v7135 = vshrl.u32 %v6958, 16
  %v7137 = vrot.slane %v7135, 4
  %v7138 = vshll.u32 %v6958, 16
  %v7140 = vrot.slane %v7138, 5
  %v7141 = vor.u32 %v7137, %v7140
  %v7142 = vrot.slane %v7141, 4
  %v7144 = vshll.u32 %v6959, 16
  %v7146 = vrot.slane %v7144, 5
  %v7147 = vsel %vm197, %v7142, %v7146
  %v7149 = vshrl.u32 %v6960, 16
  %v7151 = vrot.slane %v7149, 4
  %v7152 = vshll.u32 %v6960, 16
  %v7154 = vrot.slane %v7152, 5
  %v7155 = vor.u32 %v7151, %v7154
  %v7156 = vrot.slane %v7155, 4
  %v7158 = vshll.u32 %v6961, 16
  %v7160 = vrot.slane %v7158, 5
  %v7161 = vsel %vm197, %v7156, %v7160
  %v7163 = vshrl.u32 %v6962, 16
  %v7165 = vrot.slane %v7163, 4
  %v7166 = vshll.u32 %v6962, 16
  %v7168 = vrot.slane %v7166, 5
  %v7169 = vor.u32 %v7165, %v7168
  %v7170 = vrot.slane %v7169, 4
  %v7172 = vshll.u32 %v6963, 16
  %v7174 = vrot.slane %v7172, 5
  %v7175 = vsel %vm197, %v7170, %v7174
  %v7177 = vshrl.u32 %v6964, 16
  %v7179 = vrot.slane %v7177, 4
  %v7180 = vshll.u32 %v6964, 16
  %v7182 = vrot.slane %v7180, 5
  %v7183 = vor.u32 %v7179, %v7182
  %v7184 = vrot.slane %v7183, 4
  %v7186 = vshll.u32 %v6965, 16
  %v7188 = vrot.slane %v7186, 5
  %v7189 = vsel %vm197, %v7184, %v7188
  %7190 = vrot.lane.b32.xlu0 %v6979, 40
  %v7191 = vpop.permute.xlu0 %7190
  %7192 = vrot.lane.b32.xlu0 %v6993, 40
  %v7193 = vpop.permute.xlu0 %7192
  %7194 = vrot.lane.b32.xlu0 %v7007, 40
  %v7195 = vpop.permute.xlu0 %7194
  %7196 = vrot.lane.b32.xlu0 %v7021, 40
  %v7197 = vpop.permute.xlu0 %7196
  %7198 = vrot.lane.b32.xlu0 %v7035, 40
  %v7199 = vpop.permute.xlu0 %7198
  %7200 = vrot.lane.b32.xlu0 %v7049, 40
  %v7201 = vpop.permute.xlu0 %7200
  %7202 = vrot.lane.b32.xlu0 %v7063, 40
  %v7203 = vpop.permute.xlu0 %7202
  %7204 = vrot.lane.b32.xlu0 %v7077, 40
  %v7205 = vpop.permute.xlu0 %7204
  %7206 = vrot.lane.b32.xlu0 %v7091, 40
  %v7207 = vpop.permute.xlu0 %7206
  %7208 = vrot.lane.b32.xlu0 %v7105, 40
  %v7209 = vpop.permute.xlu0 %7208
  %7210 = vrot.lane.b32.xlu0 %v7119, 40
  %v7211 = vpop.permute.xlu0 %7210
  %7212 = vrot.lane.b32.xlu0 %v7133, 40
  %v7213 = vpop.permute.xlu0 %7212
  %7214 = vrot.lane.b32.xlu0 %v7147, 40
  %v7215 = vpop.permute.xlu0 %7214
  %7216 = vrot.lane.b32.xlu0 %v7161, 40
  %v7217 = vpop.permute.xlu0 %7216
  %7218 = vrot.lane.b32.xlu0 %v7175, 40
  %v7219 = vpop.permute.xlu0 %7218
  %7220 = vrot.lane.b32.xlu0 %v7189, 40
  %v7221 = vpop.permute.xlu0 %7220
  %7238 = vst.msk [vmem:[#allocation2] sm:$0xf] %vm987, %v7191
  %7239 = vst.msk [vmem:[#allocation2 + $0x4] sm:$0xf] %vm987, %v7193
  %7240 = vst.msk [vmem:[#allocation2 + $0x8] sm:$0xf] %vm987, %v7195
  %7241 = vst.msk [vmem:[#allocation2 + $0xc] sm:$0xf] %vm987, %v7197
  %7242 = vst.msk [vmem:[#allocation2 + $0x10] sm:$0xf] %vm987, %v7199
  %7243 = vst.msk [vmem:[#allocation2 + $0x14] sm:$0xf] %vm987, %v7201
  %7244 = vst.msk [vmem:[#allocation2 + $0x18] sm:$0xf] %vm987, %v7203
  %7245 = vst.msk [vmem:[#allocation2 + $0x1c] sm:$0xf] %vm987, %v7205
  %7246 = vst.msk [vmem:[#allocation2 + $0x20] sm:$0xf] %vm987, %v7207
  %7247 = vst.msk [vmem:[#allocation2 + $0x24] sm:$0xf] %vm987, %v7209
  %7248 = vst.msk [vmem:[#allocation2 + $0x28] sm:$0xf] %vm987, %v7211
  %7249 = vst.msk [vmem:[#allocation2 + $0x2c] sm:$0xf] %vm987, %v7213
  %7250 = vst.msk [vmem:[#allocation2 + $0x30] sm:$0xf] %vm987, %v7215
  %7251 = vst.msk [vmem:[#allocation2 + $0x34] sm:$0xf] %vm987, %v7217
  %7252 = vst.msk [vmem:[#allocation2 + $0x38] sm:$0xf] %vm987, %v7219
  %7253 = vst.msk [vmem:[#allocation2 + $0x3c] sm:$0xf] %vm987, %v7221
  %v7254 = vld [vmem:[%s5188] sm:$0xf]
  %v7255 = vld [vmem:[%s5188 + $0x8] sm:$0xf]
  %v7256 = vld [vmem:[%s5188 + $0x10] sm:$0xf]
  %v7257 = vld [vmem:[%s5188 + $0x18] sm:$0xf]
  %v7258 = vld [vmem:[%s5188 + $0x20] sm:$0xf]
  %v7259 = vld [vmem:[%s5188 + $0x28] sm:$0xf]
  %v7260 = vld [vmem:[%s5188 + $0x30] sm:$0xf]
  %v7261 = vld [vmem:[%s5188 + $0x38] sm:$0xf]
  %v7262 = vld [vmem:[%s5188 + $0x48] sm:$0xf]
  %v7263 = vld [vmem:[%s5188 + $0x50] sm:$0xf]
  %v7264 = vld [vmem:[%s5188 + $0x58] sm:$0xf]
  %v7265 = vld [vmem:[%s5188 + $0x60] sm:$0xf]
  %v7266 = vld [vmem:[%s5188 + $0x68] sm:$0xf]
  %v7267 = vld [vmem:[%s5188 + $0x70] sm:$0xf]
  %v7268 = vld [vmem:[%s5188 + $0x78] sm:$0xf]
  %v7269 = vld [vmem:[%s5188 + $0x80] sm:$0xf]
  %7286 = vrot.lane.b32.xlu0 %v7254, 48
  %v7287 = vpop.permute.xlu0 %7286
  %7288 = vrot.lane.b32.xlu0 %v7255, 48
  %v7289 = vpop.permute.xlu0 %7288
  %7290 = vrot.lane.b32.xlu0 %v7256, 48
  %v7291 = vpop.permute.xlu0 %7290
  %7292 = vrot.lane.b32.xlu0 %v7257, 48
  %v7293 = vpop.permute.xlu0 %7292
  %7294 = vrot.lane.b32.xlu0 %v7258, 48
  %v7295 = vpop.permute.xlu0 %7294
  %7296 = vrot.lane.b32.xlu0 %v7259, 48
  %v7297 = vpop.permute.xlu0 %7296
  %7298 = vrot.lane.b32.xlu0 %v7260, 48
  %v7299 = vpop.permute.xlu0 %7298
  %7300 = vrot.lane.b32.xlu0 %v7261, 48
  %v7301 = vpop.permute.xlu0 %7300
  %7302 = vrot.lane.b32.xlu0 %v7262, 48
  %v7303 = vpop.permute.xlu0 %7302
  %7304 = vrot.lane.b32.xlu0 %v7263, 48
  %v7305 = vpop.permute.xlu0 %7304
  %7306 = vrot.lane.b32.xlu0 %v7264, 48
  %v7307 = vpop.permute.xlu0 %7306
  %7308 = vrot.lane.b32.xlu0 %v7265, 48
  %v7309 = vpop.permute.xlu0 %7308
  %7310 = vrot.lane.b32.xlu0 %v7266, 48
  %v7311 = vpop.permute.xlu0 %7310
  %7312 = vrot.lane.b32.xlu0 %v7267, 48
  %v7313 = vpop.permute.xlu0 %7312
  %7314 = vrot.lane.b32.xlu0 %v7268, 48
  %v7315 = vpop.permute.xlu0 %7314
  %7316 = vrot.lane.b32.xlu0 %v7269, 48
  %v7317 = vpop.permute.xlu0 %7316
  %7334 = vst.msk [vmem:[#allocation2] sm:$0xf] %vm1085, %v7287
  %7335 = vst.msk [vmem:[#allocation2 + $0x4] sm:$0xf] %vm1085, %v7289
  %7336 = vst.msk [vmem:[#allocation2 + $0x8] sm:$0xf] %vm1085, %v7291
  %7337 = vst.msk [vmem:[#allocation2 + $0xc] sm:$0xf] %vm1085, %v7293
  %7338 = vst.msk [vmem:[#allocation2 + $0x10] sm:$0xf] %vm1085, %v7295
  %7339 = vst.msk [vmem:[#allocation2 + $0x14] sm:$0xf] %vm1085, %v7297
  %7340 = vst.msk [vmem:[#allocation2 + $0x18] sm:$0xf] %vm1085, %v7299
  %7341 = vst.msk [vmem:[#allocation2 + $0x1c] sm:$0xf] %vm1085, %v7301
  %7342 = vst.msk [vmem:[#allocation2 + $0x20] sm:$0xf] %vm1085, %v7303
  %7343 = vst.msk [vmem:[#allocation2 + $0x24] sm:$0xf] %vm1085, %v7305
  %7344 = vst.msk [vmem:[#allocation2 + $0x28] sm:$0xf] %vm1085, %v7307
  %7345 = vst.msk [vmem:[#allocation2 + $0x2c] sm:$0xf] %vm1085, %v7309
  %7346 = vst.msk [vmem:[#allocation2 + $0x30] sm:$0xf] %vm1085, %v7311
  %7347 = vst.msk [vmem:[#allocation2 + $0x34] sm:$0xf] %vm1085, %v7313
  %7348 = vst.msk [vmem:[#allocation2 + $0x38] sm:$0xf] %vm1085, %v7315
  %7349 = vst.msk [vmem:[#allocation2 + $0x3c] sm:$0xf] %vm1085, %v7317
  %v7350 = vld [vmem:[%s5091] sm:$0xf]
  %v7351 = vld [vmem:[%s5091 + $0x4] sm:$0x1]
  %v7352 = vld [vmem:[%s5091 + $0x8] sm:$0xf]
  %v7353 = vld [vmem:[%s5091 + $0xc] sm:$0x1]
  %v7354 = vld [vmem:[%s5091 + $0x10] sm:$0xf]
  %v7355 = vld [vmem:[%s5091 + $0x14] sm:$0x1]
  %v7356 = vld [vmem:[%s5091 + $0x18] sm:$0xf]
  %v7357 = vld [vmem:[%s5091 + $0x1c] sm:$0x1]
  %v7358 = vld [vmem:[%s5091 + $0x20] sm:$0xf]
  %v7359 = vld [vmem:[%s5091 + $0x24] sm:$0x1]
  %v7360 = vld [vmem:[%s5091 + $0x28] sm:$0xf]
  %v7361 = vld [vmem:[%s5091 + $0x2c] sm:$0x1]
  %v7362 = vld [vmem:[%s5091 + $0x30] sm:$0xf]
  %v7363 = vld [vmem:[%s5091 + $0x34] sm:$0x1]
  %v7364 = vld [vmem:[%s5091 + $0x38] sm:$0xf]
  %v7365 = vld [vmem:[%s5091 + $0x3c] sm:$0x1]
  %v7366 = vld [vmem:[%s5091 + $0x48] sm:$0xf]
  %v7367 = vld [vmem:[%s5091 + $0x4c] sm:$0x1]
  %v7368 = vld [vmem:[%s5091 + $0x50] sm:$0xf]
  %v7369 = vld [vmem:[%s5091 + $0x54] sm:$0x1]
  %v7370 = vld [vmem:[%s5091 + $0x58] sm:$0xf]
  %v7371 = vld [vmem:[%s5091 + $0x5c] sm:$0x1]
  %v7372 = vld [vmem:[%s5091 + $0x60] sm:$0xf]
  %v7373 = vld [vmem:[%s5091 + $0x64] sm:$0x1]
  %v7374 = vld [vmem:[%s5091 + $0x68] sm:$0xf]
  %v7375 = vld [vmem:[%s5091 + $0x6c] sm:$0x1]
  %v7376 = vld [vmem:[%s5091 + $0x70] sm:$0xf]
  %v7377 = vld [vmem:[%s5091 + $0x74] sm:$0x1]
  %v7378 = vld [vmem:[%s5091 + $0x78] sm:$0xf]
  %v7379 = vld [vmem:[%s5091 + $0x7c] sm:$0x1]
  %v7380 = vld [vmem:[%s5091 + $0x80] sm:$0xf]
  %v7381 = vld [vmem:[%s5091 + $0x84] sm:$0x1]
  %v7383 = vshrl.u32 %v7350, 16
  %v7385 = vrot.slane %v7383, 4
  %v7386 = vshll.u32 %v7350, 16
  %v7388 = vrot.slane %v7386, 5
  %v7389 = vor.u32 %v7385, %v7388
  %v7390 = vrot.slane %v7389, 4
  %v7392 = vshll.u32 %v7351, 16
  %v7394 = vrot.slane %v7392, 5
  %v7395 = vsel %vm197, %v7390, %v7394
  %v7397 = vshrl.u32 %v7352, 16
  %v7399 = vrot.slane %v7397, 4
  %v7400 = vshll.u32 %v7352, 16
  %v7402 = vrot.slane %v7400, 5
  %v7403 = vor.u32 %v7399, %v7402
  %v7404 = vrot.slane %v7403, 4
  %v7406 = vshll.u32 %v7353, 16
  %v7408 = vrot.slane %v7406, 5
  %v7409 = vsel %vm197, %v7404, %v7408
  %v7411 = vshrl.u32 %v7354, 16
  %v7413 = vrot.slane %v7411, 4
  %v7414 = vshll.u32 %v7354, 16
  %v7416 = vrot.slane %v7414, 5
  %v7417 = vor.u32 %v7413, %v7416
  %v7418 = vrot.slane %v7417, 4
  %v7420 = vshll.u32 %v7355, 16
  %v7422 = vrot.slane %v7420, 5
  %v7423 = vsel %vm197, %v7418, %v7422
  %v7425 = vshrl.u32 %v7356, 16
  %v7427 = vrot.slane %v7425, 4
  %v7428 = vshll.u32 %v7356, 16
  %v7430 = vrot.slane %v7428, 5
  %v7431 = vor.u32 %v7427, %v7430
  %v7432 = vrot.slane %v7431, 4
  %v7434 = vshll.u32 %v7357, 16
  %v7436 = vrot.slane %v7434, 5
  %v7437 = vsel %vm197, %v7432, %v7436
  %v7439 = vshrl.u32 %v7358, 16
  %v7441 = vrot.slane %v7439, 4
  %v7442 = vshll.u32 %v7358, 16
  %v7444 = vrot.slane %v7442, 5
  %v7445 = vor.u32 %v7441, %v7444
  %v7446 = vrot.slane %v7445, 4
  %v7448 = vshll.u32 %v7359, 16
  %v7450 = vrot.slane %v7448, 5
  %v7451 = vsel %vm197, %v7446, %v7450
  %v7453 = vshrl.u32 %v7360, 16
  %v7455 = vrot.slane %v7453, 4
  %v7456 = vshll.u32 %v7360, 16
  %v7458 = vrot.slane %v7456, 5
  %v7459 = vor.u32 %v7455, %v7458
  %v7460 = vrot.slane %v7459, 4
  %v7462 = vshll.u32 %v7361, 16
  %v7464 = vrot.slane %v7462, 5
  %v7465 = vsel %vm197, %v7460, %v7464
  %v7467 = vshrl.u32 %v7362, 16
  %v7469 = vrot.slane %v7467, 4
  %v7470 = vshll.u32 %v7362, 16
  %v7472 = vrot.slane %v7470, 5
  %v7473 = vor.u32 %v7469, %v7472
  %v7474 = vrot.slane %v7473, 4
  %v7476 = vshll.u32 %v7363, 16
  %v7478 = vrot.slane %v7476, 5
  %v7479 = vsel %vm197, %v7474, %v7478
  %v7481 = vshrl.u32 %v7364, 16
  %v7483 = vrot.slane %v7481, 4
  %v7484 = vshll.u32 %v7364, 16
  %v7486 = vrot.slane %v7484, 5
  %v7487 = vor.u32 %v7483, %v7486
  %v7488 = vrot.slane %v7487, 4
  %v7490 = vshll.u32 %v7365, 16
  %v7492 = vrot.slane %v7490, 5
  %v7493 = vsel %vm197, %v7488, %v7492
  %v7495 = vshrl.u32 %v7366, 16
  %v7497 = vrot.slane %v7495, 4
  %v7498 = vshll.u32 %v7366, 16
  %v7500 = vrot.slane %v7498, 5
  %v7501 = vor.u32 %v7497, %v7500
  %v7502 = vrot.slane %v7501, 4
  %v7504 = vshll.u32 %v7367, 16
  %v7506 = vrot.slane %v7504, 5
  %v7507 = vsel %vm197, %v7502, %v7506
  %v7509 = vshrl.u32 %v7368, 16
  %v7511 = vrot.slane %v7509, 4
  %v7512 = vshll.u32 %v7368, 16
  %v7514 = vrot.slane %v7512, 5
  %v7515 = vor.u32 %v7511, %v7514
  %v7516 = vrot.slane %v7515, 4
  %v7518 = vshll.u32 %v7369, 16
  %v7520 = vrot.slane %v7518, 5
  %v7521 = vsel %vm197, %v7516, %v7520
  %v7523 = vshrl.u32 %v7370, 16
  %v7525 = vrot.slane %v7523, 4
  %v7526 = vshll.u32 %v7370, 16
  %v7528 = vrot.slane %v7526, 5
  %v7529 = vor.u32 %v7525, %v7528
  %v7530 = vrot.slane %v7529, 4
  %v7532 = vshll.u32 %v7371, 16
  %v7534 = vrot.slane %v7532, 5
  %v7535 = vsel %vm197, %v7530, %v7534
  %v7537 = vshrl.u32 %v7372, 16
  %v7539 = vrot.slane %v7537, 4
  %v7540 = vshll.u32 %v7372, 16
  %v7542 = vrot.slane %v7540, 5
  %v7543 = vor.u32 %v7539, %v7542
  %v7544 = vrot.slane %v7543, 4
  %v7546 = vshll.u32 %v7373, 16
  %v7548 = vrot.slane %v7546, 5
  %v7549 = vsel %vm197, %v7544, %v7548
  %v7551 = vshrl.u32 %v7374, 16
  %v7553 = vrot.slane %v7551, 4
  %v7554 = vshll.u32 %v7374, 16
  %v7556 = vrot.slane %v7554, 5
  %v7557 = vor.u32 %v7553, %v7556
  %v7558 = vrot.slane %v7557, 4
  %v7560 = vshll.u32 %v7375, 16
  %v7562 = vrot.slane %v7560, 5
  %v7563 = vsel %vm197, %v7558, %v7562
  %v7565 = vshrl.u32 %v7376, 16
  %v7567 = vrot.slane %v7565, 4
  %v7568 = vshll.u32 %v7376, 16
  %v7570 = vrot.slane %v7568, 5
  %v7571 = vor.u32 %v7567, %v7570
  %v7572 = vrot.slane %v7571, 4
  %v7574 = vshll.u32 %v7377, 16
  %v7576 = vrot.slane %v7574, 5
  %v7577 = vsel %vm197, %v7572, %v7576
  %v7579 = vshrl.u32 %v7378, 16
  %v7581 = vrot.slane %v7579, 4
  %v7582 = vshll.u32 %v7378, 16
  %v7584 = vrot.slane %v7582, 5
  %v7585 = vor.u32 %v7581, %v7584
  %v7586 = vrot.slane %v7585, 4
  %v7588 = vshll.u32 %v7379, 16
  %v7590 = vrot.slane %v7588, 5
  %v7591 = vsel %vm197, %v7586, %v7590
  %v7593 = vshrl.u32 %v7380, 16
  %v7595 = vrot.slane %v7593, 4
  %v7596 = vshll.u32 %v7380, 16
  %v7598 = vrot.slane %v7596, 5
  %v7599 = vor.u32 %v7595, %v7598
  %v7600 = vrot.slane %v7599, 4
  %v7602 = vshll.u32 %v7381, 16
  %v7604 = vrot.slane %v7602, 5
  %v7605 = vsel %vm197, %v7600, %v7604
  %7606 = vrot.lane.b32.xlu0 %v7395, 56
  %v7607 = vpop.permute.xlu0 %7606
  %7608 = vrot.lane.b32.xlu0 %v7409, 56
  %v7609 = vpop.permute.xlu0 %7608
  %7610 = vrot.lane.b32.xlu0 %v7423, 56
  %v7611 = vpop.permute.xlu0 %7610
  %7612 = vrot.lane.b32.xlu0 %v7437, 56
  %v7613 = vpop.permute.xlu0 %7612
  %7614 = vrot.lane.b32.xlu0 %v7451, 56
  %v7615 = vpop.permute.xlu0 %7614
  %7616 = vrot.lane.b32.xlu0 %v7465, 56
  %v7617 = vpop.permute.xlu0 %7616
  %7618 = vrot.lane.b32.xlu0 %v7479, 56
  %v7619 = vpop.permute.xlu0 %7618
  %7620 = vrot.lane.b32.xlu0 %v7493, 56
  %v7621 = vpop.permute.xlu0 %7620
  %7622 = vrot.lane.b32.xlu0 %v7507, 56
  %v7623 = vpop.permute.xlu0 %7622
  %7624 = vrot.lane.b32.xlu0 %v7521, 56
  %v7625 = vpop.permute.xlu0 %7624
  %7626 = vrot.lane.b32.xlu0 %v7535, 56
  %v7627 = vpop.permute.xlu0 %7626
  %7628 = vrot.lane.b32.xlu0 %v7549, 56
  %v7629 = vpop.permute.xlu0 %7628
  %7630 = vrot.lane.b32.xlu0 %v7563, 56
  %v7631 = vpop.permute.xlu0 %7630
  %7632 = vrot.lane.b32.xlu0 %v7577, 56
  %v7633 = vpop.permute.xlu0 %7632
  %7634 = vrot.lane.b32.xlu0 %v7591, 56
  %v7635 = vpop.permute.xlu0 %7634
  %7636 = vrot.lane.b32.xlu0 %v7605, 56
  %v7637 = vpop.permute.xlu0 %7636
  %7654 = vst.msk [vmem:[#allocation2] sm:$0xf] %vm1183, %v7607
  %7655 = vst.msk [vmem:[#allocation2 + $0x4] sm:$0xf] %vm1183, %v7609
  %7656 = vst.msk [vmem:[#allocation2 + $0x8] sm:$0xf] %vm1183, %v7611
  %7657 = vst.msk [vmem:[#allocation2 + $0xc] sm:$0xf] %vm1183, %v7613
  %7658 = vst.msk [vmem:[#allocation2 + $0x10] sm:$0xf] %vm1183, %v7615
  %7659 = vst.msk [vmem:[#allocation2 + $0x14] sm:$0xf] %vm1183, %v7617
  %7660 = vst.msk [vmem:[#allocation2 + $0x18] sm:$0xf] %vm1183, %v7619
  %7661 = vst.msk [vmem:[#allocation2 + $0x1c] sm:$0xf] %vm1183, %v7621
  %7662 = vst.msk [vmem:[#allocation2 + $0x20] sm:$0xf] %vm1183, %v7623
  %7663 = vst.msk [vmem:[#allocation2 + $0x24] sm:$0xf] %vm1183, %v7625
  %7664 = vst.msk [vmem:[#allocation2 + $0x28] sm:$0xf] %vm1183, %v7627
  %7665 = vst.msk [vmem:[#allocation2 + $0x2c] sm:$0xf] %vm1183, %v7629
  %7666 = vst.msk [vmem:[#allocation2 + $0x30] sm:$0xf] %vm1183, %v7631
  %7667 = vst.msk [vmem:[#allocation2 + $0x34] sm:$0xf] %vm1183, %v7633
  %7668 = vst.msk [vmem:[#allocation2 + $0x38] sm:$0xf] %vm1183, %v7635
  %7669 = vst.msk [vmem:[#allocation2 + $0x3c] sm:$0xf] %vm1183, %v7637
  %v7670 = vld [vmem:[%s5188] sm:$0xf]
  %v7671 = vld [vmem:[%s5188 + $0x4] sm:$0x1]
  %v7672 = vld [vmem:[%s5188 + $0x8] sm:$0xf]
  %v7673 = vld [vmem:[%s5188 + $0xc] sm:$0x1]
  %v7674 = vld [vmem:[%s5188 + $0x10] sm:$0xf]
  %v7675 = vld [vmem:[%s5188 + $0x14] sm:$0x1]
  %v7676 = vld [vmem:[%s5188 + $0x18] sm:$0xf]
  %v7677 = vld [vmem:[%s5188 + $0x1c] sm:$0x1]
  %v7678 = vld [vmem:[%s5188 + $0x20] sm:$0xf]
  %v7679 = vld [vmem:[%s5188 + $0x24] sm:$0x1]
  %v7680 = vld [vmem:[%s5188 + $0x28] sm:$0xf]
  %v7681 = vld [vmem:[%s5188 + $0x2c] sm:$0x1]
  %v7682 = vld [vmem:[%s5188 + $0x30] sm:$0xf]
  %v7683 = vld [vmem:[%s5188 + $0x34] sm:$0x1]
  %v7684 = vld [vmem:[%s5188 + $0x38] sm:$0xf]
  %v7685 = vld [vmem:[%s5188 + $0x3c] sm:$0x1]
  %v7686 = vld [vmem:[%s5188 + $0x48] sm:$0xf]
  %v7687 = vld [vmem:[%s5188 + $0x4c] sm:$0x1]
  %v7688 = vld [vmem:[%s5188 + $0x50] sm:$0xf]
  %v7689 = vld [vmem:[%s5188 + $0x54] sm:$0x1]
  %v7690 = vld [vmem:[%s5188 + $0x58] sm:$0xf]
  %v7691 = vld [vmem:[%s5188 + $0x5c] sm:$0x1]
  %v7692 = vld [vmem:[%s5188 + $0x60] sm:$0xf]
  %v7693 = vld [vmem:[%s5188 + $0x64] sm:$0x1]
  %v7694 = vld [vmem:[%s5188 + $0x68] sm:$0xf]
  %v7695 = vld [vmem:[%s5188 + $0x6c] sm:$0x1]
  %v7696 = vld [vmem:[%s5188 + $0x70] sm:$0xf]
  %v7697 = vld [vmem:[%s5188 + $0x74] sm:$0x1]
  %v7698 = vld [vmem:[%s5188 + $0x78] sm:$0xf]
  %v7699 = vld [vmem:[%s5188 + $0x7c] sm:$0x1]
  %v7700 = vld [vmem:[%s5188 + $0x80] sm:$0xf]
  %v7701 = vld [vmem:[%s5188 + $0x84] sm:$0x1]
  %v7703 = vshrl.u32 %v7670, 16
  %v7705 = vrot.slane %v7703, 4
  %v7706 = vshll.u32 %v7670, 16
  %v7708 = vrot.slane %v7706, 5
  %v7709 = vor.u32 %v7705, %v7708
  %v7710 = vrot.slane %v7709, 4
  %v7712 = vshll.u32 %v7671, 16
  %v7714 = vrot.slane %v7712, 5
  %v7715 = vsel %vm197, %v7710, %v7714
  %v7717 = vshrl.u32 %v7672, 16
  %v7719 = vrot.slane %v7717, 4
  %v7720 = vshll.u32 %v7672, 16
  %v7722 = vrot.slane %v7720, 5
  %v7723 = vor.u32 %v7719, %v7722
  %v7724 = vrot.slane %v7723, 4
  %v7726 = vshll.u32 %v7673, 16
  %v7728 = vrot.slane %v7726, 5
  %v7729 = vsel %vm197, %v7724, %v7728
  %v7731 = vshrl.u32 %v7674, 16
  %v7733 = vrot.slane %v7731, 4
  %v7734 = vshll.u32 %v7674, 16
  %v7736 = vrot.slane %v7734, 5
  %v7737 = vor.u32 %v7733, %v7736
  %v7738 = vrot.slane %v7737, 4
  %v7740 = vshll.u32 %v7675, 16
  %v7742 = vrot.slane %v7740, 5
  %v7743 = vsel %vm197, %v7738, %v7742
  %v7745 = vshrl.u32 %v7676, 16
  %v7747 = vrot.slane %v7745, 4
  %v7748 = vshll.u32 %v7676, 16
  %v7750 = vrot.slane %v7748, 5
  %v7751 = vor.u32 %v7747, %v7750
  %v7752 = vrot.slane %v7751, 4
  %v7754 = vshll.u32 %v7677, 16
  %v7756 = vrot.slane %v7754, 5
  %v7757 = vsel %vm197, %v7752, %v7756
  %v7759 = vshrl.u32 %v7678, 16
  %v7761 = vrot.slane %v7759, 4
  %v7762 = vshll.u32 %v7678, 16
  %v7764 = vrot.slane %v7762, 5
  %v7765 = vor.u32 %v7761, %v7764
  %v7766 = vrot.slane %v7765, 4
  %v7768 = vshll.u32 %v7679, 16
  %v7770 = vrot.slane %v7768, 5
  %v7771 = vsel %vm197, %v7766, %v7770
  %v7773 = vshrl.u32 %v7680, 16
  %v7775 = vrot.slane %v7773, 4
  %v7776 = vshll.u32 %v7680, 16
  %v7778 = vrot.slane %v7776, 5
  %v7779 = vor.u32 %v7775, %v7778
  %v7780 = vrot.slane %v7779, 4
  %v7782 = vshll.u32 %v7681, 16
  %v7784 = vrot.slane %v7782, 5
  %v7785 = vsel %vm197, %v7780, %v7784
  %v7787 = vshrl.u32 %v7682, 16
  %v7789 = vrot.slane %v7787, 4
  %v7790 = vshll.u32 %v7682, 16
  %v7792 = vrot.slane %v7790, 5
  %v7793 = vor.u32 %v7789, %v7792
  %v7794 = vrot.slane %v7793, 4
  %v7796 = vshll.u32 %v7683, 16
  %v7798 = vrot.slane %v7796, 5
  %v7799 = vsel %vm197, %v7794, %v7798
  %v7801 = vshrl.u32 %v7684, 16
  %v7803 = vrot.slane %v7801, 4
  %v7804 = vshll.u32 %v7684, 16
  %v7806 = vrot.slane %v7804, 5
  %v7807 = vor.u32 %v7803, %v7806
  %v7808 = vrot.slane %v7807, 4
  %v7810 = vshll.u32 %v7685, 16
  %v7812 = vrot.slane %v7810, 5
  %v7813 = vsel %vm197, %v7808, %v7812
  %v7815 = vshrl.u32 %v7686, 16
  %v7817 = vrot.slane %v7815, 4
  %v7818 = vshll.u32 %v7686, 16
  %v7820 = vrot.slane %v7818, 5
  %v7821 = vor.u32 %v7817, %v7820
  %v7822 = vrot.slane %v7821, 4
  %v7824 = vshll.u32 %v7687, 16
  %v7826 = vrot.slane %v7824, 5
  %v7827 = vsel %vm197, %v7822, %v7826
  %v7829 = vshrl.u32 %v7688, 16
  %v7831 = vrot.slane %v7829, 4
  %v7832 = vshll.u32 %v7688, 16
  %v7834 = vrot.slane %v7832, 5
  %v7835 = vor.u32 %v7831, %v7834
  %v7836 = vrot.slane %v7835, 4
  %v7838 = vshll.u32 %v7689, 16
  %v7840 = vrot.slane %v7838, 5
  %v7841 = vsel %vm197, %v7836, %v7840
  %v7843 = vshrl.u32 %v7690, 16
  %v7845 = vrot.slane %v7843, 4
  %v7846 = vshll.u32 %v7690, 16
  %v7848 = vrot.slane %v7846, 5
  %v7849 = vor.u32 %v7845, %v7848
  %v7850 = vrot.slane %v7849, 4
  %v7852 = vshll.u32 %v7691, 16
  %v7854 = vrot.slane %v7852, 5
  %v7855 = vsel %vm197, %v7850, %v7854
  %v7857 = vshrl.u32 %v7692, 16
  %v7859 = vrot.slane %v7857, 4
  %v7860 = vshll.u32 %v7692, 16
  %v7862 = vrot.slane %v7860, 5
  %v7863 = vor.u32 %v7859, %v7862
  %v7864 = vrot.slane %v7863, 4
  %v7866 = vshll.u32 %v7693, 16
  %v7868 = vrot.slane %v7866, 5
  %v7869 = vsel %vm197, %v7864, %v7868
  %v7871 = vshrl.u32 %v7694, 16
  %v7873 = vrot.slane %v7871, 4
  %v7874 = vshll.u32 %v7694, 16
  %v7876 = vrot.slane %v7874, 5
  %v7877 = vor.u32 %v7873, %v7876
  %v7878 = vrot.slane %v7877, 4
  %v7880 = vshll.u32 %v7695, 16
  %v7882 = vrot.slane %v7880, 5
  %v7883 = vsel %vm197, %v7878, %v7882
  %v7885 = vshrl.u32 %v7696, 16
  %v7887 = vrot.slane %v7885, 4
  %v7888 = vshll.u32 %v7696, 16
  %v7890 = vrot.slane %v7888, 5
  %v7891 = vor.u32 %v7887, %v7890
  %v7892 = vrot.slane %v7891, 4
  %v7894 = vshll.u32 %v7697, 16
  %v7896 = vrot.slane %v7894, 5
  %v7897 = vsel %vm197, %v7892, %v7896
  %v7899 = vshrl.u32 %v7698, 16
  %v7901 = vrot.slane %v7899, 4
  %v7902 = vshll.u32 %v7698, 16
  %v7904 = vrot.slane %v7902, 5
  %v7905 = vor.u32 %v7901, %v7904
  %v7906 = vrot.slane %v7905, 4
  %v7908 = vshll.u32 %v7699, 16
  %v7910 = vrot.slane %v7908, 5
  %v7911 = vsel %vm197, %v7906, %v7910
  %v7913 = vshrl.u32 %v7700, 16
  %v7915 = vrot.slane %v7913, 4
  %v7916 = vshll.u32 %v7700, 16
  %v7918 = vrot.slane %v7916, 5
  %v7919 = vor.u32 %v7915, %v7918
  %v7920 = vrot.slane %v7919, 4
  %v7922 = vshll.u32 %v7701, 16
  %v7924 = vrot.slane %v7922, 5
  %v7925 = vsel %vm197, %v7920, %v7924
  %7926 = vrot.lane.b32.xlu0 %v7715, 64
  %v7927 = vpop.permute.xlu0 %7926
  %7928 = vrot.lane.b32.xlu0 %v7729, 64
  %v7929 = vpop.permute.xlu0 %7928
  %7930 = vrot.lane.b32.xlu0 %v7743, 64
  %v7931 = vpop.permute.xlu0 %7930
  %7932 = vrot.lane.b32.xlu0 %v7757, 64
  %v7933 = vpop.permute.xlu0 %7932
  %7934 = vrot.lane.b32.xlu0 %v7771, 64
  %v7935 = vpop.permute.xlu0 %7934
  %7936 = vrot.lane.b32.xlu0 %v7785, 64
  %v7937 = vpop.permute.xlu0 %7936
  %7938 = vrot.lane.b32.xlu0 %v7799, 64
  %v7939 = vpop.permute.xlu0 %7938
  %7940 = vrot.lane.b32.xlu0 %v7813, 64
  %v7941 = vpop.permute.xlu0 %7940
  %7942 = vrot.lane.b32.xlu0 %v7827, 64
  %v7943 = vpop.permute.xlu0 %7942
  %7944 = vrot.lane.b32.xlu0 %v7841, 64
  %v7945 = vpop.permute.xlu0 %7944
  %7946 = vrot.lane.b32.xlu0 %v7855, 64
  %v7947 = vpop.permute.xlu0 %7946
  %7948 = vrot.lane.b32.xlu0 %v7869, 64
  %v7949 = vpop.permute.xlu0 %7948
  %7950 = vrot.lane.b32.xlu0 %v7883, 64
  %v7951 = vpop.permute.xlu0 %7950
  %7952 = vrot.lane.b32.xlu0 %v7897, 64
  %v7953 = vpop.permute.xlu0 %7952
  %7954 = vrot.lane.b32.xlu0 %v7911, 64
  %v7955 = vpop.permute.xlu0 %7954
  %7956 = vrot.lane.b32.xlu0 %v7925, 64
  %v7957 = vpop.permute.xlu0 %7956
  %7974 = vst.msk [vmem:[#allocation2] sm:$0xf] %vm1504, %v7927
  %7975 = vst.msk [vmem:[#allocation2 + $0x4] sm:$0xf] %vm1504, %v7929
  %7976 = vst.msk [vmem:[#allocation2 + $0x8] sm:$0xf] %vm1504, %v7931
  %7977 = vst.msk [vmem:[#allocation2 + $0xc] sm:$0xf] %vm1504, %v7933
  %7978 = vst.msk [vmem:[#allocation2 + $0x10] sm:$0xf] %vm1504, %v7935
  %7979 = vst.msk [vmem:[#allocation2 + $0x14] sm:$0xf] %vm1504, %v7937
  %7980 = vst.msk [vmem:[#allocation2 + $0x18] sm:$0xf] %vm1504, %v7939
  %7981 = vst.msk [vmem:[#allocation2 + $0x1c] sm:$0xf] %vm1504, %v7941
  %7982 = vst.msk [vmem:[#allocation2 + $0x20] sm:$0xf] %vm1504, %v7943
  %7983 = vst.msk [vmem:[#allocation2 + $0x24] sm:$0xf] %vm1504, %v7945
  %7984 = vst.msk [vmem:[#allocation2 + $0x28] sm:$0xf] %vm1504, %v7947
  %7985 = vst.msk [vmem:[#allocation2 + $0x2c] sm:$0xf] %vm1504, %v7949
  %7986 = vst.msk [vmem:[#allocation2 + $0x30] sm:$0xf] %vm1504, %v7951
  %7987 = vst.msk [vmem:[#allocation2 + $0x34] sm:$0xf] %vm1504, %v7953
  %7988 = vst.msk [vmem:[#allocation2 + $0x38] sm:$0xf] %vm1504, %v7955
  %7989 = vst.msk [vmem:[#allocation2 + $0x3c] sm:$0xf] %vm1504, %v7957
  %v7990 = vld [vmem:[#allocation2] sm:$0xf]
  %v7991 = vld [vmem:[#allocation2 + $0x4] sm:$0xf]
  %v7992 = vld [vmem:[#allocation2 + $0x8] sm:$0xf]
  %v7993 = vld [vmem:[#allocation2 + $0xc] sm:$0xf]
  %v7994 = vld [vmem:[#allocation2 + $0x10] sm:$0xf]
  %v7995 = vld [vmem:[#allocation2 + $0x14] sm:$0xf]
  %v7996 = vld [vmem:[#allocation2 + $0x18] sm:$0xf]
  %v7997 = vld [vmem:[#allocation2 + $0x1c] sm:$0xf]
  %v7998 = vld [vmem:[#allocation2 + $0x20] sm:$0xf]
  %v7999 = vld [vmem:[#allocation2 + $0x24] sm:$0xf]
  %v8000 = vld [vmem:[#allocation2 + $0x28] sm:$0xf]
  %v8001 = vld [vmem:[#allocation2 + $0x2c] sm:$0xf]
  %v8002 = vld [vmem:[#allocation2 + $0x30] sm:$0xf]
  %v8003 = vld [vmem:[#allocation2 + $0x34] sm:$0xf]
  %v8004 = vld [vmem:[#allocation2 + $0x38] sm:$0xf]
  %v8005 = vld [vmem:[#allocation2 + $0x3c] sm:$0xf]
  %v8006 = vld [vmem:[%s1] sm:$0xf]
  %v8007 = vld [vmem:[%s1 + $0x4] sm:$0xf]
  %v8008 = vld [vmem:[%s1 + $0x8] sm:$0xf]
  %v8009 = vld [vmem:[%s1 + $0xc] sm:$0xf]
  %v8010 = vld [vmem:[%s1 + $0x10] sm:$0xf]
  %v8011 = vld [vmem:[%s1 + $0x14] sm:$0xf]
  %v8012 = vld [vmem:[%s1 + $0x18] sm:$0xf]
  %v8013 = vld [vmem:[%s1 + $0x1c] sm:$0xf]
  %v8014 = vld [vmem:[%s1 + $0x20] sm:$0xf]
  %v8015 = vld [vmem:[%s1 + $0x24] sm:$0xf]
  %v8016 = vld [vmem:[%s1 + $0x28] sm:$0xf]
  %v8017 = vld [vmem:[%s1 + $0x2c] sm:$0xf]
  %v8018 = vld [vmem:[%s1 + $0x30] sm:$0xf]
  %v8019 = vld [vmem:[%s1 + $0x34] sm:$0xf]
  %v8020 = vld [vmem:[%s1 + $0x38] sm:$0xf]
  %v8021 = vld [vmem:[%s1 + $0x3c] sm:$0xf]
  %v8038 = vunpack.c.l.b16 %v7990
  %v8039 = vunpack.c.l.b16 %v7991
  %v8040 = vunpack.c.l.b16 %v7992
  %v8041 = vunpack.c.l.b16 %v7993
  %v8042 = vunpack.c.l.b16 %v7994
  %v8043 = vunpack.c.l.b16 %v7995
  %v8044 = vunpack.c.l.b16 %v7996
  %v8045 = vunpack.c.l.b16 %v7997
  %v8046 = vunpack.c.l.b16 %v7998
  %v8047 = vunpack.c.l.b16 %v7999
  %v8048 = vunpack.c.l.b16 %v8000
  %v8049 = vunpack.c.l.b16 %v8001
  %v8050 = vunpack.c.l.b16 %v8002
  %v8051 = vunpack.c.l.b16 %v8003
  %v8052 = vunpack.c.l.b16 %v8004
  %v8053 = vunpack.c.l.b16 %v8005
  %v8054 = vpack.c.b16 %v8039, %v8038
  %v8055 = vpack.c.b16 %v8041, %v8040
  %v8056 = vpack.c.b16 %v8043, %v8042
  %v8057 = vpack.c.b16 %v8045, %v8044
  %v8058 = vpack.c.b16 %v8047, %v8046
  %v8059 = vpack.c.b16 %v8049, %v8048
  %v8060 = vpack.c.b16 %v8051, %v8050
  %v8061 = vpack.c.b16 %v8053, %v8052
  %v8086 = vunpack.c.l.b16 %v8006
  %v8087 = vunpack.c.l.b16 %v8007
  %v8088 = vunpack.c.l.b16 %v8008
  %v8089 = vunpack.c.l.b16 %v8009
  %v8090 = vunpack.c.l.b16 %v8010
  %v8091 = vunpack.c.l.b16 %v8011
  %v8092 = vunpack.c.l.b16 %v8012
  %v8093 = vunpack.c.l.b16 %v8013
  %v8094 = vunpack.c.l.b16 %v8014
  %v8095 = vunpack.c.l.b16 %v8015
  %v8096 = vunpack.c.l.b16 %v8016
  %v8097 = vunpack.c.l.b16 %v8017
  %v8098 = vunpack.c.l.b16 %v8018
  %v8099 = vunpack.c.l.b16 %v8019
  %v8100 = vunpack.c.l.b16 %v8020
  %v8101 = vunpack.c.l.b16 %v8021
  %v8102 = vpack.c.b16 %v8087, %v8086
  %v8103 = vpack.c.b16 %v8089, %v8088
  %v8104 = vpack.c.b16 %v8091, %v8090
  %v8105 = vpack.c.b16 %v8093, %v8092
  %v8106 = vpack.c.b16 %v8095, %v8094
  %v8107 = vpack.c.b16 %v8097, %v8096
  %v8108 = vpack.c.b16 %v8099, %v8098
  %v8109 = vpack.c.b16 %v8101, %v8100
  %8118 = vmatprep.subr.bf16.mxu0 0
  %8119 = vmatpush1.bf16.msra.mxu0 %v8109
  %8120 = vmatprep.subr.bf16.mxu0 0
  %8121 = vmatpush1.bf16.msra.mxu0 %v8108
  %8122 = vmatprep.subr.bf16.mxu0 0
  %8123 = vmatpush1.bf16.msra.mxu0 %v8107
  %8124 = vmatprep.subr.bf16.mxu0 0
  %8125 = vmatpush1.bf16.msra.mxu0 %v8106
  %8126 = vmatprep.subr.bf16.mxu0 0
  %8127 = vmatpush1.bf16.msra.mxu0 %v8105
  %8128 = vmatprep.subr.bf16.mxu0 0
  %8129 = vmatpush1.bf16.msra.mxu0 %v8104
  %8130 = vmatprep.subr.bf16.mxu0 0
  %8131 = vmatpush1.bf16.msra.mxu0 %v8103
  %8132 = vmatprep.subr.bf16.mxu0 0
  %8133 = vmatpush1.bf16.msra.mxu0 %v8102
  %8134 = vmatprep.subr.bf16.mxu0 0
  %8135 = vmatpush2.bf16.msra.mxu0 0
  %8136 = vmatprep.subr.bf16.mxu0 0
  %8137 = vmatpush2.bf16.msra.mxu0 0
  %8138 = vmatprep.subr.bf16.mxu0 0
  %8139 = vmatpush2.bf16.msra.mxu0 0
  %8140 = vmatprep.subr.bf16.mxu0 0
  %8141 = vmatpush2.bf16.msra.mxu0 0
  %8142 = vmatprep.subr.bf16.mxu0 0
  %8143 = vmatpush2.bf16.msra.mxu0 0
  %8144 = vmatprep.subr.bf16.mxu0 0
  %8145 = vmatpush2.bf16.msra.mxu0 0
  %8146 = vmatprep.subr.bf16.mxu0 0
  %8147 = vmatpush2.bf16.msra.mxu0 0
  %8148 = vmatprep.subr.bf16.mxu0 0
  %8149 = vmatpush2.bf16.msra.mxu0 0
  %8150 = vmatprep.mubr.bf16.mxu0 0
  %8151 = vmatmul.mubr.bf16.gmra.mxu0 %v8054
  %v8152 = vpop.f32.mrf.mxu0
  %v8153 = vadd.f32 0.0, %v8152
  %v8154 = vpop.f32.mrf.mxu0
  %v8155 = vpop.f32.mrf.mxu0
  %v8156 = vadd.f32 0.0, %v8155
  %v8157 = vpop.f32.mrf.mxu0
  %8158 = vmatprep.mubr.bf16.mxu0 0
  %8159 = vmatmul.mubr.bf16.gmra.mxu0 %v8055
  %v8160 = vpop.f32.mrf.mxu0
  %v8161 = vadd.f32 0.0, %v8160
  %v8162 = vpop.f32.mrf.mxu0
  %v8163 = vpop.f32.mrf.mxu0
  %v8164 = vadd.f32 0.0, %v8163
  %v8165 = vpop.f32.mrf.mxu0
  %8166 = vmatprep.mubr.bf16.mxu0 0
  %8167 = vmatmul.mubr.bf16.gmra.mxu0 %v8056
  %v8168 = vpop.f32.mrf.mxu0
  %v8169 = vadd.f32 0.0, %v8168
  %v8170 = vpop.f32.mrf.mxu0
  %v8171 = vpop.f32.mrf.mxu0
  %v8172 = vadd.f32 0.0, %v8171
  %v8173 = vpop.f32.mrf.mxu0
  %8174 = vmatprep.mubr.bf16.mxu0 0
  %8175 = vmatmul.mubr.bf16.gmra.mxu0 %v8057
  %v8176 = vpop.f32.mrf.mxu0
  %v8177 = vadd.f32 0.0, %v8176
  %v8178 = vpop.f32.mrf.mxu0
  %v8179 = vpop.f32.mrf.mxu0
  %v8180 = vadd.f32 0.0, %v8179
  %v8181 = vpop.f32.mrf.mxu0
  %8182 = vmatprep.mubr.bf16.mxu0 0
  %8183 = vmatmul.mubr.bf16.gmra.mxu0 %v8058
  %v8184 = vpop.f32.mrf.mxu0
  %v8185 = vadd.f32 0.0, %v8184
  %v8186 = vpop.f32.mrf.mxu0
  %v8187 = vpop.f32.mrf.mxu0
  %v8188 = vadd.f32 0.0, %v8187
  %v8189 = vpop.f32.mrf.mxu0
  %8190 = vmatprep.mubr.bf16.mxu0 0
  %8191 = vmatmul.mubr.bf16.gmra.mxu0 %v8059
  %v8192 = vpop.f32.mrf.mxu0
  %v8193 = vadd.f32 0.0, %v8192
  %v8194 = vpop.f32.mrf.mxu0
  %v8195 = vpop.f32.mrf.mxu0
  %v8196 = vadd.f32 0.0, %v8195
  %v8197 = vpop.f32.mrf.mxu0
  %8198 = vmatprep.mubr.bf16.mxu0 0
  %8199 = vmatmul.mubr.bf16.gmra.mxu0 %v8060
  %v8200 = vpop.f32.mrf.mxu0
  %v8201 = vadd.f32 0.0, %v8200
  %v8202 = vpop.f32.mrf.mxu0
  %v8203 = vpop.f32.mrf.mxu0
  %v8204 = vadd.f32 0.0, %v8203
  %v8205 = vpop.f32.mrf.mxu0
  %8206 = vmatprep.mubr.bf16.mxu0 0
  %8207 = vmatmul.mubr.bf16.gmra.mxu0 %v8061
  %v8208 = vpop.f32.mrf.mxu0
  %v8209 = vadd.f32 0.0, %v8208
  %v8210 = vpop.f32.mrf.mxu0
  %v8211 = vpop.f32.mrf.mxu0
  %v8212 = vadd.f32 0.0, %v8211
  %v8213 = vpop.f32.mrf.mxu0
  %8214 = vdwg.mxu0
  %v8215 = vmax.f32 %v5830, %v8153
  %v8216 = vmax.f32 %v5831, %v8156
  %v8217 = vmax.f32 %v5832, %v8161
  %v8218 = vmax.f32 %v5833, %v8164
  %v8219 = vmax.f32 %v5834, %v8169
  %v8220 = vmax.f32 %v5835, %v8172
  %v8221 = vmax.f32 %v5836, %v8177
  %v8222 = vmax.f32 %v5837, %v8180
  %v8223 = vmax.f32 %v5838, %v8185
  %v8224 = vmax.f32 %v5839, %v8188
  %v8225 = vmax.f32 %v5840, %v8193
  %v8226 = vmax.f32 %v5841, %v8196
  %v8227 = vmax.f32 %v5842, %v8201
  %v8228 = vmax.f32 %v5843, %v8204
  %v8229 = vmax.f32 %v5844, %v8209
  %v8230 = vmax.f32 %v5845, %v8212
  %v8231 = vpack.c.bf16 %v8216, %v8215
  %v8232 = vpack.c.bf16 %v8218, %v8217
  %v8233 = vpack.c.bf16 %v8220, %v8219
  %v8234 = vpack.c.bf16 %v8222, %v8221
  %v8235 = vpack.c.bf16 %v8224, %v8223
  %v8236 = vpack.c.bf16 %v8226, %v8225
  %v8237 = vpack.c.bf16 %v8228, %v8227
  %v8238 = vpack.c.bf16 %v8230, %v8229
  %v8247 = vunpack.c.l.b16 %v8231
  %v8248 = vunpack.c.h.b16 %v8231
  %v8249 = vunpack.c.l.b16 %v8232
  %v8250 = vunpack.c.h.b16 %v8232
  %v8251 = vunpack.c.l.b16 %v8233
  %v8252 = vunpack.c.h.b16 %v8233
  %v8253 = vunpack.c.l.b16 %v8234
  %v8254 = vunpack.c.h.b16 %v8234
  %v8255 = vunpack.c.l.b16 %v8235
  %v8256 = vunpack.c.h.b16 %v8235
  %v8257 = vunpack.c.l.b16 %v8236
  %v8258 = vunpack.c.h.b16 %v8236
  %v8259 = vunpack.c.l.b16 %v8237
  %v8260 = vunpack.c.h.b16 %v8237
  %v8261 = vunpack.c.l.b16 %v8238
  %v8262 = vunpack.c.h.b16 %v8238
  %v8263 = vpack.c.b16 %v8247, %v8247
  %v8264 = vpack.c.b16 %v8248, %v8248
  %v8265 = vpack.c.b16 %v8249, %v8249
  %v8266 = vpack.c.b16 %v8250, %v8250
  %v8267 = vpack.c.b16 %v8251, %v8251
  %v8268 = vpack.c.b16 %v8252, %v8252
  %v8269 = vpack.c.b16 %v8253, %v8253
  %v8270 = vpack.c.b16 %v8254, %v8254
  %v8271 = vpack.c.b16 %v8255, %v8255
  %v8272 = vpack.c.b16 %v8256, %v8256
  %v8273 = vpack.c.b16 %v8257, %v8257
  %v8274 = vpack.c.b16 %v8258, %v8258
  %v8275 = vpack.c.b16 %v8259, %v8259
  %v8276 = vpack.c.b16 %v8260, %v8260
  %v8277 = vpack.c.b16 %v8261, %v8261
  %v8278 = vpack.c.b16 %v8262, %v8262
  %8295 = vst [vmem:[%s2] sm:$0xf] %v8263
  %8296 = vst [vmem:[%s2 + $0x4] sm:$0xf] %v8264
  %8297 = vst [vmem:[%s2 + $0x8] sm:$0xf] %v8265
  %8298 = vst [vmem:[%s2 + $0xc] sm:$0xf] %v8266
  %8299 = vst [vmem:[%s2 + $0x10] sm:$0xf] %v8267
  %8300 = vst [vmem:[%s2 + $0x14] sm:$0xf] %v8268
  %8301 = vst [vmem:[%s2 + $0x18] sm:$0xf] %v8269
  %8302 = vst [vmem:[%s2 + $0x1c] sm:$0xf] %v8270
  %8303 = vst [vmem:[%s2 + $0x20] sm:$0xf] %v8271
  %8304 = vst [vmem:[%s2 + $0x24] sm:$0xf] %v8272
  %8305 = vst [vmem:[%s2 + $0x28] sm:$0xf] %v8273
  %8306 = vst [vmem:[%s2 + $0x2c] sm:$0xf] %v8274
  %8307 = vst [vmem:[%s2 + $0x30] sm:$0xf] %v8275
  %8308 = vst [vmem:[%s2 + $0x34] sm:$0xf] %v8276
  %8309 = vst [vmem:[%s2 + $0x38] sm:$0xf] %v8277
  %8310 = vst [vmem:[%s2 + $0x3c] sm:$0xf] %v8278
  %v8311 = vadd.f32 %v8215, %v8216
  %v8312 = vadd.f32 %v8311, %v8217
  %v8313 = vadd.f32 %v8312, %v8218
  %v8314 = vadd.f32 %v8313, %v8219
  %v8315 = vadd.f32 %v8314, %v8220
  %v8316 = vadd.f32 %v8315, %v8221
  %v8317 = vadd.f32 %v8316, %v8222
  %v8318 = vadd.f32 %v8317, %v8223
  %v8319 = vadd.f32 %v8318, %v8224
  %v8320 = vadd.f32 %v8319, %v8225
  %v8321 = vadd.f32 %v8320, %v8226
  %v8322 = vadd.f32 %v8321, %v8227
  %v8323 = vadd.f32 %v8322, %v8228
  %v8324 = vadd.f32 %v8323, %v8229
  %v8325 = vadd.f32 %v8324, %v8230
  %v8326 = vrot.slane %v8325, 4
  %v8327 = vadd.f32 %v8325, %v8326
  %v8328 = vrot.slane %v8327, 2
  %v8329 = vadd.f32 %v8327, %v8328
  %v8330 = vrot.slane %v8329, 1
  %v8331 = vadd.f32 %v8329, %v8330
  %8332 = vst [vmem:[%s3] sm:$0x1] %v8331
  %v8333 = vmul.f32 %v8215, %v8215
  %v8334 = vmul.f32 %v8216, %v8216
  %v8335 = vmul.f32 %v8217, %v8217
  %v8336 = vmul.f32 %v8218, %v8218
  %v8337 = vmul.f32 %v8219, %v8219
  %v8338 = vmul.f32 %v8220, %v8220
  %v8339 = vmul.f32 %v8221, %v8221
  %v8340 = vmul.f32 %v8222, %v8222
  %v8341 = vmul.f32 %v8223, %v8223
  %v8342 = vmul.f32 %v8224, %v8224
  %v8343 = vmul.f32 %v8225, %v8225
  %v8344 = vmul.f32 %v8226, %v8226
  %v8345 = vmul.f32 %v8227, %v8227
  %v8346 = vmul.f32 %v8228, %v8228
  %v8347 = vmul.f32 %v8229, %v8229
  %v8348 = vmul.f32 %v8230, %v8230
  %v8349 = vadd.f32 %v8333, %v8334
  %v8350 = vadd.f32 %v8349, %v8335
  %v8351 = vadd.f32 %v8350, %v8336
  %v8352 = vadd.f32 %v8351, %v8337
  %v8353 = vadd.f32 %v8352, %v8338
  %v8354 = vadd.f32 %v8353, %v8339
  %v8355 = vadd.f32 %v8354, %v8340
  %v8356 = vadd.f32 %v8355, %v8341
  %v8357 = vadd.f32 %v8356, %v8342
  %v8358 = vadd.f32 %v8357, %v8343
  %v8359 = vadd.f32 %v8358, %v8344
  %v8360 = vadd.f32 %v8359, %v8345
  %v8361 = vadd.f32 %v8360, %v8346
  %v8362 = vadd.f32 %v8361, %v8347
  %v8363 = vadd.f32 %v8362, %v8348
  %v8364 = vrot.slane %v8363, 4
  %v8365 = vadd.f32 %v8363, %v8364
  %v8366 = vrot.slane %v8365, 2
  %v8367 = vadd.f32 %v8365, %v8366
  %v8368 = vrot.slane %v8367, 1
  %v8369 = vadd.f32 %v8367, %v8368
  %8370 = vst [vmem:[%s4] sm:$0x1] %v8369
  // Predicated region
  $region10: #{convgroup_forward.3} parent=0 // pred_check
    _
  $region11: #{convgroup_forward.3} parent=0 // pred_check_branch
    %8372 = sbr.rel (0) target = $region13
  $region12: #{convgroup_forward.3} parent=0 // pred_region
    _
  $region13: #{convgroup_forward.3} parent=0 // pred_fallthru
    _
  // Predicated region
  $region14: #{convgroup_forward.3} parent=0 // pred_check
    _
  $region15: #{convgroup_forward.3} parent=0 // pred_check_branch
    %8374 = sbr.rel (0) target = $region17
  $region16: #{convgroup_forward.3} parent=0 // pred_region
    _
  $region17: #{convgroup_forward.3} parent=0 // pred_fallthru
    _
  // Predicated region
  $region18: #{convgroup_forward.3} parent=0 // pred_check
    _
  $region19: #{convgroup_forward.3} parent=0 // pred_check_branch
    %8376 = sbr.rel (0) target = $region21
  $region20: #{convgroup_forward.3} parent=0 // pred_region
    _
  $region21: #{convgroup_forward.3} parent=0 // pred_fallthru
    _
  // Predicated region
  $region22: #{convgroup_forward.3} parent=0 // pred_check
    _
  $region23: #{convgroup_forward.3} parent=0 // pred_check_branch
    %8378 = sbr.rel (0) target = $region25
  $region24: #{convgroup_forward.3} parent=0 // pred_region
    _
  $region25: #{convgroup_forward.3} parent=0 // pred_fallthru
    _
  // Predicated region
  $region26: #{convgroup_forward.3} parent=0 // pred_check
    _
  $region27: #{convgroup_forward.3} parent=0 // pred_check_branch
    %8380 = sbr.rel (0) target = $region29
  $region28: #{convgroup_forward.3} parent=0 // pred_region
    _
  $region29: #{convgroup_forward.3} parent=0 // pred_fallthru
    _
  // Predicated region
  $region30: #{convgroup_forward.3} parent=0 // pred_check
    _
  $region31: #{convgroup_forward.3} parent=0 // pred_check_branch
    %8382 = sbr.rel (0) target = $region33
  $region32: #{convgroup_forward.3} parent=0 // pred_region
    _
  $region33: #{convgroup_forward.3} parent=0 // pred_fallthru
    _

</llo_original>
